<compile_context>
chip_gen: v5e
topology: v5e:2x2
jax: 0.10.0
libtpu: 0.0.40
codegen_flags: <defaults>
</compile_context>

<pallas_src>
import jax
import jax.numpy as jnp
from jax import lax
from jax.experimental import pallas as pl

# ----------------------------- model dimensions ------------------------------
D_MODEL = 32
SEQ = 16
BATCH = 2              # "true" batch
N_AUG = 1              # module's n_augmentations
AUG = N_AUG + 1        # = 2 augmentation groups
BT = AUG * BATCH       # batch entering the layer = 4
N_HEADS = 4
HEAD_DIM = 8
HD_ALL = N_HEADS * HEAD_DIM      # 32
CONV_K = 5
CONV_PAD = (CONV_K - 1) // 2
FF_HID = 4 * D_MODEL             # FusedMLP hidden = 128
ML_HID = 4 * D_MODEL             # meta swiglu ff_in output (exp_f=2 -> d*2*2) = 128
ML_HALF = 2 * D_MODEL            # meta swiglu hidden after GLU split = 64
COS_HALF = D_MODEL // 2          # cosine-similarity half width = 16
M_ROWS = BT * SEQ                # 64 folded rows for all shared-weight matmuls
EPS = 1e-5

# dot_general dimension numbers (weights stay in PyTorch (out, in) layout)
_TRANS_B = (((1,), (1,)), ((), ()))   # A @ B^T           (forward with (out,in) weights)
_TRANS_A = (((0,), (0,)), ((), ()))   # A^T @ B           (row-contraction weight grads)

# ------------------------- packed small-parameter layout ----------------------
_V32_NAMES = ('ff1_ln_g', 'ff1_ln_b', 'ff1_b2', 'attn_ln_g', 'attn_ln_b',
              'conv_ln_g', 'conv_ln_b', 'dw_b', 'bn_g', 'bn_b', 'bn_mean', 'bn_var',
              'pw2_b', 'ff2_ln_g', 'ff2_ln_b', 'in_bo', 'pred_bo', 'u_bo',
              'ml_norm_out_g', 'ml_norm_out_b', 'norm_out_g', 'norm_out_b')
_V64_NAMES = ('pw1_b', 'pred_bi')
_V128_NAMES = ('ff1_b1', 'in_bi', 'u_bi')
_V32_IDX = {n: i for i, n in enumerate(_V32_NAMES)}
_V64_IDX = {n: i for i, n in enumerate(_V64_NAMES)}
_V128_IDX = {n: i for i, n in enumerate(_V128_NAMES)}


# --------------------------------- helpers -----------------------------------
def _ln(x, g, b, eps=EPS):
    mu = jnp.mean(x, axis=-1, keepdims=True)
    xc = x - mu
    var = jnp.mean(xc * xc, axis=-1, keepdims=True)
    return xc * jax.lax.rsqrt(var + eps) * g + b


def _dg(a, b, dims):
    return lax.dot_general(a, b, dims, preferred_element_type=jnp.float32)


# ------------------------------- Pallas kernel --------------------------------
def _conformer_layer_kernel(
    x_ref, scal_ref, v32_ref, v64_ref, v128_ref,
    rp_ref, f1w1_ref, f1w2_ref, qkvw_ref, outw_ref,
    pw1w_ref, dww_ref, pw2w_ref,
    inwi_ref, inwo_ref, pwi_ref, pwo_ref, lc_ref, uwi_ref, uwo_ref,
    out_ref, kv_ref,
):
    V32, V64, V128 = v32_ref[...], v64_ref[...], v128_ref[...]
    r32 = lambda n: V32[_V32_IDX[n]:_V32_IDX[n] + 1, :]
    r64 = lambda n: V64[_V64_IDX[n]:_V64_IDX[n] + 1, :]
    r128 = lambda n: V128[_V128_IDX[n]:_V128_IDX[n] + 1, :]

    rp_scale = scal_ref[0, 0]
    lr_abs = scal_ref[0, 1]
    res_scale = scal_ref[0, 2]

    x_in = x_ref[...].reshape(M_ROWS, D_MODEL)

    # ---- per-augmentation random projection, scaled --------------------------
    # TODO(synk): source lambda references undefined `p_in` (NameError in PyTorch);
    # implementing the evident intent `a.matmul(p) * random_proj_scale`.
    xs = [jnp.dot(x_in[a * BATCH * SEQ:(a + 1) * BATCH * SEQ, :], rp_ref[a],
                  preferred_element_type=jnp.float32) for a in range(AUG)]
    x = jnp.concatenate(xs, axis=0) * rp_scale                               # (64, 32)

    # ---- ff1: 0.5 * FusedMLP(LN(x)) + x --------------------------------------
    h = _ln(x, r32('ff1_ln_g'), r32('ff1_ln_b'))
    h = jnp.dot(h, f1w1_ref[...], preferred_element_type=jnp.float32) + r128('ff1_b1')
    h = jax.nn.gelu(h, approximate=True)
    h = jnp.dot(h, f1w2_ref[...], preferred_element_type=jnp.float32) + r32('ff1_b2')
    x = 0.5 * h + x

    # ---- attention (PreNorm; no mask / cache / rotary) ------------------------
    h = _ln(x, r32('attn_ln_g'), r32('attn_ln_b'))
    qkv = jnp.dot(h, qkvw_ref[...], preferred_element_type=jnp.float32)      # lanes (qkv,h,d)
    q = qkv[:, 0 * HD_ALL:1 * HD_ALL]
    k = qkv[:, 1 * HD_ALL:2 * HD_ALL]
    v = qkv[:, 2 * HD_ALL:3 * HD_ALL]
    # lane-dense KV-cache output: per row [k(h,d) | v(h,d)] -> reshaped outside
    kv_ref[...] = jnp.concatenate([k, v], axis=-1).reshape(BT, SEQ, 2 * HD_ALL)

    scale = 1.0 / (HEAD_DIM ** 0.5)
    heads = []
    for hi in range(N_HEADS):
        sl = slice(hi * HEAD_DIM, (hi + 1) * HEAD_DIM)
        qh = q[:, sl].reshape(BT, SEQ, HEAD_DIM)
        kh = k[:, sl].reshape(BT, SEQ, HEAD_DIM)
        vh = v[:, sl].reshape(BT, SEQ, HEAD_DIM)
        s = jnp.einsum('bik,bjk->bij', qh, kh,
                       preferred_element_type=jnp.float32) * scale           # (BT, N, N)
        s = s - jnp.max(s, axis=-1, keepdims=True)
        e = jnp.exp(s)
        p = e * pl.reciprocal(jnp.sum(e, axis=-1, keepdims=True), approx=True)
        heads.append(jnp.einsum('bij,bjd->bid', p, vh,
                                preferred_element_type=jnp.float32).reshape(M_ROWS, HEAD_DIM))
    o = jnp.concatenate(heads, axis=-1)                                       # (64, 32)
    x = jnp.dot(o, outw_ref[...], preferred_element_type=jnp.float32) + x

    # ---- conformer conv module: pw1 -> GLU -> depthwise -> BN -> swish -> pw2 --
    h = _ln(x, r32('conv_ln_g'), r32('conv_ln_b'))
    h = jnp.dot(h, pw1w_ref[...], preferred_element_type=jnp.float32) + r64('pw1_b')
    h = h[:, :D_MODEL] * jax.nn.sigmoid(h[:, D_MODEL:])                      # GLU -> (64, 32)

    # depthwise conv along time, 'same' padding: in-register shifts + edge masks
    t_idx = jax.lax.broadcasted_iota(jnp.int32, (BT, SEQ, D_MODEL), 1).reshape(M_ROWS, D_MODEL)
    wd = dww_ref[...]                                                         # (K, D)
    acc = h * wd[CONV_PAD:CONV_PAD + 1, :]
    for t in range(CONV_K):
        dt = t - CONV_PAD
        if dt == 0:
            continue
        if dt > 0:
            shifted = jnp.concatenate([h[dt:, :], jnp.zeros((dt, D_MODEL), jnp.float32)], axis=0)
        else:
            shifted = jnp.concatenate([jnp.zeros((-dt, D_MODEL), jnp.float32), h[:dt, :]], axis=0)
        valid = (t_idx + dt >= 0) & (t_idx + dt < SEQ)
        acc = acc + jnp.where(valid, shifted, 0.0) * wd[t:t + 1, :]
    h = acc + r32('dw_b')

    # batch-(re)norm in eval mode, swish, pointwise conv 2
    h = (h - r32('bn_mean')) * jax.lax.rsqrt(r32('bn_var') + EPS) * r32('bn_g') + r32('bn_b')
    h = h * jax.nn.sigmoid(h)
    h = jnp.dot(h, pw2w_ref[...], preferred_element_type=jnp.float32) + r32('pw2_b')
    x = h + x

    # ---- ff2 = Scale(0.5, PreNorm(LN, MetaLayer)) ------------------------------
    hff = _ln(x, r32('ff2_ln_g'), r32('ff2_ln_b'))                            # (64, 32)

    in_wi, in_wo = inwi_ref[...], inwo_ref[...]
    in_bi, in_bo = r128('in_bi'), r32('in_bo')
    p_wi, p_wo = pwi_ref[...], pwo_ref[...]
    p_bi, p_bo = r64('pred_bi'), r32('pred_bo')
    u_wi, u_wo = uwi_ref[...], uwo_ref[...]
    u_bi, u_bo = r128('u_bi'), r32('u_bo')
    lc0, lc1 = lc_ref[0], lc_ref[1]

    # inner_network.in_ff forward at the ORIGINAL params, all 64 rows at once
    pre = _dg(hff, in_wi, _TRANS_B) + in_bi                                   # (64, 128)
    a1, b1 = pre[:, :ML_HALF], pre[:, ML_HALF:]
    s1 = jax.nn.sigmoid(a1)
    za = a1 * s1                                                              # silu(a1)
    z = za * b1                                                               # (64, 64)
    hh = _dg(z, in_wo, _TRANS_B) + in_bo                                      # (64, 32)

    meta_rows = [None] * BT
    for b in range(BATCH):
        r0 = slice(b * SEQ, (b + 1) * SEQ)                  # aug 0 rows of true batch b
        r1 = slice((BATCH + b) * SEQ, (BATCH + b + 1) * SEQ)  # aug 1 rows of true batch b

        # --- inner-network tail: linear combine -> predictor -> cosine loss ----
        y = jnp.dot(hh[r0], lc0, preferred_element_type=jnp.float32) \
            + jnp.dot(hh[r1], lc1, preferred_element_type=jnp.float32)        # (16, 32)
        ppre = _dg(y, p_wi, _TRANS_B) + p_bi                                  # (16, 64)
        pa, pb = ppre[:, :D_MODEL], ppre[:, D_MODEL:]
        ps = jax.nn.sigmoid(pa)
        pza = pa * ps
        pz = pza * pb                                                         # (16, 32)
        pr = _dg(pz, p_wo, _TRANS_B) + p_bo                                   # (16, 32)
        a2, b2 = pr[:, :COS_HALF], pr[:, COS_HALF:]                           # (16, 16)
        na = jnp.sqrt(jnp.sum(a2 * a2, axis=-1, keepdims=True))
        nb = jnp.sqrt(jnp.sum(b2 * b2, axis=-1, keepdims=True))
        dt_ab = jnp.sum(a2 * b2, axis=-1, keepdims=True)
        prod = na * nb
        den = jnp.maximum(prod, 1e-8)

        # --- analytic VJP of L = mean(2 + 2*dot/den) w.r.t. in_ff params -------
        g_cos = 2.0 / SEQ
        g_dt = g_cos / den
        g_prod = jnp.where(prod > 1e-8, -g_cos * dt_ab / (den * den), 0.0)
        g_a2 = g_dt * b2 + (g_prod * nb / na) * a2
        g_b2 = g_dt * a2 + (g_prod * na / nb) * b2
        g_pr = jnp.concatenate([g_a2, g_b2], axis=-1)                         # (16, 32)
        g_pz = jnp.dot(g_pr, p_wo, preferred_element_type=jnp.float32)        # (16, 32)
        g_pb = g_pz * pza
        g_pa = (g_pz * pb) * ps * (1.0 + pa * (1.0 - ps))                     # silu'(pa)
        g_ppre = jnp.concatenate([g_pa, g_pb], axis=-1)                       # (16, 64)
        g_y = jnp.dot(g_ppre, p_wi, preferred_element_type=jnp.float32)       # (16, 32)
        g_hh = jnp.concatenate([_dg(g_y, lc0, _TRANS_B),
                                _dg(g_y, lc1, _TRANS_B)], axis=0)             # (32, 32)

        zb = jnp.concatenate([z[r0], z[r1]], axis=0)                          # (32, 64)
        xb = jnp.concatenate([hff[r0], hff[r1]], axis=0)                      # (32, 32)
        g_wo = _dg(g_hh, zb, _TRANS_A)                                        # (32, 64)
        g_bo = jnp.sum(g_hh, axis=0, keepdims=True)                           # (1, 32)
        g_z = jnp.dot(g_hh, in_wo, preferred_element_type=jnp.float32)        # (32, 64)
        zab = jnp.concatenate([za[r0], za[r1]], axis=0)
        b1b = jnp.concatenate([b1[r0], b1[r1]], axis=0)
        s1b = jnp.concatenate([s1[r0], s1[r1]], axis=0)
        a1b = jnp.concatenate([a1[r0], a1[r1]], axis=0)
        g_b1 = g_z * zab
        g_a1 = (g_z * b1b) * s1b * (1.0 + a1b * (1.0 - s1b))                  # silu'(a1)
        g_pre = jnp.concatenate([g_a1, g_b1], axis=-1)                        # (32, 128)
        g_wi = _dg(g_pre, xb, _TRANS_A)                                       # (128, 32)
        g_bi = jnp.sum(g_pre, axis=0, keepdims=True)                          # (1, 128)

        # --- meta update of u_ff and forward with the updated in_ff weights -----
        wi_u = u_wi - g_wi * lr_abs
        bi_u = u_bi - g_bi * lr_abs
        wo_u = u_wo - g_wo * lr_abs
        bo_u = u_bo - g_bo * lr_abs
        pre2 = _dg(xb, wi_u, _TRANS_B) + bi_u                                 # (32, 128)
        a3, b3 = pre2[:, :ML_HALF], pre2[:, ML_HALF:]
        z3 = (a3 * jax.nn.sigmoid(a3)) * b3
        ob = _dg(z3, wo_u, _TRANS_B) + bo_u                                   # (32, 32)
        meta_rows[b] = ob[:SEQ]                # aug 0  -> bt index b
        meta_rows[BATCH + b] = ob[SEQ:]        # aug 1  -> bt index BATCH + b

    meta = jnp.concatenate(meta_rows, axis=0)                                 # (64, 32)
    meta = _ln(meta, r32('ml_norm_out_g'), r32('ml_norm_out_b'))              # MetaLayer norm_out
    x = 0.5 * meta + x                                                        # Scale(0.5) + resid

    # ---- final norm + scaled input residual -----------------------------------
    out = _ln(x, r32('norm_out_g'), r32('norm_out_b')) + x_in * res_scale
    out_ref[...] = out.reshape(BT, SEQ, D_MODEL)


# ------------------------------ Pallas wrapper ---------------------------------
def conformer_layer_forward(kp, x, length):
    del length  # only the flash-attn varlen branch uses it; SDPA path ignores it
    out_shapes = (
        jax.ShapeDtypeStruct((BT, SEQ, D_MODEL), jnp.float32),        # layer output
        jax.ShapeDtypeStruct((BT, SEQ, 2 * HD_ALL), jnp.float32),     # lane-dense kv cache
    )
    out, kv_flat = pl.pallas_call(_conformer_layer_kernel, out_shape=out_shapes)(
        x, kp['scalars'], kp['vecs32'], kp['vecs64'], kp['vecs128'],
        kp['random_projections'], kp['ff1_w1'], kp['ff1_w2'], kp['qkv_w'], kp['attn_out_w'],
        kp['pw1_w'], kp['dw_w'], kp['pw2_w'],
        kp['in_wi'], kp['in_wo'], kp['pred_wi'], kp['pred_wo'], kp['lc'],
        kp['u_wi'], kp['u_wo'],
    )
    kv_to_cache = kv_flat.reshape(BT, SEQ, 2, N_HEADS, HEAD_DIM)
    return out, kv_to_cache


# ---------------------------------- params --------------------------------------
def init_params(key):
    """Parameters in PyTorch layouts (Linear weight = (out, in), Conv1d squeezed)."""
    keys = iter(jax.random.split(key, 24))

    def nrm(shape, scale):
        return (jax.random.normal(next(keys), shape) * scale).astype(jnp.float32)

    ones = lambda m: jnp.ones((m,), jnp.float32)
    zeros = lambda m: jnp.zeros((m,), jnp.float32)

    p = {}
    p['random_projections'] = nrm((AUG, D_MODEL, D_MODEL), 0.5)
    p['random_proj_scale'] = jnp.array(1.0, jnp.float32)
    p['residual_scale'] = jnp.array(1.0, jnp.float32)
    # ff1 (PreNorm LayerNorm + FusedMLP, bias_in_ff=True)
    p['ff1_ln_g'], p['ff1_ln_b'] = ones(D_MODEL), zeros(D_MODEL)
    p['ff1_w1'], p['ff1_b1'] = nrm((FF_HID, D_MODEL), 0.05), zeros(FF_HID)
    p['ff1_w2'], p['ff1_b2'] = nrm((D_MODEL, FF_HID), 0.05), zeros(D_MODEL)
    # attention (bias=False); qkv_proj output rows ordered '(h d qkv)' as in the source
    p['attn_ln_g'], p['attn_ln_b'] = ones(D_MODEL), zeros(D_MODEL)
    p['qkv_w'] = nrm((3 * N_HEADS * HEAD_DIM, D_MODEL), 0.05)
    p['attn_out_w'] = nrm((D_MODEL, N_HEADS * HEAD_DIM), 0.05)
    # conv module
    p['conv_ln_g'], p['conv_ln_b'] = ones(D_MODEL), zeros(D_MODEL)
    p['pw1_w'], p['pw1_b'] = nrm((2 * D_MODEL, D_MODEL), 0.05), zeros(2 * D_MODEL)
    p['dw_w'], p['dw_b'] = nrm((D_MODEL, CONV_K), 0.05), zeros(D_MODEL)
    p['bn_g'], p['bn_b'] = ones(D_MODEL), zeros(D_MODEL)
    p['bn_mean'], p['bn_var'] = zeros(D_MODEL), ones(D_MODEL)
    p['pw2_w'], p['pw2_b'] = nrm((D_MODEL, D_MODEL), 0.05), zeros(D_MODEL)
    # ff2 = Scale(0.5, PreNorm(LayerNorm, MetaLayer))
    p['ff2_ln_g'], p['ff2_ln_b'] = ones(D_MODEL), zeros(D_MODEL)
    p['ml_lr'] = jnp.array(1.0, jnp.float32)
    p['ml_norm_out_g'], p['ml_norm_out_b'] = ones(D_MODEL), zeros(D_MODEL)
    p['in_ff'] = dict(wi=nrm((ML_HID, D_MODEL), 0.05), bi=zeros(ML_HID),
                      wo=nrm((D_MODEL, ML_HALF), 0.05), bo=zeros(D_MODEL))
    p['lc'] = nrm((2, D_MODEL, D_MODEL), 0.1)
    p['pred'] = dict(wi=nrm((2 * D_MODEL, D_MODEL), 0.05), bi=zeros(2 * D_MODEL),
                     wo=nrm((D_MODEL, D_MODEL), 0.05), bo=zeros(D_MODEL))
    p['u_ff'] = dict(wi=nrm((ML_HID, D_MODEL), 0.05), bi=zeros(ML_HID),
                     wo=nrm((D_MODEL, ML_HALF), 0.05), bo=zeros(D_MODEL))
    # final norm
    p['norm_out_g'], p['norm_out_b'] = ones(D_MODEL), zeros(D_MODEL)
    return p


def prepare_kernel_params(p):
    """One-time conversion to kernel-friendly layouts (completely off the fwd path).

    Every static transpose / permutation happens here, and all the small per-channel
    vectors are packed into a handful of VMEM tiles so the kernel only has 20 operands.
    The meta weight matrices stay in PyTorch (out, in) layout and are consumed via
    trans_a / trans_b dot_general dimension numbers inside the kernel.
    """
    # reorder qkv output rows '(h d qkv)' -> '(qkv h d)' so q/k/v are contiguous lane
    # slabs ordered (h, d), matching rearrange('b n (h d qkv) -> qkv b n h d').
    qkv_w = jnp.transpose(
        p['qkv_w'].reshape(N_HEADS, HEAD_DIM, 3, D_MODEL), (2, 0, 1, 3)
    ).reshape(3 * HD_ALL, D_MODEL).T

    v32_src = {
        'ff1_ln_g': p['ff1_ln_g'], 'ff1_ln_b': p['ff1_ln_b'], 'ff1_b2': p['ff1_b2'],
        'attn_ln_g': p['attn_ln_g'], 'attn_ln_b': p['attn_ln_b'],
        'conv_ln_g': p['conv_ln_g'], 'conv_ln_b': p['conv_ln_b'],
        'dw_b': p['dw_b'], 'bn_g': p['bn_g'], 'bn_b': p['bn_b'],
        'bn_mean': p['bn_mean'], 'bn_var': p['bn_var'], 'pw2_b': p['pw2_b'],
        'ff2_ln_g': p['ff2_ln_g'], 'ff2_ln_b': p['ff2_ln_b'],
        'in_bo': p['in_ff']['bo'], 'pred_bo': p['pred']['bo'], 'u_bo': p['u_ff']['bo'],
        'ml_norm_out_g': p['ml_norm_out_g'], 'ml_norm_out_b': p['ml_norm_out_b'],
        'norm_out_g': p['norm_out_g'], 'norm_out_b': p['norm_out_b'],
    }
    v64_src = {'pw1_b': p['pw1_b'], 'pred_bi': p['pred']['bi']}
    v128_src = {'ff1_b1': p['ff1_b1'], 'in_bi': p['in_ff']['bi'], 'u_bi': p['u_ff']['bi']}

    vecs32 = jnp.stack([v32_src[n] for n in _V32_NAMES]).astype(jnp.float32)
    vecs64 = jnp.stack([v64_src[n] for n in _V64_NAMES]).astype(jnp.float32)
    vecs128 = jnp.stack([v128_src[n] for n in _V128_NAMES]).astype(jnp.float32)
    scalars = jnp.stack([p['random_proj_scale'], jnp.abs(p['ml_lr']),
                         p['residual_scale'], jnp.array(0.0, jnp.float32)]).reshape(1, 4)

    return {
        'scalars': scalars, 'vecs32': vecs32, 'vecs64': vecs64, 'vecs128': vecs128,
        'random_projections': p['random_projections'],
        'ff1_w1': p['ff1_w1'].T, 'ff1_w2': p['ff1_w2'].T,
        'qkv_w': qkv_w, 'attn_out_w': p['attn_out_w'].T,
        'pw1_w': p['pw1_w'].T, 'dw_w': p['dw_w'].T, 'pw2_w': p['pw2_w'].T,
        'in_wi': p['in_ff']['wi'], 'in_wo': p['in_ff']['wo'],
        'pred_wi': p['pred']['wi'], 'pred_wo': p['pred']['wo'],
        'lc': p['lc'],
        'u_wi': p['u_ff']['wi'], 'u_wo': p['u_ff']['wo'],
    }


# ----------------------------------- main ----------------------------------------
if __name__ == "__main__":
    key = jax.random.PRNGKey(0)
    pkey, xkey = jax.random.split(key)
    params = init_params(pkey)
    kparams = prepare_kernel_params(params)      # one-time layout prep, off the fwd path
    x = jax.random.normal(xkey, (BT, SEQ, D_MODEL), dtype=jnp.float32)
    length = jnp.full((BT,), SEQ, dtype=jnp.int32)

    fwd = jax.jit(conformer_layer_forward)
    out, kv_to_cache = fwd(kparams, x, length)
    out = jax.block_until_ready(out)
    kv_to_cache = jax.block_until_ready(kv_to_cache)

    assert out.shape == (BT, SEQ, D_MODEL)
    assert kv_to_cache.shape == (BT, SEQ, 2, N_HEADS, HEAD_DIM)
    assert bool(jnp.all(jnp.isfinite(out)))
    assert bool(jnp.all(jnp.isfinite(kv_to_cache)))
    print("KERNEL_OK")
</pallas_src>

<mosaic_0001>
module attributes {stable_mosaic.version = 11 : i64} {
  func.func @_conformer_layer_kernel(%arg0: memref<4x16x32xf32, #tpu.memory_space<vmem>>, %arg1: memref<1x4xf32, #tpu.memory_space<vmem>>, %arg2: memref<22x32xf32, #tpu.memory_space<vmem>>, %arg3: memref<2x64xf32, #tpu.memory_space<vmem>>, %arg4: memref<3x128xf32, #tpu.memory_space<vmem>>, %arg5: memref<2x32x32xf32, #tpu.memory_space<vmem>>, %arg6: memref<32x128xf32, #tpu.memory_space<vmem>>, %arg7: memref<128x32xf32, #tpu.memory_space<vmem>>, %arg8: memref<32x96xf32, #tpu.memory_space<vmem>>, %arg9: memref<32x32xf32, #tpu.memory_space<vmem>>, %arg10: memref<32x64xf32, #tpu.memory_space<vmem>>, %arg11: memref<5x32xf32, #tpu.memory_space<vmem>>, %arg12: memref<32x32xf32, #tpu.memory_space<vmem>>, %arg13: memref<128x32xf32, #tpu.memory_space<vmem>>, %arg14: memref<32x64xf32, #tpu.memory_space<vmem>>, %arg15: memref<64x32xf32, #tpu.memory_space<vmem>>, %arg16: memref<32x32xf32, #tpu.memory_space<vmem>>, %arg17: memref<2x32x32xf32, #tpu.memory_space<vmem>>, %arg18: memref<128x32xf32, #tpu.memory_space<vmem>>, %arg19: memref<32x64xf32, #tpu.memory_space<vmem>>, %arg20: memref<4x16x32xf32, #tpu.memory_space<vmem>>, %arg21: memref<4x16x64xf32, #tpu.memory_space<vmem>>) attributes {dimension_semantics = [], scalar_prefetch = 0 : i64, scratch_operands = 0 : i64, tpu.core_type = #tpu.core_type<tc>} {
    %c0 = arith.constant 0 : index
    %c0_0 = arith.constant 0 : index
    %0 = vector.load %arg2[%c0, %c0_0] : memref<22x32xf32, #tpu.memory_space<vmem>>, vector<22x32xf32>
    %c0_1 = arith.constant 0 : index
    %c0_2 = arith.constant 0 : index
    %1 = vector.load %arg3[%c0_1, %c0_2] : memref<2x64xf32, #tpu.memory_space<vmem>>, vector<2x64xf32>
    %c0_3 = arith.constant 0 : index
    %c0_4 = arith.constant 0 : index
    %2 = vector.load %arg4[%c0_3, %c0_4] : memref<3x128xf32, #tpu.memory_space<vmem>>, vector<3x128xf32>
    %c0_5 = arith.constant 0 : index
    %c0_6 = arith.constant 0 : index
    %3 = vector.load %arg1[%c0_5, %c0_6] : memref<1x4xf32, #tpu.memory_space<vmem>>, vector<1x1xf32>
    %4 = vector.extract %3[0, 0] : f32 from vector<1x1xf32>
    %c0_7 = arith.constant 0 : index
    %c1 = arith.constant 1 : index
    %5 = vector.load %arg1[%c0_7, %c1] : memref<1x4xf32, #tpu.memory_space<vmem>>, vector<1x1xf32>
    %6 = vector.extract %5[0, 0] : f32 from vector<1x1xf32>
    %c0_8 = arith.constant 0 : index
    %c2 = arith.constant 2 : index
    %7 = vector.load %arg1[%c0_8, %c2] : memref<1x4xf32, #tpu.memory_space<vmem>>, vector<1x1xf32>
    %8 = vector.extract %7[0, 0] : f32 from vector<1x1xf32>
    %c0_9 = arith.constant 0 : index
    %c0_10 = arith.constant 0 : index
    %c0_11 = arith.constant 0 : index
    %9 = vector.load %arg0[%c0_9, %c0_10, %c0_11] : memref<4x16x32xf32, #tpu.memory_space<vmem>>, vector<4x16x32xf32>
    %10 = vector.shape_cast %9 : vector<4x16x32xf32> to vector<64x32xf32>
    %11 = vector.extract_strided_slice %10 {offsets = [0, 0], sizes = [32, 32], strides = [1, 1]} : vector<64x32xf32> to vector<32x32xf32>
    %c0_12 = arith.constant 0 : index
    %c0_13 = arith.constant 0 : index
    %c0_14 = arith.constant 0 : index
    %12 = vector.load %arg5[%c0_12, %c0_13, %c0_14] : memref<2x32x32xf32, #tpu.memory_space<vmem>>, vector<1x32x32xf32>
    %13 = vector.shape_cast %12 : vector<1x32x32xf32> to vector<32x32xf32>
    %cst = arith.constant dense<0.000000e+00> : vector<32x32xf32>
    %14 = tpu.matmul %11, %13, %cst {dimension_numbers = #tpu.dot_dimension_numbers<[1], [0], [0], [1], [0, 0, 1, 1], [], []>} : vector<32x32xf32>, vector<32x32xf32>, vector<32x32xf32> -> vector<32x32xf32>
    %15 = vector.extract_strided_slice %10 {offsets = [32, 0], sizes = [32, 32], strides = [1, 1]} : vector<64x32xf32> to vector<32x32xf32>
    %c1_15 = arith.constant 1 : index
    %c0_16 = arith.constant 0 : index
    %c0_17 = arith.constant 0 : index
    %16 = vector.load %arg5[%c1_15, %c0_16, %c0_17] : memref<2x32x32xf32, #tpu.memory_space<vmem>>, vector<1x32x32xf32>
    %17 = vector.shape_cast %16 : vector<1x32x32xf32> to vector<32x32xf32>
    %cst_18 = arith.constant dense<0.000000e+00> : vector<32x32xf32>
    %18 = tpu.matmul %15, %17, %cst_18 {dimension_numbers = #tpu.dot_dimension_numbers<[1], [0], [0], [1], [0, 0, 1, 1], [], []>} : vector<32x32xf32>, vector<32x32xf32>, vector<32x32xf32> -> vector<32x32xf32>
    %19 = tpu.concatenate %14, %18 in 0 : vector<32x32xf32>, vector<32x32xf32> -> vector<64x32xf32>
    %20 = vector.broadcast %4 : f32 to vector<64x32xf32>
    %21 = arith.mulf %19, %20 : vector<64x32xf32>
    %22 = vector.extract_strided_slice %0 {offsets = [0, 0], sizes = [1, 32], strides = [1, 1]} : vector<22x32xf32> to vector<1x32xf32>
    %23 = vector.extract_strided_slice %0 {offsets = [1, 0], sizes = [1, 32], strides = [1, 1]} : vector<22x32xf32> to vector<1x32xf32>
    %cst_19 = arith.constant dense<0.000000e+00> : vector<64xf32>
    %24 = vector.multi_reduction <add>, %21, %cst_19 [1] : vector<64x32xf32> to vector<64xf32>
    %25 = vector.shape_cast %24 : vector<64xf32> to vector<64x1xf32>
    %cst_20 = arith.constant 3.200000e+01 : f32
    %26 = vector.broadcast %cst_20 : f32 to vector<64x1xf32>
    %27 = arith.divf %25, %26 : vector<64x1xf32>
    %28 = vector.broadcast %27 : vector<64x1xf32> to vector<64x32xf32>
    %29 = arith.subf %21, %28 : vector<64x32xf32>
    %30 = arith.mulf %29, %29 : vector<64x32xf32>
    %cst_21 = arith.constant dense<0.000000e+00> : vector<64xf32>
    %31 = vector.multi_reduction <add>, %30, %cst_21 [1] : vector<64x32xf32> to vector<64xf32>
    %32 = vector.shape_cast %31 : vector<64xf32> to vector<64x1xf32>
    %cst_22 = arith.constant 3.200000e+01 : f32
    %33 = vector.broadcast %cst_22 : f32 to vector<64x1xf32>
    %34 = arith.divf %32, %33 : vector<64x1xf32>
    %cst_23 = arith.constant 9.99999974E-6 : f32
    %35 = vector.broadcast %cst_23 : f32 to vector<64x1xf32>
    %36 = arith.addf %34, %35 : vector<64x1xf32>
    %37 = math.rsqrt %36 : vector<64x1xf32>
    %38 = vector.broadcast %37 : vector<64x1xf32> to vector<64x32xf32>
    %39 = arith.mulf %29, %38 : vector<64x32xf32>
    %40 = vector.broadcast %22 : vector<1x32xf32> to vector<64x32xf32>
    %41 = arith.mulf %39, %40 : vector<64x32xf32>
    %42 = vector.broadcast %23 : vector<1x32xf32> to vector<64x32xf32>
    %43 = arith.addf %41, %42 : vector<64x32xf32>
    %c0_24 = arith.constant 0 : index
    %c0_25 = arith.constant 0 : index
    %44 = vector.load %arg6[%c0_24, %c0_25] : memref<32x128xf32, #tpu.memory_space<vmem>>, vector<32x128xf32>
    %cst_26 = arith.constant dense<0.000000e+00> : vector<64x128xf32>
    %45 = tpu.matmul %43, %44, %cst_26 {dimension_numbers = #tpu.dot_dimension_numbers<[1], [0], [0], [1], [0, 0, 1, 1], [], []>} : vector<64x32xf32>, vector<32x128xf32>, vector<64x128xf32> -> vector<64x128xf32>
    %46 = vector.extract_strided_slice %2 {offsets = [0, 0], sizes = [1, 128], strides = [1, 1]} : vector<3x128xf32> to vector<1x128xf32>
    %47 = vector.broadcast %46 : vector<1x128xf32> to vector<64x128xf32>
    %48 = arith.addf %45, %47 : vector<64x128xf32>
    %49 = arith.mulf %48, %48 : vector<64x128xf32>
    %50 = arith.mulf %48, %49 : vector<64x128xf32>
    %cst_27 = arith.constant 4.471500e-02 : f32
    %51 = vector.broadcast %cst_27 : f32 to vector<64x128xf32>
    %52 = arith.mulf %51, %50 : vector<64x128xf32>
    %53 = arith.addf %48, %52 : vector<64x128xf32>
    %cst_28 = arith.constant 0.797884583 : f32
    %54 = vector.broadcast %cst_28 : f32 to vector<64x128xf32>
    %55 = arith.mulf %54, %53 : vector<64x128xf32>
    %56 = math.tanh %55 : vector<64x128xf32>
    %cst_29 = arith.constant 1.000000e+00 : f32
    %57 = vector.broadcast %cst_29 : f32 to vector<64x128xf32>
    %58 = arith.addf %57, %56 : vector<64x128xf32>
    %cst_30 = arith.constant 5.000000e-01 : f32
    %59 = vector.broadcast %cst_30 : f32 to vector<64x128xf32>
    %60 = arith.mulf %59, %58 : vector<64x128xf32>
    %61 = arith.mulf %48, %60 : vector<64x128xf32>
    %c0_31 = arith.constant 0 : index
    %c0_32 = arith.constant 0 : index
    %62 = vector.load %arg7[%c0_31, %c0_32] : memref<128x32xf32, #tpu.memory_space<vmem>>, vector<128x32xf32>
    %cst_33 = arith.constant dense<0.000000e+00> : vector<64x32xf32>
    %63 = tpu.matmul %61, %62, %cst_33 {dimension_numbers = #tpu.dot_dimension_numbers<[1], [0], [0], [1], [0, 0, 1, 1], [], []>} : vector<64x128xf32>, vector<128x32xf32>, vector<64x32xf32> -> vector<64x32xf32>
    %64 = vector.extract_strided_slice %0 {offsets = [2, 0], sizes = [1, 32], strides = [1, 1]} : vector<22x32xf32> to vector<1x32xf32>
    %65 = vector.broadcast %64 : vector<1x32xf32> to vector<64x32xf32>
    %66 = arith.addf %63, %65 : vector<64x32xf32>
    %cst_34 = arith.constant 5.000000e-01 : f32
    %67 = vector.broadcast %cst_34 : f32 to vector<64x32xf32>
    %68 = arith.mulf %67, %66 : vector<64x32xf32>
    %69 = arith.addf %68, %21 : vector<64x32xf32>
    %70 = vector.extract_strided_slice %0 {offsets = [3, 0], sizes = [1, 32], strides = [1, 1]} : vector<22x32xf32> to vector<1x32xf32>
    %71 = vector.extract_strided_slice %0 {offsets = [4, 0], sizes = [1, 32], strides = [1, 1]} : vector<22x32xf32> to vector<1x32xf32>
    %cst_35 = arith.constant dense<0.000000e+00> : vector<64xf32>
    %72 = vector.multi_reduction <add>, %69, %cst_35 [1] : vector<64x32xf32> to vector<64xf32>
    %73 = vector.shape_cast %72 : vector<64xf32> to vector<64x1xf32>
    %cst_36 = arith.constant 3.200000e+01 : f32
    %74 = vector.broadcast %cst_36 : f32 to vector<64x1xf32>
    %75 = arith.divf %73, %74 : vector<64x1xf32>
    %76 = vector.broadcast %75 : vector<64x1xf32> to vector<64x32xf32>
    %77 = arith.subf %69, %76 : vector<64x32xf32>
    %78 = arith.mulf %77, %77 : vector<64x32xf32>
    %cst_37 = arith.constant dense<0.000000e+00> : vector<64xf32>
    %79 = vector.multi_reduction <add>, %78, %cst_37 [1] : vector<64x32xf32> to vector<64xf32>
    %80 = vector.shape_cast %79 : vector<64xf32> to vector<64x1xf32>
    %cst_38 = arith.constant 3.200000e+01 : f32
    %81 = vector.broadcast %cst_38 : f32 to vector<64x1xf32>
    %82 = arith.divf %80, %81 : vector<64x1xf32>
    %cst_39 = arith.constant 9.99999974E-6 : f32
    %83 = vector.broadcast %cst_39 : f32 to vector<64x1xf32>
    %84 = arith.addf %82, %83 : vector<64x1xf32>
    %85 = math.rsqrt %84 : vector<64x1xf32>
    %86 = vector.broadcast %85 : vector<64x1xf32> to vector<64x32xf32>
    %87 = arith.mulf %77, %86 : vector<64x32xf32>
    %88 = vector.broadcast %70 : vector<1x32xf32> to vector<64x32xf32>
    %89 = arith.mulf %87, %88 : vector<64x32xf32>
    %90 = vector.broadcast %71 : vector<1x32xf32> to vector<64x32xf32>
    %91 = arith.addf %89, %90 : vector<64x32xf32>
    %c0_40 = arith.constant 0 : index
    %c0_41 = arith.constant 0 : index
    %92 = vector.load %arg8[%c0_40, %c0_41] : memref<32x96xf32, #tpu.memory_space<vmem>>, vector<32x96xf32>
    %cst_42 = arith.constant dense<0.000000e+00> : vector<64x96xf32>
    %93 = tpu.matmul %91, %92, %cst_42 {dimension_numbers = #tpu.dot_dimension_numbers<[1], [0], [0], [1], [0, 0, 1, 1], [], []>} : vector<64x32xf32>, vector<32x96xf32>, vector<64x96xf32> -> vector<64x96xf32>
    %94 = vector.extract_strided_slice %93 {offsets = [0, 0], sizes = [64, 32], strides = [1, 1]} : vector<64x96xf32> to vector<64x32xf32>
    %95 = vector.extract_strided_slice %93 {offsets = [0, 32], sizes = [64, 32], strides = [1, 1]} : vector<64x96xf32> to vector<64x32xf32>
    %96 = vector.extract_strided_slice %93 {offsets = [0, 64], sizes = [64, 32], strides = [1, 1]} : vector<64x96xf32> to vector<64x32xf32>
    %97 = tpu.concatenate %95, %96 in 1 : vector<64x32xf32>, vector<64x32xf32> -> vector<64x64xf32>
    %98 = vector.shape_cast %97 : vector<64x64xf32> to vector<4x16x64xf32>
    %c0_43 = arith.constant 0 : index
    %c0_44 = arith.constant 0 : index
    %c0_45 = arith.constant 0 : index
    %99 = vector.load %arg21[%c0_43, %c0_44, %c0_45] : memref<4x16x64xf32, #tpu.memory_space<vmem>>, vector<4x16x64xf32>
    tpu.vector_store %arg21[%c0_43, %c0_44, %c0_45], %98 {strides = array<i32>} : memref<4x16x64xf32, #tpu.memory_space<vmem>>, vector<4x16x64xf32>,
    %100 = vector.extract_strided_slice %94 {offsets = [0, 0], sizes = [64, 8], strides = [1, 1]} : vector<64x32xf32> to vector<64x8xf32>
    %101 = vector.shape_cast %100 : vector<64x8xf32> to vector<4x16x8xf32>
    %102 = vector.extract_strided_slice %95 {offsets = [0, 0], sizes = [64, 8], strides = [1, 1]} : vector<64x32xf32> to vector<64x8xf32>
    %103 = vector.shape_cast %102 : vector<64x8xf32> to vector<4x16x8xf32>
    %104 = vector.extract_strided_slice %96 {offsets = [0, 0], sizes = [64, 8], strides = [1, 1]} : vector<64x32xf32> to vector<64x8xf32>
    %105 = vector.shape_cast %104 : vector<64x8xf32> to vector<4x16x8xf32>
    "tpu.trace_start"() <{level = 10 : i32, message = "bik,bjk->bij"}> : () -> ()
    %cst_46 = arith.constant dense<0.000000e+00> : vector<4x16x16xf32>
    %106 = tpu.matmul %101, %103, %cst_46 {dimension_numbers = #tpu.dot_dimension_numbers<[2], [2], [1], [1], [0, 0, 0, 1, 1, 1], [0], [0]>} : vector<4x16x8xf32>, vector<4x16x8xf32>, vector<4x16x16xf32> -> vector<4x16x16xf32>
    "tpu.trace_stop"() : () -> ()
    %cst_47 = arith.constant 0.353553385 : f32
    %107 = vector.broadcast %cst_47 : f32 to vector<4x16x16xf32>
    %108 = arith.mulf %106, %107 : vector<4x16x16xf32>
    %cst_48 = arith.constant dense<0xFF800000> : vector<4x16xf32>
    %109 = vector.multi_reduction <maximumf>, %108, %cst_48 [2] : vector<4x16x16xf32> to vector<4x16xf32>
    %110 = vector.shape_cast %109 : vector<4x16xf32> to vector<4x16x1xf32>
    %111 = vector.broadcast %110 : vector<4x16x1xf32> to vector<4x16x16xf32>
    %112 = arith.subf %108, %111 : vector<4x16x16xf32>
    %113 = math.exp %112 : vector<4x16x16xf32>
    %cst_49 = arith.constant dense<0.000000e+00> : vector<4x16xf32>
    %114 = vector.multi_reduction <add>, %113, %cst_49 [2] : vector<4x16x16xf32> to vector<4x16xf32>
    %115 = vector.shape_cast %114 : vector<4x16xf32> to vector<4x16x1xf32>
    %116 = tpu.reciprocal %115 {approx = true} : vector<4x16x1xf32> -> vector<4x16x1xf32>
    %117 = vector.broadcast %116 : vector<4x16x1xf32> to vector<4x16x16xf32>
    %118 = arith.mulf %113, %117 : vector<4x16x16xf32>
    "tpu.trace_start"() <{level = 10 : i32, message = "bij,bjd->bid"}> : () -> ()
    %cst_50 = arith.constant dense<0.000000e+00> : vector<4x16x8xf32>
    %119 = tpu.matmul %118, %105, %cst_50 {dimension_numbers = #tpu.dot_dimension_numbers<[2], [1], [1], [2], [0, 0, 0, 1, 1, 2], [0], [0]>} : vector<4x16x16xf32>, vector<4x16x8xf32>, vector<4x16x8xf32> -> vector<4x16x8xf32>
    "tpu.trace_stop"() : () -> ()
    %120 = vector.shape_cast %119 : vector<4x16x8xf32> to vector<64x8xf32>
    %121 = vector.extract_strided_slice %94 {offsets = [0, 8], sizes = [64, 8], strides = [1, 1]} : vector<64x32xf32> to vector<64x8xf32>
    %122 = vector.shape_cast %121 : vector<64x8xf32> to vector<4x16x8xf32>
    %123 = vector.extract_strided_slice %95 {offsets = [0, 8], sizes = [64, 8], strides = [1, 1]} : vector<64x32xf32> to vector<64x8xf32>
    %124 = vector.shape_cast %123 : vector<64x8xf32> to vector<4x16x8xf32>
    %125 = vector.extract_strided_slice %96 {offsets = [0, 8], sizes = [64, 8], strides = [1, 1]} : vector<64x32xf32> to vector<64x8xf32>
    %126 = vector.shape_cast %125 : vector<64x8xf32> to vector<4x16x8xf32>
    "tpu.trace_start"() <{level = 10 : i32, message = "bik,bjk->bij"}> : () -> ()
    %cst_51 = arith.constant dense<0.000000e+00> : vector<4x16x16xf32>
    %127 = tpu.matmul %122, %124, %cst_51 {dimension_numbers = #tpu.dot_dimension_numbers<[2], [2], [1], [1], [0, 0, 0, 1, 1, 1], [0], [0]>} : vector<4x16x8xf32>, vector<4x16x8xf32>, vector<4x16x16xf32> -> vector<4x16x16xf32>
    "tpu.trace_stop"() : () -> ()
    %cst_52 = arith.constant 0.353553385 : f32
    %128 = vector.broadcast %cst_52 : f32 to vector<4x16x16xf32>
    %129 = arith.mulf %127, %128 : vector<4x16x16xf32>
    %cst_53 = arith.constant dense<0xFF800000> : vector<4x16xf32>
    %130 = vector.multi_reduction <maximumf>, %129, %cst_53 [2] : vector<4x16x16xf32> to vector<4x16xf32>
    %131 = vector.shape_cast %130 : vector<4x16xf32> to vector<4x16x1xf32>
    %132 = vector.broadcast %131 : vector<4x16x1xf32> to vector<4x16x16xf32>
    %133 = arith.subf %129, %132 : vector<4x16x16xf32>
    %134 = math.exp %133 : vector<4x16x16xf32>
    %cst_54 = arith.constant dense<0.000000e+00> : vector<4x16xf32>
    %135 = vector.multi_reduction <add>, %134, %cst_54 [2] : vector<4x16x16xf32> to vector<4x16xf32>
    %136 = vector.shape_cast %135 : vector<4x16xf32> to vector<4x16x1xf32>
    %137 = tpu.reciprocal %136 {approx = true} : vector<4x16x1xf32> -> vector<4x16x1xf32>
    %138 = vector.broadcast %137 : vector<4x16x1xf32> to vector<4x16x16xf32>
    %139 = arith.mulf %134, %138 : vector<4x16x16xf32>
    "tpu.trace_start"() <{level = 10 : i32, message = "bij,bjd->bid"}> : () -> ()
    %cst_55 = arith.constant dense<0.000000e+00> : vector<4x16x8xf32>
    %140 = tpu.matmul %139, %126, %cst_55 {dimension_numbers = #tpu.dot_dimension_numbers<[2], [1], [1], [2], [0, 0, 0, 1, 1, 2], [0], [0]>} : vector<4x16x16xf32>, vector<4x16x8xf32>, vector<4x16x8xf32> -> vector<4x16x8xf32>
    "tpu.trace_stop"() : () -> ()
    %141 = vector.shape_cast %140 : vector<4x16x8xf32> to vector<64x8xf32>
    %142 = vector.extract_strided_slice %94 {offsets = [0, 16], sizes = [64, 8], strides = [1, 1]} : vector<64x32xf32> to vector<64x8xf32>
    %143 = vector.shape_cast %142 : vector<64x8xf32> to vector<4x16x8xf32>
    %144 = vector.extract_strided_slice %95 {offsets = [0, 16], sizes = [64, 8], strides = [1, 1]} : vector<64x32xf32> to vector<64x8xf32>
    %145 = vector.shape_cast %144 : vector<64x8xf32> to vector<4x16x8xf32>
    %146 = vector.extract_strided_slice %96 {offsets = [0, 16], sizes = [64, 8], strides = [1, 1]} : vector<64x32xf32> to vector<64x8xf32>
    %147 = vector.shape_cast %146 : vector<64x8xf32> to vector<4x16x8xf32>
    "tpu.trace_start"() <{level = 10 : i32, message = "bik,bjk->bij"}> : () -> ()
    %cst_56 = arith.constant dense<0.000000e+00> : vector<4x16x16xf32>
    %148 = tpu.matmul %143, %145, %cst_56 {dimension_numbers = #tpu.dot_dimension_numbers<[2], [2], [1], [1], [0, 0, 0, 1, 1, 1], [0], [0]>} : vector<4x16x8xf32>, vector<4x16x8xf32>, vector<4x16x16xf32> -> vector<4x16x16xf32>
    "tpu.trace_stop"() : () -> ()
    %cst_57 = arith.constant 0.353553385 : f32
    %149 = vector.broadcast %cst_57 : f32 to vector<4x16x16xf32>
    %150 = arith.mulf %148, %149 : vector<4x16x16xf32>
    %cst_58 = arith.constant dense<0xFF800000> : vector<4x16xf32>
    %151 = vector.multi_reduction <maximumf>, %150, %cst_58 [2] : vector<4x16x16xf32> to vector<4x16xf32>
    %152 = vector.shape_cast %151 : vector<4x16xf32> to vector<4x16x1xf32>
    %153 = vector.broadcast %152 : vector<4x16x1xf32> to vector<4x16x16xf32>
    %154 = arith.subf %150, %153 : vector<4x16x16xf32>
    %155 = math.exp %154 : vector<4x16x16xf32>
    %cst_59 = arith.constant dense<0.000000e+00> : vector<4x16xf32>
    %156 = vector.multi_reduction <add>, %155, %cst_59 [2] : vector<4x16x16xf32> to vector<4x16xf32>
    %157 = vector.shape_cast %156 : vector<4x16xf32> to vector<4x16x1xf32>
    %158 = tpu.reciprocal %157 {approx = true} : vector<4x16x1xf32> -> vector<4x16x1xf32>
    %159 = vector.broadcast %158 : vector<4x16x1xf32> to vector<4x16x16xf32>
    %160 = arith.mulf %155, %159 : vector<4x16x16xf32>
    "tpu.trace_start"() <{level = 10 : i32, message = "bij,bjd->bid"}> : () -> ()
    %cst_60 = arith.constant dense<0.000000e+00> : vector<4x16x8xf32>
    %161 = tpu.matmul %160, %147, %cst_60 {dimension_numbers = #tpu.dot_dimension_numbers<[2], [1], [1], [2], [0, 0, 0, 1, 1, 2], [0], [0]>} : vector<4x16x16xf32>, vector<4x16x8xf32>, vector<4x16x8xf32> -> vector<4x16x8xf32>
    "tpu.trace_stop"() : () -> ()
    %162 = vector.shape_cast %161 : vector<4x16x8xf32> to vector<64x8xf32>
    %163 = vector.extract_strided_slice %94 {offsets = [0, 24], sizes = [64, 8], strides = [1, 1]} : vector<64x32xf32> to vector<64x8xf32>
    %164 = vector.shape_cast %163 : vector<64x8xf32> to vector<4x16x8xf32>
    %165 = vector.extract_strided_slice %95 {offsets = [0, 24], sizes = [64, 8], strides = [1, 1]} : vector<64x32xf32> to vector<64x8xf32>
    %166 = vector.shape_cast %165 : vector<64x8xf32> to vector<4x16x8xf32>
    %167 = vector.extract_strided_slice %96 {offsets = [0, 24], sizes = [64, 8], strides = [1, 1]} : vector<64x32xf32> to vector<64x8xf32>
    %168 = vector.shape_cast %167 : vector<64x8xf32> to vector<4x16x8xf32>
    "tpu.trace_start"() <{level = 10 : i32, message = "bik,bjk->bij"}> : () -> ()
    %cst_61 = arith.constant dense<0.000000e+00> : vector<4x16x16xf32>
    %169 = tpu.matmul %164, %166, %cst_61 {dimension_numbers = #tpu.dot_dimension_numbers<[2], [2], [1], [1], [0, 0, 0, 1, 1, 1], [0], [0]>} : vector<4x16x8xf32>, vector<4x16x8xf32>, vector<4x16x16xf32> -> vector<4x16x16xf32>
    "tpu.trace_stop"() : () -> ()
    %cst_62 = arith.constant 0.353553385 : f32
    %170 = vector.broadcast %cst_62 : f32 to vector<4x16x16xf32>
    %171 = arith.mulf %169, %170 : vector<4x16x16xf32>
    %cst_63 = arith.constant dense<0xFF800000> : vector<4x16xf32>
    %172 = vector.multi_reduction <maximumf>, %171, %cst_63 [2] : vector<4x16x16xf32> to vector<4x16xf32>
    %173 = vector.shape_cast %172 : vector<4x16xf32> to vector<4x16x1xf32>
    %174 = vector.broadcast %173 : vector<4x16x1xf32> to vector<4x16x16xf32>
    %175 = arith.subf %171, %174 : vector<4x16x16xf32>
    %176 = math.exp %175 : vector<4x16x16xf32>
    %cst_64 = arith.constant dense<0.000000e+00> : vector<4x16xf32>
    %177 = vector.multi_reduction <add>, %176, %cst_64 [2] : vector<4x16x16xf32> to vector<4x16xf32>
    %178 = vector.shape_cast %177 : vector<4x16xf32> to vector<4x16x1xf32>
    %179 = tpu.reciprocal %178 {approx = true} : vector<4x16x1xf32> -> vector<4x16x1xf32>
    %180 = vector.broadcast %179 : vector<4x16x1xf32> to vector<4x16x16xf32>
    %181 = arith.mulf %176, %180 : vector<4x16x16xf32>
    "tpu.trace_start"() <{level = 10 : i32, message = "bij,bjd->bid"}> : () -> ()
    %cst_65 = arith.constant dense<0.000000e+00> : vector<4x16x8xf32>
    %182 = tpu.matmul %181, %168, %cst_65 {dimension_numbers = #tpu.dot_dimension_numbers<[2], [1], [1], [2], [0, 0, 0, 1, 1, 2], [0], [0]>} : vector<4x16x16xf32>, vector<4x16x8xf32>, vector<4x16x8xf32> -> vector<4x16x8xf32>
    "tpu.trace_stop"() : () -> ()
    %183 = vector.shape_cast %182 : vector<4x16x8xf32> to vector<64x8xf32>
    %184 = tpu.concatenate %120, %141, %162, %183 in 1 : vector<64x8xf32>, vector<64x8xf32>, vector<64x8xf32>, vector<64x8xf32> -> vector<64x32xf32>
    %c0_66 = arith.constant 0 : index
    %c0_67 = arith.constant 0 : index
    %185 = vector.load %arg9[%c0_66, %c0_67] : memref<32x32xf32, #tpu.memory_space<vmem>>, vector<32x32xf32>
    %cst_68 = arith.constant dense<0.000000e+00> : vector<64x32xf32>
    %186 = tpu.matmul %184, %185, %cst_68 {dimension_numbers = #tpu.dot_dimension_numbers<[1], [0], [0], [1], [0, 0, 1, 1], [], []>} : vector<64x32xf32>, vector<32x32xf32>, vector<64x32xf32> -> vector<64x32xf32>
    %187 = arith.addf %186, %69 : vector<64x32xf32>
    %188 = vector.extract_strided_slice %0 {offsets = [5, 0], sizes = [1, 32], strides = [1, 1]} : vector<22x32xf32> to vector<1x32xf32>
    %189 = vector.extract_strided_slice %0 {offsets = [6, 0], sizes = [1, 32], strides = [1, 1]} : vector<22x32xf32> to vector<1x32xf32>
    %cst_69 = arith.constant dense<0.000000e+00> : vector<64xf32>
    %190 = vector.multi_reduction <add>, %187, %cst_69 [1] : vector<64x32xf32> to vector<64xf32>
    %191 = vector.shape_cast %190 : vector<64xf32> to vector<64x1xf32>
    %cst_70 = arith.constant 3.200000e+01 : f32
    %192 = vector.broadcast %cst_70 : f32 to vector<64x1xf32>
    %193 = arith.divf %191, %192 : vector<64x1xf32>
    %194 = vector.broadcast %193 : vector<64x1xf32> to vector<64x32xf32>
    %195 = arith.subf %187, %194 : vector<64x32xf32>
    %196 = arith.mulf %195, %195 : vector<64x32xf32>
    %cst_71 = arith.constant dense<0.000000e+00> : vector<64xf32>
    %197 = vector.multi_reduction <add>, %196, %cst_71 [1] : vector<64x32xf32> to vector<64xf32>
    %198 = vector.shape_cast %197 : vector<64xf32> to vector<64x1xf32>
    %cst_72 = arith.constant 3.200000e+01 : f32
    %199 = vector.broadcast %cst_72 : f32 to vector<64x1xf32>
    %200 = arith.divf %198, %199 : vector<64x1xf32>
    %cst_73 = arith.constant 9.99999974E-6 : f32
    %201 = vector.broadcast %cst_73 : f32 to vector<64x1xf32>
    %202 = arith.addf %200, %201 : vector<64x1xf32>
    %203 = math.rsqrt %202 : vector<64x1xf32>
    %204 = vector.broadcast %203 : vector<64x1xf32> to vector<64x32xf32>
    %205 = arith.mulf %195, %204 : vector<64x32xf32>
    %206 = vector.broadcast %188 : vector<1x32xf32> to vector<64x32xf32>
    %207 = arith.mulf %205, %206 : vector<64x32xf32>
    %208 = vector.broadcast %189 : vector<1x32xf32> to vector<64x32xf32>
    %209 = arith.addf %207, %208 : vector<64x32xf32>
    %c0_74 = arith.constant 0 : index
    %c0_75 = arith.constant 0 : index
    %210 = vector.load %arg10[%c0_74, %c0_75] : memref<32x64xf32, #tpu.memory_space<vmem>>, vector<32x64xf32>
    %cst_76 = arith.constant dense<0.000000e+00> : vector<64x64xf32>
    %211 = tpu.matmul %209, %210, %cst_76 {dimension_numbers = #tpu.dot_dimension_numbers<[1], [0], [0], [1], [0, 0, 1, 1], [], []>} : vector<64x32xf32>, vector<32x64xf32>, vector<64x64xf32> -> vector<64x64xf32>
    %212 = vector.extract_strided_slice %1 {offsets = [0, 0], sizes = [1, 64], strides = [1, 1]} : vector<2x64xf32> to vector<1x64xf32>
    %213 = vector.broadcast %212 : vector<1x64xf32> to vector<64x64xf32>
    %214 = arith.addf %211, %213 : vector<64x64xf32>
    %215 = vector.extract_strided_slice %214 {offsets = [0, 0], sizes = [64, 32], strides = [1, 1]} : vector<64x64xf32> to vector<64x32xf32>
    %216 = vector.extract_strided_slice %214 {offsets = [0, 32], sizes = [64, 32], strides = [1, 1]} : vector<64x64xf32> to vector<64x32xf32>
    %217 = arith.negf %216 : vector<64x32xf32>
    %218 = math.exp %217 : vector<64x32xf32>
    %cst_77 = arith.constant 1.000000e+00 : f32
    %219 = vector.broadcast %cst_77 : f32 to vector<64x32xf32>
    %220 = arith.addf %219, %218 : vector<64x32xf32>
    %221 = arith.divf %219, %220 : vector<64x32xf32>
    %222 = arith.mulf %215, %221 : vector<64x32xf32>
    %223 = tpu.iota {dimensions = array<i32: 1>} : vector<4x16x32xi32>
    %224 = vector.shape_cast %223 : vector<4x16x32xi32> to vector<64x32xi32>
    %c0_78 = arith.constant 0 : index
    %c0_79 = arith.constant 0 : index
    %225 = vector.load %arg11[%c0_78, %c0_79] : memref<5x32xf32, #tpu.memory_space<vmem>>, vector<5x32xf32>
    %226 = vector.extract_strided_slice %225 {offsets = [2, 0], sizes = [1, 32], strides = [1, 1]} : vector<5x32xf32> to vector<1x32xf32>
    %227 = vector.broadcast %226 : vector<1x32xf32> to vector<64x32xf32>
    %228 = arith.mulf %222, %227 : vector<64x32xf32>
    %cst_80 = arith.constant 0.000000e+00 : f32
    %229 = vector.broadcast %cst_80 : f32 to vector<2x32xf32>
    %230 = vector.extract_strided_slice %222 {offsets = [0, 0], sizes = [62, 32], strides = [1, 1]} : vector<64x32xf32> to vector<62x32xf32>
    %231 = tpu.concatenate %229, %230 in 0 : vector<2x32xf32>, vector<62x32xf32> -> vector<64x32xf32>
    %c-2_i32 = arith.constant -2 : i32
    %232 = vector.broadcast %c-2_i32 : i32 to vector<64x32xi32>
    %233 = arith.addi %224, %232 : vector<64x32xi32>
    %c0_i32 = arith.constant 0 : i32
    %234 = vector.broadcast %c0_i32 : i32 to vector<64x32xi32>
    %235 = arith.cmpi sge, %233, %234 : vector<64x32xi32>
    %c-2_i32_81 = arith.constant -2 : i32
    %236 = vector.broadcast %c-2_i32_81 : i32 to vector<64x32xi32>
    %237 = arith.addi %224, %236 : vector<64x32xi32>
    %c16_i32 = arith.constant 16 : i32
    %238 = vector.broadcast %c16_i32 : i32 to vector<64x32xi32>
    %239 = arith.cmpi slt, %237, %238 : vector<64x32xi32>
    %240 = arith.andi %235, %239 : vector<64x32xi1>
    %cst_82 = arith.constant 0.000000e+00 : f32
    %241 = vector.broadcast %cst_82 : f32 to vector<64x32xf32>
    %242 = arith.select %240, %231, %241 : vector<64x32xi1>, vector<64x32xf32>
    %243 = vector.extract_strided_slice %225 {offsets = [0, 0], sizes = [1, 32], strides = [1, 1]} : vector<5x32xf32> to vector<1x32xf32>
    %244 = vector.broadcast %243 : vector<1x32xf32> to vector<64x32xf32>
    %245 = arith.mulf %242, %244 : vector<64x32xf32>
    %246 = arith.addf %228, %245 : vector<64x32xf32>
    %cst_83 = arith.constant 0.000000e+00 : f32
    %247 = vector.broadcast %cst_83 : f32 to vector<1x32xf32>
    %248 = vector.extract_strided_slice %222 {offsets = [0, 0], sizes = [63, 32], strides = [1, 1]} : vector<64x32xf32> to vector<63x32xf32>
    %249 = tpu.concatenate %247, %248 in 0 : vector<1x32xf32>, vector<63x32xf32> -> vector<64x32xf32>
    %c-1_i32 = arith.constant -1 : i32
    %250 = vector.broadcast %c-1_i32 : i32 to vector<64x32xi32>
    %251 = arith.addi %224, %250 : vector<64x32xi32>
    %c0_i32_84 = arith.constant 0 : i32
    %252 = vector.broadcast %c0_i32_84 : i32 to vector<64x32xi32>
    %253 = arith.cmpi sge, %251, %252 : vector<64x32xi32>
    %c-1_i32_85 = arith.constant -1 : i32
    %254 = vector.broadcast %c-1_i32_85 : i32 to vector<64x32xi32>
    %255 = arith.addi %224, %254 : vector<64x32xi32>
    %c16_i32_86 = arith.constant 16 : i32
    %256 = vector.broadcast %c16_i32_86 : i32 to vector<64x32xi32>
    %257 = arith.cmpi slt, %255, %256 : vector<64x32xi32>
    %258 = arith.andi %253, %257 : vector<64x32xi1>
    %cst_87 = arith.constant 0.000000e+00 : f32
    %259 = vector.broadcast %cst_87 : f32 to vector<64x32xf32>
    %260 = arith.select %258, %249, %259 : vector<64x32xi1>, vector<64x32xf32>
    %261 = vector.extract_strided_slice %225 {offsets = [1, 0], sizes = [1, 32], strides = [1, 1]} : vector<5x32xf32> to vector<1x32xf32>
    %262 = vector.broadcast %261 : vector<1x32xf32> to vector<64x32xf32>
    %263 = arith.mulf %260, %262 : vector<64x32xf32>
    %264 = arith.addf %246, %263 : vector<64x32xf32>
    %265 = vector.extract_strided_slice %222 {offsets = [1, 0], sizes = [63, 32], strides = [1, 1]} : vector<64x32xf32> to vector<63x32xf32>
    %cst_88 = arith.constant 0.000000e+00 : f32
    %266 = vector.broadcast %cst_88 : f32 to vector<1x32xf32>
    %267 = tpu.concatenate %265, %266 in 0 : vector<63x32xf32>, vector<1x32xf32> -> vector<64x32xf32>
    %c1_i32 = arith.constant 1 : i32
    %268 = vector.broadcast %c1_i32 : i32 to vector<64x32xi32>
    %269 = arith.addi %224, %268 : vector<64x32xi32>
    %c0_i32_89 = arith.constant 0 : i32
    %270 = vector.broadcast %c0_i32_89 : i32 to vector<64x32xi32>
    %271 = arith.cmpi sge, %269, %270 : vector<64x32xi32>
    %c1_i32_90 = arith.constant 1 : i32
    %272 = vector.broadcast %c1_i32_90 : i32 to vector<64x32xi32>
    %273 = arith.addi %224, %272 : vector<64x32xi32>
    %c16_i32_91 = arith.constant 16 : i32
    %274 = vector.broadcast %c16_i32_91 : i32 to vector<64x32xi32>
    %275 = arith.cmpi slt, %273, %274 : vector<64x32xi32>
    %276 = arith.andi %271, %275 : vector<64x32xi1>
    %cst_92 = arith.constant 0.000000e+00 : f32
    %277 = vector.broadcast %cst_92 : f32 to vector<64x32xf32>
    %278 = arith.select %276, %267, %277 : vector<64x32xi1>, vector<64x32xf32>
    %279 = vector.extract_strided_slice %225 {offsets = [3, 0], sizes = [1, 32], strides = [1, 1]} : vector<5x32xf32> to vector<1x32xf32>
    %280 = vector.broadcast %279 : vector<1x32xf32> to vector<64x32xf32>
    %281 = arith.mulf %278, %280 : vector<64x32xf32>
    %282 = arith.addf %264, %281 : vector<64x32xf32>
    %283 = vector.extract_strided_slice %222 {offsets = [2, 0], sizes = [62, 32], strides = [1, 1]} : vector<64x32xf32> to vector<62x32xf32>
    %cst_93 = arith.constant 0.000000e+00 : f32
    %284 = vector.broadcast %cst_93 : f32 to vector<2x32xf32>
    %285 = tpu.concatenate %283, %284 in 0 : vector<62x32xf32>, vector<2x32xf32> -> vector<64x32xf32>
    %c2_i32 = arith.constant 2 : i32
    %286 = vector.broadcast %c2_i32 : i32 to vector<64x32xi32>
    %287 = arith.addi %224, %286 : vector<64x32xi32>
    %c0_i32_94 = arith.constant 0 : i32
    %288 = vector.broadcast %c0_i32_94 : i32 to vector<64x32xi32>
    %289 = arith.cmpi sge, %287, %288 : vector<64x32xi32>
    %c2_i32_95 = arith.constant 2 : i32
    %290 = vector.broadcast %c2_i32_95 : i32 to vector<64x32xi32>
    %291 = arith.addi %224, %290 : vector<64x32xi32>
    %c16_i32_96 = arith.constant 16 : i32
    %292 = vector.broadcast %c16_i32_96 : i32 to vector<64x32xi32>
    %293 = arith.cmpi slt, %291, %292 : vector<64x32xi32>
    %294 = arith.andi %289, %293 : vector<64x32xi1>
    %cst_97 = arith.constant 0.000000e+00 : f32
    %295 = vector.broadcast %cst_97 : f32 to vector<64x32xf32>
    %296 = arith.select %294, %285, %295 : vector<64x32xi1>, vector<64x32xf32>
    %297 = vector.extract_strided_slice %225 {offsets = [4, 0], sizes = [1, 32], strides = [1, 1]} : vector<5x32xf32> to vector<1x32xf32>
    %298 = vector.broadcast %297 : vector<1x32xf32> to vector<64x32xf32>
    %299 = arith.mulf %296, %298 : vector<64x32xf32>
    %300 = arith.addf %282, %299 : vector<64x32xf32>
    %301 = vector.extract_strided_slice %0 {offsets = [7, 0], sizes = [1, 32], strides = [1, 1]} : vector<22x32xf32> to vector<1x32xf32>
    %302 = vector.broadcast %301 : vector<1x32xf32> to vector<64x32xf32>
    %303 = arith.addf %300, %302 : vector<64x32xf32>
    %304 = vector.extract_strided_slice %0 {offsets = [10, 0], sizes = [1, 32], strides = [1, 1]} : vector<22x32xf32> to vector<1x32xf32>
    %305 = vector.broadcast %304 : vector<1x32xf32> to vector<64x32xf32>
    %306 = arith.subf %303, %305 : vector<64x32xf32>
    %307 = vector.extract_strided_slice %0 {offsets = [11, 0], sizes = [1, 32], strides = [1, 1]} : vector<22x32xf32> to vector<1x32xf32>
    %cst_98 = arith.constant 9.99999974E-6 : f32
    %308 = vector.broadcast %cst_98 : f32 to vector<1x32xf32>
    %309 = arith.addf %307, %308 : vector<1x32xf32>
    %310 = math.rsqrt %309 : vector<1x32xf32>
    %311 = vector.broadcast %310 : vector<1x32xf32> to vector<64x32xf32>
    %312 = arith.mulf %306, %311 : vector<64x32xf32>
    %313 = vector.extract_strided_slice %0 {offsets = [8, 0], sizes = [1, 32], strides = [1, 1]} : vector<22x32xf32> to vector<1x32xf32>
    %314 = vector.broadcast %313 : vector<1x32xf32> to vector<64x32xf32>
    %315 = arith.mulf %312, %314 : vector<64x32xf32>
    %316 = vector.extract_strided_slice %0 {offsets = [9, 0], sizes = [1, 32], strides = [1, 1]} : vector<22x32xf32> to vector<1x32xf32>
    %317 = vector.broadcast %316 : vector<1x32xf32> to vector<64x32xf32>
    %318 = arith.addf %315, %317 : vector<64x32xf32>
    %319 = arith.negf %318 : vector<64x32xf32>
    %320 = math.exp %319 : vector<64x32xf32>
    %cst_99 = arith.constant 1.000000e+00 : f32
    %321 = vector.broadcast %cst_99 : f32 to vector<64x32xf32>
    %322 = arith.addf %321, %320 : vector<64x32xf32>
    %323 = arith.divf %321, %322 : vector<64x32xf32>
    %324 = arith.mulf %318, %323 : vector<64x32xf32>
    %c0_100 = arith.constant 0 : index
    %c0_101 = arith.constant 0 : index
    %325 = vector.load %arg12[%c0_100, %c0_101] : memref<32x32xf32, #tpu.memory_space<vmem>>, vector<32x32xf32>
    %cst_102 = arith.constant dense<0.000000e+00> : vector<64x32xf32>
    %326 = tpu.matmul %324, %325, %cst_102 {dimension_numbers = #tpu.dot_dimension_numbers<[1], [0], [0], [1], [0, 0, 1, 1], [], []>} : vector<64x32xf32>, vector<32x32xf32>, vector<64x32xf32> -> vector<64x32xf32>
    %327 = vector.extract_strided_slice %0 {offsets = [12, 0], sizes = [1, 32], strides = [1, 1]} : vector<22x32xf32> to vector<1x32xf32>
    %328 = vector.broadcast %327 : vector<1x32xf32> to vector<64x32xf32>
    %329 = arith.addf %326, %328 : vector<64x32xf32>
    %330 = arith.addf %329, %187 : vector<64x32xf32>
    %331 = vector.extract_strided_slice %0 {offsets = [13, 0], sizes = [1, 32], strides = [1, 1]} : vector<22x32xf32> to vector<1x32xf32>
    %332 = vector.extract_strided_slice %0 {offsets = [14, 0], sizes = [1, 32], strides = [1, 1]} : vector<22x32xf32> to vector<1x32xf32>
    %cst_103 = arith.constant dense<0.000000e+00> : vector<64xf32>
    %333 = vector.multi_reduction <add>, %330, %cst_103 [1] : vector<64x32xf32> to vector<64xf32>
    %334 = vector.shape_cast %333 : vector<64xf32> to vector<64x1xf32>
    %cst_104 = arith.constant 3.200000e+01 : f32
    %335 = vector.broadcast %cst_104 : f32 to vector<64x1xf32>
    %336 = arith.divf %334, %335 : vector<64x1xf32>
    %337 = vector.broadcast %336 : vector<64x1xf32> to vector<64x32xf32>
    %338 = arith.subf %330, %337 : vector<64x32xf32>
    %339 = arith.mulf %338, %338 : vector<64x32xf32>
    %cst_105 = arith.constant dense<0.000000e+00> : vector<64xf32>
    %340 = vector.multi_reduction <add>, %339, %cst_105 [1] : vector<64x32xf32> to vector<64xf32>
    %341 = vector.shape_cast %340 : vector<64xf32> to vector<64x1xf32>
    %cst_106 = arith.constant 3.200000e+01 : f32
    %342 = vector.broadcast %cst_106 : f32 to vector<64x1xf32>
    %343 = arith.divf %341, %342 : vector<64x1xf32>
    %cst_107 = arith.constant 9.99999974E-6 : f32
    %344 = vector.broadcast %cst_107 : f32 to vector<64x1xf32>
    %345 = arith.addf %343, %344 : vector<64x1xf32>
    %346 = math.rsqrt %345 : vector<64x1xf32>
    %347 = vector.broadcast %346 : vector<64x1xf32> to vector<64x32xf32>
    %348 = arith.mulf %338, %347 : vector<64x32xf32>
    %349 = vector.broadcast %331 : vector<1x32xf32> to vector<64x32xf32>
    %350 = arith.mulf %348, %349 : vector<64x32xf32>
    %351 = vector.broadcast %332 : vector<1x32xf32> to vector<64x32xf32>
    %352 = arith.addf %350, %351 : vector<64x32xf32>
    %c0_108 = arith.constant 0 : index
    %c0_109 = arith.constant 0 : index
    %353 = vector.load %arg13[%c0_108, %c0_109] : memref<128x32xf32, #tpu.memory_space<vmem>>, vector<128x32xf32>
    %c0_110 = arith.constant 0 : index
    %c0_111 = arith.constant 0 : index
    %354 = vector.load %arg14[%c0_110, %c0_111] : memref<32x64xf32, #tpu.memory_space<vmem>>, vector<32x64xf32>
    %355 = vector.extract_strided_slice %2 {offsets = [1, 0], sizes = [1, 128], strides = [1, 1]} : vector<3x128xf32> to vector<1x128xf32>
    %356 = vector.extract_strided_slice %0 {offsets = [15, 0], sizes = [1, 32], strides = [1, 1]} : vector<22x32xf32> to vector<1x32xf32>
    %c0_112 = arith.constant 0 : index
    %c0_113 = arith.constant 0 : index
    %357 = vector.load %arg15[%c0_112, %c0_113] : memref<64x32xf32, #tpu.memory_space<vmem>>, vector<64x32xf32>
    %c0_114 = arith.constant 0 : index
    %c0_115 = arith.constant 0 : index
    %358 = vector.load %arg16[%c0_114, %c0_115] : memref<32x32xf32, #tpu.memory_space<vmem>>, vector<32x32xf32>
    %359 = vector.extract_strided_slice %1 {offsets = [1, 0], sizes = [1, 64], strides = [1, 1]} : vector<2x64xf32> to vector<1x64xf32>
    %360 = vector.extract_strided_slice %0 {offsets = [16, 0], sizes = [1, 32], strides = [1, 1]} : vector<22x32xf32> to vector<1x32xf32>
    %c0_116 = arith.constant 0 : index
    %c0_117 = arith.constant 0 : index
    %361 = vector.load %arg18[%c0_116, %c0_117] : memref<128x32xf32, #tpu.memory_space<vmem>>, vector<128x32xf32>
    %c0_118 = arith.constant 0 : index
    %c0_119 = arith.constant 0 : index
    %362 = vector.load %arg19[%c0_118, %c0_119] : memref<32x64xf32, #tpu.memory_space<vmem>>, vector<32x64xf32>
    %363 = vector.extract_strided_slice %2 {offsets = [2, 0], sizes = [1, 128], strides = [1, 1]} : vector<3x128xf32> to vector<1x128xf32>
    %364 = vector.extract_strided_slice %0 {offsets = [17, 0], sizes = [1, 32], strides = [1, 1]} : vector<22x32xf32> to vector<1x32xf32>
    %c0_120 = arith.constant 0 : index
    %c0_121 = arith.constant 0 : index
    %c0_122 = arith.constant 0 : index
    %365 = vector.load %arg17[%c0_120, %c0_121, %c0_122] : memref<2x32x32xf32, #tpu.memory_space<vmem>>, vector<1x32x32xf32>
    %366 = vector.shape_cast %365 : vector<1x32x32xf32> to vector<32x32xf32>
    %c1_123 = arith.constant 1 : index
    %c0_124 = arith.constant 0 : index
    %c0_125 = arith.constant 0 : index
    %367 = vector.load %arg17[%c1_123, %c0_124, %c0_125] : memref<2x32x32xf32, #tpu.memory_space<vmem>>, vector<1x32x32xf32>
    %368 = vector.shape_cast %367 : vector<1x32x32xf32> to vector<32x32xf32>
    %cst_126 = arith.constant dense<0.000000e+00> : vector<64x128xf32>
    %369 = tpu.matmul %352, %353, %cst_126 {dimension_numbers = #tpu.dot_dimension_numbers<[1], [1], [0], [0], [0, 0, 1, 0], [], []>} : vector<64x32xf32>, vector<128x32xf32>, vector<64x128xf32> -> vector<64x128xf32>
    %370 = vector.broadcast %355 : vector<1x128xf32> to vector<64x128xf32>
    %371 = arith.addf %369, %370 : vector<64x128xf32>
    %372 = vector.extract_strided_slice %371 {offsets = [0, 0], sizes = [64, 64], strides = [1, 1]} : vector<64x128xf32> to vector<64x64xf32>
    %373 = vector.extract_strided_slice %371 {offsets = [0, 64], sizes = [64, 64], strides = [1, 1]} : vector<64x128xf32> to vector<64x64xf32>
    %374 = arith.negf %372 : vector<64x64xf32>
    %375 = math.exp %374 : vector<64x64xf32>
    %cst_127 = arith.constant 1.000000e+00 : f32
    %376 = vector.broadcast %cst_127 : f32 to vector<64x64xf32>
    %377 = arith.addf %376, %375 : vector<64x64xf32>
    %378 = arith.divf %376, %377 : vector<64x64xf32>
    %379 = arith.mulf %372, %378 : vector<64x64xf32>
    %380 = arith.mulf %379, %373 : vector<64x64xf32>
    %cst_128 = arith.constant dense<0.000000e+00> : vector<64x32xf32>
    %381 = tpu.matmul %380, %354, %cst_128 {dimension_numbers = #tpu.dot_dimension_numbers<[1], [1], [0], [0], [0, 0, 1, 0], [], []>} : vector<64x64xf32>, vector<32x64xf32>, vector<64x32xf32> -> vector<64x32xf32>
    %382 = vector.broadcast %356 : vector<1x32xf32> to vector<64x32xf32>
    %383 = arith.addf %381, %382 : vector<64x32xf32>
    %384 = vector.extract_strided_slice %383 {offsets = [0, 0], sizes = [16, 32], strides = [1, 1]} : vector<64x32xf32> to vector<16x32xf32>
    %cst_129 = arith.constant dense<0.000000e+00> : vector<16x32xf32>
    %385 = tpu.matmul %384, %366, %cst_129 {dimension_numbers = #tpu.dot_dimension_numbers<[1], [0], [0], [1], [0, 0, 1, 1], [], []>} : vector<16x32xf32>, vector<32x32xf32>, vector<16x32xf32> -> vector<16x32xf32>
    %386 = vector.extract_strided_slice %383 {offsets = [32, 0], sizes = [16, 32], strides = [1, 1]} : vector<64x32xf32> to vector<16x32xf32>
    %cst_130 = arith.constant dense<0.000000e+00> : vector<16x32xf32>
    %387 = tpu.matmul %386, %368, %cst_130 {dimension_numbers = #tpu.dot_dimension_numbers<[1], [0], [0], [1], [0, 0, 1, 1], [], []>} : vector<16x32xf32>, vector<32x32xf32>, vector<16x32xf32> -> vector<16x32xf32>
    %388 = arith.addf %385, %387 : vector<16x32xf32>
    %cst_131 = arith.constant dense<0.000000e+00> : vector<16x64xf32>
    %389 = tpu.matmul %388, %357, %cst_131 {dimension_numbers = #tpu.dot_dimension_numbers<[1], [1], [0], [0], [0, 0, 1, 0], [], []>} : vector<16x32xf32>, vector<64x32xf32>, vector<16x64xf32> -> vector<16x64xf32>
    %390 = vector.broadcast %359 : vector<1x64xf32> to vector<16x64xf32>
    %391 = arith.addf %389, %390 : vector<16x64xf32>
    %392 = vector.extract_strided_slice %391 {offsets = [0, 0], sizes = [16, 32], strides = [1, 1]} : vector<16x64xf32> to vector<16x32xf32>
    %393 = vector.extract_strided_slice %391 {offsets = [0, 32], sizes = [16, 32], strides = [1, 1]} : vector<16x64xf32> to vector<16x32xf32>
    %394 = arith.negf %392 : vector<16x32xf32>
    %395 = math.exp %394 : vector<16x32xf32>
    %cst_132 = arith.constant 1.000000e+00 : f32
    %396 = vector.broadcast %cst_132 : f32 to vector<16x32xf32>
    %397 = arith.addf %396, %395 : vector<16x32xf32>
    %398 = arith.divf %396, %397 : vector<16x32xf32>
    %399 = arith.mulf %392, %398 : vector<16x32xf32>
    %400 = arith.mulf %399, %393 : vector<16x32xf32>
    %cst_133 = arith.constant dense<0.000000e+00> : vector<16x32xf32>
    %401 = tpu.matmul %400, %358, %cst_133 {dimension_numbers = #tpu.dot_dimension_numbers<[1], [1], [0], [0], [0, 0, 1, 0], [], []>} : vector<16x32xf32>, vector<32x32xf32>, vector<16x32xf32> -> vector<16x32xf32>
    %402 = vector.broadcast %360 : vector<1x32xf32> to vector<16x32xf32>
    %403 = arith.addf %401, %402 : vector<16x32xf32>
    %404 = vector.extract_strided_slice %403 {offsets = [0, 0], sizes = [16, 16], strides = [1, 1]} : vector<16x32xf32> to vector<16x16xf32>
    %405 = vector.extract_strided_slice %403 {offsets = [0, 16], sizes = [16, 16], strides = [1, 1]} : vector<16x32xf32> to vector<16x16xf32>
    %406 = arith.mulf %404, %404 : vector<16x16xf32>
    %cst_134 = arith.constant dense<0.000000e+00> : vector<16xf32>
    %407 = vector.multi_reduction <add>, %406, %cst_134 [1] : vector<16x16xf32> to vector<16xf32>
    %408 = vector.shape_cast %407 : vector<16xf32> to vector<16x1xf32>
    %409 = math.sqrt %408 : vector<16x1xf32>
    %410 = arith.mulf %405, %405 : vector<16x16xf32>
    %cst_135 = arith.constant dense<0.000000e+00> : vector<16xf32>
    %411 = vector.multi_reduction <add>, %410, %cst_135 [1] : vector<16x16xf32> to vector<16xf32>
    %412 = vector.shape_cast %411 : vector<16xf32> to vector<16x1xf32>
    %413 = math.sqrt %412 : vector<16x1xf32>
    %414 = arith.mulf %404, %405 : vector<16x16xf32>
    %cst_136 = arith.constant dense<0.000000e+00> : vector<16xf32>
    %415 = vector.multi_reduction <add>, %414, %cst_136 [1] : vector<16x16xf32> to vector<16xf32>
    %416 = vector.shape_cast %415 : vector<16xf32> to vector<16x1xf32>
    %417 = arith.mulf %409, %413 : vector<16x1xf32>
    %cst_137 = arith.constant 9.99999993E-9 : f32
    %418 = vector.broadcast %cst_137 : f32 to vector<16x1xf32>
    %419 = arith.maximumf %417, %418 : vector<16x1xf32>
    %cst_138 = arith.constant 1.250000e-01 : f32
    %420 = vector.broadcast %cst_138 : f32 to vector<16x1xf32>
    %421 = arith.divf %420, %419 : vector<16x1xf32>
    %cst_139 = arith.constant 9.99999993E-9 : f32
    %422 = vector.broadcast %cst_139 : f32 to vector<16x1xf32>
    %423 = arith.cmpf ogt, %417, %422 : vector<16x1xf32>
    %cst_140 = arith.constant -1.250000e-01 : f32
    %424 = vector.broadcast %cst_140 : f32 to vector<16x1xf32>
    %425 = arith.mulf %424, %416 : vector<16x1xf32>
    %426 = arith.mulf %419, %419 : vector<16x1xf32>
    %427 = arith.divf %425, %426 : vector<16x1xf32>
    %cst_141 = arith.constant 0.000000e+00 : f32
    %428 = vector.broadcast %cst_141 : f32 to vector<16x1xf32>
    %429 = arith.select %423, %427, %428 : vector<16x1xi1>, vector<16x1xf32>
    %430 = vector.broadcast %421 : vector<16x1xf32> to vector<16x16xf32>
    %431 = arith.mulf %430, %405 : vector<16x16xf32>
    %432 = arith.mulf %429, %413 : vector<16x1xf32>
    %433 = arith.divf %432, %409 : vector<16x1xf32>
    %434 = vector.broadcast %433 : vector<16x1xf32> to vector<16x16xf32>
    %435 = arith.mulf %434, %404 : vector<16x16xf32>
    %436 = arith.addf %431, %435 : vector<16x16xf32>
    %437 = vector.broadcast %421 : vector<16x1xf32> to vector<16x16xf32>
    %438 = arith.mulf %437, %404 : vector<16x16xf32>
    %439 = arith.mulf %429, %409 : vector<16x1xf32>
    %440 = arith.divf %439, %413 : vector<16x1xf32>
    %441 = vector.broadcast %440 : vector<16x1xf32> to vector<16x16xf32>
    %442 = arith.mulf %441, %405 : vector<16x16xf32>
    %443 = arith.addf %438, %442 : vector<16x16xf32>
    %444 = tpu.concatenate %436, %443 in 1 : vector<16x16xf32>, vector<16x16xf32> -> vector<16x32xf32>
    %cst_142 = arith.constant dense<0.000000e+00> : vector<16x32xf32>
    %445 = tpu.matmul %444, %358, %cst_142 {dimension_numbers = #tpu.dot_dimension_numbers<[1], [0], [0], [1], [0, 0, 1, 1], [], []>} : vector<16x32xf32>, vector<32x32xf32>, vector<16x32xf32> -> vector<16x32xf32>
    %446 = arith.mulf %445, %399 : vector<16x32xf32>
    %447 = arith.mulf %445, %393 : vector<16x32xf32>
    %448 = arith.mulf %447, %398 : vector<16x32xf32>
    %cst_143 = arith.constant 1.000000e+00 : f32
    %449 = vector.broadcast %cst_143 : f32 to vector<16x32xf32>
    %450 = arith.subf %449, %398 : vector<16x32xf32>
    %451 = arith.mulf %392, %450 : vector<16x32xf32>
    %cst_144 = arith.constant 1.000000e+00 : f32
    %452 = vector.broadcast %cst_144 : f32 to vector<16x32xf32>
    %453 = arith.addf %452, %451 : vector<16x32xf32>
    %454 = arith.mulf %448, %453 : vector<16x32xf32>
    %455 = tpu.concatenate %454, %446 in 1 : vector<16x32xf32>, vector<16x32xf32> -> vector<16x64xf32>
    %cst_145 = arith.constant dense<0.000000e+00> : vector<16x32xf32>
    %456 = tpu.matmul %455, %357, %cst_145 {dimension_numbers = #tpu.dot_dimension_numbers<[1], [0], [0], [1], [0, 0, 1, 1], [], []>} : vector<16x64xf32>, vector<64x32xf32>, vector<16x32xf32> -> vector<16x32xf32>
    %cst_146 = arith.constant dense<0.000000e+00> : vector<16x32xf32>
    %457 = tpu.matmul %456, %366, %cst_146 {dimension_numbers = #tpu.dot_dimension_numbers<[1], [1], [0], [0], [0, 0, 1, 0], [], []>} : vector<16x32xf32>, vector<32x32xf32>, vector<16x32xf32> -> vector<16x32xf32>
    %cst_147 = arith.constant dense<0.000000e+00> : vector<16x32xf32>
    %458 = tpu.matmul %456, %368, %cst_147 {dimension_numbers = #tpu.dot_dimension_numbers<[1], [1], [0], [0], [0, 0, 1, 0], [], []>} : vector<16x32xf32>, vector<32x32xf32>, vector<16x32xf32> -> vector<16x32xf32>
    %459 = tpu.concatenate %457, %458 in 0 : vector<16x32xf32>, vector<16x32xf32> -> vector<32x32xf32>
    %460 = vector.extract_strided_slice %380 {offsets = [0, 0], sizes = [16, 64], strides = [1, 1]} : vector<64x64xf32> to vector<16x64xf32>
    %461 = vector.extract_strided_slice %380 {offsets = [32, 0], sizes = [16, 64], strides = [1, 1]} : vector<64x64xf32> to vector<16x64xf32>
    %462 = tpu.concatenate %460, %461 in 0 : vector<16x64xf32>, vector<16x64xf32> -> vector<32x64xf32>
    %463 = vector.extract_strided_slice %352 {offsets = [0, 0], sizes = [16, 32], strides = [1, 1]} : vector<64x32xf32> to vector<16x32xf32>
    %464 = vector.extract_strided_slice %352 {offsets = [32, 0], sizes = [16, 32], strides = [1, 1]} : vector<64x32xf32> to vector<16x32xf32>
    %465 = tpu.concatenate %463, %464 in 0 : vector<16x32xf32>, vector<16x32xf32> -> vector<32x32xf32>
    %cst_148 = arith.constant dense<0.000000e+00> : vector<32x64xf32>
    %466 = tpu.matmul %459, %462, %cst_148 {dimension_numbers = #tpu.dot_dimension_numbers<[0], [0], [1], [1], [0, 1, 1, 1], [], []>} : vector<32x32xf32>, vector<32x64xf32>, vector<32x64xf32> -> vector<32x64xf32>
    %cst_149 = arith.constant dense<0.000000e+00> : vector<32xf32>
    %467 = vector.multi_reduction <add>, %459, %cst_149 [0] : vector<32x32xf32> to vector<32xf32>
    %468 = vector.shape_cast %467 : vector<32xf32> to vector<1x32xf32>
    %cst_150 = arith.constant dense<0.000000e+00> : vector<32x64xf32>
    %469 = tpu.matmul %459, %354, %cst_150 {dimension_numbers = #tpu.dot_dimension_numbers<[1], [0], [0], [1], [0, 0, 1, 1], [], []>} : vector<32x32xf32>, vector<32x64xf32>, vector<32x64xf32> -> vector<32x64xf32>
    %470 = vector.extract_strided_slice %379 {offsets = [0, 0], sizes = [16, 64], strides = [1, 1]} : vector<64x64xf32> to vector<16x64xf32>
    %471 = vector.extract_strided_slice %379 {offsets = [32, 0], sizes = [16, 64], strides = [1, 1]} : vector<64x64xf32> to vector<16x64xf32>
    %472 = tpu.concatenate %470, %471 in 0 : vector<16x64xf32>, vector<16x64xf32> -> vector<32x64xf32>
    %473 = vector.extract_strided_slice %373 {offsets = [0, 0], sizes = [16, 64], strides = [1, 1]} : vector<64x64xf32> to vector<16x64xf32>
    %474 = vector.extract_strided_slice %373 {offsets = [32, 0], sizes = [16, 64], strides = [1, 1]} : vector<64x64xf32> to vector<16x64xf32>
    %475 = tpu.concatenate %473, %474 in 0 : vector<16x64xf32>, vector<16x64xf32> -> vector<32x64xf32>
    %476 = vector.extract_strided_slice %378 {offsets = [0, 0], sizes = [16, 64], strides = [1, 1]} : vector<64x64xf32> to vector<16x64xf32>
    %477 = vector.extract_strided_slice %378 {offsets = [32, 0], sizes = [16, 64], strides = [1, 1]} : vector<64x64xf32> to vector<16x64xf32>
    %478 = tpu.concatenate %476, %477 in 0 : vector<16x64xf32>, vector<16x64xf32> -> vector<32x64xf32>
    %479 = vector.extract_strided_slice %372 {offsets = [0, 0], sizes = [16, 64], strides = [1, 1]} : vector<64x64xf32> to vector<16x64xf32>
    %480 = vector.extract_strided_slice %372 {offsets = [32, 0], sizes = [16, 64], strides = [1, 1]} : vector<64x64xf32> to vector<16x64xf32>
    %481 = tpu.concatenate %479, %480 in 0 : vector<16x64xf32>, vector<16x64xf32> -> vector<32x64xf32>
    %482 = arith.mulf %469, %472 : vector<32x64xf32>
    %483 = arith.mulf %469, %475 : vector<32x64xf32>
    %484 = arith.mulf %483, %478 : vector<32x64xf32>
    %cst_151 = arith.constant 1.000000e+00 : f32
    %485 = vector.broadcast %cst_151 : f32 to vector<32x64xf32>
    %486 = arith.subf %485, %478 : vector<32x64xf32>
    %487 = arith.mulf %481, %486 : vector<32x64xf32>
    %cst_152 = arith.constant 1.000000e+00 : f32
    %488 = vector.broadcast %cst_152 : f32 to vector<32x64xf32>
    %489 = arith.addf %488, %487 : vector<32x64xf32>
    %490 = arith.mulf %484, %489 : vector<32x64xf32>
    %491 = tpu.concatenate %490, %482 in 1 : vector<32x64xf32>, vector<32x64xf32> -> vector<32x128xf32>
    %cst_153 = arith.constant dense<0.000000e+00> : vector<128x32xf32>
    %492 = tpu.matmul %491, %465, %cst_153 {dimension_numbers = #tpu.dot_dimension_numbers<[0], [0], [1], [1], [0, 1, 1, 1], [], []>} : vector<32x128xf32>, vector<32x32xf32>, vector<128x32xf32> -> vector<128x32xf32>
    %cst_154 = arith.constant dense<0.000000e+00> : vector<128xf32>
    %493 = vector.multi_reduction <add>, %491, %cst_154 [0] : vector<32x128xf32> to vector<128xf32>
    %494 = vector.shape_cast %493 : vector<128xf32> to vector<1x128xf32>
    %495 = vector.broadcast %6 : f32 to vector<128x32xf32>
    %496 = arith.mulf %492, %495 : vector<128x32xf32>
    %497 = arith.subf %361, %496 : vector<128x32xf32>
    %498 = vector.broadcast %6 : f32 to vector<1x128xf32>
    %499 = arith.mulf %494, %498 : vector<1x128xf32>
    %500 = arith.subf %363, %499 : vector<1x128xf32>
    %501 = vector.broadcast %6 : f32 to vector<32x64xf32>
    %502 = arith.mulf %466, %501 : vector<32x64xf32>
    %503 = arith.subf %362, %502 : vector<32x64xf32>
    %504 = vector.broadcast %6 : f32 to vector<1x32xf32>
    %505 = arith.mulf %468, %504 : vector<1x32xf32>
    %506 = arith.subf %364, %505 : vector<1x32xf32>
    %cst_155 = arith.constant dense<0.000000e+00> : vector<32x128xf32>
    %507 = tpu.matmul %465, %497, %cst_155 {dimension_numbers = #tpu.dot_dimension_numbers<[1], [1], [0], [0], [0, 0, 1, 0], [], []>} : vector<32x32xf32>, vector<128x32xf32>, vector<32x128xf32> -> vector<32x128xf32>
    %508 = vector.broadcast %500 : vector<1x128xf32> to vector<32x128xf32>
    %509 = arith.addf %507, %508 : vector<32x128xf32>
    %510 = vector.extract_strided_slice %509 {offsets = [0, 0], sizes = [32, 64], strides = [1, 1]} : vector<32x128xf32> to vector<32x64xf32>
    %511 = vector.extract_strided_slice %509 {offsets = [0, 64], sizes = [32, 64], strides = [1, 1]} : vector<32x128xf32> to vector<32x64xf32>
    %512 = arith.negf %510 : vector<32x64xf32>
    %513 = math.exp %512 : vector<32x64xf32>
    %cst_156 = arith.constant 1.000000e+00 : f32
    %514 = vector.broadcast %cst_156 : f32 to vector<32x64xf32>
    %515 = arith.addf %514, %513 : vector<32x64xf32>
    %516 = arith.divf %514, %515 : vector<32x64xf32>
    %517 = arith.mulf %510, %516 : vector<32x64xf32>
    %518 = arith.mulf %517, %511 : vector<32x64xf32>
    %cst_157 = arith.constant dense<0.000000e+00> : vector<32x32xf32>
    %519 = tpu.matmul %518, %503, %cst_157 {dimension_numbers = #tpu.dot_dimension_numbers<[1], [1], [0], [0], [0, 0, 1, 0], [], []>} : vector<32x64xf32>, vector<32x64xf32>, vector<32x32xf32> -> vector<32x32xf32>
    %520 = vector.broadcast %506 : vector<1x32xf32> to vector<32x32xf32>
    %521 = arith.addf %519, %520 : vector<32x32xf32>
    %522 = vector.extract_strided_slice %521 {offsets = [0, 0], sizes = [16, 32], strides = [1, 1]} : vector<32x32xf32> to vector<16x32xf32>
    %523 = vector.extract_strided_slice %521 {offsets = [16, 0], sizes = [16, 32], strides = [1, 1]} : vector<32x32xf32> to vector<16x32xf32>
    %524 = vector.extract_strided_slice %383 {offsets = [16, 0], sizes = [16, 32], strides = [1, 1]} : vector<64x32xf32> to vector<16x32xf32>
    %cst_158 = arith.constant dense<0.000000e+00> : vector<16x32xf32>
    %525 = tpu.matmul %524, %366, %cst_158 {dimension_numbers = #tpu.dot_dimension_numbers<[1], [0], [0], [1], [0, 0, 1, 1], [], []>} : vector<16x32xf32>, vector<32x32xf32>, vector<16x32xf32> -> vector<16x32xf32>
    %526 = vector.extract_strided_slice %383 {offsets = [48, 0], sizes = [16, 32], strides = [1, 1]} : vector<64x32xf32> to vector<16x32xf32>
    %cst_159 = arith.constant dense<0.000000e+00> : vector<16x32xf32>
    %527 = tpu.matmul %526, %368, %cst_159 {dimension_numbers = #tpu.dot_dimension_numbers<[1], [0], [0], [1], [0, 0, 1, 1], [], []>} : vector<16x32xf32>, vector<32x32xf32>, vector<16x32xf32> -> vector<16x32xf32>
    %528 = arith.addf %525, %527 : vector<16x32xf32>
    %cst_160 = arith.constant dense<0.000000e+00> : vector<16x64xf32>
    %529 = tpu.matmul %528, %357, %cst_160 {dimension_numbers = #tpu.dot_dimension_numbers<[1], [1], [0], [0], [0, 0, 1, 0], [], []>} : vector<16x32xf32>, vector<64x32xf32>, vector<16x64xf32> -> vector<16x64xf32>
    %530 = vector.broadcast %359 : vector<1x64xf32> to vector<16x64xf32>
    %531 = arith.addf %529, %530 : vector<16x64xf32>
    %532 = vector.extract_strided_slice %531 {offsets = [0, 0], sizes = [16, 32], strides = [1, 1]} : vector<16x64xf32> to vector<16x32xf32>
    %533 = vector.extract_strided_slice %531 {offsets = [0, 32], sizes = [16, 32], strides = [1, 1]} : vector<16x64xf32> to vector<16x32xf32>
    %534 = arith.negf %532 : vector<16x32xf32>
    %535 = math.exp %534 : vector<16x32xf32>
    %cst_161 = arith.constant 1.000000e+00 : f32
    %536 = vector.broadcast %cst_161 : f32 to vector<16x32xf32>
    %537 = arith.addf %536, %535 : vector<16x32xf32>
    %538 = arith.divf %536, %537 : vector<16x32xf32>
    %539 = arith.mulf %532, %538 : vector<16x32xf32>
    %540 = arith.mulf %539, %533 : vector<16x32xf32>
    %cst_162 = arith.constant dense<0.000000e+00> : vector<16x32xf32>
    %541 = tpu.matmul %540, %358, %cst_162 {dimension_numbers = #tpu.dot_dimension_numbers<[1], [1], [0], [0], [0, 0, 1, 0], [], []>} : vector<16x32xf32>, vector<32x32xf32>, vector<16x32xf32> -> vector<16x32xf32>
    %542 = vector.broadcast %360 : vector<1x32xf32> to vector<16x32xf32>
    %543 = arith.addf %541, %542 : vector<16x32xf32>
    %544 = vector.extract_strided_slice %543 {offsets = [0, 0], sizes = [16, 16], strides = [1, 1]} : vector<16x32xf32> to vector<16x16xf32>
    %545 = vector.extract_strided_slice %543 {offsets = [0, 16], sizes = [16, 16], strides = [1, 1]} : vector<16x32xf32> to vector<16x16xf32>
    %546 = arith.mulf %544, %544 : vector<16x16xf32>
    %cst_163 = arith.constant dense<0.000000e+00> : vector<16xf32>
    %547 = vector.multi_reduction <add>, %546, %cst_163 [1] : vector<16x16xf32> to vector<16xf32>
    %548 = vector.shape_cast %547 : vector<16xf32> to vector<16x1xf32>
    %549 = math.sqrt %548 : vector<16x1xf32>
    %550 = arith.mulf %545, %545 : vector<16x16xf32>
    %cst_164 = arith.constant dense<0.000000e+00> : vector<16xf32>
    %551 = vector.multi_reduction <add>, %550, %cst_164 [1] : vector<16x16xf32> to vector<16xf32>
    %552 = vector.shape_cast %551 : vector<16xf32> to vector<16x1xf32>
    %553 = math.sqrt %552 : vector<16x1xf32>
    %554 = arith.mulf %544, %545 : vector<16x16xf32>
    %cst_165 = arith.constant dense<0.000000e+00> : vector<16xf32>
    %555 = vector.multi_reduction <add>, %554, %cst_165 [1] : vector<16x16xf32> to vector<16xf32>
    %556 = vector.shape_cast %555 : vector<16xf32> to vector<16x1xf32>
    %557 = arith.mulf %549, %553 : vector<16x1xf32>
    %cst_166 = arith.constant 9.99999993E-9 : f32
    %558 = vector.broadcast %cst_166 : f32 to vector<16x1xf32>
    %559 = arith.maximumf %557, %558 : vector<16x1xf32>
    %cst_167 = arith.constant 1.250000e-01 : f32
    %560 = vector.broadcast %cst_167 : f32 to vector<16x1xf32>
    %561 = arith.divf %560, %559 : vector<16x1xf32>
    %cst_168 = arith.constant 9.99999993E-9 : f32
    %562 = vector.broadcast %cst_168 : f32 to vector<16x1xf32>
    %563 = arith.cmpf ogt, %557, %562 : vector<16x1xf32>
    %cst_169 = arith.constant -1.250000e-01 : f32
    %564 = vector.broadcast %cst_169 : f32 to vector<16x1xf32>
    %565 = arith.mulf %564, %556 : vector<16x1xf32>
    %566 = arith.mulf %559, %559 : vector<16x1xf32>
    %567 = arith.divf %565, %566 : vector<16x1xf32>
    %cst_170 = arith.constant 0.000000e+00 : f32
    %568 = vector.broadcast %cst_170 : f32 to vector<16x1xf32>
    %569 = arith.select %563, %567, %568 : vector<16x1xi1>, vector<16x1xf32>
    %570 = vector.broadcast %561 : vector<16x1xf32> to vector<16x16xf32>
    %571 = arith.mulf %570, %545 : vector<16x16xf32>
    %572 = arith.mulf %569, %553 : vector<16x1xf32>
    %573 = arith.divf %572, %549 : vector<16x1xf32>
    %574 = vector.broadcast %573 : vector<16x1xf32> to vector<16x16xf32>
    %575 = arith.mulf %574, %544 : vector<16x16xf32>
    %576 = arith.addf %571, %575 : vector<16x16xf32>
    %577 = vector.broadcast %561 : vector<16x1xf32> to vector<16x16xf32>
    %578 = arith.mulf %577, %544 : vector<16x16xf32>
    %579 = arith.mulf %569, %549 : vector<16x1xf32>
    %580 = arith.divf %579, %553 : vector<16x1xf32>
    %581 = vector.broadcast %580 : vector<16x1xf32> to vector<16x16xf32>
    %582 = arith.mulf %581, %545 : vector<16x16xf32>
    %583 = arith.addf %578, %582 : vector<16x16xf32>
    %584 = tpu.concatenate %576, %583 in 1 : vector<16x16xf32>, vector<16x16xf32> -> vector<16x32xf32>
    %cst_171 = arith.constant dense<0.000000e+00> : vector<16x32xf32>
    %585 = tpu.matmul %584, %358, %cst_171 {dimension_numbers = #tpu.dot_dimension_numbers<[1], [0], [0], [1], [0, 0, 1, 1], [], []>} : vector<16x32xf32>, vector<32x32xf32>, vector<16x32xf32> -> vector<16x32xf32>
    %586 = arith.mulf %585, %539 : vector<16x32xf32>
    %587 = arith.mulf %585, %533 : vector<16x32xf32>
    %588 = arith.mulf %587, %538 : vector<16x32xf32>
    %cst_172 = arith.constant 1.000000e+00 : f32
    %589 = vector.broadcast %cst_172 : f32 to vector<16x32xf32>
    %590 = arith.subf %589, %538 : vector<16x32xf32>
    %591 = arith.mulf %532, %590 : vector<16x32xf32>
    %cst_173 = arith.constant 1.000000e+00 : f32
    %592 = vector.broadcast %cst_173 : f32 to vector<16x32xf32>
    %593 = arith.addf %592, %591 : vector<16x32xf32>
    %594 = arith.mulf %588, %593 : vector<16x32xf32>
    %595 = tpu.concatenate %594, %586 in 1 : vector<16x32xf32>, vector<16x32xf32> -> vector<16x64xf32>
    %cst_174 = arith.constant dense<0.000000e+00> : vector<16x32xf32>
    %596 = tpu.matmul %595, %357, %cst_174 {dimension_numbers = #tpu.dot_dimension_numbers<[1], [0], [0], [1], [0, 0, 1, 1], [], []>} : vector<16x64xf32>, vector<64x32xf32>, vector<16x32xf32> -> vector<16x32xf32>
    %cst_175 = arith.constant dense<0.000000e+00> : vector<16x32xf32>
    %597 = tpu.matmul %596, %366, %cst_175 {dimension_numbers = #tpu.dot_dimension_numbers<[1], [1], [0], [0], [0, 0, 1, 0], [], []>} : vector<16x32xf32>, vector<32x32xf32>, vector<16x32xf32> -> vector<16x32xf32>
    %cst_176 = arith.constant dense<0.000000e+00> : vector<16x32xf32>
    %598 = tpu.matmul %596, %368, %cst_176 {dimension_numbers = #tpu.dot_dimension_numbers<[1], [1], [0], [0], [0, 0, 1, 0], [], []>} : vector<16x32xf32>, vector<32x32xf32>, vector<16x32xf32> -> vector<16x32xf32>
    %599 = tpu.concatenate %597, %598 in 0 : vector<16x32xf32>, vector<16x32xf32> -> vector<32x32xf32>
    %600 = vector.extract_strided_slice %380 {offsets = [16, 0], sizes = [16, 64], strides = [1, 1]} : vector<64x64xf32> to vector<16x64xf32>
    %601 = vector.extract_strided_slice %380 {offsets = [48, 0], sizes = [16, 64], strides = [1, 1]} : vector<64x64xf32> to vector<16x64xf32>
    %602 = tpu.concatenate %600, %601 in 0 : vector<16x64xf32>, vector<16x64xf32> -> vector<32x64xf32>
    %603 = vector.extract_strided_slice %352 {offsets = [16, 0], sizes = [16, 32], strides = [1, 1]} : vector<64x32xf32> to vector<16x32xf32>
    %604 = vector.extract_strided_slice %352 {offsets = [48, 0], sizes = [16, 32], strides = [1, 1]} : vector<64x32xf32> to vector<16x32xf32>
    %605 = tpu.concatenate %603, %604 in 0 : vector<16x32xf32>, vector<16x32xf32> -> vector<32x32xf32>
    %cst_177 = arith.constant dense<0.000000e+00> : vector<32x64xf32>
    %606 = tpu.matmul %599, %602, %cst_177 {dimension_numbers = #tpu.dot_dimension_numbers<[0], [0], [1], [1], [0, 1, 1, 1], [], []>} : vector<32x32xf32>, vector<32x64xf32>, vector<32x64xf32> -> vector<32x64xf32>
    %cst_178 = arith.constant dense<0.000000e+00> : vector<32xf32>
    %607 = vector.multi_reduction <add>, %599, %cst_178 [0] : vector<32x32xf32> to vector<32xf32>
    %608 = vector.shape_cast %607 : vector<32xf32> to vector<1x32xf32>
    %cst_179 = arith.constant dense<0.000000e+00> : vector<32x64xf32>
    %609 = tpu.matmul %599, %354, %cst_179 {dimension_numbers = #tpu.dot_dimension_numbers<[1], [0], [0], [1], [0, 0, 1, 1], [], []>} : vector<32x32xf32>, vector<32x64xf32>, vector<32x64xf32> -> vector<32x64xf32>
    %610 = vector.extract_strided_slice %379 {offsets = [16, 0], sizes = [16, 64], strides = [1, 1]} : vector<64x64xf32> to vector<16x64xf32>
    %611 = vector.extract_strided_slice %379 {offsets = [48, 0], sizes = [16, 64], strides = [1, 1]} : vector<64x64xf32> to vector<16x64xf32>
    %612 = tpu.concatenate %610, %611 in 0 : vector<16x64xf32>, vector<16x64xf32> -> vector<32x64xf32>
    %613 = vector.extract_strided_slice %373 {offsets = [16, 0], sizes = [16, 64], strides = [1, 1]} : vector<64x64xf32> to vector<16x64xf32>
    %614 = vector.extract_strided_slice %373 {offsets = [48, 0], sizes = [16, 64], strides = [1, 1]} : vector<64x64xf32> to vector<16x64xf32>
    %615 = tpu.concatenate %613, %614 in 0 : vector<16x64xf32>, vector<16x64xf32> -> vector<32x64xf32>
    %616 = vector.extract_strided_slice %378 {offsets = [16, 0], sizes = [16, 64], strides = [1, 1]} : vector<64x64xf32> to vector<16x64xf32>
    %617 = vector.extract_strided_slice %378 {offsets = [48, 0], sizes = [16, 64], strides = [1, 1]} : vector<64x64xf32> to vector<16x64xf32>
    %618 = tpu.concatenate %616, %617 in 0 : vector<16x64xf32>, vector<16x64xf32> -> vector<32x64xf32>
    %619 = vector.extract_strided_slice %372 {offsets = [16, 0], sizes = [16, 64], strides = [1, 1]} : vector<64x64xf32> to vector<16x64xf32>
    %620 = vector.extract_strided_slice %372 {offsets = [48, 0], sizes = [16, 64], strides = [1, 1]} : vector<64x64xf32> to vector<16x64xf32>
    %621 = tpu.concatenate %619, %620 in 0 : vector<16x64xf32>, vector<16x64xf32> -> vector<32x64xf32>
    %622 = arith.mulf %609, %612 : vector<32x64xf32>
    %623 = arith.mulf %609, %615 : vector<32x64xf32>
    %624 = arith.mulf %623, %618 : vector<32x64xf32>
    %cst_180 = arith.constant 1.000000e+00 : f32
    %625 = vector.broadcast %cst_180 : f32 to vector<32x64xf32>
    %626 = arith.subf %625, %618 : vector<32x64xf32>
    %627 = arith.mulf %621, %626 : vector<32x64xf32>
    %cst_181 = arith.constant 1.000000e+00 : f32
    %628 = vector.broadcast %cst_181 : f32 to vector<32x64xf32>
    %629 = arith.addf %628, %627 : vector<32x64xf32>
    %630 = arith.mulf %624, %629 : vector<32x64xf32>
    %631 = tpu.concatenate %630, %622 in 1 : vector<32x64xf32>, vector<32x64xf32> -> vector<32x128xf32>
    %cst_182 = arith.constant dense<0.000000e+00> : vector<128x32xf32>
    %632 = tpu.matmul %631, %605, %cst_182 {dimension_numbers = #tpu.dot_dimension_numbers<[0], [0], [1], [1], [0, 1, 1, 1], [], []>} : vector<32x128xf32>, vector<32x32xf32>, vector<128x32xf32> -> vector<128x32xf32>
    %cst_183 = arith.constant dense<0.000000e+00> : vector<128xf32>
    %633 = vector.multi_reduction <add>, %631, %cst_183 [0] : vector<32x128xf32> to vector<128xf32>
    %634 = vector.shape_cast %633 : vector<128xf32> to vector<1x128xf32>
    %635 = vector.broadcast %6 : f32 to vector<128x32xf32>
    %636 = arith.mulf %632, %635 : vector<128x32xf32>
    %637 = arith.subf %361, %636 : vector<128x32xf32>
    %638 = vector.broadcast %6 : f32 to vector<1x128xf32>
    %639 = arith.mulf %634, %638 : vector<1x128xf32>
    %640 = arith.subf %363, %639 : vector<1x128xf32>
    %641 = vector.broadcast %6 : f32 to vector<32x64xf32>
    %642 = arith.mulf %606, %641 : vector<32x64xf32>
    %643 = arith.subf %362, %642 : vector<32x64xf32>
    %644 = vector.broadcast %6 : f32 to vector<1x32xf32>
    %645 = arith.mulf %608, %644 : vector<1x32xf32>
    %646 = arith.subf %364, %645 : vector<1x32xf32>
    %cst_184 = arith.constant dense<0.000000e+00> : vector<32x128xf32>
    %647 = tpu.matmul %605, %637, %cst_184 {dimension_numbers = #tpu.dot_dimension_numbers<[1], [1], [0], [0], [0, 0, 1, 0], [], []>} : vector<32x32xf32>, vector<128x32xf32>, vector<32x128xf32> -> vector<32x128xf32>
    %648 = vector.broadcast %640 : vector<1x128xf32> to vector<32x128xf32>
    %649 = arith.addf %647, %648 : vector<32x128xf32>
    %650 = vector.extract_strided_slice %649 {offsets = [0, 0], sizes = [32, 64], strides = [1, 1]} : vector<32x128xf32> to vector<32x64xf32>
    %651 = vector.extract_strided_slice %649 {offsets = [0, 64], sizes = [32, 64], strides = [1, 1]} : vector<32x128xf32> to vector<32x64xf32>
    %652 = arith.negf %650 : vector<32x64xf32>
    %653 = math.exp %652 : vector<32x64xf32>
    %cst_185 = arith.constant 1.000000e+00 : f32
    %654 = vector.broadcast %cst_185 : f32 to vector<32x64xf32>
    %655 = arith.addf %654, %653 : vector<32x64xf32>
    %656 = arith.divf %654, %655 : vector<32x64xf32>
    %657 = arith.mulf %650, %656 : vector<32x64xf32>
    %658 = arith.mulf %657, %651 : vector<32x64xf32>
    %cst_186 = arith.constant dense<0.000000e+00> : vector<32x32xf32>
    %659 = tpu.matmul %658, %643, %cst_186 {dimension_numbers = #tpu.dot_dimension_numbers<[1], [1], [0], [0], [0, 0, 1, 0], [], []>} : vector<32x64xf32>, vector<32x64xf32>, vector<32x32xf32> -> vector<32x32xf32>
    %660 = vector.broadcast %646 : vector<1x32xf32> to vector<32x32xf32>
    %661 = arith.addf %659, %660 : vector<32x32xf32>
    %662 = vector.extract_strided_slice %661 {offsets = [0, 0], sizes = [16, 32], strides = [1, 1]} : vector<32x32xf32> to vector<16x32xf32>
    %663 = vector.extract_strided_slice %661 {offsets = [16, 0], sizes = [16, 32], strides = [1, 1]} : vector<32x32xf32> to vector<16x32xf32>
    %664 = tpu.concatenate %522, %662, %523, %663 in 0 : vector<16x32xf32>, vector<16x32xf32>, vector<16x32xf32>, vector<16x32xf32> -> vector<64x32xf32>
    %665 = vector.extract_strided_slice %0 {offsets = [18, 0], sizes = [1, 32], strides = [1, 1]} : vector<22x32xf32> to vector<1x32xf32>
    %666 = vector.extract_strided_slice %0 {offsets = [19, 0], sizes = [1, 32], strides = [1, 1]} : vector<22x32xf32> to vector<1x32xf32>
    %cst_187 = arith.constant dense<0.000000e+00> : vector<64xf32>
    %667 = vector.multi_reduction <add>, %664, %cst_187 [1] : vector<64x32xf32> to vector<64xf32>
    %668 = vector.shape_cast %667 : vector<64xf32> to vector<64x1xf32>
    %cst_188 = arith.constant 3.200000e+01 : f32
    %669 = vector.broadcast %cst_188 : f32 to vector<64x1xf32>
    %670 = arith.divf %668, %669 : vector<64x1xf32>
    %671 = vector.broadcast %670 : vector<64x1xf32> to vector<64x32xf32>
    %672 = arith.subf %664, %671 : vector<64x32xf32>
    %673 = arith.mulf %672, %672 : vector<64x32xf32>
    %cst_189 = arith.constant dense<0.000000e+00> : vector<64xf32>
    %674 = vector.multi_reduction <add>, %673, %cst_189 [1] : vector<64x32xf32> to vector<64xf32>
    %675 = vector.shape_cast %674 : vector<64xf32> to vector<64x1xf32>
    %cst_190 = arith.constant 3.200000e+01 : f32
    %676 = vector.broadcast %cst_190 : f32 to vector<64x1xf32>
    %677 = arith.divf %675, %676 : vector<64x1xf32>
    %cst_191 = arith.constant 9.99999974E-6 : f32
    %678 = vector.broadcast %cst_191 : f32 to vector<64x1xf32>
    %679 = arith.addf %677, %678 : vector<64x1xf32>
    %680 = math.rsqrt %679 : vector<64x1xf32>
    %681 = vector.broadcast %680 : vector<64x1xf32> to vector<64x32xf32>
    %682 = arith.mulf %672, %681 : vector<64x32xf32>
    %683 = vector.broadcast %665 : vector<1x32xf32> to vector<64x32xf32>
    %684 = arith.mulf %682, %683 : vector<64x32xf32>
    %685 = vector.broadcast %666 : vector<1x32xf32> to vector<64x32xf32>
    %686 = arith.addf %684, %685 : vector<64x32xf32>
    %cst_192 = arith.constant 5.000000e-01 : f32
    %687 = vector.broadcast %cst_192 : f32 to vector<64x32xf32>
    %688 = arith.mulf %687, %686 : vector<64x32xf32>
    %689 = arith.addf %688, %330 : vector<64x32xf32>
    %690 = vector.extract_strided_slice %0 {offsets = [20, 0], sizes = [1, 32], strides = [1, 1]} : vector<22x32xf32> to vector<1x32xf32>
    %691 = vector.extract_strided_slice %0 {offsets = [21, 0], sizes = [1, 32], strides = [1, 1]} : vector<22x32xf32> to vector<1x32xf32>
    %cst_193 = arith.constant dense<0.000000e+00> : vector<64xf32>
    %692 = vector.multi_reduction <add>, %689, %cst_193 [1] : vector<64x32xf32> to vector<64xf32>
    %693 = vector.shape_cast %692 : vector<64xf32> to vector<64x1xf32>
    %cst_194 = arith.constant 3.200000e+01 : f32
    %694 = vector.broadcast %cst_194 : f32 to vector<64x1xf32>
    %695 = arith.divf %693, %694 : vector<64x1xf32>
    %696 = vector.broadcast %695 : vector<64x1xf32> to vector<64x32xf32>
    %697 = arith.subf %689, %696 : vector<64x32xf32>
    %698 = arith.mulf %697, %697 : vector<64x32xf32>
    %cst_195 = arith.constant dense<0.000000e+00> : vector<64xf32>
    %699 = vector.multi_reduction <add>, %698, %cst_195 [1] : vector<64x32xf32> to vector<64xf32>
    %700 = vector.shape_cast %699 : vector<64xf32> to vector<64x1xf32>
    %cst_196 = arith.constant 3.200000e+01 : f32
    %701 = vector.broadcast %cst_196 : f32 to vector<64x1xf32>
    %702 = arith.divf %700, %701 : vector<64x1xf32>
    %cst_197 = arith.constant 9.99999974E-6 : f32
    %703 = vector.broadcast %cst_197 : f32 to vector<64x1xf32>
    %704 = arith.addf %702, %703 : vector<64x1xf32>
    %705 = math.rsqrt %704 : vector<64x1xf32>
    %706 = vector.broadcast %705 : vector<64x1xf32> to vector<64x32xf32>
    %707 = arith.mulf %697, %706 : vector<64x32xf32>
    %708 = vector.broadcast %690 : vector<1x32xf32> to vector<64x32xf32>
    %709 = arith.mulf %707, %708 : vector<64x32xf32>
    %710 = vector.broadcast %691 : vector<1x32xf32> to vector<64x32xf32>
    %711 = arith.addf %709, %710 : vector<64x32xf32>
    %712 = vector.broadcast %8 : f32 to vector<64x32xf32>
    %713 = arith.mulf %10, %712 : vector<64x32xf32>
    %714 = arith.addf %711, %713 : vector<64x32xf32>
    %715 = vector.shape_cast %714 : vector<64x32xf32> to vector<4x16x32xf32>
    %c0_198 = arith.constant 0 : index
    %c0_199 = arith.constant 0 : index
    %c0_200 = arith.constant 0 : index
    %716 = vector.load %arg20[%c0_198, %c0_199, %c0_200] : memref<4x16x32xf32, #tpu.memory_space<vmem>>, vector<4x16x32xf32>
    tpu.vector_store %arg20[%c0_198, %c0_199, %c0_200], %715 {strides = array<i32>} : memref<4x16x32xf32, #tpu.memory_space<vmem>>, vector<4x16x32xf32>,
    return
  }
}

</mosaic_0001>

<llo_original>
// kernel: conformer_layer_forward.1
$region0: #{conformer_layer_forward.1}
  #allocation0 [shape = 'u32[]', space=smem, size = 0x4, offset = 0x4, fixed_abs, tag = 'smem constant byte address 0x4 - core index']
  #allocation1 [shape = 'u32[72,128]{1,0:T(1,128)}', space=vmem, size = 0x9000, scoped, tag = 'internal scratch']
  %s0 = inlined_call_operand.vmem [shape: f32[4,16,32], index: 0, kind: input, shape index: {}]
  %s1 = inlined_call_operand.hbm [shape: f32[1,4], index: 1, kind: input, shape index: {}]
  %s2 = inlined_call_operand.vmem [shape: f32[22,32], index: 2, kind: input, shape index: {}]
  %s3 = inlined_call_operand.vmem [shape: f32[2,64], index: 3, kind: input, shape index: {}]
  %s4 = inlined_call_operand.vmem [shape: f32[3,128], index: 4, kind: input, shape index: {}]
  %s5 = inlined_call_operand.vmem [shape: f32[2,32,32], index: 5, kind: input, shape index: {}]
  %s6 = inlined_call_operand.vmem [shape: f32[32,128], index: 6, kind: input, shape index: {}]
  %s7 = inlined_call_operand.vmem [shape: f32[128,32], index: 7, kind: input, shape index: {}]
  %s8 = inlined_call_operand.vmem [shape: f32[32,96], index: 8, kind: input, shape index: {}]
  %s9 = inlined_call_operand.vmem [shape: f32[32,32], index: 9, kind: input, shape index: {}]
  %s10 = inlined_call_operand.vmem [shape: f32[32,64], index: 10, kind: input, shape index: {}]
  %s11 = inlined_call_operand.vmem [shape: f32[5,32], index: 11, kind: input, shape index: {}]
  %s12 = inlined_call_operand.vmem [shape: f32[32,32], index: 12, kind: input, shape index: {}]
  %s13 = inlined_call_operand.vmem [shape: f32[128,32], index: 13, kind: input, shape index: {}]
  %s14 = inlined_call_operand.vmem [shape: f32[32,64], index: 14, kind: input, shape index: {}]
  %s15 = inlined_call_operand.vmem [shape: f32[64,32], index: 15, kind: input, shape index: {}]
  %s16 = inlined_call_operand.vmem [shape: f32[32,32], index: 16, kind: input, shape index: {}]
  %s17 = inlined_call_operand.vmem [shape: f32[2,32,32], index: 17, kind: input, shape index: {}]
  %s18 = inlined_call_operand.vmem [shape: f32[128,32], index: 18, kind: input, shape index: {}]
  %s19 = inlined_call_operand.vmem [shape: f32[32,64], index: 19, kind: input, shape index: {}]
  %s20 = inlined_call_operand.hbm [shape: f32[4,16,32], index: 20, kind: output, shape index: {0}]
  %s21 = inlined_call_operand.vmem [shape: f32[4,16,64], index: 21, kind: output, shape index: {1}]
  %22 = xla_tuple %s20, %s21
  %s23 = sld [smem:[#allocation0]]
  $region102: #{conformer_layer_forward.1} parent=0
    _
  %s25 = ssub.s32 1, %s23
  %s26 = scalar_select 0, %s25, %s23
  $region1: #{conformer_layer_forward.1} parent=0
    #allocation2 [shape = 'u8[512]{0}', space=vmem, size = 0x400, scoped, tag = 'input window, operand 1, single buffered']
    #allocation3 [shape = 's32[1]{0}', space=sflag, size = 0x4, scoped, tag = 'scoped memory for conformer_layer_forward.1']
    #allocation4 [shape = 's32[1]{0}', space=sflag, size = 0x4, scoped, tag = 'scoped memory for conformer_layer_forward.1']
    #allocation5 [shape = 'u8[32768]{0}', space=vmem, size = 0x8000, scoped, tag = 'output window, operand 0, single buffered']
    %27 = vsyncpa [#allocation3], 0
    %28 = vsyncpa [#allocation4], 0
    // Predicated region
    $region2: #{conformer_layer_forward.1} parent=1 // pred_check
      _
    $region3: #{conformer_layer_forward.1} parent=1 // pred_check_branch
      %30 = sbr.rel (0) target = $region5
    $region4: #{conformer_layer_forward.1} parent=1 // pred_region
      _
    $region5: #{conformer_layer_forward.1} parent=1 // pred_fallthru
      _
    // Predicated region
    $region6: #{conformer_layer_forward.1} parent=1 // pred_check
      _
    $region7: #{conformer_layer_forward.1} parent=1 // pred_check_branch
      %32 = sbr.rel (0) target = $region9
    $region8: #{conformer_layer_forward.1} parent=1 // pred_region
      %34 = vsyncadd [#allocation3], 0
      %s36 = sshll.u32 %s1, 4
      %s37 = int_to_ptr.hbm [resolvable:$true] %s36
      %s38 = sshll.u32 [#allocation2], 4
      %s39 = int_to_ptr.vmem [resolvable:$true] %s38
      %41 = dma.hbm_to_vmem [thread:$0]  %s37, 16, %s39, [#allocation3]
    $region9: #{conformer_layer_forward.1} parent=1 // pred_fallthru
      _
    // Predicated region
    $region10: #{conformer_layer_forward.1} parent=1 // pred_check
      _
    $region11: #{conformer_layer_forward.1} parent=1 // pred_check_branch
      %43 = sbr.rel (0) target = $region13
    $region12: #{conformer_layer_forward.1} parent=1 // pred_region
      _
    $region13: #{conformer_layer_forward.1} parent=1 // pred_fallthru
      _
    // Predicated region
    $region14: #{conformer_layer_forward.1} parent=1 // pred_check
      _
    $region15: #{conformer_layer_forward.1} parent=1 // pred_check_branch
      %45 = sbr.rel (0) target = $region17
    $region16: #{conformer_layer_forward.1} parent=1 // pred_region
      _
    $region17: #{conformer_layer_forward.1} parent=1 // pred_fallthru
      _
    // Predicated region
    $region18: #{conformer_layer_forward.1} parent=1 // pred_check
      _
    $region19: #{conformer_layer_forward.1} parent=1 // pred_check_branch
      %47 = sbr.rel (0) target = $region21
    $region20: #{conformer_layer_forward.1} parent=1 // pred_region
      _
    $region21: #{conformer_layer_forward.1} parent=1 // pred_fallthru
      _
    // Predicated region
    $region22: #{conformer_layer_forward.1} parent=1 // pred_check
      _
    $region23: #{conformer_layer_forward.1} parent=1 // pred_check_branch
      %49 = sbr.rel (0) target = $region25
    $region24: #{conformer_layer_forward.1} parent=1 // pred_region
      _
    $region25: #{conformer_layer_forward.1} parent=1 // pred_fallthru
      _
    // Predicated region
    $region26: #{conformer_layer_forward.1} parent=1 // pred_check
      _
    $region27: #{conformer_layer_forward.1} parent=1 // pred_check_branch
      %51 = sbr.rel (0) target = $region29
    $region28: #{conformer_layer_forward.1} parent=1 // pred_region
      _
    $region29: #{conformer_layer_forward.1} parent=1 // pred_fallthru
      _
    // Predicated region
    $region30: #{conformer_layer_forward.1} parent=1 // pred_check
      _
    $region31: #{conformer_layer_forward.1} parent=1 // pred_check_branch
      %53 = sbr.rel (0) target = $region33
    $region32: #{conformer_layer_forward.1} parent=1 // pred_region
      _
    $region33: #{conformer_layer_forward.1} parent=1 // pred_fallthru
      _
    // Predicated region
    $region34: #{conformer_layer_forward.1} parent=1 // pred_check
      _
    $region35: #{conformer_layer_forward.1} parent=1 // pred_check_branch
      %55 = sbr.rel (0) target = $region37
    $region36: #{conformer_layer_forward.1} parent=1 // pred_region
      _
    $region37: #{conformer_layer_forward.1} parent=1 // pred_fallthru
      _
    // Predicated region
    $region38: #{conformer_layer_forward.1} parent=1 // pred_check
      _
    $region39: #{conformer_layer_forward.1} parent=1 // pred_check_branch
      %57 = sbr.rel (0) target = $region41
    $region40: #{conformer_layer_forward.1} parent=1 // pred_region
      _
    $region41: #{conformer_layer_forward.1} parent=1 // pred_fallthru
      _
    // Predicated region
    $region42: #{conformer_layer_forward.1} parent=1 // pred_check
      _
    $region43: #{conformer_layer_forward.1} parent=1 // pred_check_branch
      %59 = sbr.rel (0) target = $region45
    $region44: #{conformer_layer_forward.1} parent=1 // pred_region
      _
    $region45: #{conformer_layer_forward.1} parent=1 // pred_fallthru
      _
    // Predicated region
    $region46: #{conformer_layer_forward.1} parent=1 // pred_check
      _
    $region47: #{conformer_layer_forward.1} parent=1 // pred_check_branch
      %61 = sbr.rel (0) target = $region49
    $region48: #{conformer_layer_forward.1} parent=1 // pred_region
      _
    $region49: #{conformer_layer_forward.1} parent=1 // pred_fallthru
      _
    // Predicated region
    $region50: #{conformer_layer_forward.1} parent=1 // pred_check
      _
    $region51: #{conformer_layer_forward.1} parent=1 // pred_check_branch
      %63 = sbr.rel (0) target = $region53
    $region52: #{conformer_layer_forward.1} parent=1 // pred_region
      _
    $region53: #{conformer_layer_forward.1} parent=1 // pred_fallthru
      _
    // Predicated region
    $region54: #{conformer_layer_forward.1} parent=1 // pred_check
      _
    $region55: #{conformer_layer_forward.1} parent=1 // pred_check_branch
      %65 = sbr.rel (0) target = $region57
    $region56: #{conformer_layer_forward.1} parent=1 // pred_region
      _
    $region57: #{conformer_layer_forward.1} parent=1 // pred_fallthru
      _
    // Predicated region
    $region58: #{conformer_layer_forward.1} parent=1 // pred_check
      _
    $region59: #{conformer_layer_forward.1} parent=1 // pred_check_branch
      %67 = sbr.rel (0) target = $region61
    $region60: #{conformer_layer_forward.1} parent=1 // pred_region
      _
    $region61: #{conformer_layer_forward.1} parent=1 // pred_fallthru
      _
    // Predicated region
    $region62: #{conformer_layer_forward.1} parent=1 // pred_check
      _
    $region63: #{conformer_layer_forward.1} parent=1 // pred_check_branch
      %69 = sbr.rel (0) target = $region65
    $region64: #{conformer_layer_forward.1} parent=1 // pred_region
      _
    $region65: #{conformer_layer_forward.1} parent=1 // pred_fallthru
      _
    // Predicated region
    $region66: #{conformer_layer_forward.1} parent=1 // pred_check
      _
    $region67: #{conformer_layer_forward.1} parent=1 // pred_check_branch
      %71 = sbr.rel (0) target = $region69
    $region68: #{conformer_layer_forward.1} parent=1 // pred_region
      _
    $region69: #{conformer_layer_forward.1} parent=1 // pred_fallthru
      _
    // Predicated region
    $region70: #{conformer_layer_forward.1} parent=1 // pred_check
      _
    $region71: #{conformer_layer_forward.1} parent=1 // pred_check_branch
      %73 = sbr.rel (0) target = $region73
    $region72: #{conformer_layer_forward.1} parent=1 // pred_region
      _
    $region73: #{conformer_layer_forward.1} parent=1 // pred_fallthru
      _
    // Predicated region
    $region74: #{conformer_layer_forward.1} parent=1 // pred_check
      _
    $region75: #{conformer_layer_forward.1} parent=1 // pred_check_branch
      %75 = sbr.rel (0) target = $region77
    $region76: #{conformer_layer_forward.1} parent=1 // pred_region
      _
    $region77: #{conformer_layer_forward.1} parent=1 // pred_fallthru
      _
    // Predicated region
    $region78: #{conformer_layer_forward.1} parent=1 // pred_check
      _
    $region79: #{conformer_layer_forward.1} parent=1 // pred_check_branch
      %77 = sbr.rel (0) target = $region81
    $region80: #{conformer_layer_forward.1} parent=1 // pred_region
      _
    $region81: #{conformer_layer_forward.1} parent=1 // pred_fallthru
      _
    // Predicated region
    $region82: #{conformer_layer_forward.1} parent=1 // pred_check
      _
    $region83: #{conformer_layer_forward.1} parent=1 // pred_check_branch
      %79 = sbr.rel (0) target = $region85
    $region84: #{conformer_layer_forward.1} parent=1 // pred_region
      %81 = dma.done [#allocation3], 16
    $region85: #{conformer_layer_forward.1} parent=1 // pred_fallthru
      _
    %v82 = vld [vmem:[%s2] sm:$0xff]
    %v83 = vld [vmem:[%s2 + $0x8] sm:$0xff]
    %v84 = vld [vmem:[%s2 + $0x10] sm:$0x3f]
    %v85 = vld [vmem:[%s3] sm:$0x3]
    %v86 = vld [vmem:[%s4] sm:$0x7]
    %v87 = vld [vmem:[#allocation2] sm:$0x1]
    %s88 = vtos %v87
    %90 = vrot.lane.b32.xlu0 %v87, 127
    %v91 = vpop.permute.xlu0 %90
    %s93 = vtos %v91
    %94 = vrot.lane.b32.xlu0 %v87, 126
    %v95 = vpop.permute.xlu0 %94
    %s97 = vtos %v95
    %v98 = vld [vmem:[%s0] sm:$0xff]
    %v99 = vld [vmem:[%s0 + $0x8] sm:$0xff]
    %v100 = vld [vmem:[%s0 + $0x10] sm:$0xff]
    %v101 = vld [vmem:[%s0 + $0x18] sm:$0xff]
    %v102 = vld [vmem:[%s0 + $0x20] sm:$0xff]
    %v103 = vld [vmem:[%s0 + $0x28] sm:$0xff]
    %v104 = vld [vmem:[%s0 + $0x30] sm:$0xff]
    %v105 = vld [vmem:[%s0 + $0x38] sm:$0xff]
    %v106 = vld [vmem:[%s5] sm:$0xff]
    %v107 = vld [vmem:[%s5 + $0x8] sm:$0xff]
    %v108 = vld [vmem:[%s5 + $0x10] sm:$0xff]
    %v109 = vld [vmem:[%s5 + $0x18] sm:$0xff]
    %vm110 = vcmask 261120
    %v112 = vsel %vm110, %v98, 0
    %v115 = vsel %vm110, %v99, 0
    %v118 = vsel %vm110, %v100, 0
    %v121 = vsel %vm110, %v101, 0
    %123 = vmatpush.msra.mxu0 0.0
    %124 = vmatpush.msra.mxu0 0.0
    %125 = vmatpush.msra.mxu0 0.0
    %126 = vmatpush.msra.mxu0 0.0
    %127 = vmatpush.msra.mxu0 0.0
    %128 = vmatpush.msra.mxu0 0.0
    %129 = vmatpush.msra.mxu0 0.0
    %130 = vmatpush.msra.mxu0 0.0
    %131 = vmatpush.msra.mxu0 0.0
    %132 = vmatpush.msra.mxu0 0.0
    %133 = vmatpush.msra.mxu0 0.0
    %134 = vmatpush.msra.mxu0 0.0
    %135 = vmatpush.msra.mxu0 %v109
    %136 = vmatpush.msra.mxu0 %v108
    %137 = vmatpush.msra.mxu0 %v107
    %138 = vmatpush.msra.mxu0 %v106
    %139 = vmatmul.f32.gmra.mxu0 %v112
    %v140 = vpop.f32.mrf.mxu0
    %v141 = vadd.f32 0.0, %v140
    %142 = vmatmul.f32.gmra.mxu0 %v115
    %v143 = vpop.f32.mrf.mxu0
    %v144 = vadd.f32 0.0, %v143
    %145 = vmatmul.f32.gmra.mxu0 %v118
    %v146 = vpop.f32.mrf.mxu0
    %v147 = vadd.f32 0.0, %v146
    %148 = vmatmul.f32.gmra.mxu0 %v121
    %v149 = vpop.f32.mrf.mxu0
    %v150 = vadd.f32 0.0, %v149
    %151 = vdwg.mxu0
    %s152 = scalar_lea.vmem %s5, 32
    %v153 = vld [vmem:[%s152] sm:$0xff]
    %v154 = vld [vmem:[%s152 + $0x8] sm:$0xff]
    %v155 = vld [vmem:[%s152 + $0x10] sm:$0xff]
    %v156 = vld [vmem:[%s152 + $0x18] sm:$0xff]
    %v158 = vsel %vm110, %v102, 0
    %v161 = vsel %vm110, %v103, 0
    %v164 = vsel %vm110, %v104, 0
    %v167 = vsel %vm110, %v105, 0
    %169 = vmatpush.msra.mxu0 0.0
    %170 = vmatpush.msra.mxu0 0.0
    %171 = vmatpush.msra.mxu0 0.0
    %172 = vmatpush.msra.mxu0 0.0
    %173 = vmatpush.msra.mxu0 0.0
    %174 = vmatpush.msra.mxu0 0.0
    %175 = vmatpush.msra.mxu0 0.0
    %176 = vmatpush.msra.mxu0 0.0
    %177 = vmatpush.msra.mxu0 0.0
    %178 = vmatpush.msra.mxu0 0.0
    %179 = vmatpush.msra.mxu0 0.0
    %180 = vmatpush.msra.mxu0 0.0
    %181 = vmatpush.msra.mxu0 %v156
    %182 = vmatpush.msra.mxu0 %v155
    %183 = vmatpush.msra.mxu0 %v154
    %184 = vmatpush.msra.mxu0 %v153
    %185 = vmatmul.f32.gmra.mxu0 %v158
    %v186 = vpop.f32.mrf.mxu0
    %v187 = vadd.f32 0.0, %v186
    %188 = vmatmul.f32.gmra.mxu0 %v161
    %v189 = vpop.f32.mrf.mxu0
    %v190 = vadd.f32 0.0, %v189
    %191 = vmatmul.f32.gmra.mxu0 %v164
    %v192 = vpop.f32.mrf.mxu0
    %v193 = vadd.f32 0.0, %v192
    %194 = vmatmul.f32.gmra.mxu0 %v167
    %v195 = vpop.f32.mrf.mxu0
    %v196 = vadd.f32 0.0, %v195
    %197 = vdwg.mxu0
    %v198 = vstv %s88
    %v199 = vmul.f32 %v141, %v198
    %v200 = vmul.f32 %v144, %v198
    %v201 = vmul.f32 %v147, %v198
    %v202 = vmul.f32 %v150, %v198
    %v203 = vmul.f32 %v187, %v198
    %v204 = vmul.f32 %v190, %v198
    %v205 = vmul.f32 %v193, %v198
    %v206 = vmul.f32 %v196, %v198
    %v207 = vsel %vm110, %v199, 0.0
    %208 = vadd.xlane.f32.xlu0 %v207
    %v209 = vpop.xlane.xlu0 %208
    %v210 = vsel %vm110, %v200, 0.0
    %211 = vadd.xlane.f32.xlu0 %v210
    %v212 = vpop.xlane.xlu0 %211
    %v213 = vsel %vm110, %v201, 0.0
    %214 = vadd.xlane.f32.xlu0 %v213
    %v215 = vpop.xlane.xlu0 %214
    %v216 = vsel %vm110, %v202, 0.0
    %217 = vadd.xlane.f32.xlu0 %v216
    %v218 = vpop.xlane.xlu0 %217
    %v219 = vsel %vm110, %v203, 0.0
    %220 = vadd.xlane.f32.xlu0 %v219
    %v221 = vpop.xlane.xlu0 %220
    %v222 = vsel %vm110, %v204, 0.0
    %223 = vadd.xlane.f32.xlu0 %v222
    %v224 = vpop.xlane.xlu0 %223
    %v225 = vsel %vm110, %v205, 0.0
    %226 = vadd.xlane.f32.xlu0 %v225
    %v227 = vpop.xlane.xlu0 %226
    %v228 = vsel %vm110, %v206, 0.0
    %229 = vadd.xlane.f32.xlu0 %v228
    %v230 = vpop.xlane.xlu0 %229
    %v231 = vrcp.pop 32.0
    %v232 = vmul.f32 32.0, %v231
    %v233 = vsub.f32 1.0, %v232
    %v234 = vmul.f32 %v231, %v233
    %v235 = vadd.f32 %v231, %v234
    %vm236 = vweird.f32 %v231
    %v237 = vsel %vm236, %v231, %v235
    %v238 = vmul.f32 %v209, %v237
    %v239 = vmul.f32 %v212, %v237
    %v240 = vmul.f32 %v215, %v237
    %v241 = vmul.f32 %v218, %v237
    %v242 = vmul.f32 %v221, %v237
    %v243 = vmul.f32 %v224, %v237
    %v244 = vmul.f32 %v227, %v237
    %v245 = vmul.f32 %v230, %v237
    %v246 = vsub.f32 %v199, %v238
    %v247 = vsub.f32 %v200, %v239
    %v248 = vsub.f32 %v201, %v240
    %v249 = vsub.f32 %v202, %v241
    %v250 = vsub.f32 %v203, %v242
    %v251 = vsub.f32 %v204, %v243
    %v252 = vsub.f32 %v205, %v244
    %v253 = vsub.f32 %v206, %v245
    %v254 = vmul.f32 %v246, %v246
    %v255 = vmul.f32 %v247, %v247
    %v256 = vmul.f32 %v248, %v248
    %v257 = vmul.f32 %v249, %v249
    %v258 = vmul.f32 %v250, %v250
    %v259 = vmul.f32 %v251, %v251
    %v260 = vmul.f32 %v252, %v252
    %v261 = vmul.f32 %v253, %v253
    %v262 = vsel %vm110, %v254, 0.0
    %263 = vadd.xlane.f32.xlu0 %v262
    %v264 = vpop.xlane.xlu0 %263
    %v265 = vsel %vm110, %v255, 0.0
    %266 = vadd.xlane.f32.xlu0 %v265
    %v267 = vpop.xlane.xlu0 %266
    %v268 = vsel %vm110, %v256, 0.0
    %269 = vadd.xlane.f32.xlu0 %v268
    %v270 = vpop.xlane.xlu0 %269
    %v271 = vsel %vm110, %v257, 0.0
    %272 = vadd.xlane.f32.xlu0 %v271
    %v273 = vpop.xlane.xlu0 %272
    %v274 = vsel %vm110, %v258, 0.0
    %275 = vadd.xlane.f32.xlu0 %v274
    %v276 = vpop.xlane.xlu0 %275
    %v277 = vsel %vm110, %v259, 0.0
    %278 = vadd.xlane.f32.xlu0 %v277
    %v279 = vpop.xlane.xlu0 %278
    %v280 = vsel %vm110, %v260, 0.0
    %281 = vadd.xlane.f32.xlu0 %v280
    %v282 = vpop.xlane.xlu0 %281
    %v283 = vsel %vm110, %v261, 0.0
    %284 = vadd.xlane.f32.xlu0 %v283
    %v285 = vpop.xlane.xlu0 %284
    %v286 = vmul.f32 %v264, %v237
    %v287 = vmul.f32 %v267, %v237
    %v288 = vmul.f32 %v270, %v237
    %v289 = vmul.f32 %v273, %v237
    %v290 = vmul.f32 %v276, %v237
    %v291 = vmul.f32 %v279, %v237
    %v292 = vmul.f32 %v282, %v237
    %v293 = vmul.f32 %v285, %v237
    %v294 = vadd.f32 %v286, 1e-05
    %v295 = vadd.f32 %v287, 1e-05
    %v296 = vadd.f32 %v288, 1e-05
    %v297 = vadd.f32 %v289, 1e-05
    %v298 = vadd.f32 %v290, 1e-05
    %v299 = vadd.f32 %v291, 1e-05
    %v300 = vadd.f32 %v292, 1e-05
    %v301 = vadd.f32 %v293, 1e-05
    %v302 = vrsqrt.pop %v294
    %v303 = vmul.f32 %v302, %v294
    %v304 = vmul.f32 %v303, %v302
    %v305 = vmul.f32 0.5, %v304
    %v306 = vsub.f32 1.5, %v305
    %v307 = vmul.f32 %v302, %v306
    %vm308 = vweird.f32 %v294
    %vm309 = vweird.f32 %v302
    %vm310 = vmor %vm308, %vm309
    %v311 = vsel %vm310, %v302, %v307
    %v312 = vrsqrt.pop %v295
    %v313 = vmul.f32 %v312, %v295
    %v314 = vmul.f32 %v313, %v312
    %v315 = vmul.f32 0.5, %v314
    %v316 = vsub.f32 1.5, %v315
    %v317 = vmul.f32 %v312, %v316
    %vm318 = vweird.f32 %v295
    %vm319 = vweird.f32 %v312
    %vm320 = vmor %vm318, %vm319
    %v321 = vsel %vm320, %v312, %v317
    %v322 = vrsqrt.pop %v296
    %v323 = vmul.f32 %v322, %v296
    %v324 = vmul.f32 %v323, %v322
    %v325 = vmul.f32 0.5, %v324
    %v326 = vsub.f32 1.5, %v325
    %v327 = vmul.f32 %v322, %v326
    %vm328 = vweird.f32 %v296
    %vm329 = vweird.f32 %v322
    %vm330 = vmor %vm328, %vm329
    %v331 = vsel %vm330, %v322, %v327
    %v332 = vrsqrt.pop %v297
    %v333 = vmul.f32 %v332, %v297
    %v334 = vmul.f32 %v333, %v332
    %v335 = vmul.f32 0.5, %v334
    %v336 = vsub.f32 1.5, %v335
    %v337 = vmul.f32 %v332, %v336
    %vm338 = vweird.f32 %v297
    %vm339 = vweird.f32 %v332
    %vm340 = vmor %vm338, %vm339
    %v341 = vsel %vm340, %v332, %v337
    %v342 = vrsqrt.pop %v298
    %v343 = vmul.f32 %v342, %v298
    %v344 = vmul.f32 %v343, %v342
    %v345 = vmul.f32 0.5, %v344
    %v346 = vsub.f32 1.5, %v345
    %v347 = vmul.f32 %v342, %v346
    %vm348 = vweird.f32 %v298
    %vm349 = vweird.f32 %v342
    %vm350 = vmor %vm348, %vm349
    %v351 = vsel %vm350, %v342, %v347
    %v352 = vrsqrt.pop %v299
    %v353 = vmul.f32 %v352, %v299
    %v354 = vmul.f32 %v353, %v352
    %v355 = vmul.f32 0.5, %v354
    %v356 = vsub.f32 1.5, %v355
    %v357 = vmul.f32 %v352, %v356
    %vm358 = vweird.f32 %v299
    %vm359 = vweird.f32 %v352
    %vm360 = vmor %vm358, %vm359
    %v361 = vsel %vm360, %v352, %v357
    %v362 = vrsqrt.pop %v300
    %v363 = vmul.f32 %v362, %v300
    %v364 = vmul.f32 %v363, %v362
    %v365 = vmul.f32 0.5, %v364
    %v366 = vsub.f32 1.5, %v365
    %v367 = vmul.f32 %v362, %v366
    %vm368 = vweird.f32 %v300
    %vm369 = vweird.f32 %v362
    %vm370 = vmor %vm368, %vm369
    %v371 = vsel %vm370, %v362, %v367
    %v372 = vrsqrt.pop %v301
    %v373 = vmul.f32 %v372, %v301
    %v374 = vmul.f32 %v373, %v372
    %v375 = vmul.f32 0.5, %v374
    %v376 = vsub.f32 1.5, %v375
    %v377 = vmul.f32 %v372, %v376
    %vm378 = vweird.f32 %v301
    %vm379 = vweird.f32 %v372
    %vm380 = vmor %vm378, %vm379
    %v381 = vsel %vm380, %v372, %v377
    %v382 = vmul.f32 %v246, %v311
    %v383 = vmul.f32 %v247, %v321
    %v384 = vmul.f32 %v248, %v331
    %v385 = vmul.f32 %v249, %v341
    %v386 = vmul.f32 %v250, %v351
    %v387 = vmul.f32 %v251, %v361
    %v388 = vmul.f32 %v252, %v371
    %v389 = vmul.f32 %v253, %v381
    %v390 = vperm.slane %v82, 0
    %v391 = vmul.f32 %v382, %v390
    %v392 = vmul.f32 %v383, %v390
    %v393 = vmul.f32 %v384, %v390
    %v394 = vmul.f32 %v385, %v390
    %v395 = vmul.f32 %v386, %v390
    %v396 = vmul.f32 %v387, %v390
    %v397 = vmul.f32 %v388, %v390
    %v398 = vmul.f32 %v389, %v390
    %v399 = vperm.slane %v82, 1
    %v400 = vadd.f32 %v391, %v399
    %v401 = vadd.f32 %v392, %v399
    %v402 = vadd.f32 %v393, %v399
    %v403 = vadd.f32 %v394, %v399
    %v404 = vadd.f32 %v395, %v399
    %v405 = vadd.f32 %v396, %v399
    %v406 = vadd.f32 %v397, %v399
    %v407 = vadd.f32 %v398, %v399
    %v408 = vld [vmem:[%s6] sm:$0xff]
    %v409 = vld [vmem:[%s6 + $0x8] sm:$0xff]
    %v410 = vld [vmem:[%s6 + $0x10] sm:$0xff]
    %v411 = vld [vmem:[%s6 + $0x18] sm:$0xff]
    %v412 = vperm.slane %v86, 0
    %v414 = vsel %vm110, %v400, 0
    %v417 = vsel %vm110, %v401, 0
    %v420 = vsel %vm110, %v402, 0
    %v423 = vsel %vm110, %v403, 0
    %v426 = vsel %vm110, %v404, 0
    %v429 = vsel %vm110, %v405, 0
    %v432 = vsel %vm110, %v406, 0
    %v435 = vsel %vm110, %v407, 0
    %437 = vmatpush.msra.mxu0 0.0
    %438 = vmatpush.msra.mxu0 0.0
    %439 = vmatpush.msra.mxu0 0.0
    %440 = vmatpush.msra.mxu0 0.0
    %441 = vmatpush.msra.mxu0 0.0
    %442 = vmatpush.msra.mxu0 0.0
    %443 = vmatpush.msra.mxu0 0.0
    %444 = vmatpush.msra.mxu0 0.0
    %445 = vmatpush.msra.mxu0 0.0
    %446 = vmatpush.msra.mxu0 0.0
    %447 = vmatpush.msra.mxu0 0.0
    %448 = vmatpush.msra.mxu0 0.0
    %449 = vmatpush.msra.mxu0 %v411
    %450 = vmatpush.msra.mxu0 %v410
    %451 = vmatpush.msra.mxu0 %v409
    %452 = vmatpush.msra.mxu0 %v408
    %453 = vmatmul.f32.gmra.mxu0 %v414
    %v454 = vpop.f32.mrf.mxu0
    %v455 = vadd.f32 %v412, %v454
    %456 = vmatmul.f32.gmra.mxu0 %v417
    %v457 = vpop.f32.mrf.mxu0
    %v458 = vadd.f32 %v412, %v457
    %459 = vmatmul.f32.gmra.mxu0 %v420
    %v460 = vpop.f32.mrf.mxu0
    %v461 = vadd.f32 %v412, %v460
    %462 = vmatmul.f32.gmra.mxu0 %v423
    %v463 = vpop.f32.mrf.mxu0
    %v464 = vadd.f32 %v412, %v463
    %465 = vmatmul.f32.gmra.mxu0 %v426
    %v466 = vpop.f32.mrf.mxu0
    %v467 = vadd.f32 %v412, %v466
    %468 = vmatmul.f32.gmra.mxu0 %v429
    %v469 = vpop.f32.mrf.mxu0
    %v470 = vadd.f32 %v412, %v469
    %471 = vmatmul.f32.gmra.mxu0 %v432
    %v472 = vpop.f32.mrf.mxu0
    %v473 = vadd.f32 %v412, %v472
    %474 = vmatmul.f32.gmra.mxu0 %v435
    %v475 = vpop.f32.mrf.mxu0
    %v476 = vadd.f32 %v412, %v475
    %477 = vdwg.mxu0
    %v478 = vmul.f32 %v455, %v455
    %v479 = vmul.f32 %v458, %v458
    %v480 = vmul.f32 %v461, %v461
    %v481 = vmul.f32 %v464, %v464
    %v482 = vmul.f32 %v467, %v467
    %v483 = vmul.f32 %v470, %v470
    %v484 = vmul.f32 %v473, %v473
    %v485 = vmul.f32 %v476, %v476
    %v486 = vmul.f32 %v455, %v478
    %v487 = vmul.f32 %v458, %v479
    %v488 = vmul.f32 %v461, %v480
    %v489 = vmul.f32 %v464, %v481
    %v490 = vmul.f32 %v467, %v482
    %v491 = vmul.f32 %v470, %v483
    %v492 = vmul.f32 %v473, %v484
    %v493 = vmul.f32 %v476, %v485
    %v494 = vmul.f32 %v486, 0.044715
    %v495 = vmul.f32 %v487, 0.044715
    %v496 = vmul.f32 %v488, 0.044715
    %v497 = vmul.f32 %v489, 0.044715
    %v498 = vmul.f32 %v490, 0.044715
    %v499 = vmul.f32 %v491, 0.044715
    %v500 = vmul.f32 %v492, 0.044715
    %v501 = vmul.f32 %v493, 0.044715
    %v502 = vadd.f32 %v455, %v494
    %v503 = vadd.f32 %v458, %v495
    %v504 = vadd.f32 %v461, %v496
    %v505 = vadd.f32 %v464, %v497
    %v506 = vadd.f32 %v467, %v498
    %v507 = vadd.f32 %v470, %v499
    %v508 = vadd.f32 %v473, %v500
    %v509 = vadd.f32 %v476, %v501
    %v510 = vmul.f32 %v502, 0.7978846
    %v511 = vmul.f32 %v503, 0.7978846
    %v512 = vmul.f32 %v504, 0.7978846
    %v513 = vmul.f32 %v505, 0.7978846
    %v514 = vmul.f32 %v506, 0.7978846
    %v515 = vmul.f32 %v507, 0.7978846
    %v516 = vmul.f32 %v508, 0.7978846
    %v517 = vmul.f32 %v509, 0.7978846
    %v518 = vtanh.pop %v510
    %v519 = vtanh.pop %v511
    %v520 = vtanh.pop %v512
    %v521 = vtanh.pop %v513
    %v522 = vtanh.pop %v514
    %v523 = vtanh.pop %v515
    %v524 = vtanh.pop %v516
    %v525 = vtanh.pop %v517
    %v526 = vadd.f32 %v518, 1.0
    %v527 = vadd.f32 %v519, 1.0
    %v528 = vadd.f32 %v520, 1.0
    %v529 = vadd.f32 %v521, 1.0
    %v530 = vadd.f32 %v522, 1.0
    %v531 = vadd.f32 %v523, 1.0
    %v532 = vadd.f32 %v524, 1.0
    %v533 = vadd.f32 %v525, 1.0
    %v534 = vmul.f32 %v526, 0.5
    %v535 = vmul.f32 %v527, 0.5
    %v536 = vmul.f32 %v528, 0.5
    %v537 = vmul.f32 %v529, 0.5
    %v538 = vmul.f32 %v530, 0.5
    %v539 = vmul.f32 %v531, 0.5
    %v540 = vmul.f32 %v532, 0.5
    %v541 = vmul.f32 %v533, 0.5
    %v542 = vmul.f32 %v455, %v534
    %v543 = vmul.f32 %v458, %v535
    %v544 = vmul.f32 %v461, %v536
    %v545 = vmul.f32 %v464, %v537
    %v546 = vmul.f32 %v467, %v538
    %v547 = vmul.f32 %v470, %v539
    %v548 = vmul.f32 %v473, %v540
    %v549 = vmul.f32 %v476, %v541
    %v550 = vld [vmem:[%s7] sm:$0xff]
    %v551 = vld [vmem:[%s7 + $0x8] sm:$0xff]
    %v552 = vld [vmem:[%s7 + $0x10] sm:$0xff]
    %v553 = vld [vmem:[%s7 + $0x18] sm:$0xff]
    %v554 = vld [vmem:[%s7 + $0x20] sm:$0xff]
    %v555 = vld [vmem:[%s7 + $0x28] sm:$0xff]
    %v556 = vld [vmem:[%s7 + $0x30] sm:$0xff]
    %v557 = vld [vmem:[%s7 + $0x38] sm:$0xff]
    %v558 = vld [vmem:[%s7 + $0x40] sm:$0xff]
    %v559 = vld [vmem:[%s7 + $0x48] sm:$0xff]
    %v560 = vld [vmem:[%s7 + $0x50] sm:$0xff]
    %v561 = vld [vmem:[%s7 + $0x58] sm:$0xff]
    %v562 = vld [vmem:[%s7 + $0x60] sm:$0xff]
    %v563 = vld [vmem:[%s7 + $0x68] sm:$0xff]
    %v564 = vld [vmem:[%s7 + $0x70] sm:$0xff]
    %v565 = vld [vmem:[%s7 + $0x78] sm:$0xff]
    %v566 = vperm.slane %v82, 2
    %567 = vmatpush.msra.mxu0 %v565
    %568 = vmatpush.msra.mxu0 %v564
    %569 = vmatpush.msra.mxu0 %v563
    %570 = vmatpush.msra.mxu0 %v562
    %571 = vmatpush.msra.mxu0 %v561
    %572 = vmatpush.msra.mxu0 %v560
    %573 = vmatpush.msra.mxu0 %v559
    %574 = vmatpush.msra.mxu0 %v558
    %575 = vmatpush.msra.mxu0 %v557
    %576 = vmatpush.msra.mxu0 %v556
    %577 = vmatpush.msra.mxu0 %v555
    %578 = vmatpush.msra.mxu0 %v554
    %579 = vmatpush.msra.mxu0 %v553
    %580 = vmatpush.msra.mxu0 %v552
    %581 = vmatpush.msra.mxu0 %v551
    %582 = vmatpush.msra.mxu0 %v550
    %583 = vmatmul.f32.gmra.mxu0 %v542
    %v584 = vpop.f32.mrf.mxu0
    %v585 = vadd.f32 %v566, %v584
    %586 = vmatmul.f32.gmra.mxu0 %v543
    %v587 = vpop.f32.mrf.mxu0
    %v588 = vadd.f32 %v566, %v587
    %589 = vmatmul.f32.gmra.mxu0 %v544
    %v590 = vpop.f32.mrf.mxu0
    %v591 = vadd.f32 %v566, %v590
    %592 = vmatmul.f32.gmra.mxu0 %v545
    %v593 = vpop.f32.mrf.mxu0
    %v594 = vadd.f32 %v566, %v593
    %595 = vmatmul.f32.gmra.mxu0 %v546
    %v596 = vpop.f32.mrf.mxu0
    %v597 = vadd.f32 %v566, %v596
    %598 = vmatmul.f32.gmra.mxu0 %v547
    %v599 = vpop.f32.mrf.mxu0
    %v600 = vadd.f32 %v566, %v599
    %601 = vmatmul.f32.gmra.mxu0 %v548
    %v602 = vpop.f32.mrf.mxu0
    %v603 = vadd.f32 %v566, %v602
    %604 = vmatmul.f32.gmra.mxu0 %v549
    %v605 = vpop.f32.mrf.mxu0
    %v606 = vadd.f32 %v566, %v605
    %607 = vdwg.mxu0
    %v608 = vmul.f32 %v585, 0.5
    %v609 = vmul.f32 %v588, 0.5
    %v610 = vmul.f32 %v591, 0.5
    %v611 = vmul.f32 %v594, 0.5
    %v612 = vmul.f32 %v597, 0.5
    %v613 = vmul.f32 %v600, 0.5
    %v614 = vmul.f32 %v603, 0.5
    %v615 = vmul.f32 %v606, 0.5
    %v616 = vadd.f32 %v608, %v199
    %v617 = vadd.f32 %v609, %v200
    %v618 = vadd.f32 %v610, %v201
    %v619 = vadd.f32 %v611, %v202
    %v620 = vadd.f32 %v612, %v203
    %v621 = vadd.f32 %v613, %v204
    %v622 = vadd.f32 %v614, %v205
    %v623 = vadd.f32 %v615, %v206
    %v624 = vsel %vm110, %v616, 0.0
    %625 = vadd.xlane.f32.xlu0 %v624
    %v626 = vpop.xlane.xlu0 %625
    %v627 = vsel %vm110, %v617, 0.0
    %628 = vadd.xlane.f32.xlu0 %v627
    %v629 = vpop.xlane.xlu0 %628
    %v630 = vsel %vm110, %v618, 0.0
    %631 = vadd.xlane.f32.xlu0 %v630
    %v632 = vpop.xlane.xlu0 %631
    %v633 = vsel %vm110, %v619, 0.0
    %634 = vadd.xlane.f32.xlu0 %v633
    %v635 = vpop.xlane.xlu0 %634
    %v636 = vsel %vm110, %v620, 0.0
    %637 = vadd.xlane.f32.xlu0 %v636
    %v638 = vpop.xlane.xlu0 %637
    %v639 = vsel %vm110, %v621, 0.0
    %640 = vadd.xlane.f32.xlu0 %v639
    %v641 = vpop.xlane.xlu0 %640
    %v642 = vsel %vm110, %v622, 0.0
    %643 = vadd.xlane.f32.xlu0 %v642
    %v644 = vpop.xlane.xlu0 %643
    %v645 = vsel %vm110, %v623, 0.0
    %646 = vadd.xlane.f32.xlu0 %v645
    %v647 = vpop.xlane.xlu0 %646
    %v648 = vmul.f32 %v626, %v237
    %v649 = vmul.f32 %v629, %v237
    %v650 = vmul.f32 %v632, %v237
    %v651 = vmul.f32 %v635, %v237
    %v652 = vmul.f32 %v638, %v237
    %v653 = vmul.f32 %v641, %v237
    %v654 = vmul.f32 %v644, %v237
    %v655 = vmul.f32 %v647, %v237
    %v656 = vsub.f32 %v616, %v648
    %v657 = vsub.f32 %v617, %v649
    %v658 = vsub.f32 %v618, %v650
    %v659 = vsub.f32 %v619, %v651
    %v660 = vsub.f32 %v620, %v652
    %v661 = vsub.f32 %v621, %v653
    %v662 = vsub.f32 %v622, %v654
    %v663 = vsub.f32 %v623, %v655
    %v664 = vmul.f32 %v656, %v656
    %v665 = vmul.f32 %v657, %v657
    %v666 = vmul.f32 %v658, %v658
    %v667 = vmul.f32 %v659, %v659
    %v668 = vmul.f32 %v660, %v660
    %v669 = vmul.f32 %v661, %v661
    %v670 = vmul.f32 %v662, %v662
    %v671 = vmul.f32 %v663, %v663
    %v672 = vsel %vm110, %v664, 0.0
    %673 = vadd.xlane.f32.xlu0 %v672
    %v674 = vpop.xlane.xlu0 %673
    %v675 = vsel %vm110, %v665, 0.0
    %676 = vadd.xlane.f32.xlu0 %v675
    %v677 = vpop.xlane.xlu0 %676
    %v678 = vsel %vm110, %v666, 0.0
    %679 = vadd.xlane.f32.xlu0 %v678
    %v680 = vpop.xlane.xlu0 %679
    %v681 = vsel %vm110, %v667, 0.0
    %682 = vadd.xlane.f32.xlu0 %v681
    %v683 = vpop.xlane.xlu0 %682
    %v684 = vsel %vm110, %v668, 0.0
    %685 = vadd.xlane.f32.xlu0 %v684
    %v686 = vpop.xlane.xlu0 %685
    %v687 = vsel %vm110, %v669, 0.0
    %688 = vadd.xlane.f32.xlu0 %v687
    %v689 = vpop.xlane.xlu0 %688
    %v690 = vsel %vm110, %v670, 0.0
    %691 = vadd.xlane.f32.xlu0 %v690
    %v692 = vpop.xlane.xlu0 %691
    %v693 = vsel %vm110, %v671, 0.0
    %694 = vadd.xlane.f32.xlu0 %v693
    %v695 = vpop.xlane.xlu0 %694
    %v696 = vmul.f32 %v674, %v237
    %v697 = vmul.f32 %v677, %v237
    %v698 = vmul.f32 %v680, %v237
    %v699 = vmul.f32 %v683, %v237
    %v700 = vmul.f32 %v686, %v237
    %v701 = vmul.f32 %v689, %v237
    %v702 = vmul.f32 %v692, %v237
    %v703 = vmul.f32 %v695, %v237
    %v704 = vadd.f32 %v696, 1e-05
    %v705 = vadd.f32 %v697, 1e-05
    %v706 = vadd.f32 %v698, 1e-05
    %v707 = vadd.f32 %v699, 1e-05
    %v708 = vadd.f32 %v700, 1e-05
    %v709 = vadd.f32 %v701, 1e-05
    %v710 = vadd.f32 %v702, 1e-05
    %v711 = vadd.f32 %v703, 1e-05
    %v712 = vrsqrt.pop %v704
    %v713 = vmul.f32 %v712, %v704
    %v714 = vmul.f32 %v713, %v712
    %v715 = vmul.f32 0.5, %v714
    %v716 = vsub.f32 1.5, %v715
    %v717 = vmul.f32 %v712, %v716
    %vm718 = vweird.f32 %v704
    %vm719 = vweird.f32 %v712
    %vm720 = vmor %vm718, %vm719
    %v721 = vsel %vm720, %v712, %v717
    %v722 = vrsqrt.pop %v705
    %v723 = vmul.f32 %v722, %v705
    %v724 = vmul.f32 %v723, %v722
    %v725 = vmul.f32 0.5, %v724
    %v726 = vsub.f32 1.5, %v725
    %v727 = vmul.f32 %v722, %v726
    %vm728 = vweird.f32 %v705
    %vm729 = vweird.f32 %v722
    %vm730 = vmor %vm728, %vm729
    %v731 = vsel %vm730, %v722, %v727
    %v732 = vrsqrt.pop %v706
    %v733 = vmul.f32 %v732, %v706
    %v734 = vmul.f32 %v733, %v732
    %v735 = vmul.f32 0.5, %v734
    %v736 = vsub.f32 1.5, %v735
    %v737 = vmul.f32 %v732, %v736
    %vm738 = vweird.f32 %v706
    %vm739 = vweird.f32 %v732
    %vm740 = vmor %vm738, %vm739
    %v741 = vsel %vm740, %v732, %v737
    %v742 = vrsqrt.pop %v707
    %v743 = vmul.f32 %v742, %v707
    %v744 = vmul.f32 %v743, %v742
    %v745 = vmul.f32 0.5, %v744
    %v746 = vsub.f32 1.5, %v745
    %v747 = vmul.f32 %v742, %v746
    %vm748 = vweird.f32 %v707
    %vm749 = vweird.f32 %v742
    %vm750 = vmor %vm748, %vm749
    %v751 = vsel %vm750, %v742, %v747
    %v752 = vrsqrt.pop %v708
    %v753 = vmul.f32 %v752, %v708
    %v754 = vmul.f32 %v753, %v752
    %v755 = vmul.f32 0.5, %v754
    %v756 = vsub.f32 1.5, %v755
    %v757 = vmul.f32 %v752, %v756
    %vm758 = vweird.f32 %v708
    %vm759 = vweird.f32 %v752
    %vm760 = vmor %vm758, %vm759
    %v761 = vsel %vm760, %v752, %v757
    %v762 = vrsqrt.pop %v709
    %v763 = vmul.f32 %v762, %v709
    %v764 = vmul.f32 %v763, %v762
    %v765 = vmul.f32 0.5, %v764
    %v766 = vsub.f32 1.5, %v765
    %v767 = vmul.f32 %v762, %v766
    %vm768 = vweird.f32 %v709
    %vm769 = vweird.f32 %v762
    %vm770 = vmor %vm768, %vm769
    %v771 = vsel %vm770, %v762, %v767
    %v772 = vrsqrt.pop %v710
    %v773 = vmul.f32 %v772, %v710
    %v774 = vmul.f32 %v773, %v772
    %v775 = vmul.f32 0.5, %v774
    %v776 = vsub.f32 1.5, %v775
    %v777 = vmul.f32 %v772, %v776
    %vm778 = vweird.f32 %v710
    %vm779 = vweird.f32 %v772
    %vm780 = vmor %vm778, %vm779
    %v781 = vsel %vm780, %v772, %v777
    %v782 = vrsqrt.pop %v711
    %v783 = vmul.f32 %v782, %v711
    %v784 = vmul.f32 %v783, %v782
    %v785 = vmul.f32 0.5, %v784
    %v786 = vsub.f32 1.5, %v785
    %v787 = vmul.f32 %v782, %v786
    %vm788 = vweird.f32 %v711
    %vm789 = vweird.f32 %v782
    %vm790 = vmor %vm788, %vm789
    %v791 = vsel %vm790, %v782, %v787
    %v792 = vmul.f32 %v656, %v721
    %v793 = vmul.f32 %v657, %v731
    %v794 = vmul.f32 %v658, %v741
    %v795 = vmul.f32 %v659, %v751
    %v796 = vmul.f32 %v660, %v761
    %v797 = vmul.f32 %v661, %v771
    %v798 = vmul.f32 %v662, %v781
    %v799 = vmul.f32 %v663, %v791
    %v800 = vperm.slane %v82, 3
    %v801 = vmul.f32 %v792, %v800
    %v802 = vmul.f32 %v793, %v800
    %v803 = vmul.f32 %v794, %v800
    %v804 = vmul.f32 %v795, %v800
    %v805 = vmul.f32 %v796, %v800
    %v806 = vmul.f32 %v797, %v800
    %v807 = vmul.f32 %v798, %v800
    %v808 = vmul.f32 %v799, %v800
    %v809 = vperm.slane %v82, 4
    %v810 = vadd.f32 %v801, %v809
    %v811 = vadd.f32 %v802, %v809
    %v812 = vadd.f32 %v803, %v809
    %v813 = vadd.f32 %v804, %v809
    %v814 = vadd.f32 %v805, %v809
    %v815 = vadd.f32 %v806, %v809
    %v816 = vadd.f32 %v807, %v809
    %v817 = vadd.f32 %v808, %v809
    %v818 = vld [vmem:[%s8] sm:$0xff]
    %v819 = vld [vmem:[%s8 + $0x8] sm:$0xff]
    %v820 = vld [vmem:[%s8 + $0x10] sm:$0xff]
    %v821 = vld [vmem:[%s8 + $0x18] sm:$0xff]
    %v823 = vsel %vm110, %v810, 0
    %v826 = vsel %vm110, %v811, 0
    %v829 = vsel %vm110, %v812, 0
    %v832 = vsel %vm110, %v813, 0
    %v835 = vsel %vm110, %v814, 0
    %v838 = vsel %vm110, %v815, 0
    %v841 = vsel %vm110, %v816, 0
    %v844 = vsel %vm110, %v817, 0
    %846 = vmatpush.msra.mxu0 0.0
    %847 = vmatpush.msra.mxu0 0.0
    %848 = vmatpush.msra.mxu0 0.0
    %849 = vmatpush.msra.mxu0 0.0
    %850 = vmatpush.msra.mxu0 0.0
    %851 = vmatpush.msra.mxu0 0.0
    %852 = vmatpush.msra.mxu0 0.0
    %853 = vmatpush.msra.mxu0 0.0
    %854 = vmatpush.msra.mxu0 0.0
    %855 = vmatpush.msra.mxu0 0.0
    %856 = vmatpush.msra.mxu0 0.0
    %857 = vmatpush.msra.mxu0 0.0
    %858 = vmatpush.msra.mxu0 %v821
    %859 = vmatpush.msra.mxu0 %v820
    %860 = vmatpush.msra.mxu0 %v819
    %861 = vmatpush.msra.mxu0 %v818
    %862 = vmatmul.f32.gmra.mxu0 %v823
    %v863 = vpop.f32.mrf.mxu0
    %v864 = vadd.f32 0.0, %v863
    %865 = vmatmul.f32.gmra.mxu0 %v826
    %v866 = vpop.f32.mrf.mxu0
    %v867 = vadd.f32 0.0, %v866
    %868 = vmatmul.f32.gmra.mxu0 %v829
    %v869 = vpop.f32.mrf.mxu0
    %v870 = vadd.f32 0.0, %v869
    %871 = vmatmul.f32.gmra.mxu0 %v832
    %v872 = vpop.f32.mrf.mxu0
    %v873 = vadd.f32 0.0, %v872
    %874 = vmatmul.f32.gmra.mxu0 %v835
    %v875 = vpop.f32.mrf.mxu0
    %v876 = vadd.f32 0.0, %v875
    %877 = vmatmul.f32.gmra.mxu0 %v838
    %v878 = vpop.f32.mrf.mxu0
    %v879 = vadd.f32 0.0, %v878
    %880 = vmatmul.f32.gmra.mxu0 %v841
    %v881 = vpop.f32.mrf.mxu0
    %v882 = vadd.f32 0.0, %v881
    %883 = vmatmul.f32.gmra.mxu0 %v844
    %v884 = vpop.f32.mrf.mxu0
    %v885 = vadd.f32 0.0, %v884
    %886 = vdwg.mxu0
    %895 = vrot.lane.b32.xlu0 %v864, 96
    %v896 = vpop.permute.xlu0 %895
    %897 = vrot.lane.b32.xlu0 %v867, 96
    %v898 = vpop.permute.xlu0 %897
    %899 = vrot.lane.b32.xlu0 %v870, 96
    %v900 = vpop.permute.xlu0 %899
    %901 = vrot.lane.b32.xlu0 %v873, 96
    %v902 = vpop.permute.xlu0 %901
    %903 = vrot.lane.b32.xlu0 %v876, 96
    %v904 = vpop.permute.xlu0 %903
    %905 = vrot.lane.b32.xlu0 %v879, 96
    %v906 = vpop.permute.xlu0 %905
    %907 = vrot.lane.b32.xlu0 %v882, 96
    %v908 = vpop.permute.xlu0 %907
    %909 = vrot.lane.b32.xlu0 %v885, 96
    %v910 = vpop.permute.xlu0 %909
    %vm919 = vcmask 523264
    %920 = vst.msk [vmem:[%s21] sm:$0xff] %vm919, %v896
    %921 = vst.msk [vmem:[%s21 + $0x8] sm:$0xff] %vm919, %v898
    %922 = vst.msk [vmem:[%s21 + $0x10] sm:$0xff] %vm919, %v900
    %923 = vst.msk [vmem:[%s21 + $0x18] sm:$0xff] %vm919, %v902
    %924 = vst.msk [vmem:[%s21 + $0x20] sm:$0xff] %vm919, %v904
    %925 = vst.msk [vmem:[%s21 + $0x28] sm:$0xff] %vm919, %v906
    %926 = vst.msk [vmem:[%s21 + $0x30] sm:$0xff] %vm919, %v908
    %927 = vst.msk [vmem:[%s21 + $0x38] sm:$0xff] %vm919, %v910
    %vm928 = vcmask 64512
    %v929 = vsel %vm928, %v864, 0
    %v931 = vsel %vm928, %v867, 0
    %v933 = vsel %vm928, %v896, 0
    %v935 = vsel %vm928, %v898, 0
    %937 = vmatpush.xpose.msra.mxu0 0.0
    %938 = vmatpush.xpose.msra.mxu0 0.0
    %939 = vmatpush.xpose.msra.mxu0 0.0
    %940 = vmatpush.xpose.msra.mxu0 0.0
    %941 = vmatpush.xpose.msra.mxu0 0.0
    %942 = vmatpush.xpose.msra.mxu0 0.0
    %943 = vmatpush.xpose.msra.mxu0 0.0
    %944 = vmatpush.xpose.msra.mxu0 0.0
    %945 = vmatpush.xpose.msra.mxu0 0.0
    %946 = vmatpush.xpose.msra.mxu0 0.0
    %947 = vmatpush.xpose.msra.mxu0 0.0
    %948 = vmatpush.xpose.msra.mxu0 0.0
    %949 = vmatpush.xpose.msra.mxu0 0.0
    %950 = vmatpush.xpose.msra.mxu0 0.0
    %951 = vmatpush.xpose.msra.mxu0 %v935
    %952 = vmatpush.xpose.msra.mxu0 %v933
    %953 = vmatmul.f32.gmra.mxu0 %v929
    %v954 = vpop.f32.mrf.mxu0
    %v955 = vadd.f32 0.0, %v954
    %956 = vmatmul.f32.gmra.mxu0 %v931
    %v957 = vpop.f32.mrf.mxu0
    %v958 = vadd.f32 0.0, %v957
    %959 = vdwg.mxu0
    %v960 = vsel %vm928, %v870, 0
    %v962 = vsel %vm928, %v873, 0
    %v964 = vsel %vm928, %v900, 0
    %v966 = vsel %vm928, %v902, 0
    %968 = vmatpush.xpose.msra.mxu0 0.0
    %969 = vmatpush.xpose.msra.mxu0 0.0
    %970 = vmatpush.xpose.msra.mxu0 0.0
    %971 = vmatpush.xpose.msra.mxu0 0.0
    %972 = vmatpush.xpose.msra.mxu0 0.0
    %973 = vmatpush.xpose.msra.mxu0 0.0
    %974 = vmatpush.xpose.msra.mxu0 0.0
    %975 = vmatpush.xpose.msra.mxu0 0.0
    %976 = vmatpush.xpose.msra.mxu0 0.0
    %977 = vmatpush.xpose.msra.mxu0 0.0
    %978 = vmatpush.xpose.msra.mxu0 0.0
    %979 = vmatpush.xpose.msra.mxu0 0.0
    %980 = vmatpush.xpose.msra.mxu0 0.0
    %981 = vmatpush.xpose.msra.mxu0 0.0
    %982 = vmatpush.xpose.msra.mxu0 %v966
    %983 = vmatpush.xpose.msra.mxu0 %v964
    %984 = vmatmul.f32.gmra.mxu0 %v960
    %v985 = vpop.f32.mrf.mxu0
    %v986 = vadd.f32 0.0, %v985
    %987 = vmatmul.f32.gmra.mxu0 %v962
    %v988 = vpop.f32.mrf.mxu0
    %v989 = vadd.f32 0.0, %v988
    %990 = vdwg.mxu0
    %v991 = vsel %vm928, %v876, 0
    %v993 = vsel %vm928, %v879, 0
    %v995 = vsel %vm928, %v904, 0
    %v997 = vsel %vm928, %v906, 0
    %999 = vmatpush.xpose.msra.mxu0 0.0
    %1000 = vmatpush.xpose.msra.mxu0 0.0
    %1001 = vmatpush.xpose.msra.mxu0 0.0
    %1002 = vmatpush.xpose.msra.mxu0 0.0
    %1003 = vmatpush.xpose.msra.mxu0 0.0
    %1004 = vmatpush.xpose.msra.mxu0 0.0
    %1005 = vmatpush.xpose.msra.mxu0 0.0
    %1006 = vmatpush.xpose.msra.mxu0 0.0
    %1007 = vmatpush.xpose.msra.mxu0 0.0
    %1008 = vmatpush.xpose.msra.mxu0 0.0
    %1009 = vmatpush.xpose.msra.mxu0 0.0
    %1010 = vmatpush.xpose.msra.mxu0 0.0
    %1011 = vmatpush.xpose.msra.mxu0 0.0
    %1012 = vmatpush.xpose.msra.mxu0 0.0
    %1013 = vmatpush.xpose.msra.mxu0 %v997
    %1014 = vmatpush.xpose.msra.mxu0 %v995
    %1015 = vmatmul.f32.gmra.mxu0 %v991
    %v1016 = vpop.f32.mrf.mxu0
    %v1017 = vadd.f32 0.0, %v1016
    %1018 = vmatmul.f32.gmra.mxu0 %v993
    %v1019 = vpop.f32.mrf.mxu0
    %v1020 = vadd.f32 0.0, %v1019
    %1021 = vdwg.mxu0
    %v1022 = vsel %vm928, %v882, 0
    %v1024 = vsel %vm928, %v885, 0
    %v1026 = vsel %vm928, %v908, 0
    %v1028 = vsel %vm928, %v910, 0
    %1030 = vmatpush.xpose.msra.mxu0 0.0
    %1031 = vmatpush.xpose.msra.mxu0 0.0
    %1032 = vmatpush.xpose.msra.mxu0 0.0
    %1033 = vmatpush.xpose.msra.mxu0 0.0
    %1034 = vmatpush.xpose.msra.mxu0 0.0
    %1035 = vmatpush.xpose.msra.mxu0 0.0
    %1036 = vmatpush.xpose.msra.mxu0 0.0
    %1037 = vmatpush.xpose.msra.mxu0 0.0
    %1038 = vmatpush.xpose.msra.mxu0 0.0
    %1039 = vmatpush.xpose.msra.mxu0 0.0
    %1040 = vmatpush.xpose.msra.mxu0 0.0
    %1041 = vmatpush.xpose.msra.mxu0 0.0
    %1042 = vmatpush.xpose.msra.mxu0 0.0
    %1043 = vmatpush.xpose.msra.mxu0 0.0
    %1044 = vmatpush.xpose.msra.mxu0 %v1028
    %1045 = vmatpush.xpose.msra.mxu0 %v1026
    %1046 = vmatmul.f32.gmra.mxu0 %v1022
    %v1047 = vpop.f32.mrf.mxu0
    %v1048 = vadd.f32 0.0, %v1047
    %1049 = vmatmul.f32.gmra.mxu0 %v1024
    %v1050 = vpop.f32.mrf.mxu0
    %v1051 = vadd.f32 0.0, %v1050
    %1052 = vdwg.mxu0
    %v1053 = vmul.f32 %v955, 0.35355338
    %v1054 = vmul.f32 %v958, 0.35355338
    %v1055 = vmul.f32 %v986, 0.35355338
    %v1056 = vmul.f32 %v989, 0.35355338
    %v1057 = vmul.f32 %v1017, 0.35355338
    %v1058 = vmul.f32 %v1020, 0.35355338
    %v1059 = vmul.f32 %v1048, 0.35355338
    %v1060 = vmul.f32 %v1051, 0.35355338
    %vm1061 = vcmask 130048
    %v1062 = vsel %vm1061, %v1053, -inf
    %1063 = vmax.xlane.f32.xlu0 %v1062
    %v1064 = vpop.xlane.xlu0 %1063
    %v1065 = vsel %vm1061, %v1054, -inf
    %1066 = vmax.xlane.f32.xlu0 %v1065
    %v1067 = vpop.xlane.xlu0 %1066
    %v1068 = vsel %vm1061, %v1055, -inf
    %1069 = vmax.xlane.f32.xlu0 %v1068
    %v1070 = vpop.xlane.xlu0 %1069
    %v1071 = vsel %vm1061, %v1056, -inf
    %1072 = vmax.xlane.f32.xlu0 %v1071
    %v1073 = vpop.xlane.xlu0 %1072
    %v1074 = vsel %vm1061, %v1057, -inf
    %1075 = vmax.xlane.f32.xlu0 %v1074
    %v1076 = vpop.xlane.xlu0 %1075
    %v1077 = vsel %vm1061, %v1058, -inf
    %1078 = vmax.xlane.f32.xlu0 %v1077
    %v1079 = vpop.xlane.xlu0 %1078
    %v1080 = vsel %vm1061, %v1059, -inf
    %1081 = vmax.xlane.f32.xlu0 %v1080
    %v1082 = vpop.xlane.xlu0 %1081
    %v1083 = vsel %vm1061, %v1060, -inf
    %1084 = vmax.xlane.f32.xlu0 %v1083
    %v1085 = vpop.xlane.xlu0 %1084
    %v1086 = vsub.f32 %v1053, %v1064
    %v1087 = vsub.f32 %v1054, %v1067
    %v1088 = vsub.f32 %v1055, %v1070
    %v1089 = vsub.f32 %v1056, %v1073
    %v1090 = vsub.f32 %v1057, %v1076
    %v1091 = vsub.f32 %v1058, %v1079
    %v1092 = vsub.f32 %v1059, %v1082
    %v1093 = vsub.f32 %v1060, %v1085
    %v1094 = vmul.f32 %v1086, 1.442695
    %v1095 = vpow.pop %v1094
    %v1096 = vmul.f32 %v1087, 1.442695
    %v1097 = vpow.pop %v1096
    %v1098 = vmul.f32 %v1088, 1.442695
    %v1099 = vpow.pop %v1098
    %v1100 = vmul.f32 %v1089, 1.442695
    %v1101 = vpow.pop %v1100
    %v1102 = vmul.f32 %v1090, 1.442695
    %v1103 = vpow.pop %v1102
    %v1104 = vmul.f32 %v1091, 1.442695
    %v1105 = vpow.pop %v1104
    %v1106 = vmul.f32 %v1092, 1.442695
    %v1107 = vpow.pop %v1106
    %v1108 = vmul.f32 %v1093, 1.442695
    %v1109 = vpow.pop %v1108
    %v1110 = vsel %vm1061, %v1095, 0.0
    %1111 = vadd.xlane.f32.xlu0 %v1110
    %v1112 = vpop.xlane.xlu0 %1111
    %v1113 = vsel %vm1061, %v1097, 0.0
    %1114 = vadd.xlane.f32.xlu0 %v1113
    %v1115 = vpop.xlane.xlu0 %1114
    %v1116 = vsel %vm1061, %v1099, 0.0
    %1117 = vadd.xlane.f32.xlu0 %v1116
    %v1118 = vpop.xlane.xlu0 %1117
    %v1119 = vsel %vm1061, %v1101, 0.0
    %1120 = vadd.xlane.f32.xlu0 %v1119
    %v1121 = vpop.xlane.xlu0 %1120
    %v1122 = vsel %vm1061, %v1103, 0.0
    %1123 = vadd.xlane.f32.xlu0 %v1122
    %v1124 = vpop.xlane.xlu0 %1123
    %v1125 = vsel %vm1061, %v1105, 0.0
    %1126 = vadd.xlane.f32.xlu0 %v1125
    %v1127 = vpop.xlane.xlu0 %1126
    %v1128 = vsel %vm1061, %v1107, 0.0
    %1129 = vadd.xlane.f32.xlu0 %v1128
    %v1130 = vpop.xlane.xlu0 %1129
    %v1131 = vsel %vm1061, %v1109, 0.0
    %1132 = vadd.xlane.f32.xlu0 %v1131
    %v1133 = vpop.xlane.xlu0 %1132
    %v1134 = vrcp.pop %v1112
    %v1135 = vrcp.pop %v1115
    %v1136 = vrcp.pop %v1118
    %v1137 = vrcp.pop %v1121
    %v1138 = vrcp.pop %v1124
    %v1139 = vrcp.pop %v1127
    %v1140 = vrcp.pop %v1130
    %v1141 = vrcp.pop %v1133
    %v1142 = vmul.f32 %v1095, %v1134
    %v1143 = vmul.f32 %v1097, %v1135
    %v1144 = vmul.f32 %v1099, %v1136
    %v1145 = vmul.f32 %v1101, %v1137
    %v1146 = vmul.f32 %v1103, %v1138
    %v1147 = vmul.f32 %v1105, %v1139
    %v1148 = vmul.f32 %v1107, %v1140
    %v1149 = vmul.f32 %v1109, %v1141
    %1150 = vrot.lane.b32.xlu0 %v864, 64
    %v1151 = vpop.permute.xlu0 %1150
    %1152 = vrot.lane.b32.xlu0 %v867, 64
    %v1153 = vpop.permute.xlu0 %1152
    %v1157 = vsel %vm1061, %v1142, 0
    %v1160 = vsel %vm1061, %v1143, 0
    %1162 = vmatpush.msra.mxu0 0.0
    %1163 = vmatpush.msra.mxu0 0.0
    %1164 = vmatpush.msra.mxu0 0.0
    %1165 = vmatpush.msra.mxu0 0.0
    %1166 = vmatpush.msra.mxu0 0.0
    %1167 = vmatpush.msra.mxu0 0.0
    %1168 = vmatpush.msra.mxu0 0.0
    %1169 = vmatpush.msra.mxu0 0.0
    %1170 = vmatpush.msra.mxu0 0.0
    %1171 = vmatpush.msra.mxu0 0.0
    %1172 = vmatpush.msra.mxu0 0.0
    %1173 = vmatpush.msra.mxu0 0.0
    %1174 = vmatpush.msra.mxu0 0.0
    %1175 = vmatpush.msra.mxu0 0.0
    %1176 = vmatpush.msra.mxu0 %v1153
    %1177 = vmatpush.msra.mxu0 %v1151
    %1178 = vmatmul.f32.gmra.mxu0 %v1157
    %v1179 = vpop.f32.mrf.mxu0
    %v1180 = vadd.f32 0.0, %v1179
    %1181 = vmatmul.f32.gmra.mxu0 %v1160
    %v1182 = vpop.f32.mrf.mxu0
    %v1183 = vadd.f32 0.0, %v1182
    %1184 = vdwg.mxu0
    %1185 = vrot.lane.b32.xlu0 %v870, 64
    %v1186 = vpop.permute.xlu0 %1185
    %1187 = vrot.lane.b32.xlu0 %v873, 64
    %v1188 = vpop.permute.xlu0 %1187
    %v1192 = vsel %vm1061, %v1144, 0
    %v1195 = vsel %vm1061, %v1145, 0
    %1197 = vmatpush.msra.mxu0 0.0
    %1198 = vmatpush.msra.mxu0 0.0
    %1199 = vmatpush.msra.mxu0 0.0
    %1200 = vmatpush.msra.mxu0 0.0
    %1201 = vmatpush.msra.mxu0 0.0
    %1202 = vmatpush.msra.mxu0 0.0
    %1203 = vmatpush.msra.mxu0 0.0
    %1204 = vmatpush.msra.mxu0 0.0
    %1205 = vmatpush.msra.mxu0 0.0
    %1206 = vmatpush.msra.mxu0 0.0
    %1207 = vmatpush.msra.mxu0 0.0
    %1208 = vmatpush.msra.mxu0 0.0
    %1209 = vmatpush.msra.mxu0 0.0
    %1210 = vmatpush.msra.mxu0 0.0
    %1211 = vmatpush.msra.mxu0 %v1188
    %1212 = vmatpush.msra.mxu0 %v1186
    %1213 = vmatmul.f32.gmra.mxu0 %v1192
    %v1214 = vpop.f32.mrf.mxu0
    %v1215 = vadd.f32 0.0, %v1214
    %1216 = vmatmul.f32.gmra.mxu0 %v1195
    %v1217 = vpop.f32.mrf.mxu0
    %v1218 = vadd.f32 0.0, %v1217
    %1219 = vdwg.mxu0
    %1220 = vrot.lane.b32.xlu0 %v876, 64
    %v1221 = vpop.permute.xlu0 %1220
    %1222 = vrot.lane.b32.xlu0 %v879, 64
    %v1223 = vpop.permute.xlu0 %1222
    %v1227 = vsel %vm1061, %v1146, 0
    %v1230 = vsel %vm1061, %v1147, 0
    %1232 = vmatpush.msra.mxu0 0.0
    %1233 = vmatpush.msra.mxu0 0.0
    %1234 = vmatpush.msra.mxu0 0.0
    %1235 = vmatpush.msra.mxu0 0.0
    %1236 = vmatpush.msra.mxu0 0.0
    %1237 = vmatpush.msra.mxu0 0.0
    %1238 = vmatpush.msra.mxu0 0.0
    %1239 = vmatpush.msra.mxu0 0.0
    %1240 = vmatpush.msra.mxu0 0.0
    %1241 = vmatpush.msra.mxu0 0.0
    %1242 = vmatpush.msra.mxu0 0.0
    %1243 = vmatpush.msra.mxu0 0.0
    %1244 = vmatpush.msra.mxu0 0.0
    %1245 = vmatpush.msra.mxu0 0.0
    %1246 = vmatpush.msra.mxu0 %v1223
    %1247 = vmatpush.msra.mxu0 %v1221
    %1248 = vmatmul.f32.gmra.mxu0 %v1227
    %v1249 = vpop.f32.mrf.mxu0
    %v1250 = vadd.f32 0.0, %v1249
    %1251 = vmatmul.f32.gmra.mxu0 %v1230
    %v1252 = vpop.f32.mrf.mxu0
    %v1253 = vadd.f32 0.0, %v1252
    %1254 = vdwg.mxu0
    %1255 = vrot.lane.b32.xlu0 %v882, 64
    %v1256 = vpop.permute.xlu0 %1255
    %1257 = vrot.lane.b32.xlu0 %v885, 64
    %v1258 = vpop.permute.xlu0 %1257
    %v1262 = vsel %vm1061, %v1148, 0
    %v1265 = vsel %vm1061, %v1149, 0
    %1267 = vmatpush.msra.mxu0 0.0
    %1268 = vmatpush.msra.mxu0 0.0
    %1269 = vmatpush.msra.mxu0 0.0
    %1270 = vmatpush.msra.mxu0 0.0
    %1271 = vmatpush.msra.mxu0 0.0
    %1272 = vmatpush.msra.mxu0 0.0
    %1273 = vmatpush.msra.mxu0 0.0
    %1274 = vmatpush.msra.mxu0 0.0
    %1275 = vmatpush.msra.mxu0 0.0
    %1276 = vmatpush.msra.mxu0 0.0
    %1277 = vmatpush.msra.mxu0 0.0
    %1278 = vmatpush.msra.mxu0 0.0
    %1279 = vmatpush.msra.mxu0 0.0
    %1280 = vmatpush.msra.mxu0 0.0
    %1281 = vmatpush.msra.mxu0 %v1258
    %1282 = vmatpush.msra.mxu0 %v1256
    %1283 = vmatmul.f32.gmra.mxu0 %v1262
    %v1284 = vpop.f32.mrf.mxu0
    %v1285 = vadd.f32 0.0, %v1284
    %1286 = vmatmul.f32.gmra.mxu0 %v1265
    %v1287 = vpop.f32.mrf.mxu0
    %v1288 = vadd.f32 0.0, %v1287
    %1289 = vdwg.mxu0
    %1290 = vrot.lane.b32.xlu0 %v864, 120
    %v1291 = vpop.permute.xlu0 %1290
    %1292 = vrot.lane.b32.xlu0 %v867, 120
    %v1293 = vpop.permute.xlu0 %1292
    %1294 = vrot.lane.b32.xlu0 %v864, 88
    %v1295 = vpop.permute.xlu0 %1294
    %1296 = vrot.lane.b32.xlu0 %v867, 88
    %v1297 = vpop.permute.xlu0 %1296
    %v1298 = vsel %vm928, %v1291, 0
    %v1300 = vsel %vm928, %v1293, 0
    %v1302 = vsel %vm928, %v1295, 0
    %v1304 = vsel %vm928, %v1297, 0
    %1306 = vmatpush.xpose.msra.mxu0 0.0
    %1307 = vmatpush.xpose.msra.mxu0 0.0
    %1308 = vmatpush.xpose.msra.mxu0 0.0
    %1309 = vmatpush.xpose.msra.mxu0 0.0
    %1310 = vmatpush.xpose.msra.mxu0 0.0
    %1311 = vmatpush.xpose.msra.mxu0 0.0
    %1312 = vmatpush.xpose.msra.mxu0 0.0
    %1313 = vmatpush.xpose.msra.mxu0 0.0
    %1314 = vmatpush.xpose.msra.mxu0 0.0
    %1315 = vmatpush.xpose.msra.mxu0 0.0
    %1316 = vmatpush.xpose.msra.mxu0 0.0
    %1317 = vmatpush.xpose.msra.mxu0 0.0
    %1318 = vmatpush.xpose.msra.mxu0 0.0
    %1319 = vmatpush.xpose.msra.mxu0 0.0
    %1320 = vmatpush.xpose.msra.mxu0 %v1304
    %1321 = vmatpush.xpose.msra.mxu0 %v1302
    %1322 = vmatmul.f32.gmra.mxu0 %v1298
    %v1323 = vpop.f32.mrf.mxu0
    %v1324 = vadd.f32 0.0, %v1323
    %1325 = vmatmul.f32.gmra.mxu0 %v1300
    %v1326 = vpop.f32.mrf.mxu0
    %v1327 = vadd.f32 0.0, %v1326
    %1328 = vdwg.mxu0
    %1329 = vrot.lane.b32.xlu0 %v870, 120
    %v1330 = vpop.permute.xlu0 %1329
    %1331 = vrot.lane.b32.xlu0 %v873, 120
    %v1332 = vpop.permute.xlu0 %1331
    %1333 = vrot.lane.b32.xlu0 %v870, 88
    %v1334 = vpop.permute.xlu0 %1333
    %1335 = vrot.lane.b32.xlu0 %v873, 88
    %v1336 = vpop.permute.xlu0 %1335
    %v1337 = vsel %vm928, %v1330, 0
    %v1339 = vsel %vm928, %v1332, 0
    %v1341 = vsel %vm928, %v1334, 0
    %v1343 = vsel %vm928, %v1336, 0
    %1345 = vmatpush.xpose.msra.mxu0 0.0
    %1346 = vmatpush.xpose.msra.mxu0 0.0
    %1347 = vmatpush.xpose.msra.mxu0 0.0
    %1348 = vmatpush.xpose.msra.mxu0 0.0
    %1349 = vmatpush.xpose.msra.mxu0 0.0
    %1350 = vmatpush.xpose.msra.mxu0 0.0
    %1351 = vmatpush.xpose.msra.mxu0 0.0
    %1352 = vmatpush.xpose.msra.mxu0 0.0
    %1353 = vmatpush.xpose.msra.mxu0 0.0
    %1354 = vmatpush.xpose.msra.mxu0 0.0
    %1355 = vmatpush.xpose.msra.mxu0 0.0
    %1356 = vmatpush.xpose.msra.mxu0 0.0
    %1357 = vmatpush.xpose.msra.mxu0 0.0
    %1358 = vmatpush.xpose.msra.mxu0 0.0
    %1359 = vmatpush.xpose.msra.mxu0 %v1343
    %1360 = vmatpush.xpose.msra.mxu0 %v1341
    %1361 = vmatmul.f32.gmra.mxu0 %v1337
    %v1362 = vpop.f32.mrf.mxu0
    %v1363 = vadd.f32 0.0, %v1362
    %1364 = vmatmul.f32.gmra.mxu0 %v1339
    %v1365 = vpop.f32.mrf.mxu0
    %v1366 = vadd.f32 0.0, %v1365
    %1367 = vdwg.mxu0
    %1368 = vrot.lane.b32.xlu0 %v876, 120
    %v1369 = vpop.permute.xlu0 %1368
    %1370 = vrot.lane.b32.xlu0 %v879, 120
    %v1371 = vpop.permute.xlu0 %1370
    %1372 = vrot.lane.b32.xlu0 %v876, 88
    %v1373 = vpop.permute.xlu0 %1372
    %1374 = vrot.lane.b32.xlu0 %v879, 88
    %v1375 = vpop.permute.xlu0 %1374
    %v1376 = vsel %vm928, %v1369, 0
    %v1378 = vsel %vm928, %v1371, 0
    %v1380 = vsel %vm928, %v1373, 0
    %v1382 = vsel %vm928, %v1375, 0
    %1384 = vmatpush.xpose.msra.mxu0 0.0
    %1385 = vmatpush.xpose.msra.mxu0 0.0
    %1386 = vmatpush.xpose.msra.mxu0 0.0
    %1387 = vmatpush.xpose.msra.mxu0 0.0
    %1388 = vmatpush.xpose.msra.mxu0 0.0
    %1389 = vmatpush.xpose.msra.mxu0 0.0
    %1390 = vmatpush.xpose.msra.mxu0 0.0
    %1391 = vmatpush.xpose.msra.mxu0 0.0
    %1392 = vmatpush.xpose.msra.mxu0 0.0
    %1393 = vmatpush.xpose.msra.mxu0 0.0
    %1394 = vmatpush.xpose.msra.mxu0 0.0
    %1395 = vmatpush.xpose.msra.mxu0 0.0
    %1396 = vmatpush.xpose.msra.mxu0 0.0
    %1397 = vmatpush.xpose.msra.mxu0 0.0
    %1398 = vmatpush.xpose.msra.mxu0 %v1382
    %1399 = vmatpush.xpose.msra.mxu0 %v1380
    %1400 = vmatmul.f32.gmra.mxu0 %v1376
    %v1401 = vpop.f32.mrf.mxu0
    %v1402 = vadd.f32 0.0, %v1401
    %1403 = vmatmul.f32.gmra.mxu0 %v1378
    %v1404 = vpop.f32.mrf.mxu0
    %v1405 = vadd.f32 0.0, %v1404
    %1406 = vdwg.mxu0
    %1407 = vrot.lane.b32.xlu0 %v882, 120
    %v1408 = vpop.permute.xlu0 %1407
    %1409 = vrot.lane.b32.xlu0 %v885, 120
    %v1410 = vpop.permute.xlu0 %1409
    %1411 = vrot.lane.b32.xlu0 %v882, 88
    %v1412 = vpop.permute.xlu0 %1411
    %1413 = vrot.lane.b32.xlu0 %v885, 88
    %v1414 = vpop.permute.xlu0 %1413
    %v1415 = vsel %vm928, %v1408, 0
    %v1417 = vsel %vm928, %v1410, 0
    %v1419 = vsel %vm928, %v1412, 0
    %v1421 = vsel %vm928, %v1414, 0
    %1423 = vmatpush.xpose.msra.mxu0 0.0
    %1424 = vmatpush.xpose.msra.mxu0 0.0
    %1425 = vmatpush.xpose.msra.mxu0 0.0
    %1426 = vmatpush.xpose.msra.mxu0 0.0
    %1427 = vmatpush.xpose.msra.mxu0 0.0
    %1428 = vmatpush.xpose.msra.mxu0 0.0
    %1429 = vmatpush.xpose.msra.mxu0 0.0
    %1430 = vmatpush.xpose.msra.mxu0 0.0
    %1431 = vmatpush.xpose.msra.mxu0 0.0
    %1432 = vmatpush.xpose.msra.mxu0 0.0
    %1433 = vmatpush.xpose.msra.mxu0 0.0
    %1434 = vmatpush.xpose.msra.mxu0 0.0
    %1435 = vmatpush.xpose.msra.mxu0 0.0
    %1436 = vmatpush.xpose.msra.mxu0 0.0
    %1437 = vmatpush.xpose.msra.mxu0 %v1421
    %1438 = vmatpush.xpose.msra.mxu0 %v1419
    %1439 = vmatmul.f32.gmra.mxu0 %v1415
    %v1440 = vpop.f32.mrf.mxu0
    %v1441 = vadd.f32 0.0, %v1440
    %1442 = vmatmul.f32.gmra.mxu0 %v1417
    %v1443 = vpop.f32.mrf.mxu0
    %v1444 = vadd.f32 0.0, %v1443
    %1445 = vdwg.mxu0
    %v1446 = vmul.f32 %v1324, 0.35355338
    %v1447 = vmul.f32 %v1327, 0.35355338
    %v1448 = vmul.f32 %v1363, 0.35355338
    %v1449 = vmul.f32 %v1366, 0.35355338
    %v1450 = vmul.f32 %v1402, 0.35355338
    %v1451 = vmul.f32 %v1405, 0.35355338
    %v1452 = vmul.f32 %v1441, 0.35355338
    %v1453 = vmul.f32 %v1444, 0.35355338
    %v1454 = vsel %vm1061, %v1446, -inf
    %1455 = vmax.xlane.f32.xlu0 %v1454
    %v1456 = vpop.xlane.xlu0 %1455
    %v1457 = vsel %vm1061, %v1447, -inf
    %1458 = vmax.xlane.f32.xlu0 %v1457
    %v1459 = vpop.xlane.xlu0 %1458
    %v1460 = vsel %vm1061, %v1448, -inf
    %1461 = vmax.xlane.f32.xlu0 %v1460
    %v1462 = vpop.xlane.xlu0 %1461
    %v1463 = vsel %vm1061, %v1449, -inf
    %1464 = vmax.xlane.f32.xlu0 %v1463
    %v1465 = vpop.xlane.xlu0 %1464
    %v1466 = vsel %vm1061, %v1450, -inf
    %1467 = vmax.xlane.f32.xlu0 %v1466
    %v1468 = vpop.xlane.xlu0 %1467
    %v1469 = vsel %vm1061, %v1451, -inf
    %1470 = vmax.xlane.f32.xlu0 %v1469
    %v1471 = vpop.xlane.xlu0 %1470
    %v1472 = vsel %vm1061, %v1452, -inf
    %1473 = vmax.xlane.f32.xlu0 %v1472
    %v1474 = vpop.xlane.xlu0 %1473
    %v1475 = vsel %vm1061, %v1453, -inf
    %1476 = vmax.xlane.f32.xlu0 %v1475
    %v1477 = vpop.xlane.xlu0 %1476
    %v1478 = vsub.f32 %v1446, %v1456
    %v1479 = vsub.f32 %v1447, %v1459
    %v1480 = vsub.f32 %v1448, %v1462
    %v1481 = vsub.f32 %v1449, %v1465
    %v1482 = vsub.f32 %v1450, %v1468
    %v1483 = vsub.f32 %v1451, %v1471
    %v1484 = vsub.f32 %v1452, %v1474
    %v1485 = vsub.f32 %v1453, %v1477
    %v1486 = vmul.f32 %v1478, 1.442695
    %v1487 = vpow.pop %v1486
    %v1488 = vmul.f32 %v1479, 1.442695
    %v1489 = vpow.pop %v1488
    %v1490 = vmul.f32 %v1480, 1.442695
    %v1491 = vpow.pop %v1490
    %v1492 = vmul.f32 %v1481, 1.442695
    %v1493 = vpow.pop %v1492
    %v1494 = vmul.f32 %v1482, 1.442695
    %v1495 = vpow.pop %v1494
    %v1496 = vmul.f32 %v1483, 1.442695
    %v1497 = vpow.pop %v1496
    %v1498 = vmul.f32 %v1484, 1.442695
    %v1499 = vpow.pop %v1498
    %v1500 = vmul.f32 %v1485, 1.442695
    %v1501 = vpow.pop %v1500
    %v1502 = vsel %vm1061, %v1487, 0.0
    %1503 = vadd.xlane.f32.xlu0 %v1502
    %v1504 = vpop.xlane.xlu0 %1503
    %v1505 = vsel %vm1061, %v1489, 0.0
    %1506 = vadd.xlane.f32.xlu0 %v1505
    %v1507 = vpop.xlane.xlu0 %1506
    %v1508 = vsel %vm1061, %v1491, 0.0
    %1509 = vadd.xlane.f32.xlu0 %v1508
    %v1510 = vpop.xlane.xlu0 %1509
    %v1511 = vsel %vm1061, %v1493, 0.0
    %1512 = vadd.xlane.f32.xlu0 %v1511
    %v1513 = vpop.xlane.xlu0 %1512
    %v1514 = vsel %vm1061, %v1495, 0.0
    %1515 = vadd.xlane.f32.xlu0 %v1514
    %v1516 = vpop.xlane.xlu0 %1515
    %v1517 = vsel %vm1061, %v1497, 0.0
    %1518 = vadd.xlane.f32.xlu0 %v1517
    %v1519 = vpop.xlane.xlu0 %1518
    %v1520 = vsel %vm1061, %v1499, 0.0
    %1521 = vadd.xlane.f32.xlu0 %v1520
    %v1522 = vpop.xlane.xlu0 %1521
    %v1523 = vsel %vm1061, %v1501, 0.0
    %1524 = vadd.xlane.f32.xlu0 %v1523
    %v1525 = vpop.xlane.xlu0 %1524
    %v1526 = vrcp.pop %v1504
    %v1527 = vrcp.pop %v1507
    %v1528 = vrcp.pop %v1510
    %v1529 = vrcp.pop %v1513
    %v1530 = vrcp.pop %v1516
    %v1531 = vrcp.pop %v1519
    %v1532 = vrcp.pop %v1522
    %v1533 = vrcp.pop %v1525
    %v1534 = vmul.f32 %v1487, %v1526
    %v1535 = vmul.f32 %v1489, %v1527
    %v1536 = vmul.f32 %v1491, %v1528
    %v1537 = vmul.f32 %v1493, %v1529
    %v1538 = vmul.f32 %v1495, %v1530
    %v1539 = vmul.f32 %v1497, %v1531
    %v1540 = vmul.f32 %v1499, %v1532
    %v1541 = vmul.f32 %v1501, %v1533
    %1542 = vrot.lane.b32.xlu0 %v864, 56
    %v1543 = vpop.permute.xlu0 %1542
    %1544 = vrot.lane.b32.xlu0 %v867, 56
    %v1545 = vpop.permute.xlu0 %1544
    %v1549 = vsel %vm1061, %v1534, 0
    %v1552 = vsel %vm1061, %v1535, 0
    %1554 = vmatpush.msra.mxu0 0.0
    %1555 = vmatpush.msra.mxu0 0.0
    %1556 = vmatpush.msra.mxu0 0.0
    %1557 = vmatpush.msra.mxu0 0.0
    %1558 = vmatpush.msra.mxu0 0.0
    %1559 = vmatpush.msra.mxu0 0.0
    %1560 = vmatpush.msra.mxu0 0.0
    %1561 = vmatpush.msra.mxu0 0.0
    %1562 = vmatpush.msra.mxu0 0.0
    %1563 = vmatpush.msra.mxu0 0.0
    %1564 = vmatpush.msra.mxu0 0.0
    %1565 = vmatpush.msra.mxu0 0.0
    %1566 = vmatpush.msra.mxu0 0.0
    %1567 = vmatpush.msra.mxu0 0.0
    %1568 = vmatpush.msra.mxu0 %v1545
    %1569 = vmatpush.msra.mxu0 %v1543
    %1570 = vmatmul.f32.gmra.mxu0 %v1549
    %v1571 = vpop.f32.mrf.mxu0
    %v1572 = vadd.f32 0.0, %v1571
    %1573 = vmatmul.f32.gmra.mxu0 %v1552
    %v1574 = vpop.f32.mrf.mxu0
    %v1575 = vadd.f32 0.0, %v1574
    %1576 = vdwg.mxu0
    %1577 = vrot.lane.b32.xlu0 %v870, 56
    %v1578 = vpop.permute.xlu0 %1577
    %1579 = vrot.lane.b32.xlu0 %v873, 56
    %v1580 = vpop.permute.xlu0 %1579
    %v1584 = vsel %vm1061, %v1536, 0
    %v1587 = vsel %vm1061, %v1537, 0
    %1589 = vmatpush.msra.mxu0 0.0
    %1590 = vmatpush.msra.mxu0 0.0
    %1591 = vmatpush.msra.mxu0 0.0
    %1592 = vmatpush.msra.mxu0 0.0
    %1593 = vmatpush.msra.mxu0 0.0
    %1594 = vmatpush.msra.mxu0 0.0
    %1595 = vmatpush.msra.mxu0 0.0
    %1596 = vmatpush.msra.mxu0 0.0
    %1597 = vmatpush.msra.mxu0 0.0
    %1598 = vmatpush.msra.mxu0 0.0
    %1599 = vmatpush.msra.mxu0 0.0
    %1600 = vmatpush.msra.mxu0 0.0
    %1601 = vmatpush.msra.mxu0 0.0
    %1602 = vmatpush.msra.mxu0 0.0
    %1603 = vmatpush.msra.mxu0 %v1580
    %1604 = vmatpush.msra.mxu0 %v1578
    %1605 = vmatmul.f32.gmra.mxu0 %v1584
    %v1606 = vpop.f32.mrf.mxu0
    %v1607 = vadd.f32 0.0, %v1606
    %1608 = vmatmul.f32.gmra.mxu0 %v1587
    %v1609 = vpop.f32.mrf.mxu0
    %v1610 = vadd.f32 0.0, %v1609
    %1611 = vdwg.mxu0
    %1612 = vrot.lane.b32.xlu0 %v876, 56
    %v1613 = vpop.permute.xlu0 %1612
    %1614 = vrot.lane.b32.xlu0 %v879, 56
    %v1615 = vpop.permute.xlu0 %1614
    %v1619 = vsel %vm1061, %v1538, 0
    %v1622 = vsel %vm1061, %v1539, 0
    %1624 = vmatpush.msra.mxu0 0.0
    %1625 = vmatpush.msra.mxu0 0.0
    %1626 = vmatpush.msra.mxu0 0.0
    %1627 = vmatpush.msra.mxu0 0.0
    %1628 = vmatpush.msra.mxu0 0.0
    %1629 = vmatpush.msra.mxu0 0.0
    %1630 = vmatpush.msra.mxu0 0.0
    %1631 = vmatpush.msra.mxu0 0.0
    %1632 = vmatpush.msra.mxu0 0.0
    %1633 = vmatpush.msra.mxu0 0.0
    %1634 = vmatpush.msra.mxu0 0.0
    %1635 = vmatpush.msra.mxu0 0.0
    %1636 = vmatpush.msra.mxu0 0.0
    %1637 = vmatpush.msra.mxu0 0.0
    %1638 = vmatpush.msra.mxu0 %v1615
    %1639 = vmatpush.msra.mxu0 %v1613
    %1640 = vmatmul.f32.gmra.mxu0 %v1619
    %v1641 = vpop.f32.mrf.mxu0
    %v1642 = vadd.f32 0.0, %v1641
    %1643 = vmatmul.f32.gmra.mxu0 %v1622
    %v1644 = vpop.f32.mrf.mxu0
    %v1645 = vadd.f32 0.0, %v1644
    %1646 = vdwg.mxu0
    %1647 = vrot.lane.b32.xlu0 %v882, 56
    %v1648 = vpop.permute.xlu0 %1647
    %1649 = vrot.lane.b32.xlu0 %v885, 56
    %v1650 = vpop.permute.xlu0 %1649
    %v1654 = vsel %vm1061, %v1540, 0
    %v1657 = vsel %vm1061, %v1541, 0
    %1659 = vmatpush.msra.mxu0 0.0
    %1660 = vmatpush.msra.mxu0 0.0
    %1661 = vmatpush.msra.mxu0 0.0
    %1662 = vmatpush.msra.mxu0 0.0
    %1663 = vmatpush.msra.mxu0 0.0
    %1664 = vmatpush.msra.mxu0 0.0
    %1665 = vmatpush.msra.mxu0 0.0
    %1666 = vmatpush.msra.mxu0 0.0
    %1667 = vmatpush.msra.mxu0 0.0
    %1668 = vmatpush.msra.mxu0 0.0
    %1669 = vmatpush.msra.mxu0 0.0
    %1670 = vmatpush.msra.mxu0 0.0
    %1671 = vmatpush.msra.mxu0 0.0
    %1672 = vmatpush.msra.mxu0 0.0
    %1673 = vmatpush.msra.mxu0 %v1650
    %1674 = vmatpush.msra.mxu0 %v1648
    %1675 = vmatmul.f32.gmra.mxu0 %v1654
    %v1676 = vpop.f32.mrf.mxu0
    %v1677 = vadd.f32 0.0, %v1676
    %1678 = vmatmul.f32.gmra.mxu0 %v1657
    %v1679 = vpop.f32.mrf.mxu0
    %v1680 = vadd.f32 0.0, %v1679
    %1681 = vdwg.mxu0
    %1682 = vrot.lane.b32.xlu0 %v864, 112
    %v1683 = vpop.permute.xlu0 %1682
    %1684 = vrot.lane.b32.xlu0 %v867, 112
    %v1685 = vpop.permute.xlu0 %1684
    %1686 = vrot.lane.b32.xlu0 %v864, 80
    %v1687 = vpop.permute.xlu0 %1686
    %1688 = vrot.lane.b32.xlu0 %v867, 80
    %v1689 = vpop.permute.xlu0 %1688
    %v1690 = vsel %vm928, %v1683, 0
    %v1692 = vsel %vm928, %v1685, 0
    %v1694 = vsel %vm928, %v1687, 0
    %v1696 = vsel %vm928, %v1689, 0
    %1698 = vmatpush.xpose.msra.mxu0 0.0
    %1699 = vmatpush.xpose.msra.mxu0 0.0
    %1700 = vmatpush.xpose.msra.mxu0 0.0
    %1701 = vmatpush.xpose.msra.mxu0 0.0
    %1702 = vmatpush.xpose.msra.mxu0 0.0
    %1703 = vmatpush.xpose.msra.mxu0 0.0
    %1704 = vmatpush.xpose.msra.mxu0 0.0
    %1705 = vmatpush.xpose.msra.mxu0 0.0
    %1706 = vmatpush.xpose.msra.mxu0 0.0
    %1707 = vmatpush.xpose.msra.mxu0 0.0
    %1708 = vmatpush.xpose.msra.mxu0 0.0
    %1709 = vmatpush.xpose.msra.mxu0 0.0
    %1710 = vmatpush.xpose.msra.mxu0 0.0
    %1711 = vmatpush.xpose.msra.mxu0 0.0
    %1712 = vmatpush.xpose.msra.mxu0 %v1696
    %1713 = vmatpush.xpose.msra.mxu0 %v1694
    %1714 = vmatmul.f32.gmra.mxu0 %v1690
    %v1715 = vpop.f32.mrf.mxu0
    %v1716 = vadd.f32 0.0, %v1715
    %1717 = vmatmul.f32.gmra.mxu0 %v1692
    %v1718 = vpop.f32.mrf.mxu0
    %v1719 = vadd.f32 0.0, %v1718
    %1720 = vdwg.mxu0
    %1721 = vrot.lane.b32.xlu0 %v870, 112
    %v1722 = vpop.permute.xlu0 %1721
    %1723 = vrot.lane.b32.xlu0 %v873, 112
    %v1724 = vpop.permute.xlu0 %1723
    %1725 = vrot.lane.b32.xlu0 %v870, 80
    %v1726 = vpop.permute.xlu0 %1725
    %1727 = vrot.lane.b32.xlu0 %v873, 80
    %v1728 = vpop.permute.xlu0 %1727
    %v1729 = vsel %vm928, %v1722, 0
    %v1731 = vsel %vm928, %v1724, 0
    %v1733 = vsel %vm928, %v1726, 0
    %v1735 = vsel %vm928, %v1728, 0
    %1737 = vmatpush.xpose.msra.mxu0 0.0
    %1738 = vmatpush.xpose.msra.mxu0 0.0
    %1739 = vmatpush.xpose.msra.mxu0 0.0
    %1740 = vmatpush.xpose.msra.mxu0 0.0
    %1741 = vmatpush.xpose.msra.mxu0 0.0
    %1742 = vmatpush.xpose.msra.mxu0 0.0
    %1743 = vmatpush.xpose.msra.mxu0 0.0
    %1744 = vmatpush.xpose.msra.mxu0 0.0
    %1745 = vmatpush.xpose.msra.mxu0 0.0
    %1746 = vmatpush.xpose.msra.mxu0 0.0
    %1747 = vmatpush.xpose.msra.mxu0 0.0
    %1748 = vmatpush.xpose.msra.mxu0 0.0
    %1749 = vmatpush.xpose.msra.mxu0 0.0
    %1750 = vmatpush.xpose.msra.mxu0 0.0
    %1751 = vmatpush.xpose.msra.mxu0 %v1735
    %1752 = vmatpush.xpose.msra.mxu0 %v1733
    %1753 = vmatmul.f32.gmra.mxu0 %v1729
    %v1754 = vpop.f32.mrf.mxu0
    %v1755 = vadd.f32 0.0, %v1754
    %1756 = vmatmul.f32.gmra.mxu0 %v1731
    %v1757 = vpop.f32.mrf.mxu0
    %v1758 = vadd.f32 0.0, %v1757
    %1759 = vdwg.mxu0
    %1760 = vrot.lane.b32.xlu0 %v876, 112
    %v1761 = vpop.permute.xlu0 %1760
    %1762 = vrot.lane.b32.xlu0 %v879, 112
    %v1763 = vpop.permute.xlu0 %1762
    %1764 = vrot.lane.b32.xlu0 %v876, 80
    %v1765 = vpop.permute.xlu0 %1764
    %1766 = vrot.lane.b32.xlu0 %v879, 80
    %v1767 = vpop.permute.xlu0 %1766
    %v1768 = vsel %vm928, %v1761, 0
    %v1770 = vsel %vm928, %v1763, 0
    %v1772 = vsel %vm928, %v1765, 0
    %v1774 = vsel %vm928, %v1767, 0
    %1776 = vmatpush.xpose.msra.mxu0 0.0
    %1777 = vmatpush.xpose.msra.mxu0 0.0
    %1778 = vmatpush.xpose.msra.mxu0 0.0
    %1779 = vmatpush.xpose.msra.mxu0 0.0
    %1780 = vmatpush.xpose.msra.mxu0 0.0
    %1781 = vmatpush.xpose.msra.mxu0 0.0
    %1782 = vmatpush.xpose.msra.mxu0 0.0
    %1783 = vmatpush.xpose.msra.mxu0 0.0
    %1784 = vmatpush.xpose.msra.mxu0 0.0
    %1785 = vmatpush.xpose.msra.mxu0 0.0
    %1786 = vmatpush.xpose.msra.mxu0 0.0
    %1787 = vmatpush.xpose.msra.mxu0 0.0
    %1788 = vmatpush.xpose.msra.mxu0 0.0
    %1789 = vmatpush.xpose.msra.mxu0 0.0
    %1790 = vmatpush.xpose.msra.mxu0 %v1774
    %1791 = vmatpush.xpose.msra.mxu0 %v1772
    %1792 = vmatmul.f32.gmra.mxu0 %v1768
    %v1793 = vpop.f32.mrf.mxu0
    %v1794 = vadd.f32 0.0, %v1793
    %1795 = vmatmul.f32.gmra.mxu0 %v1770
    %v1796 = vpop.f32.mrf.mxu0
    %v1797 = vadd.f32 0.0, %v1796
    %1798 = vdwg.mxu0
    %1799 = vrot.lane.b32.xlu0 %v882, 112
    %v1800 = vpop.permute.xlu0 %1799
    %1801 = vrot.lane.b32.xlu0 %v885, 112
    %v1802 = vpop.permute.xlu0 %1801
    %1803 = vrot.lane.b32.xlu0 %v882, 80
    %v1804 = vpop.permute.xlu0 %1803
    %1805 = vrot.lane.b32.xlu0 %v885, 80
    %v1806 = vpop.permute.xlu0 %1805
    %v1807 = vsel %vm928, %v1800, 0
    %v1809 = vsel %vm928, %v1802, 0
    %v1811 = vsel %vm928, %v1804, 0
    %v1813 = vsel %vm928, %v1806, 0
    %1815 = vmatpush.xpose.msra.mxu0 0.0
    %1816 = vmatpush.xpose.msra.mxu0 0.0
    %1817 = vmatpush.xpose.msra.mxu0 0.0
    %1818 = vmatpush.xpose.msra.mxu0 0.0
    %1819 = vmatpush.xpose.msra.mxu0 0.0
    %1820 = vmatpush.xpose.msra.mxu0 0.0
    %1821 = vmatpush.xpose.msra.mxu0 0.0
    %1822 = vmatpush.xpose.msra.mxu0 0.0
    %1823 = vmatpush.xpose.msra.mxu0 0.0
    %1824 = vmatpush.xpose.msra.mxu0 0.0
    %1825 = vmatpush.xpose.msra.mxu0 0.0
    %1826 = vmatpush.xpose.msra.mxu0 0.0
    %1827 = vmatpush.xpose.msra.mxu0 0.0
    %1828 = vmatpush.xpose.msra.mxu0 0.0
    %1829 = vmatpush.xpose.msra.mxu0 %v1813
    %1830 = vmatpush.xpose.msra.mxu0 %v1811
    %1831 = vmatmul.f32.gmra.mxu0 %v1807
    %v1832 = vpop.f32.mrf.mxu0
    %v1833 = vadd.f32 0.0, %v1832
    %1834 = vmatmul.f32.gmra.mxu0 %v1809
    %v1835 = vpop.f32.mrf.mxu0
    %v1836 = vadd.f32 0.0, %v1835
    %1837 = vdwg.mxu0
    %v1838 = vmul.f32 %v1716, 0.35355338
    %v1839 = vmul.f32 %v1719, 0.35355338
    %v1840 = vmul.f32 %v1755, 0.35355338
    %v1841 = vmul.f32 %v1758, 0.35355338
    %v1842 = vmul.f32 %v1794, 0.35355338
    %v1843 = vmul.f32 %v1797, 0.35355338
    %v1844 = vmul.f32 %v1833, 0.35355338
    %v1845 = vmul.f32 %v1836, 0.35355338
    %v1846 = vsel %vm1061, %v1838, -inf
    %1847 = vmax.xlane.f32.xlu0 %v1846
    %v1848 = vpop.xlane.xlu0 %1847
    %v1849 = vsel %vm1061, %v1839, -inf
    %1850 = vmax.xlane.f32.xlu0 %v1849
    %v1851 = vpop.xlane.xlu0 %1850
    %v1852 = vsel %vm1061, %v1840, -inf
    %1853 = vmax.xlane.f32.xlu0 %v1852
    %v1854 = vpop.xlane.xlu0 %1853
    %v1855 = vsel %vm1061, %v1841, -inf
    %1856 = vmax.xlane.f32.xlu0 %v1855
    %v1857 = vpop.xlane.xlu0 %1856
    %v1858 = vsel %vm1061, %v1842, -inf
    %1859 = vmax.xlane.f32.xlu0 %v1858
    %v1860 = vpop.xlane.xlu0 %1859
    %v1861 = vsel %vm1061, %v1843, -inf
    %1862 = vmax.xlane.f32.xlu0 %v1861
    %v1863 = vpop.xlane.xlu0 %1862
    %v1864 = vsel %vm1061, %v1844, -inf
    %1865 = vmax.xlane.f32.xlu0 %v1864
    %v1866 = vpop.xlane.xlu0 %1865
    %v1867 = vsel %vm1061, %v1845, -inf
    %1868 = vmax.xlane.f32.xlu0 %v1867
    %v1869 = vpop.xlane.xlu0 %1868
    %v1870 = vsub.f32 %v1838, %v1848
    %v1871 = vsub.f32 %v1839, %v1851
    %v1872 = vsub.f32 %v1840, %v1854
    %v1873 = vsub.f32 %v1841, %v1857
    %v1874 = vsub.f32 %v1842, %v1860
    %v1875 = vsub.f32 %v1843, %v1863
    %v1876 = vsub.f32 %v1844, %v1866
    %v1877 = vsub.f32 %v1845, %v1869
    %v1878 = vmul.f32 %v1870, 1.442695
    %v1879 = vpow.pop %v1878
    %v1880 = vmul.f32 %v1871, 1.442695
    %v1881 = vpow.pop %v1880
    %v1882 = vmul.f32 %v1872, 1.442695
    %v1883 = vpow.pop %v1882
    %v1884 = vmul.f32 %v1873, 1.442695
    %v1885 = vpow.pop %v1884
    %v1886 = vmul.f32 %v1874, 1.442695
    %v1887 = vpow.pop %v1886
    %v1888 = vmul.f32 %v1875, 1.442695
    %v1889 = vpow.pop %v1888
    %v1890 = vmul.f32 %v1876, 1.442695
    %v1891 = vpow.pop %v1890
    %v1892 = vmul.f32 %v1877, 1.442695
    %v1893 = vpow.pop %v1892
    %v1894 = vsel %vm1061, %v1879, 0.0
    %1895 = vadd.xlane.f32.xlu0 %v1894
    %v1896 = vpop.xlane.xlu0 %1895
    %v1897 = vsel %vm1061, %v1881, 0.0
    %1898 = vadd.xlane.f32.xlu0 %v1897
    %v1899 = vpop.xlane.xlu0 %1898
    %v1900 = vsel %vm1061, %v1883, 0.0
    %1901 = vadd.xlane.f32.xlu0 %v1900
    %v1902 = vpop.xlane.xlu0 %1901
    %v1903 = vsel %vm1061, %v1885, 0.0
    %1904 = vadd.xlane.f32.xlu0 %v1903
    %v1905 = vpop.xlane.xlu0 %1904
    %v1906 = vsel %vm1061, %v1887, 0.0
    %1907 = vadd.xlane.f32.xlu0 %v1906
    %v1908 = vpop.xlane.xlu0 %1907
    %v1909 = vsel %vm1061, %v1889, 0.0
    %1910 = vadd.xlane.f32.xlu0 %v1909
    %v1911 = vpop.xlane.xlu0 %1910
    %v1912 = vsel %vm1061, %v1891, 0.0
    %1913 = vadd.xlane.f32.xlu0 %v1912
    %v1914 = vpop.xlane.xlu0 %1913
    %v1915 = vsel %vm1061, %v1893, 0.0
    %1916 = vadd.xlane.f32.xlu0 %v1915
    %v1917 = vpop.xlane.xlu0 %1916
    %v1918 = vrcp.pop %v1896
    %v1919 = vrcp.pop %v1899
    %v1920 = vrcp.pop %v1902
    %v1921 = vrcp.pop %v1905
    %v1922 = vrcp.pop %v1908
    %v1923 = vrcp.pop %v1911
    %v1924 = vrcp.pop %v1914
    %v1925 = vrcp.pop %v1917
    %v1926 = vmul.f32 %v1879, %v1918
    %v1927 = vmul.f32 %v1881, %v1919
    %v1928 = vmul.f32 %v1883, %v1920
    %v1929 = vmul.f32 %v1885, %v1921
    %v1930 = vmul.f32 %v1887, %v1922
    %v1931 = vmul.f32 %v1889, %v1923
    %v1932 = vmul.f32 %v1891, %v1924
    %v1933 = vmul.f32 %v1893, %v1925
    %1934 = vrot.lane.b32.xlu0 %v864, 48
    %v1935 = vpop.permute.xlu0 %1934
    %1936 = vrot.lane.b32.xlu0 %v867, 48
    %v1937 = vpop.permute.xlu0 %1936
    %v1941 = vsel %vm1061, %v1926, 0
    %v1944 = vsel %vm1061, %v1927, 0
    %1946 = vmatpush.msra.mxu0 0.0
    %1947 = vmatpush.msra.mxu0 0.0
    %1948 = vmatpush.msra.mxu0 0.0
    %1949 = vmatpush.msra.mxu0 0.0
    %1950 = vmatpush.msra.mxu0 0.0
    %1951 = vmatpush.msra.mxu0 0.0
    %1952 = vmatpush.msra.mxu0 0.0
    %1953 = vmatpush.msra.mxu0 0.0
    %1954 = vmatpush.msra.mxu0 0.0
    %1955 = vmatpush.msra.mxu0 0.0
    %1956 = vmatpush.msra.mxu0 0.0
    %1957 = vmatpush.msra.mxu0 0.0
    %1958 = vmatpush.msra.mxu0 0.0
    %1959 = vmatpush.msra.mxu0 0.0
    %1960 = vmatpush.msra.mxu0 %v1937
    %1961 = vmatpush.msra.mxu0 %v1935
    %1962 = vmatmul.f32.gmra.mxu0 %v1941
    %v1963 = vpop.f32.mrf.mxu0
    %v1964 = vadd.f32 0.0, %v1963
    %1965 = vmatmul.f32.gmra.mxu0 %v1944
    %v1966 = vpop.f32.mrf.mxu0
    %v1967 = vadd.f32 0.0, %v1966
    %1968 = vdwg.mxu0
    %1969 = vrot.lane.b32.xlu0 %v870, 48
    %v1970 = vpop.permute.xlu0 %1969
    %1971 = vrot.lane.b32.xlu0 %v873, 48
    %v1972 = vpop.permute.xlu0 %1971
    %v1976 = vsel %vm1061, %v1928, 0
    %v1979 = vsel %vm1061, %v1929, 0
    %1981 = vmatpush.msra.mxu0 0.0
    %1982 = vmatpush.msra.mxu0 0.0
    %1983 = vmatpush.msra.mxu0 0.0
    %1984 = vmatpush.msra.mxu0 0.0
    %1985 = vmatpush.msra.mxu0 0.0
    %1986 = vmatpush.msra.mxu0 0.0
    %1987 = vmatpush.msra.mxu0 0.0
    %1988 = vmatpush.msra.mxu0 0.0
    %1989 = vmatpush.msra.mxu0 0.0
    %1990 = vmatpush.msra.mxu0 0.0
    %1991 = vmatpush.msra.mxu0 0.0
    %1992 = vmatpush.msra.mxu0 0.0
    %1993 = vmatpush.msra.mxu0 0.0
    %1994 = vmatpush.msra.mxu0 0.0
    %1995 = vmatpush.msra.mxu0 %v1972
    %1996 = vmatpush.msra.mxu0 %v1970
    %1997 = vmatmul.f32.gmra.mxu0 %v1976
    %v1998 = vpop.f32.mrf.mxu0
    %v1999 = vadd.f32 0.0, %v1998
    %2000 = vmatmul.f32.gmra.mxu0 %v1979
    %v2001 = vpop.f32.mrf.mxu0
    %v2002 = vadd.f32 0.0, %v2001
    %2003 = vdwg.mxu0
    %2004 = vrot.lane.b32.xlu0 %v876, 48
    %v2005 = vpop.permute.xlu0 %2004
    %2006 = vrot.lane.b32.xlu0 %v879, 48
    %v2007 = vpop.permute.xlu0 %2006
    %v2011 = vsel %vm1061, %v1930, 0
    %v2014 = vsel %vm1061, %v1931, 0
    %2016 = vmatpush.msra.mxu0 0.0
    %2017 = vmatpush.msra.mxu0 0.0
    %2018 = vmatpush.msra.mxu0 0.0
    %2019 = vmatpush.msra.mxu0 0.0
    %2020 = vmatpush.msra.mxu0 0.0
    %2021 = vmatpush.msra.mxu0 0.0
    %2022 = vmatpush.msra.mxu0 0.0
    %2023 = vmatpush.msra.mxu0 0.0
    %2024 = vmatpush.msra.mxu0 0.0
    %2025 = vmatpush.msra.mxu0 0.0
    %2026 = vmatpush.msra.mxu0 0.0
    %2027 = vmatpush.msra.mxu0 0.0
    %2028 = vmatpush.msra.mxu0 0.0
    %2029 = vmatpush.msra.mxu0 0.0
    %2030 = vmatpush.msra.mxu0 %v2007
    %2031 = vmatpush.msra.mxu0 %v2005
    %2032 = vmatmul.f32.gmra.mxu0 %v2011
    %v2033 = vpop.f32.mrf.mxu0
    %v2034 = vadd.f32 0.0, %v2033
    %2035 = vmatmul.f32.gmra.mxu0 %v2014
    %v2036 = vpop.f32.mrf.mxu0
    %v2037 = vadd.f32 0.0, %v2036
    %2038 = vdwg.mxu0
    %2039 = vrot.lane.b32.xlu0 %v882, 48
    %v2040 = vpop.permute.xlu0 %2039
    %2041 = vrot.lane.b32.xlu0 %v885, 48
    %v2042 = vpop.permute.xlu0 %2041
    %v2046 = vsel %vm1061, %v1932, 0
    %v2049 = vsel %vm1061, %v1933, 0
    %2051 = vmatpush.msra.mxu0 0.0
    %2052 = vmatpush.msra.mxu0 0.0
    %2053 = vmatpush.msra.mxu0 0.0
    %2054 = vmatpush.msra.mxu0 0.0
    %2055 = vmatpush.msra.mxu0 0.0
    %2056 = vmatpush.msra.mxu0 0.0
    %2057 = vmatpush.msra.mxu0 0.0
    %2058 = vmatpush.msra.mxu0 0.0
    %2059 = vmatpush.msra.mxu0 0.0
    %2060 = vmatpush.msra.mxu0 0.0
    %2061 = vmatpush.msra.mxu0 0.0
    %2062 = vmatpush.msra.mxu0 0.0
    %2063 = vmatpush.msra.mxu0 0.0
    %2064 = vmatpush.msra.mxu0 0.0
    %2065 = vmatpush.msra.mxu0 %v2042
    %2066 = vmatpush.msra.mxu0 %v2040
    %2067 = vmatmul.f32.gmra.mxu0 %v2046
    %v2068 = vpop.f32.mrf.mxu0
    %v2069 = vadd.f32 0.0, %v2068
    %2070 = vmatmul.f32.gmra.mxu0 %v2049
    %v2071 = vpop.f32.mrf.mxu0
    %v2072 = vadd.f32 0.0, %v2071
    %2073 = vdwg.mxu0
    %2074 = vrot.lane.b32.xlu0 %v864, 104
    %v2075 = vpop.permute.xlu0 %2074
    %2076 = vrot.lane.b32.xlu0 %v867, 104
    %v2077 = vpop.permute.xlu0 %2076
    %2078 = vrot.lane.b32.xlu0 %v864, 72
    %v2079 = vpop.permute.xlu0 %2078
    %2080 = vrot.lane.b32.xlu0 %v867, 72
    %v2081 = vpop.permute.xlu0 %2080
    %v2082 = vsel %vm928, %v2075, 0
    %v2084 = vsel %vm928, %v2077, 0
    %v2086 = vsel %vm928, %v2079, 0
    %v2088 = vsel %vm928, %v2081, 0
    %2090 = vmatpush.xpose.msra.mxu0 0.0
    %2091 = vmatpush.xpose.msra.mxu0 0.0
    %2092 = vmatpush.xpose.msra.mxu0 0.0
    %2093 = vmatpush.xpose.msra.mxu0 0.0
    %2094 = vmatpush.xpose.msra.mxu0 0.0
    %2095 = vmatpush.xpose.msra.mxu0 0.0
    %2096 = vmatpush.xpose.msra.mxu0 0.0
    %2097 = vmatpush.xpose.msra.mxu0 0.0
    %2098 = vmatpush.xpose.msra.mxu0 0.0
    %2099 = vmatpush.xpose.msra.mxu0 0.0
    %2100 = vmatpush.xpose.msra.mxu0 0.0
    %2101 = vmatpush.xpose.msra.mxu0 0.0
    %2102 = vmatpush.xpose.msra.mxu0 0.0
    %2103 = vmatpush.xpose.msra.mxu0 0.0
    %2104 = vmatpush.xpose.msra.mxu0 %v2088
    %2105 = vmatpush.xpose.msra.mxu0 %v2086
    %2106 = vmatmul.f32.gmra.mxu0 %v2082
    %v2107 = vpop.f32.mrf.mxu0
    %v2108 = vadd.f32 0.0, %v2107
    %2109 = vmatmul.f32.gmra.mxu0 %v2084
    %v2110 = vpop.f32.mrf.mxu0
    %v2111 = vadd.f32 0.0, %v2110
    %2112 = vdwg.mxu0
    %2113 = vrot.lane.b32.xlu0 %v870, 104
    %v2114 = vpop.permute.xlu0 %2113
    %2115 = vrot.lane.b32.xlu0 %v873, 104
    %v2116 = vpop.permute.xlu0 %2115
    %2117 = vrot.lane.b32.xlu0 %v870, 72
    %v2118 = vpop.permute.xlu0 %2117
    %2119 = vrot.lane.b32.xlu0 %v873, 72
    %v2120 = vpop.permute.xlu0 %2119
    %v2121 = vsel %vm928, %v2114, 0
    %v2123 = vsel %vm928, %v2116, 0
    %v2125 = vsel %vm928, %v2118, 0
    %v2127 = vsel %vm928, %v2120, 0
    %2129 = vmatpush.xpose.msra.mxu0 0.0
    %2130 = vmatpush.xpose.msra.mxu0 0.0
    %2131 = vmatpush.xpose.msra.mxu0 0.0
    %2132 = vmatpush.xpose.msra.mxu0 0.0
    %2133 = vmatpush.xpose.msra.mxu0 0.0
    %2134 = vmatpush.xpose.msra.mxu0 0.0
    %2135 = vmatpush.xpose.msra.mxu0 0.0
    %2136 = vmatpush.xpose.msra.mxu0 0.0
    %2137 = vmatpush.xpose.msra.mxu0 0.0
    %2138 = vmatpush.xpose.msra.mxu0 0.0
    %2139 = vmatpush.xpose.msra.mxu0 0.0
    %2140 = vmatpush.xpose.msra.mxu0 0.0
    %2141 = vmatpush.xpose.msra.mxu0 0.0
    %2142 = vmatpush.xpose.msra.mxu0 0.0
    %2143 = vmatpush.xpose.msra.mxu0 %v2127
    %2144 = vmatpush.xpose.msra.mxu0 %v2125
    %2145 = vmatmul.f32.gmra.mxu0 %v2121
    %v2146 = vpop.f32.mrf.mxu0
    %v2147 = vadd.f32 0.0, %v2146
    %2148 = vmatmul.f32.gmra.mxu0 %v2123
    %v2149 = vpop.f32.mrf.mxu0
    %v2150 = vadd.f32 0.0, %v2149
    %2151 = vdwg.mxu0
    %2152 = vrot.lane.b32.xlu0 %v876, 104
    %v2153 = vpop.permute.xlu0 %2152
    %2154 = vrot.lane.b32.xlu0 %v879, 104
    %v2155 = vpop.permute.xlu0 %2154
    %2156 = vrot.lane.b32.xlu0 %v876, 72
    %v2157 = vpop.permute.xlu0 %2156
    %2158 = vrot.lane.b32.xlu0 %v879, 72
    %v2159 = vpop.permute.xlu0 %2158
    %v2160 = vsel %vm928, %v2153, 0
    %v2162 = vsel %vm928, %v2155, 0
    %v2164 = vsel %vm928, %v2157, 0
    %v2166 = vsel %vm928, %v2159, 0
    %2168 = vmatpush.xpose.msra.mxu0 0.0
    %2169 = vmatpush.xpose.msra.mxu0 0.0
    %2170 = vmatpush.xpose.msra.mxu0 0.0
    %2171 = vmatpush.xpose.msra.mxu0 0.0
    %2172 = vmatpush.xpose.msra.mxu0 0.0
    %2173 = vmatpush.xpose.msra.mxu0 0.0
    %2174 = vmatpush.xpose.msra.mxu0 0.0
    %2175 = vmatpush.xpose.msra.mxu0 0.0
    %2176 = vmatpush.xpose.msra.mxu0 0.0
    %2177 = vmatpush.xpose.msra.mxu0 0.0
    %2178 = vmatpush.xpose.msra.mxu0 0.0
    %2179 = vmatpush.xpose.msra.mxu0 0.0
    %2180 = vmatpush.xpose.msra.mxu0 0.0
    %2181 = vmatpush.xpose.msra.mxu0 0.0
    %2182 = vmatpush.xpose.msra.mxu0 %v2166
    %2183 = vmatpush.xpose.msra.mxu0 %v2164
    %2184 = vmatmul.f32.gmra.mxu0 %v2160
    %v2185 = vpop.f32.mrf.mxu0
    %v2186 = vadd.f32 0.0, %v2185
    %2187 = vmatmul.f32.gmra.mxu0 %v2162
    %v2188 = vpop.f32.mrf.mxu0
    %v2189 = vadd.f32 0.0, %v2188
    %2190 = vdwg.mxu0
    %2191 = vrot.lane.b32.xlu0 %v882, 104
    %v2192 = vpop.permute.xlu0 %2191
    %2193 = vrot.lane.b32.xlu0 %v885, 104
    %v2194 = vpop.permute.xlu0 %2193
    %2195 = vrot.lane.b32.xlu0 %v882, 72
    %v2196 = vpop.permute.xlu0 %2195
    %2197 = vrot.lane.b32.xlu0 %v885, 72
    %v2198 = vpop.permute.xlu0 %2197
    %v2199 = vsel %vm928, %v2192, 0
    %v2201 = vsel %vm928, %v2194, 0
    %v2203 = vsel %vm928, %v2196, 0
    %v2205 = vsel %vm928, %v2198, 0
    %2207 = vmatpush.xpose.msra.mxu0 0.0
    %2208 = vmatpush.xpose.msra.mxu0 0.0
    %2209 = vmatpush.xpose.msra.mxu0 0.0
    %2210 = vmatpush.xpose.msra.mxu0 0.0
    %2211 = vmatpush.xpose.msra.mxu0 0.0
    %2212 = vmatpush.xpose.msra.mxu0 0.0
    %2213 = vmatpush.xpose.msra.mxu0 0.0
    %2214 = vmatpush.xpose.msra.mxu0 0.0
    %2215 = vmatpush.xpose.msra.mxu0 0.0
    %2216 = vmatpush.xpose.msra.mxu0 0.0
    %2217 = vmatpush.xpose.msra.mxu0 0.0
    %2218 = vmatpush.xpose.msra.mxu0 0.0
    %2219 = vmatpush.xpose.msra.mxu0 0.0
    %2220 = vmatpush.xpose.msra.mxu0 0.0
    %2221 = vmatpush.xpose.msra.mxu0 %v2205
    %2222 = vmatpush.xpose.msra.mxu0 %v2203
    %2223 = vmatmul.f32.gmra.mxu0 %v2199
    %v2224 = vpop.f32.mrf.mxu0
    %v2225 = vadd.f32 0.0, %v2224
    %2226 = vmatmul.f32.gmra.mxu0 %v2201
    %v2227 = vpop.f32.mrf.mxu0
    %v2228 = vadd.f32 0.0, %v2227
    %2229 = vdwg.mxu0
    %v2230 = vmul.f32 %v2108, 0.35355338
    %v2231 = vmul.f32 %v2111, 0.35355338
    %v2232 = vmul.f32 %v2147, 0.35355338
    %v2233 = vmul.f32 %v2150, 0.35355338
    %v2234 = vmul.f32 %v2186, 0.35355338
    %v2235 = vmul.f32 %v2189, 0.35355338
    %v2236 = vmul.f32 %v2225, 0.35355338
    %v2237 = vmul.f32 %v2228, 0.35355338
    %v2238 = vsel %vm1061, %v2230, -inf
    %2239 = vmax.xlane.f32.xlu0 %v2238
    %v2240 = vpop.xlane.xlu0 %2239
    %v2241 = vsel %vm1061, %v2231, -inf
    %2242 = vmax.xlane.f32.xlu0 %v2241
    %v2243 = vpop.xlane.xlu0 %2242
    %v2244 = vsel %vm1061, %v2232, -inf
    %2245 = vmax.xlane.f32.xlu0 %v2244
    %v2246 = vpop.xlane.xlu0 %2245
    %v2247 = vsel %vm1061, %v2233, -inf
    %2248 = vmax.xlane.f32.xlu0 %v2247
    %v2249 = vpop.xlane.xlu0 %2248
    %v2250 = vsel %vm1061, %v2234, -inf
    %2251 = vmax.xlane.f32.xlu0 %v2250
    %v2252 = vpop.xlane.xlu0 %2251
    %v2253 = vsel %vm1061, %v2235, -inf
    %2254 = vmax.xlane.f32.xlu0 %v2253
    %v2255 = vpop.xlane.xlu0 %2254
    %v2256 = vsel %vm1061, %v2236, -inf
    %2257 = vmax.xlane.f32.xlu0 %v2256
    %v2258 = vpop.xlane.xlu0 %2257
    %v2259 = vsel %vm1061, %v2237, -inf
    %2260 = vmax.xlane.f32.xlu0 %v2259
    %v2261 = vpop.xlane.xlu0 %2260
    %v2262 = vsub.f32 %v2230, %v2240
    %v2263 = vsub.f32 %v2231, %v2243
    %v2264 = vsub.f32 %v2232, %v2246
    %v2265 = vsub.f32 %v2233, %v2249
    %v2266 = vsub.f32 %v2234, %v2252
    %v2267 = vsub.f32 %v2235, %v2255
    %v2268 = vsub.f32 %v2236, %v2258
    %v2269 = vsub.f32 %v2237, %v2261
    %v2270 = vmul.f32 %v2262, 1.442695
    %v2271 = vpow.pop %v2270
    %v2272 = vmul.f32 %v2263, 1.442695
    %v2273 = vpow.pop %v2272
    %v2274 = vmul.f32 %v2264, 1.442695
    %v2275 = vpow.pop %v2274
    %v2276 = vmul.f32 %v2265, 1.442695
    %v2277 = vpow.pop %v2276
    %v2278 = vmul.f32 %v2266, 1.442695
    %v2279 = vpow.pop %v2278
    %v2280 = vmul.f32 %v2267, 1.442695
    %v2281 = vpow.pop %v2280
    %v2282 = vmul.f32 %v2268, 1.442695
    %v2283 = vpow.pop %v2282
    %v2284 = vmul.f32 %v2269, 1.442695
    %v2285 = vpow.pop %v2284
    %v2286 = vsel %vm1061, %v2271, 0.0
    %2287 = vadd.xlane.f32.xlu0 %v2286
    %v2288 = vpop.xlane.xlu0 %2287
    %v2289 = vsel %vm1061, %v2273, 0.0
    %2290 = vadd.xlane.f32.xlu0 %v2289
    %v2291 = vpop.xlane.xlu0 %2290
    %v2292 = vsel %vm1061, %v2275, 0.0
    %2293 = vadd.xlane.f32.xlu0 %v2292
    %v2294 = vpop.xlane.xlu0 %2293
    %v2295 = vsel %vm1061, %v2277, 0.0
    %2296 = vadd.xlane.f32.xlu0 %v2295
    %v2297 = vpop.xlane.xlu0 %2296
    %v2298 = vsel %vm1061, %v2279, 0.0
    %2299 = vadd.xlane.f32.xlu0 %v2298
    %v2300 = vpop.xlane.xlu0 %2299
    %v2301 = vsel %vm1061, %v2281, 0.0
    %2302 = vadd.xlane.f32.xlu0 %v2301
    %v2303 = vpop.xlane.xlu0 %2302
    %v2304 = vsel %vm1061, %v2283, 0.0
    %2305 = vadd.xlane.f32.xlu0 %v2304
    %v2306 = vpop.xlane.xlu0 %2305
    %v2307 = vsel %vm1061, %v2285, 0.0
    %2308 = vadd.xlane.f32.xlu0 %v2307
    %v2309 = vpop.xlane.xlu0 %2308
    %v2310 = vrcp.pop %v2288
    %v2311 = vrcp.pop %v2291
    %v2312 = vrcp.pop %v2294
    %v2313 = vrcp.pop %v2297
    %v2314 = vrcp.pop %v2300
    %v2315 = vrcp.pop %v2303
    %v2316 = vrcp.pop %v2306
    %v2317 = vrcp.pop %v2309
    %v2318 = vmul.f32 %v2271, %v2310
    %v2319 = vmul.f32 %v2273, %v2311
    %v2320 = vmul.f32 %v2275, %v2312
    %v2321 = vmul.f32 %v2277, %v2313
    %v2322 = vmul.f32 %v2279, %v2314
    %v2323 = vmul.f32 %v2281, %v2315
    %v2324 = vmul.f32 %v2283, %v2316
    %v2325 = vmul.f32 %v2285, %v2317
    %2326 = vrot.lane.b32.xlu0 %v864, 40
    %v2327 = vpop.permute.xlu0 %2326
    %2328 = vrot.lane.b32.xlu0 %v867, 40
    %v2329 = vpop.permute.xlu0 %2328
    %v2333 = vsel %vm1061, %v2318, 0
    %v2336 = vsel %vm1061, %v2319, 0
    %2338 = vmatpush.msra.mxu0 0.0
    %2339 = vmatpush.msra.mxu0 0.0
    %2340 = vmatpush.msra.mxu0 0.0
    %2341 = vmatpush.msra.mxu0 0.0
    %2342 = vmatpush.msra.mxu0 0.0
    %2343 = vmatpush.msra.mxu0 0.0
    %2344 = vmatpush.msra.mxu0 0.0
    %2345 = vmatpush.msra.mxu0 0.0
    %2346 = vmatpush.msra.mxu0 0.0
    %2347 = vmatpush.msra.mxu0 0.0
    %2348 = vmatpush.msra.mxu0 0.0
    %2349 = vmatpush.msra.mxu0 0.0
    %2350 = vmatpush.msra.mxu0 0.0
    %2351 = vmatpush.msra.mxu0 0.0
    %2352 = vmatpush.msra.mxu0 %v2329
    %2353 = vmatpush.msra.mxu0 %v2327
    %2354 = vmatmul.f32.gmra.mxu0 %v2333
    %v2355 = vpop.f32.mrf.mxu0
    %v2356 = vadd.f32 0.0, %v2355
    %2357 = vmatmul.f32.gmra.mxu0 %v2336
    %v2358 = vpop.f32.mrf.mxu0
    %v2359 = vadd.f32 0.0, %v2358
    %2360 = vdwg.mxu0
    %2361 = vrot.lane.b32.xlu0 %v870, 40
    %v2362 = vpop.permute.xlu0 %2361
    %2363 = vrot.lane.b32.xlu0 %v873, 40
    %v2364 = vpop.permute.xlu0 %2363
    %v2368 = vsel %vm1061, %v2320, 0
    %v2371 = vsel %vm1061, %v2321, 0
    %2373 = vmatpush.msra.mxu0 0.0
    %2374 = vmatpush.msra.mxu0 0.0
    %2375 = vmatpush.msra.mxu0 0.0
    %2376 = vmatpush.msra.mxu0 0.0
    %2377 = vmatpush.msra.mxu0 0.0
    %2378 = vmatpush.msra.mxu0 0.0
    %2379 = vmatpush.msra.mxu0 0.0
    %2380 = vmatpush.msra.mxu0 0.0
    %2381 = vmatpush.msra.mxu0 0.0
    %2382 = vmatpush.msra.mxu0 0.0
    %2383 = vmatpush.msra.mxu0 0.0
    %2384 = vmatpush.msra.mxu0 0.0
    %2385 = vmatpush.msra.mxu0 0.0
    %2386 = vmatpush.msra.mxu0 0.0
    %2387 = vmatpush.msra.mxu0 %v2364
    %2388 = vmatpush.msra.mxu0 %v2362
    %2389 = vmatmul.f32.gmra.mxu0 %v2368
    %v2390 = vpop.f32.mrf.mxu0
    %v2391 = vadd.f32 0.0, %v2390
    %2392 = vmatmul.f32.gmra.mxu0 %v2371
    %v2393 = vpop.f32.mrf.mxu0
    %v2394 = vadd.f32 0.0, %v2393
    %2395 = vdwg.mxu0
    %2396 = vrot.lane.b32.xlu0 %v876, 40
    %v2397 = vpop.permute.xlu0 %2396
    %2398 = vrot.lane.b32.xlu0 %v879, 40
    %v2399 = vpop.permute.xlu0 %2398
    %v2403 = vsel %vm1061, %v2322, 0
    %v2406 = vsel %vm1061, %v2323, 0
    %2408 = vmatpush.msra.mxu0 0.0
    %2409 = vmatpush.msra.mxu0 0.0
    %2410 = vmatpush.msra.mxu0 0.0
    %2411 = vmatpush.msra.mxu0 0.0
    %2412 = vmatpush.msra.mxu0 0.0
    %2413 = vmatpush.msra.mxu0 0.0
    %2414 = vmatpush.msra.mxu0 0.0
    %2415 = vmatpush.msra.mxu0 0.0
    %2416 = vmatpush.msra.mxu0 0.0
    %2417 = vmatpush.msra.mxu0 0.0
    %2418 = vmatpush.msra.mxu0 0.0
    %2419 = vmatpush.msra.mxu0 0.0
    %2420 = vmatpush.msra.mxu0 0.0
    %2421 = vmatpush.msra.mxu0 0.0
    %2422 = vmatpush.msra.mxu0 %v2399
    %2423 = vmatpush.msra.mxu0 %v2397
    %2424 = vmatmul.f32.gmra.mxu0 %v2403
    %v2425 = vpop.f32.mrf.mxu0
    %v2426 = vadd.f32 0.0, %v2425
    %2427 = vmatmul.f32.gmra.mxu0 %v2406
    %v2428 = vpop.f32.mrf.mxu0
    %v2429 = vadd.f32 0.0, %v2428
    %2430 = vdwg.mxu0
    %2431 = vrot.lane.b32.xlu0 %v882, 40
    %v2432 = vpop.permute.xlu0 %2431
    %2433 = vrot.lane.b32.xlu0 %v885, 40
    %v2434 = vpop.permute.xlu0 %2433
    %v2438 = vsel %vm1061, %v2324, 0
    %v2441 = vsel %vm1061, %v2325, 0
    %2443 = vmatpush.msra.mxu0 0.0
    %2444 = vmatpush.msra.mxu0 0.0
    %2445 = vmatpush.msra.mxu0 0.0
    %2446 = vmatpush.msra.mxu0 0.0
    %2447 = vmatpush.msra.mxu0 0.0
    %2448 = vmatpush.msra.mxu0 0.0
    %2449 = vmatpush.msra.mxu0 0.0
    %2450 = vmatpush.msra.mxu0 0.0
    %2451 = vmatpush.msra.mxu0 0.0
    %2452 = vmatpush.msra.mxu0 0.0
    %2453 = vmatpush.msra.mxu0 0.0
    %2454 = vmatpush.msra.mxu0 0.0
    %2455 = vmatpush.msra.mxu0 0.0
    %2456 = vmatpush.msra.mxu0 0.0
    %2457 = vmatpush.msra.mxu0 %v2434
    %2458 = vmatpush.msra.mxu0 %v2432
    %2459 = vmatmul.f32.gmra.mxu0 %v2438
    %v2460 = vpop.f32.mrf.mxu0
    %v2461 = vadd.f32 0.0, %v2460
    %2462 = vmatmul.f32.gmra.mxu0 %v2441
    %v2463 = vpop.f32.mrf.mxu0
    %v2464 = vadd.f32 0.0, %v2463
    %2465 = vdwg.mxu0
    %2474 = vrot.lane.b32.xlu0 %v1572, 8
    %v2475 = vpop.permute.xlu0 %2474
    %2476 = vrot.lane.b32.xlu0 %v1575, 8
    %v2477 = vpop.permute.xlu0 %2476
    %2478 = vrot.lane.b32.xlu0 %v1607, 8
    %v2479 = vpop.permute.xlu0 %2478
    %2480 = vrot.lane.b32.xlu0 %v1610, 8
    %v2481 = vpop.permute.xlu0 %2480
    %2482 = vrot.lane.b32.xlu0 %v1642, 8
    %v2483 = vpop.permute.xlu0 %2482
    %2484 = vrot.lane.b32.xlu0 %v1645, 8
    %v2485 = vpop.permute.xlu0 %2484
    %2486 = vrot.lane.b32.xlu0 %v1677, 8
    %v2487 = vpop.permute.xlu0 %2486
    %2488 = vrot.lane.b32.xlu0 %v1680, 8
    %v2489 = vpop.permute.xlu0 %2488
    %2506 = vrot.lane.b32.xlu0 %v1964, 16
    %v2507 = vpop.permute.xlu0 %2506
    %2508 = vrot.lane.b32.xlu0 %v1967, 16
    %v2509 = vpop.permute.xlu0 %2508
    %2510 = vrot.lane.b32.xlu0 %v1999, 16
    %v2511 = vpop.permute.xlu0 %2510
    %2512 = vrot.lane.b32.xlu0 %v2002, 16
    %v2513 = vpop.permute.xlu0 %2512
    %2514 = vrot.lane.b32.xlu0 %v2034, 16
    %v2515 = vpop.permute.xlu0 %2514
    %2516 = vrot.lane.b32.xlu0 %v2037, 16
    %v2517 = vpop.permute.xlu0 %2516
    %2518 = vrot.lane.b32.xlu0 %v2069, 16
    %v2519 = vpop.permute.xlu0 %2518
    %2520 = vrot.lane.b32.xlu0 %v2072, 16
    %v2521 = vpop.permute.xlu0 %2520
    %2538 = vrot.lane.b32.xlu0 %v2356, 24
    %v2539 = vpop.permute.xlu0 %2538
    %2540 = vrot.lane.b32.xlu0 %v2359, 24
    %v2541 = vpop.permute.xlu0 %2540
    %2542 = vrot.lane.b32.xlu0 %v2391, 24
    %v2543 = vpop.permute.xlu0 %2542
    %2544 = vrot.lane.b32.xlu0 %v2394, 24
    %v2545 = vpop.permute.xlu0 %2544
    %2546 = vrot.lane.b32.xlu0 %v2426, 24
    %v2547 = vpop.permute.xlu0 %2546
    %2548 = vrot.lane.b32.xlu0 %v2429, 24
    %v2549 = vpop.permute.xlu0 %2548
    %2550 = vrot.lane.b32.xlu0 %v2461, 24
    %v2551 = vpop.permute.xlu0 %2550
    %2552 = vrot.lane.b32.xlu0 %v2464, 24
    %v2553 = vpop.permute.xlu0 %2552
    %v2562 = vsel %vm928, %v1180, %v2475
    %v2563 = vsel %vm928, %v1183, %v2477
    %v2564 = vsel %vm928, %v1215, %v2479
    %v2565 = vsel %vm928, %v1218, %v2481
    %v2566 = vsel %vm928, %v1250, %v2483
    %v2567 = vsel %vm928, %v1253, %v2485
    %v2568 = vsel %vm928, %v1285, %v2487
    %v2569 = vsel %vm928, %v1288, %v2489
    %v2570 = vsel %vm1061, %v2562, %v2507
    %v2571 = vsel %vm1061, %v2563, %v2509
    %v2572 = vsel %vm1061, %v2564, %v2511
    %v2573 = vsel %vm1061, %v2565, %v2513
    %v2574 = vsel %vm1061, %v2566, %v2515
    %v2575 = vsel %vm1061, %v2567, %v2517
    %v2576 = vsel %vm1061, %v2568, %v2519
    %v2577 = vsel %vm1061, %v2569, %v2521
    %vm2578 = vcmask 195584
    %v2579 = vsel %vm2578, %v2570, %v2539
    %v2580 = vsel %vm2578, %v2571, %v2541
    %v2581 = vsel %vm2578, %v2572, %v2543
    %v2582 = vsel %vm2578, %v2573, %v2545
    %v2583 = vsel %vm2578, %v2574, %v2547
    %v2584 = vsel %vm2578, %v2575, %v2549
    %v2585 = vsel %vm2578, %v2576, %v2551
    %v2586 = vsel %vm2578, %v2577, %v2553
    %v2587 = vld [vmem:[%s9] sm:$0xff]
    %v2588 = vld [vmem:[%s9 + $0x8] sm:$0xff]
    %v2589 = vld [vmem:[%s9 + $0x10] sm:$0xff]
    %v2590 = vld [vmem:[%s9 + $0x18] sm:$0xff]
    %v2592 = vsel %vm110, %v2579, 0
    %v2595 = vsel %vm110, %v2580, 0
    %v2598 = vsel %vm110, %v2581, 0
    %v2601 = vsel %vm110, %v2582, 0
    %v2604 = vsel %vm110, %v2583, 0
    %v2607 = vsel %vm110, %v2584, 0
    %v2610 = vsel %vm110, %v2585, 0
    %v2613 = vsel %vm110, %v2586, 0
    %2615 = vmatpush.msra.mxu0 0.0
    %2616 = vmatpush.msra.mxu0 0.0
    %2617 = vmatpush.msra.mxu0 0.0
    %2618 = vmatpush.msra.mxu0 0.0
    %2619 = vmatpush.msra.mxu0 0.0
    %2620 = vmatpush.msra.mxu0 0.0
    %2621 = vmatpush.msra.mxu0 0.0
    %2622 = vmatpush.msra.mxu0 0.0
    %2623 = vmatpush.msra.mxu0 0.0
    %2624 = vmatpush.msra.mxu0 0.0
    %2625 = vmatpush.msra.mxu0 0.0
    %2626 = vmatpush.msra.mxu0 0.0
    %2627 = vmatpush.msra.mxu0 %v2590
    %2628 = vmatpush.msra.mxu0 %v2589
    %2629 = vmatpush.msra.mxu0 %v2588
    %2630 = vmatpush.msra.mxu0 %v2587
    %2631 = vmatmul.f32.gmra.mxu0 %v2592
    %v2632 = vpop.f32.mrf.mxu0
    %v2633 = vadd.f32 %v616, %v2632
    %2634 = vmatmul.f32.gmra.mxu0 %v2595
    %v2635 = vpop.f32.mrf.mxu0
    %v2636 = vadd.f32 %v617, %v2635
    %2637 = vmatmul.f32.gmra.mxu0 %v2598
    %v2638 = vpop.f32.mrf.mxu0
    %v2639 = vadd.f32 %v618, %v2638
    %2640 = vmatmul.f32.gmra.mxu0 %v2601
    %v2641 = vpop.f32.mrf.mxu0
    %v2642 = vadd.f32 %v619, %v2641
    %2643 = vmatmul.f32.gmra.mxu0 %v2604
    %v2644 = vpop.f32.mrf.mxu0
    %v2645 = vadd.f32 %v620, %v2644
    %2646 = vmatmul.f32.gmra.mxu0 %v2607
    %v2647 = vpop.f32.mrf.mxu0
    %v2648 = vadd.f32 %v621, %v2647
    %2649 = vmatmul.f32.gmra.mxu0 %v2610
    %v2650 = vpop.f32.mrf.mxu0
    %v2651 = vadd.f32 %v622, %v2650
    %2652 = vmatmul.f32.gmra.mxu0 %v2613
    %v2653 = vpop.f32.mrf.mxu0
    %v2654 = vadd.f32 %v623, %v2653
    %2655 = vdwg.mxu0
    %v2656 = vsel %vm110, %v2633, 0.0
    %2657 = vadd.xlane.f32.xlu0 %v2656
    %v2658 = vpop.xlane.xlu0 %2657
    %v2659 = vsel %vm110, %v2636, 0.0
    %2660 = vadd.xlane.f32.xlu0 %v2659
    %v2661 = vpop.xlane.xlu0 %2660
    %v2662 = vsel %vm110, %v2639, 0.0
    %2663 = vadd.xlane.f32.xlu0 %v2662
    %v2664 = vpop.xlane.xlu0 %2663
    %v2665 = vsel %vm110, %v2642, 0.0
    %2666 = vadd.xlane.f32.xlu0 %v2665
    %v2667 = vpop.xlane.xlu0 %2666
    %v2668 = vsel %vm110, %v2645, 0.0
    %2669 = vadd.xlane.f32.xlu0 %v2668
    %v2670 = vpop.xlane.xlu0 %2669
    %v2671 = vsel %vm110, %v2648, 0.0
    %2672 = vadd.xlane.f32.xlu0 %v2671
    %v2673 = vpop.xlane.xlu0 %2672
    %v2674 = vsel %vm110, %v2651, 0.0
    %2675 = vadd.xlane.f32.xlu0 %v2674
    %v2676 = vpop.xlane.xlu0 %2675
    %v2677 = vsel %vm110, %v2654, 0.0
    %2678 = vadd.xlane.f32.xlu0 %v2677
    %v2679 = vpop.xlane.xlu0 %2678
    %v2680 = vmul.f32 %v2658, %v237
    %v2681 = vmul.f32 %v2661, %v237
    %v2682 = vmul.f32 %v2664, %v237
    %v2683 = vmul.f32 %v2667, %v237
    %v2684 = vmul.f32 %v2670, %v237
    %v2685 = vmul.f32 %v2673, %v237
    %v2686 = vmul.f32 %v2676, %v237
    %v2687 = vmul.f32 %v2679, %v237
    %v2688 = vsub.f32 %v2633, %v2680
    %v2689 = vsub.f32 %v2636, %v2681
    %v2690 = vsub.f32 %v2639, %v2682
    %v2691 = vsub.f32 %v2642, %v2683
    %v2692 = vsub.f32 %v2645, %v2684
    %v2693 = vsub.f32 %v2648, %v2685
    %v2694 = vsub.f32 %v2651, %v2686
    %v2695 = vsub.f32 %v2654, %v2687
    %v2696 = vmul.f32 %v2688, %v2688
    %v2697 = vmul.f32 %v2689, %v2689
    %v2698 = vmul.f32 %v2690, %v2690
    %v2699 = vmul.f32 %v2691, %v2691
    %v2700 = vmul.f32 %v2692, %v2692
    %v2701 = vmul.f32 %v2693, %v2693
    %v2702 = vmul.f32 %v2694, %v2694
    %v2703 = vmul.f32 %v2695, %v2695
    %v2704 = vsel %vm110, %v2696, 0.0
    %2705 = vadd.xlane.f32.xlu0 %v2704
    %v2706 = vpop.xlane.xlu0 %2705
    %v2707 = vsel %vm110, %v2697, 0.0
    %2708 = vadd.xlane.f32.xlu0 %v2707
    %v2709 = vpop.xlane.xlu0 %2708
    %v2710 = vsel %vm110, %v2698, 0.0
    %2711 = vadd.xlane.f32.xlu0 %v2710
    %v2712 = vpop.xlane.xlu0 %2711
    %v2713 = vsel %vm110, %v2699, 0.0
    %2714 = vadd.xlane.f32.xlu0 %v2713
    %v2715 = vpop.xlane.xlu0 %2714
    %v2716 = vsel %vm110, %v2700, 0.0
    %2717 = vadd.xlane.f32.xlu0 %v2716
    %v2718 = vpop.xlane.xlu0 %2717
    %v2719 = vsel %vm110, %v2701, 0.0
    %2720 = vadd.xlane.f32.xlu0 %v2719
    %v2721 = vpop.xlane.xlu0 %2720
    %v2722 = vsel %vm110, %v2702, 0.0
    %2723 = vadd.xlane.f32.xlu0 %v2722
    %v2724 = vpop.xlane.xlu0 %2723
    %v2725 = vsel %vm110, %v2703, 0.0
    %2726 = vadd.xlane.f32.xlu0 %v2725
    %v2727 = vpop.xlane.xlu0 %2726
    %v2728 = vmul.f32 %v2706, %v237
    %v2729 = vmul.f32 %v2709, %v237
    %v2730 = vmul.f32 %v2712, %v237
    %v2731 = vmul.f32 %v2715, %v237
    %v2732 = vmul.f32 %v2718, %v237
    %v2733 = vmul.f32 %v2721, %v237
    %v2734 = vmul.f32 %v2724, %v237
    %v2735 = vmul.f32 %v2727, %v237
    %v2736 = vadd.f32 %v2728, 1e-05
    %v2737 = vadd.f32 %v2729, 1e-05
    %v2738 = vadd.f32 %v2730, 1e-05
    %v2739 = vadd.f32 %v2731, 1e-05
    %v2740 = vadd.f32 %v2732, 1e-05
    %v2741 = vadd.f32 %v2733, 1e-05
    %v2742 = vadd.f32 %v2734, 1e-05
    %v2743 = vadd.f32 %v2735, 1e-05
    %v2744 = vrsqrt.pop %v2736
    %v2745 = vmul.f32 %v2744, %v2736
    %v2746 = vmul.f32 %v2745, %v2744
    %v2747 = vmul.f32 0.5, %v2746
    %v2748 = vsub.f32 1.5, %v2747
    %v2749 = vmul.f32 %v2744, %v2748
    %vm2750 = vweird.f32 %v2736
    %vm2751 = vweird.f32 %v2744
    %vm2752 = vmor %vm2750, %vm2751
    %v2753 = vsel %vm2752, %v2744, %v2749
    %v2754 = vrsqrt.pop %v2737
    %v2755 = vmul.f32 %v2754, %v2737
    %v2756 = vmul.f32 %v2755, %v2754
    %v2757 = vmul.f32 0.5, %v2756
    %v2758 = vsub.f32 1.5, %v2757
    %v2759 = vmul.f32 %v2754, %v2758
    %vm2760 = vweird.f32 %v2737
    %vm2761 = vweird.f32 %v2754
    %vm2762 = vmor %vm2760, %vm2761
    %v2763 = vsel %vm2762, %v2754, %v2759
    %v2764 = vrsqrt.pop %v2738
    %v2765 = vmul.f32 %v2764, %v2738
    %v2766 = vmul.f32 %v2765, %v2764
    %v2767 = vmul.f32 0.5, %v2766
    %v2768 = vsub.f32 1.5, %v2767
    %v2769 = vmul.f32 %v2764, %v2768
    %vm2770 = vweird.f32 %v2738
    %vm2771 = vweird.f32 %v2764
    %vm2772 = vmor %vm2770, %vm2771
    %v2773 = vsel %vm2772, %v2764, %v2769
    %v2774 = vrsqrt.pop %v2739
    %v2775 = vmul.f32 %v2774, %v2739
    %v2776 = vmul.f32 %v2775, %v2774
    %v2777 = vmul.f32 0.5, %v2776
    %v2778 = vsub.f32 1.5, %v2777
    %v2779 = vmul.f32 %v2774, %v2778
    %vm2780 = vweird.f32 %v2739
    %vm2781 = vweird.f32 %v2774
    %vm2782 = vmor %vm2780, %vm2781
    %v2783 = vsel %vm2782, %v2774, %v2779
    %v2784 = vrsqrt.pop %v2740
    %v2785 = vmul.f32 %v2784, %v2740
    %v2786 = vmul.f32 %v2785, %v2784
    %v2787 = vmul.f32 0.5, %v2786
    %v2788 = vsub.f32 1.5, %v2787
    %v2789 = vmul.f32 %v2784, %v2788
    %vm2790 = vweird.f32 %v2740
    %vm2791 = vweird.f32 %v2784
    %vm2792 = vmor %vm2790, %vm2791
    %v2793 = vsel %vm2792, %v2784, %v2789
    %v2794 = vrsqrt.pop %v2741
    %v2795 = vmul.f32 %v2794, %v2741
    %v2796 = vmul.f32 %v2795, %v2794
    %v2797 = vmul.f32 0.5, %v2796
    %v2798 = vsub.f32 1.5, %v2797
    %v2799 = vmul.f32 %v2794, %v2798
    %vm2800 = vweird.f32 %v2741
    %vm2801 = vweird.f32 %v2794
    %vm2802 = vmor %vm2800, %vm2801
    %v2803 = vsel %vm2802, %v2794, %v2799
    %v2804 = vrsqrt.pop %v2742
    %v2805 = vmul.f32 %v2804, %v2742
    %v2806 = vmul.f32 %v2805, %v2804
    %v2807 = vmul.f32 0.5, %v2806
    %v2808 = vsub.f32 1.5, %v2807
    %v2809 = vmul.f32 %v2804, %v2808
    %vm2810 = vweird.f32 %v2742
    %vm2811 = vweird.f32 %v2804
    %vm2812 = vmor %vm2810, %vm2811
    %v2813 = vsel %vm2812, %v2804, %v2809
    %v2814 = vrsqrt.pop %v2743
    %v2815 = vmul.f32 %v2814, %v2743
    %v2816 = vmul.f32 %v2815, %v2814
    %v2817 = vmul.f32 0.5, %v2816
    %v2818 = vsub.f32 1.5, %v2817
    %v2819 = vmul.f32 %v2814, %v2818
    %vm2820 = vweird.f32 %v2743
    %vm2821 = vweird.f32 %v2814
    %vm2822 = vmor %vm2820, %vm2821
    %v2823 = vsel %vm2822, %v2814, %v2819
    %v2824 = vmul.f32 %v2688, %v2753
    %v2825 = vmul.f32 %v2689, %v2763
    %v2826 = vmul.f32 %v2690, %v2773
    %v2827 = vmul.f32 %v2691, %v2783
    %v2828 = vmul.f32 %v2692, %v2793
    %v2829 = vmul.f32 %v2693, %v2803
    %v2830 = vmul.f32 %v2694, %v2813
    %v2831 = vmul.f32 %v2695, %v2823
    %v2832 = vperm.slane %v82, 5
    %v2833 = vmul.f32 %v2824, %v2832
    %v2834 = vmul.f32 %v2825, %v2832
    %v2835 = vmul.f32 %v2826, %v2832
    %v2836 = vmul.f32 %v2827, %v2832
    %v2837 = vmul.f32 %v2828, %v2832
    %v2838 = vmul.f32 %v2829, %v2832
    %v2839 = vmul.f32 %v2830, %v2832
    %v2840 = vmul.f32 %v2831, %v2832
    %v2841 = vperm.slane %v82, 6
    %v2842 = vadd.f32 %v2833, %v2841
    %v2843 = vadd.f32 %v2834, %v2841
    %v2844 = vadd.f32 %v2835, %v2841
    %v2845 = vadd.f32 %v2836, %v2841
    %v2846 = vadd.f32 %v2837, %v2841
    %v2847 = vadd.f32 %v2838, %v2841
    %v2848 = vadd.f32 %v2839, %v2841
    %v2849 = vadd.f32 %v2840, %v2841
    %v2850 = vld [vmem:[%s10] sm:$0xff]
    %v2851 = vld [vmem:[%s10 + $0x8] sm:$0xff]
    %v2852 = vld [vmem:[%s10 + $0x10] sm:$0xff]
    %v2853 = vld [vmem:[%s10 + $0x18] sm:$0xff]
    %v2854 = vperm.slane %v85, 0
    %v2856 = vsel %vm110, %v2842, 0
    %v2859 = vsel %vm110, %v2843, 0
    %v2862 = vsel %vm110, %v2844, 0
    %v2865 = vsel %vm110, %v2845, 0
    %v2868 = vsel %vm110, %v2846, 0
    %v2871 = vsel %vm110, %v2847, 0
    %v2874 = vsel %vm110, %v2848, 0
    %v2877 = vsel %vm110, %v2849, 0
    %2879 = vmatpush.msra.mxu0 0.0
    %2880 = vmatpush.msra.mxu0 0.0
    %2881 = vmatpush.msra.mxu0 0.0
    %2882 = vmatpush.msra.mxu0 0.0
    %2883 = vmatpush.msra.mxu0 0.0
    %2884 = vmatpush.msra.mxu0 0.0
    %2885 = vmatpush.msra.mxu0 0.0
    %2886 = vmatpush.msra.mxu0 0.0
    %2887 = vmatpush.msra.mxu0 0.0
    %2888 = vmatpush.msra.mxu0 0.0
    %2889 = vmatpush.msra.mxu0 0.0
    %2890 = vmatpush.msra.mxu0 0.0
    %2891 = vmatpush.msra.mxu0 %v2853
    %2892 = vmatpush.msra.mxu0 %v2852
    %2893 = vmatpush.msra.mxu0 %v2851
    %2894 = vmatpush.msra.mxu0 %v2850
    %2895 = vmatmul.f32.gmra.mxu0 %v2856
    %v2896 = vpop.f32.mrf.mxu0
    %v2897 = vadd.f32 %v2854, %v2896
    %2898 = vmatmul.f32.gmra.mxu0 %v2859
    %v2899 = vpop.f32.mrf.mxu0
    %v2900 = vadd.f32 %v2854, %v2899
    %2901 = vmatmul.f32.gmra.mxu0 %v2862
    %v2902 = vpop.f32.mrf.mxu0
    %v2903 = vadd.f32 %v2854, %v2902
    %2904 = vmatmul.f32.gmra.mxu0 %v2865
    %v2905 = vpop.f32.mrf.mxu0
    %v2906 = vadd.f32 %v2854, %v2905
    %2907 = vmatmul.f32.gmra.mxu0 %v2868
    %v2908 = vpop.f32.mrf.mxu0
    %v2909 = vadd.f32 %v2854, %v2908
    %2910 = vmatmul.f32.gmra.mxu0 %v2871
    %v2911 = vpop.f32.mrf.mxu0
    %v2912 = vadd.f32 %v2854, %v2911
    %2913 = vmatmul.f32.gmra.mxu0 %v2874
    %v2914 = vpop.f32.mrf.mxu0
    %v2915 = vadd.f32 %v2854, %v2914
    %2916 = vmatmul.f32.gmra.mxu0 %v2877
    %v2917 = vpop.f32.mrf.mxu0
    %v2918 = vadd.f32 %v2854, %v2917
    %2919 = vdwg.mxu0
    %v2920 = vxor.u32 %v2897, 2147483648
    %v2921 = vxor.u32 %v2900, 2147483648
    %v2922 = vxor.u32 %v2903, 2147483648
    %v2923 = vxor.u32 %v2906, 2147483648
    %v2924 = vxor.u32 %v2909, 2147483648
    %v2925 = vxor.u32 %v2912, 2147483648
    %v2926 = vxor.u32 %v2915, 2147483648
    %v2927 = vxor.u32 %v2918, 2147483648
    %v2928 = vmul.f32 %v2920, 1.442695
    %v2929 = vpow.pop %v2928
    %v2930 = vmul.f32 %v2921, 1.442695
    %v2931 = vpow.pop %v2930
    %v2932 = vmul.f32 %v2922, 1.442695
    %v2933 = vpow.pop %v2932
    %v2934 = vmul.f32 %v2923, 1.442695
    %v2935 = vpow.pop %v2934
    %v2936 = vmul.f32 %v2924, 1.442695
    %v2937 = vpow.pop %v2936
    %v2938 = vmul.f32 %v2925, 1.442695
    %v2939 = vpow.pop %v2938
    %v2940 = vmul.f32 %v2926, 1.442695
    %v2941 = vpow.pop %v2940
    %v2942 = vmul.f32 %v2927, 1.442695
    %v2943 = vpow.pop %v2942
    %v2944 = vadd.f32 %v2929, 1.0
    %v2945 = vadd.f32 %v2931, 1.0
    %v2946 = vadd.f32 %v2933, 1.0
    %v2947 = vadd.f32 %v2935, 1.0
    %v2948 = vadd.f32 %v2937, 1.0
    %v2949 = vadd.f32 %v2939, 1.0
    %v2950 = vadd.f32 %v2941, 1.0
    %v2951 = vadd.f32 %v2943, 1.0
    %v2952 = vrcp.pop %v2944
    %v2953 = vmul.f32 %v2944, %v2952
    %v2954 = vsub.f32 1.0, %v2953
    %v2955 = vmul.f32 %v2952, %v2954
    %v2956 = vadd.f32 %v2952, %v2955
    %vm2957 = vweird.f32 %v2944
    %vm2958 = vweird.f32 %v2952
    %vm2959 = vmor %vm2957, %vm2958
    %v2960 = vsel %vm2959, %v2952, %v2956
    %v2961 = vand.u32 2147483647, %v2944
    %vm2962 = vcmp.eq.f32.partialorder %v2961, 8.507059e+37
    %v2963 = vand.u32 %v2944, 2147483648
    %v2964 = vor.u32 1.1754944e-38, %v2963
    %v2965 = vsel %vm2962, %v2964, %v2960
    %v2966 = vmul.f32 1.0, %v2965
    %v2967 = vrcp.pop %v2945
    %v2968 = vmul.f32 %v2945, %v2967
    %v2969 = vsub.f32 1.0, %v2968
    %v2970 = vmul.f32 %v2967, %v2969
    %v2971 = vadd.f32 %v2967, %v2970
    %vm2972 = vweird.f32 %v2945
    %vm2973 = vweird.f32 %v2967
    %vm2974 = vmor %vm2972, %vm2973
    %v2975 = vsel %vm2974, %v2967, %v2971
    %v2976 = vand.u32 2147483647, %v2945
    %vm2977 = vcmp.eq.f32.partialorder %v2976, 8.507059e+37
    %v2978 = vand.u32 %v2945, 2147483648
    %v2979 = vor.u32 1.1754944e-38, %v2978
    %v2980 = vsel %vm2977, %v2979, %v2975
    %v2981 = vmul.f32 1.0, %v2980
    %v2982 = vrcp.pop %v2946
    %v2983 = vmul.f32 %v2946, %v2982
    %v2984 = vsub.f32 1.0, %v2983
    %v2985 = vmul.f32 %v2982, %v2984
    %v2986 = vadd.f32 %v2982, %v2985
    %vm2987 = vweird.f32 %v2946
    %vm2988 = vweird.f32 %v2982
    %vm2989 = vmor %vm2987, %vm2988
    %v2990 = vsel %vm2989, %v2982, %v2986
    %v2991 = vand.u32 2147483647, %v2946
    %vm2992 = vcmp.eq.f32.partialorder %v2991, 8.507059e+37
    %v2993 = vand.u32 %v2946, 2147483648
    %v2994 = vor.u32 1.1754944e-38, %v2993
    %v2995 = vsel %vm2992, %v2994, %v2990
    %v2996 = vmul.f32 1.0, %v2995
    %v2997 = vrcp.pop %v2947
    %v2998 = vmul.f32 %v2947, %v2997
    %v2999 = vsub.f32 1.0, %v2998
    %v3000 = vmul.f32 %v2997, %v2999
    %v3001 = vadd.f32 %v2997, %v3000
    %vm3002 = vweird.f32 %v2947
    %vm3003 = vweird.f32 %v2997
    %vm3004 = vmor %vm3002, %vm3003
    %v3005 = vsel %vm3004, %v2997, %v3001
    %v3006 = vand.u32 2147483647, %v2947
    %vm3007 = vcmp.eq.f32.partialorder %v3006, 8.507059e+37
    %v3008 = vand.u32 %v2947, 2147483648
    %v3009 = vor.u32 1.1754944e-38, %v3008
    %v3010 = vsel %vm3007, %v3009, %v3005
    %v3011 = vmul.f32 1.0, %v3010
    %v3012 = vrcp.pop %v2948
    %v3013 = vmul.f32 %v2948, %v3012
    %v3014 = vsub.f32 1.0, %v3013
    %v3015 = vmul.f32 %v3012, %v3014
    %v3016 = vadd.f32 %v3012, %v3015
    %vm3017 = vweird.f32 %v2948
    %vm3018 = vweird.f32 %v3012
    %vm3019 = vmor %vm3017, %vm3018
    %v3020 = vsel %vm3019, %v3012, %v3016
    %v3021 = vand.u32 2147483647, %v2948
    %vm3022 = vcmp.eq.f32.partialorder %v3021, 8.507059e+37
    %v3023 = vand.u32 %v2948, 2147483648
    %v3024 = vor.u32 1.1754944e-38, %v3023
    %v3025 = vsel %vm3022, %v3024, %v3020
    %v3026 = vmul.f32 1.0, %v3025
    %v3027 = vrcp.pop %v2949
    %v3028 = vmul.f32 %v2949, %v3027
    %v3029 = vsub.f32 1.0, %v3028
    %v3030 = vmul.f32 %v3027, %v3029
    %v3031 = vadd.f32 %v3027, %v3030
    %vm3032 = vweird.f32 %v2949
    %vm3033 = vweird.f32 %v3027
    %vm3034 = vmor %vm3032, %vm3033
    %v3035 = vsel %vm3034, %v3027, %v3031
    %v3036 = vand.u32 2147483647, %v2949
    %vm3037 = vcmp.eq.f32.partialorder %v3036, 8.507059e+37
    %v3038 = vand.u32 %v2949, 2147483648
    %v3039 = vor.u32 1.1754944e-38, %v3038
    %v3040 = vsel %vm3037, %v3039, %v3035
    %v3041 = vmul.f32 1.0, %v3040
    %v3042 = vrcp.pop %v2950
    %v3043 = vmul.f32 %v2950, %v3042
    %v3044 = vsub.f32 1.0, %v3043
    %v3045 = vmul.f32 %v3042, %v3044
    %v3046 = vadd.f32 %v3042, %v3045
    %vm3047 = vweird.f32 %v2950
    %vm3048 = vweird.f32 %v3042
    %vm3049 = vmor %vm3047, %vm3048
    %v3050 = vsel %vm3049, %v3042, %v3046
    %v3051 = vand.u32 2147483647, %v2950
    %vm3052 = vcmp.eq.f32.partialorder %v3051, 8.507059e+37
    %v3053 = vand.u32 %v2950, 2147483648
    %v3054 = vor.u32 1.1754944e-38, %v3053
    %v3055 = vsel %vm3052, %v3054, %v3050
    %v3056 = vmul.f32 1.0, %v3055
    %v3057 = vrcp.pop %v2951
    %v3058 = vmul.f32 %v2951, %v3057
    %v3059 = vsub.f32 1.0, %v3058
    %v3060 = vmul.f32 %v3057, %v3059
    %v3061 = vadd.f32 %v3057, %v3060
    %vm3062 = vweird.f32 %v2951
    %vm3063 = vweird.f32 %v3057
    %vm3064 = vmor %vm3062, %vm3063
    %v3065 = vsel %vm3064, %v3057, %v3061
    %v3066 = vand.u32 2147483647, %v2951
    %vm3067 = vcmp.eq.f32.partialorder %v3066, 8.507059e+37
    %v3068 = vand.u32 %v2951, 2147483648
    %v3069 = vor.u32 1.1754944e-38, %v3068
    %v3070 = vsel %vm3067, %v3069, %v3065
    %v3071 = vmul.f32 1.0, %v3070
    %3080 = vrot.lane.b32.xlu0 %v2966, 96
    %v3081 = vpop.permute.xlu0 %3080
    %3082 = vrot.lane.b32.xlu0 %v2981, 96
    %v3083 = vpop.permute.xlu0 %3082
    %3084 = vrot.lane.b32.xlu0 %v2996, 96
    %v3085 = vpop.permute.xlu0 %3084
    %3086 = vrot.lane.b32.xlu0 %v3011, 96
    %v3087 = vpop.permute.xlu0 %3086
    %3088 = vrot.lane.b32.xlu0 %v3026, 96
    %v3089 = vpop.permute.xlu0 %3088
    %3090 = vrot.lane.b32.xlu0 %v3041, 96
    %v3091 = vpop.permute.xlu0 %3090
    %3092 = vrot.lane.b32.xlu0 %v3056, 96
    %v3093 = vpop.permute.xlu0 %3092
    %3094 = vrot.lane.b32.xlu0 %v3071, 96
    %v3095 = vpop.permute.xlu0 %3094
    %v3104 = vmul.f32 %v2897, %v3081
    %v3105 = vmul.f32 %v2900, %v3083
    %v3106 = vmul.f32 %v2903, %v3085
    %v3107 = vmul.f32 %v2906, %v3087
    %v3108 = vmul.f32 %v2909, %v3089
    %v3109 = vmul.f32 %v2912, %v3091
    %v3110 = vmul.f32 %v2915, %v3093
    %v3111 = vmul.f32 %v2918, %v3095
    %v3112 = vlaneseq
    %v3113 = vshrl.u32 %v3112, 7
    %v3114 = vadd.s32 %v3113, 8
    %v3115 = vld [vmem:[%s11] sm:$0x1f]
    %v3116 = vperm.slane %v3115, 2
    %v3117 = vmul.f32 %v3104, %v3116
    %v3118 = vmul.f32 %v3105, %v3116
    %v3119 = vmul.f32 %v3106, %v3116
    %v3120 = vmul.f32 %v3107, %v3116
    %v3121 = vmul.f32 %v3108, %v3116
    %v3122 = vmul.f32 %v3109, %v3116
    %v3123 = vmul.f32 %v3110, %v3116
    %v3124 = vmul.f32 %v3111, %v3116
    %vm3133 = vcmask 1041408
    %v3134 = vrot.slane %v3104, 6
    %v3135 = vrot.slane %v3105, 6
    %v3136 = vsel %vm3133, %v3134, %v3135
    %v3137 = vrot.slane %v3106, 6
    %v3138 = vsel %vm3133, %v3135, %v3137
    %v3139 = vrot.slane %v3107, 6
    %v3140 = vsel %vm3133, %v3137, %v3139
    %v3141 = vrot.slane %v3108, 6
    %v3142 = vsel %vm3133, %v3139, %v3141
    %v3143 = vrot.slane %v3109, 6
    %v3144 = vsel %vm3133, %v3141, %v3143
    %v3145 = vrot.slane %v3110, 6
    %v3146 = vsel %vm3133, %v3143, %v3145
    %v3147 = vrot.slane %v3111, 6
    %v3148 = vsel %vm3133, %v3145, %v3147
    %v3157 = vsel %vm3133, 0.0, %v3134
    %v3158 = vadd.s32 %v3113, 4294967294
    %v3159 = vadd.s32 %v3114, 4294967294
    %vm3160 = vcmp.ge.s32.totalorder %v3158, 0
    %vm3161 = vcmp.ge.s32.totalorder %v3159, 0
    %vm3162 = vcmp.lt.s32.totalorder %v3158, 16
    %vm3163 = vcmp.lt.s32.totalorder %v3159, 16
    %vm3164 = vmand %vm3160, %vm3162
    %vm3165 = vmand %vm3161, %vm3163
    %v3166 = vsel %vm3164, %v3157, 0.0
    %v3167 = vsel %vm3165, %v3136, 0.0
    %v3168 = vsel %vm3164, %v3138, 0.0
    %v3169 = vsel %vm3165, %v3140, 0.0
    %v3170 = vsel %vm3164, %v3142, 0.0
    %v3171 = vsel %vm3165, %v3144, 0.0
    %v3172 = vsel %vm3164, %v3146, 0.0
    %v3173 = vsel %vm3165, %v3148, 0.0
    %v3174 = vperm.slane %v3115, 0
    %v3175 = vmul.f32 %v3166, %v3174
    %v3176 = vmul.f32 %v3167, %v3174
    %v3177 = vmul.f32 %v3168, %v3174
    %v3178 = vmul.f32 %v3169, %v3174
    %v3179 = vmul.f32 %v3170, %v3174
    %v3180 = vmul.f32 %v3171, %v3174
    %v3181 = vmul.f32 %v3172, %v3174
    %v3182 = vmul.f32 %v3173, %v3174
    %v3183 = vadd.f32 %v3117, %v3175
    %v3184 = vadd.f32 %v3118, %v3176
    %v3185 = vadd.f32 %v3119, %v3177
    %v3186 = vadd.f32 %v3120, %v3178
    %v3187 = vadd.f32 %v3121, %v3179
    %v3188 = vadd.f32 %v3122, %v3180
    %v3189 = vadd.f32 %v3123, %v3181
    %v3190 = vadd.f32 %v3124, %v3182
    %vm3191 = vcmask 1040384
    %v3192 = vrot.slane %v3104, 7
    %v3193 = vrot.slane %v3105, 7
    %v3194 = vsel %vm3191, %v3192, %v3193
    %v3195 = vrot.slane %v3106, 7
    %v3196 = vsel %vm3191, %v3193, %v3195
    %v3197 = vrot.slane %v3107, 7
    %v3198 = vsel %vm3191, %v3195, %v3197
    %v3199 = vrot.slane %v3108, 7
    %v3200 = vsel %vm3191, %v3197, %v3199
    %v3201 = vrot.slane %v3109, 7
    %v3202 = vsel %vm3191, %v3199, %v3201
    %v3203 = vrot.slane %v3110, 7
    %v3204 = vsel %vm3191, %v3201, %v3203
    %v3205 = vrot.slane %v3111, 7
    %v3206 = vsel %vm3191, %v3203, %v3205
    %v3215 = vsel %vm3191, 0.0, %v3192
    %v3216 = vadd.s32 %v3113, 4294967295
    %v3217 = vadd.s32 %v3114, 4294967295
    %vm3218 = vcmp.ge.s32.totalorder %v3216, 0
    %vm3219 = vcmp.ge.s32.totalorder %v3217, 0
    %vm3220 = vcmp.lt.s32.totalorder %v3216, 16
    %vm3221 = vcmp.lt.s32.totalorder %v3217, 16
    %vm3222 = vmand %vm3218, %vm3220
    %vm3223 = vmand %vm3219, %vm3221
    %v3224 = vsel %vm3222, %v3215, 0.0
    %v3225 = vsel %vm3223, %v3194, 0.0
    %v3226 = vsel %vm3222, %v3196, 0.0
    %v3227 = vsel %vm3223, %v3198, 0.0
    %v3228 = vsel %vm3222, %v3200, 0.0
    %v3229 = vsel %vm3223, %v3202, 0.0
    %v3230 = vsel %vm3222, %v3204, 0.0
    %v3231 = vsel %vm3223, %v3206, 0.0
    %v3232 = vperm.slane %v3115, 1
    %v3233 = vmul.f32 %v3224, %v3232
    %v3234 = vmul.f32 %v3225, %v3232
    %v3235 = vmul.f32 %v3226, %v3232
    %v3236 = vmul.f32 %v3227, %v3232
    %v3237 = vmul.f32 %v3228, %v3232
    %v3238 = vmul.f32 %v3229, %v3232
    %v3239 = vmul.f32 %v3230, %v3232
    %v3240 = vmul.f32 %v3231, %v3232
    %v3241 = vadd.f32 %v3183, %v3233
    %v3242 = vadd.f32 %v3184, %v3234
    %v3243 = vadd.f32 %v3185, %v3235
    %v3244 = vadd.f32 %v3186, %v3236
    %v3245 = vadd.f32 %v3187, %v3237
    %v3246 = vadd.f32 %v3188, %v3238
    %v3247 = vadd.f32 %v3189, %v3239
    %v3248 = vadd.f32 %v3190, %v3240
    %vm3249 = vcmask 1046528
    %v3250 = vrot.slane %v3104, 1
    %v3251 = vrot.slane %v3105, 1
    %v3252 = vsel %vm3249, %v3250, %v3251
    %v3253 = vrot.slane %v3106, 1
    %v3254 = vsel %vm3249, %v3251, %v3253
    %v3255 = vrot.slane %v3107, 1
    %v3256 = vsel %vm3249, %v3253, %v3255
    %v3257 = vrot.slane %v3108, 1
    %v3258 = vsel %vm3249, %v3255, %v3257
    %v3259 = vrot.slane %v3109, 1
    %v3260 = vsel %vm3249, %v3257, %v3259
    %v3261 = vrot.slane %v3110, 1
    %v3262 = vsel %vm3249, %v3259, %v3261
    %v3263 = vrot.slane %v3111, 1
    %v3264 = vsel %vm3249, %v3261, %v3263
    %v3273 = vsel %vm3249, %v3263, 0.0
    %v3274 = vadd.s32 %v3113, 1
    %v3275 = vadd.s32 %v3114, 1
    %vm3276 = vcmp.ge.s32.totalorder %v3274, 0
    %vm3277 = vcmp.ge.s32.totalorder %v3275, 0
    %vm3278 = vcmp.lt.s32.totalorder %v3274, 16
    %vm3279 = vcmp.lt.s32.totalorder %v3275, 16
    %vm3280 = vmand %vm3276, %vm3278
    %vm3281 = vmand %vm3277, %vm3279
    %v3282 = vsel %vm3280, %v3252, 0.0
    %v3283 = vsel %vm3281, %v3254, 0.0
    %v3284 = vsel %vm3280, %v3256, 0.0
    %v3285 = vsel %vm3281, %v3258, 0.0
    %v3286 = vsel %vm3280, %v3260, 0.0
    %v3287 = vsel %vm3281, %v3262, 0.0
    %v3288 = vsel %vm3280, %v3264, 0.0
    %v3289 = vsel %vm3281, %v3273, 0.0
    %v3290 = vperm.slane %v3115, 3
    %v3291 = vmul.f32 %v3282, %v3290
    %v3292 = vmul.f32 %v3283, %v3290
    %v3293 = vmul.f32 %v3284, %v3290
    %v3294 = vmul.f32 %v3285, %v3290
    %v3295 = vmul.f32 %v3286, %v3290
    %v3296 = vmul.f32 %v3287, %v3290
    %v3297 = vmul.f32 %v3288, %v3290
    %v3298 = vmul.f32 %v3289, %v3290
    %v3299 = vadd.f32 %v3241, %v3291
    %v3300 = vadd.f32 %v3242, %v3292
    %v3301 = vadd.f32 %v3243, %v3293
    %v3302 = vadd.f32 %v3244, %v3294
    %v3303 = vadd.f32 %v3245, %v3295
    %v3304 = vadd.f32 %v3246, %v3296
    %v3305 = vadd.f32 %v3247, %v3297
    %v3306 = vadd.f32 %v3248, %v3298
    %vm3307 = vcmask 1045504
    %v3308 = vrot.slane %v3104, 2
    %v3309 = vrot.slane %v3105, 2
    %v3310 = vsel %vm3307, %v3308, %v3309
    %v3311 = vrot.slane %v3106, 2
    %v3312 = vsel %vm3307, %v3309, %v3311
    %v3313 = vrot.slane %v3107, 2
    %v3314 = vsel %vm3307, %v3311, %v3313
    %v3315 = vrot.slane %v3108, 2
    %v3316 = vsel %vm3307, %v3313, %v3315
    %v3317 = vrot.slane %v3109, 2
    %v3318 = vsel %vm3307, %v3315, %v3317
    %v3319 = vrot.slane %v3110, 2
    %v3320 = vsel %vm3307, %v3317, %v3319
    %v3321 = vrot.slane %v3111, 2
    %v3322 = vsel %vm3307, %v3319, %v3321
    %v3331 = vsel %vm3307, %v3321, 0.0
    %v3332 = vadd.s32 %v3113, 2
    %v3333 = vadd.s32 %v3114, 2
    %vm3334 = vcmp.ge.s32.totalorder %v3332, 0
    %vm3335 = vcmp.ge.s32.totalorder %v3333, 0
    %vm3336 = vcmp.lt.s32.totalorder %v3332, 16
    %vm3337 = vcmp.lt.s32.totalorder %v3333, 16
    %vm3338 = vmand %vm3334, %vm3336
    %vm3339 = vmand %vm3335, %vm3337
    %v3340 = vsel %vm3338, %v3310, 0.0
    %v3341 = vsel %vm3339, %v3312, 0.0
    %v3342 = vsel %vm3338, %v3314, 0.0
    %v3343 = vsel %vm3339, %v3316, 0.0
    %v3344 = vsel %vm3338, %v3318, 0.0
    %v3345 = vsel %vm3339, %v3320, 0.0
    %v3346 = vsel %vm3338, %v3322, 0.0
    %v3347 = vsel %vm3339, %v3331, 0.0
    %v3348 = vperm.slane %v3115, 4
    %v3349 = vmul.f32 %v3340, %v3348
    %v3350 = vmul.f32 %v3341, %v3348
    %v3351 = vmul.f32 %v3342, %v3348
    %v3352 = vmul.f32 %v3343, %v3348
    %v3353 = vmul.f32 %v3344, %v3348
    %v3354 = vmul.f32 %v3345, %v3348
    %v3355 = vmul.f32 %v3346, %v3348
    %v3356 = vmul.f32 %v3347, %v3348
    %v3357 = vadd.f32 %v3299, %v3349
    %v3358 = vadd.f32 %v3300, %v3350
    %v3359 = vadd.f32 %v3301, %v3351
    %v3360 = vadd.f32 %v3302, %v3352
    %v3361 = vadd.f32 %v3303, %v3353
    %v3362 = vadd.f32 %v3304, %v3354
    %v3363 = vadd.f32 %v3305, %v3355
    %v3364 = vadd.f32 %v3306, %v3356
    %v3365 = vperm.slane %v82, 7
    %v3366 = vadd.f32 %v3357, %v3365
    %v3367 = vadd.f32 %v3358, %v3365
    %v3368 = vadd.f32 %v3359, %v3365
    %v3369 = vadd.f32 %v3360, %v3365
    %v3370 = vadd.f32 %v3361, %v3365
    %v3371 = vadd.f32 %v3362, %v3365
    %v3372 = vadd.f32 %v3363, %v3365
    %v3373 = vadd.f32 %v3364, %v3365
    %v3374 = vperm.slane %v83, 2
    %v3375 = vsub.f32 %v3366, %v3374
    %v3376 = vsub.f32 %v3367, %v3374
    %v3377 = vsub.f32 %v3368, %v3374
    %v3378 = vsub.f32 %v3369, %v3374
    %v3379 = vsub.f32 %v3370, %v3374
    %v3380 = vsub.f32 %v3371, %v3374
    %v3381 = vsub.f32 %v3372, %v3374
    %v3382 = vsub.f32 %v3373, %v3374
    %v3383 = vadd.f32 %v83, 1e-05
    %v3384 = vrsqrt.pop %v3383
    %v3385 = vmul.f32 %v3384, %v3383
    %v3386 = vmul.f32 %v3385, %v3384
    %v3387 = vmul.f32 0.5, %v3386
    %v3388 = vsub.f32 1.5, %v3387
    %v3389 = vmul.f32 %v3384, %v3388
    %vm3390 = vweird.f32 %v3383
    %vm3391 = vweird.f32 %v3384
    %vm3392 = vmor %vm3390, %vm3391
    %v3393 = vsel %vm3392, %v3384, %v3389
    %v3394 = vperm.slane %v3393, 3
    %v3395 = vmul.f32 %v3375, %v3394
    %v3396 = vmul.f32 %v3376, %v3394
    %v3397 = vmul.f32 %v3377, %v3394
    %v3398 = vmul.f32 %v3378, %v3394
    %v3399 = vmul.f32 %v3379, %v3394
    %v3400 = vmul.f32 %v3380, %v3394
    %v3401 = vmul.f32 %v3381, %v3394
    %v3402 = vmul.f32 %v3382, %v3394
    %v3403 = vperm.slane %v83, 0
    %v3404 = vmul.f32 %v3395, %v3403
    %v3405 = vmul.f32 %v3396, %v3403
    %v3406 = vmul.f32 %v3397, %v3403
    %v3407 = vmul.f32 %v3398, %v3403
    %v3408 = vmul.f32 %v3399, %v3403
    %v3409 = vmul.f32 %v3400, %v3403
    %v3410 = vmul.f32 %v3401, %v3403
    %v3411 = vmul.f32 %v3402, %v3403
    %v3412 = vperm.slane %v83, 1
    %v3413 = vadd.f32 %v3404, %v3412
    %v3414 = vadd.f32 %v3405, %v3412
    %v3415 = vadd.f32 %v3406, %v3412
    %v3416 = vadd.f32 %v3407, %v3412
    %v3417 = vadd.f32 %v3408, %v3412
    %v3418 = vadd.f32 %v3409, %v3412
    %v3419 = vadd.f32 %v3410, %v3412
    %v3420 = vadd.f32 %v3411, %v3412
    %v3421 = vxor.u32 %v3413, 2147483648
    %v3422 = vxor.u32 %v3414, 2147483648
    %v3423 = vxor.u32 %v3415, 2147483648
    %v3424 = vxor.u32 %v3416, 2147483648
    %v3425 = vxor.u32 %v3417, 2147483648
    %v3426 = vxor.u32 %v3418, 2147483648
    %v3427 = vxor.u32 %v3419, 2147483648
    %v3428 = vxor.u32 %v3420, 2147483648
    %v3429 = vmul.f32 %v3421, 1.442695
    %v3430 = vpow.pop %v3429
    %v3431 = vmul.f32 %v3422, 1.442695
    %v3432 = vpow.pop %v3431
    %v3433 = vmul.f32 %v3423, 1.442695
    %v3434 = vpow.pop %v3433
    %v3435 = vmul.f32 %v3424, 1.442695
    %v3436 = vpow.pop %v3435
    %v3437 = vmul.f32 %v3425, 1.442695
    %v3438 = vpow.pop %v3437
    %v3439 = vmul.f32 %v3426, 1.442695
    %v3440 = vpow.pop %v3439
    %v3441 = vmul.f32 %v3427, 1.442695
    %v3442 = vpow.pop %v3441
    %v3443 = vmul.f32 %v3428, 1.442695
    %v3444 = vpow.pop %v3443
    %v3445 = vadd.f32 %v3430, 1.0
    %v3446 = vadd.f32 %v3432, 1.0
    %v3447 = vadd.f32 %v3434, 1.0
    %v3448 = vadd.f32 %v3436, 1.0
    %v3449 = vadd.f32 %v3438, 1.0
    %v3450 = vadd.f32 %v3440, 1.0
    %v3451 = vadd.f32 %v3442, 1.0
    %v3452 = vadd.f32 %v3444, 1.0
    %v3453 = vrcp.pop %v3445
    %v3454 = vmul.f32 %v3445, %v3453
    %v3455 = vsub.f32 1.0, %v3454
    %v3456 = vmul.f32 %v3453, %v3455
    %v3457 = vadd.f32 %v3453, %v3456
    %vm3458 = vweird.f32 %v3445
    %vm3459 = vweird.f32 %v3453
    %vm3460 = vmor %vm3458, %vm3459
    %v3461 = vsel %vm3460, %v3453, %v3457
    %v3462 = vand.u32 2147483647, %v3445
    %vm3463 = vcmp.eq.f32.partialorder %v3462, 8.507059e+37
    %v3464 = vand.u32 %v3445, 2147483648
    %v3465 = vor.u32 1.1754944e-38, %v3464
    %v3466 = vsel %vm3463, %v3465, %v3461
    %v3467 = vmul.f32 1.0, %v3466
    %v3468 = vrcp.pop %v3446
    %v3469 = vmul.f32 %v3446, %v3468
    %v3470 = vsub.f32 1.0, %v3469
    %v3471 = vmul.f32 %v3468, %v3470
    %v3472 = vadd.f32 %v3468, %v3471
    %vm3473 = vweird.f32 %v3446
    %vm3474 = vweird.f32 %v3468
    %vm3475 = vmor %vm3473, %vm3474
    %v3476 = vsel %vm3475, %v3468, %v3472
    %v3477 = vand.u32 2147483647, %v3446
    %vm3478 = vcmp.eq.f32.partialorder %v3477, 8.507059e+37
    %v3479 = vand.u32 %v3446, 2147483648
    %v3480 = vor.u32 1.1754944e-38, %v3479
    %v3481 = vsel %vm3478, %v3480, %v3476
    %v3482 = vmul.f32 1.0, %v3481
    %v3483 = vrcp.pop %v3447
    %v3484 = vmul.f32 %v3447, %v3483
    %v3485 = vsub.f32 1.0, %v3484
    %v3486 = vmul.f32 %v3483, %v3485
    %v3487 = vadd.f32 %v3483, %v3486
    %vm3488 = vweird.f32 %v3447
    %vm3489 = vweird.f32 %v3483
    %vm3490 = vmor %vm3488, %vm3489
    %v3491 = vsel %vm3490, %v3483, %v3487
    %v3492 = vand.u32 2147483647, %v3447
    %vm3493 = vcmp.eq.f32.partialorder %v3492, 8.507059e+37
    %v3494 = vand.u32 %v3447, 2147483648
    %v3495 = vor.u32 1.1754944e-38, %v3494
    %v3496 = vsel %vm3493, %v3495, %v3491
    %v3497 = vmul.f32 1.0, %v3496
    %v3498 = vrcp.pop %v3448
    %v3499 = vmul.f32 %v3448, %v3498
    %v3500 = vsub.f32 1.0, %v3499
    %v3501 = vmul.f32 %v3498, %v3500
    %v3502 = vadd.f32 %v3498, %v3501
    %vm3503 = vweird.f32 %v3448
    %vm3504 = vweird.f32 %v3498
    %vm3505 = vmor %vm3503, %vm3504
    %v3506 = vsel %vm3505, %v3498, %v3502
    %v3507 = vand.u32 2147483647, %v3448
    %vm3508 = vcmp.eq.f32.partialorder %v3507, 8.507059e+37
    %v3509 = vand.u32 %v3448, 2147483648
    %v3510 = vor.u32 1.1754944e-38, %v3509
    %v3511 = vsel %vm3508, %v3510, %v3506
    %v3512 = vmul.f32 1.0, %v3511
    %v3513 = vrcp.pop %v3449
    %v3514 = vmul.f32 %v3449, %v3513
    %v3515 = vsub.f32 1.0, %v3514
    %v3516 = vmul.f32 %v3513, %v3515
    %v3517 = vadd.f32 %v3513, %v3516
    %vm3518 = vweird.f32 %v3449
    %vm3519 = vweird.f32 %v3513
    %vm3520 = vmor %vm3518, %vm3519
    %v3521 = vsel %vm3520, %v3513, %v3517
    %v3522 = vand.u32 2147483647, %v3449
    %vm3523 = vcmp.eq.f32.partialorder %v3522, 8.507059e+37
    %v3524 = vand.u32 %v3449, 2147483648
    %v3525 = vor.u32 1.1754944e-38, %v3524
    %v3526 = vsel %vm3523, %v3525, %v3521
    %v3527 = vmul.f32 1.0, %v3526
    %v3528 = vrcp.pop %v3450
    %v3529 = vmul.f32 %v3450, %v3528
    %v3530 = vsub.f32 1.0, %v3529
    %v3531 = vmul.f32 %v3528, %v3530
    %v3532 = vadd.f32 %v3528, %v3531
    %vm3533 = vweird.f32 %v3450
    %vm3534 = vweird.f32 %v3528
    %vm3535 = vmor %vm3533, %vm3534
    %v3536 = vsel %vm3535, %v3528, %v3532
    %v3537 = vand.u32 2147483647, %v3450
    %vm3538 = vcmp.eq.f32.partialorder %v3537, 8.507059e+37
    %v3539 = vand.u32 %v3450, 2147483648
    %v3540 = vor.u32 1.1754944e-38, %v3539
    %v3541 = vsel %vm3538, %v3540, %v3536
    %v3542 = vmul.f32 1.0, %v3541
    %v3543 = vrcp.pop %v3451
    %v3544 = vmul.f32 %v3451, %v3543
    %v3545 = vsub.f32 1.0, %v3544
    %v3546 = vmul.f32 %v3543, %v3545
    %v3547 = vadd.f32 %v3543, %v3546
    %vm3548 = vweird.f32 %v3451
    %vm3549 = vweird.f32 %v3543
    %vm3550 = vmor %vm3548, %vm3549
    %v3551 = vsel %vm3550, %v3543, %v3547
    %v3552 = vand.u32 2147483647, %v3451
    %vm3553 = vcmp.eq.f32.partialorder %v3552, 8.507059e+37
    %v3554 = vand.u32 %v3451, 2147483648
    %v3555 = vor.u32 1.1754944e-38, %v3554
    %v3556 = vsel %vm3553, %v3555, %v3551
    %v3557 = vmul.f32 1.0, %v3556
    %v3558 = vrcp.pop %v3452
    %v3559 = vmul.f32 %v3452, %v3558
    %v3560 = vsub.f32 1.0, %v3559
    %v3561 = vmul.f32 %v3558, %v3560
    %v3562 = vadd.f32 %v3558, %v3561
    %vm3563 = vweird.f32 %v3452
    %vm3564 = vweird.f32 %v3558
    %vm3565 = vmor %vm3563, %vm3564
    %v3566 = vsel %vm3565, %v3558, %v3562
    %v3567 = vand.u32 2147483647, %v3452
    %vm3568 = vcmp.eq.f32.partialorder %v3567, 8.507059e+37
    %v3569 = vand.u32 %v3452, 2147483648
    %v3570 = vor.u32 1.1754944e-38, %v3569
    %v3571 = vsel %vm3568, %v3570, %v3566
    %v3572 = vmul.f32 1.0, %v3571
    %v3573 = vmul.f32 %v3413, %v3467
    %v3574 = vmul.f32 %v3414, %v3482
    %v3575 = vmul.f32 %v3415, %v3497
    %v3576 = vmul.f32 %v3416, %v3512
    %v3577 = vmul.f32 %v3417, %v3527
    %v3578 = vmul.f32 %v3418, %v3542
    %v3579 = vmul.f32 %v3419, %v3557
    %v3580 = vmul.f32 %v3420, %v3572
    %v3581 = vld [vmem:[%s12] sm:$0xff]
    %v3582 = vld [vmem:[%s12 + $0x8] sm:$0xff]
    %v3583 = vld [vmem:[%s12 + $0x10] sm:$0xff]
    %v3584 = vld [vmem:[%s12 + $0x18] sm:$0xff]
    %v3585 = vperm.slane %v83, 4
    %v3587 = vsel %vm110, %v3573, 0
    %v3590 = vsel %vm110, %v3574, 0
    %v3593 = vsel %vm110, %v3575, 0
    %v3596 = vsel %vm110, %v3576, 0
    %v3599 = vsel %vm110, %v3577, 0
    %v3602 = vsel %vm110, %v3578, 0
    %v3605 = vsel %vm110, %v3579, 0
    %v3608 = vsel %vm110, %v3580, 0
    %3610 = vmatpush.msra.mxu0 0.0
    %3611 = vmatpush.msra.mxu0 0.0
    %3612 = vmatpush.msra.mxu0 0.0
    %3613 = vmatpush.msra.mxu0 0.0
    %3614 = vmatpush.msra.mxu0 0.0
    %3615 = vmatpush.msra.mxu0 0.0
    %3616 = vmatpush.msra.mxu0 0.0
    %3617 = vmatpush.msra.mxu0 0.0
    %3618 = vmatpush.msra.mxu0 0.0
    %3619 = vmatpush.msra.mxu0 0.0
    %3620 = vmatpush.msra.mxu0 0.0
    %3621 = vmatpush.msra.mxu0 0.0
    %3622 = vmatpush.msra.mxu0 %v3584
    %3623 = vmatpush.msra.mxu0 %v3583
    %3624 = vmatpush.msra.mxu0 %v3582
    %3625 = vmatpush.msra.mxu0 %v3581
    %3626 = vmatmul.f32.gmra.mxu0 %v3587
    %v3627 = vpop.f32.mrf.mxu0
    %v3628 = vadd.f32 %v3585, %v3627
    %3629 = vmatmul.f32.gmra.mxu0 %v3590
    %v3630 = vpop.f32.mrf.mxu0
    %v3631 = vadd.f32 %v3585, %v3630
    %3632 = vmatmul.f32.gmra.mxu0 %v3593
    %v3633 = vpop.f32.mrf.mxu0
    %v3634 = vadd.f32 %v3585, %v3633
    %3635 = vmatmul.f32.gmra.mxu0 %v3596
    %v3636 = vpop.f32.mrf.mxu0
    %v3637 = vadd.f32 %v3585, %v3636
    %3638 = vmatmul.f32.gmra.mxu0 %v3599
    %v3639 = vpop.f32.mrf.mxu0
    %v3640 = vadd.f32 %v3585, %v3639
    %3641 = vmatmul.f32.gmra.mxu0 %v3602
    %v3642 = vpop.f32.mrf.mxu0
    %v3643 = vadd.f32 %v3585, %v3642
    %3644 = vmatmul.f32.gmra.mxu0 %v3605
    %v3645 = vpop.f32.mrf.mxu0
    %v3646 = vadd.f32 %v3585, %v3645
    %3647 = vmatmul.f32.gmra.mxu0 %v3608
    %v3648 = vpop.f32.mrf.mxu0
    %v3649 = vadd.f32 %v3585, %v3648
    %3650 = vdwg.mxu0
    %v3651 = vadd.f32 %v3628, %v2633
    %v3652 = vadd.f32 %v3631, %v2636
    %v3653 = vadd.f32 %v3634, %v2639
    %v3654 = vadd.f32 %v3637, %v2642
    %v3655 = vadd.f32 %v3640, %v2645
    %v3656 = vadd.f32 %v3643, %v2648
    %v3657 = vadd.f32 %v3646, %v2651
    %v3658 = vadd.f32 %v3649, %v2654
    %v3659 = vsel %vm110, %v3651, 0.0
    %3660 = vadd.xlane.f32.xlu0 %v3659
    %v3661 = vpop.xlane.xlu0 %3660
    %v3662 = vsel %vm110, %v3652, 0.0
    %3663 = vadd.xlane.f32.xlu0 %v3662
    %v3664 = vpop.xlane.xlu0 %3663
    %v3665 = vsel %vm110, %v3653, 0.0
    %3666 = vadd.xlane.f32.xlu0 %v3665
    %v3667 = vpop.xlane.xlu0 %3666
    %v3668 = vsel %vm110, %v3654, 0.0
    %3669 = vadd.xlane.f32.xlu0 %v3668
    %v3670 = vpop.xlane.xlu0 %3669
    %v3671 = vsel %vm110, %v3655, 0.0
    %3672 = vadd.xlane.f32.xlu0 %v3671
    %v3673 = vpop.xlane.xlu0 %3672
    %v3674 = vsel %vm110, %v3656, 0.0
    %3675 = vadd.xlane.f32.xlu0 %v3674
    %v3676 = vpop.xlane.xlu0 %3675
    %v3677 = vsel %vm110, %v3657, 0.0
    %3678 = vadd.xlane.f32.xlu0 %v3677
    %v3679 = vpop.xlane.xlu0 %3678
    %v3680 = vsel %vm110, %v3658, 0.0
    %3681 = vadd.xlane.f32.xlu0 %v3680
    %v3682 = vpop.xlane.xlu0 %3681
    %v3683 = vmul.f32 %v3661, %v237
    %v3684 = vmul.f32 %v3664, %v237
    %v3685 = vmul.f32 %v3667, %v237
    %v3686 = vmul.f32 %v3670, %v237
    %v3687 = vmul.f32 %v3673, %v237
    %v3688 = vmul.f32 %v3676, %v237
    %v3689 = vmul.f32 %v3679, %v237
    %v3690 = vmul.f32 %v3682, %v237
    %v3691 = vsub.f32 %v3651, %v3683
    %v3692 = vsub.f32 %v3652, %v3684
    %v3693 = vsub.f32 %v3653, %v3685
    %v3694 = vsub.f32 %v3654, %v3686
    %v3695 = vsub.f32 %v3655, %v3687
    %v3696 = vsub.f32 %v3656, %v3688
    %v3697 = vsub.f32 %v3657, %v3689
    %v3698 = vsub.f32 %v3658, %v3690
    %v3699 = vmul.f32 %v3691, %v3691
    %v3700 = vmul.f32 %v3692, %v3692
    %v3701 = vmul.f32 %v3693, %v3693
    %v3702 = vmul.f32 %v3694, %v3694
    %v3703 = vmul.f32 %v3695, %v3695
    %v3704 = vmul.f32 %v3696, %v3696
    %v3705 = vmul.f32 %v3697, %v3697
    %v3706 = vmul.f32 %v3698, %v3698
    %v3707 = vsel %vm110, %v3699, 0.0
    %3708 = vadd.xlane.f32.xlu0 %v3707
    %v3709 = vpop.xlane.xlu0 %3708
    %v3710 = vsel %vm110, %v3700, 0.0
    %3711 = vadd.xlane.f32.xlu0 %v3710
    %v3712 = vpop.xlane.xlu0 %3711
    %v3713 = vsel %vm110, %v3701, 0.0
    %3714 = vadd.xlane.f32.xlu0 %v3713
    %v3715 = vpop.xlane.xlu0 %3714
    %v3716 = vsel %vm110, %v3702, 0.0
    %3717 = vadd.xlane.f32.xlu0 %v3716
    %v3718 = vpop.xlane.xlu0 %3717
    %v3719 = vsel %vm110, %v3703, 0.0
    %3720 = vadd.xlane.f32.xlu0 %v3719
    %v3721 = vpop.xlane.xlu0 %3720
    %v3722 = vsel %vm110, %v3704, 0.0
    %3723 = vadd.xlane.f32.xlu0 %v3722
    %v3724 = vpop.xlane.xlu0 %3723
    %v3725 = vsel %vm110, %v3705, 0.0
    %3726 = vadd.xlane.f32.xlu0 %v3725
    %v3727 = vpop.xlane.xlu0 %3726
    %v3728 = vsel %vm110, %v3706, 0.0
    %3729 = vadd.xlane.f32.xlu0 %v3728
    %v3730 = vpop.xlane.xlu0 %3729
    %v3731 = vmul.f32 %v3709, %v237
    %v3732 = vmul.f32 %v3712, %v237
    %v3733 = vmul.f32 %v3715, %v237
    %v3734 = vmul.f32 %v3718, %v237
    %v3735 = vmul.f32 %v3721, %v237
    %v3736 = vmul.f32 %v3724, %v237
    %v3737 = vmul.f32 %v3727, %v237
    %v3738 = vmul.f32 %v3730, %v237
    %v3739 = vadd.f32 %v3731, 1e-05
    %v3740 = vadd.f32 %v3732, 1e-05
    %v3741 = vadd.f32 %v3733, 1e-05
    %v3742 = vadd.f32 %v3734, 1e-05
    %v3743 = vadd.f32 %v3735, 1e-05
    %v3744 = vadd.f32 %v3736, 1e-05
    %v3745 = vadd.f32 %v3737, 1e-05
    %v3746 = vadd.f32 %v3738, 1e-05
    %v3747 = vrsqrt.pop %v3739
    %v3748 = vmul.f32 %v3747, %v3739
    %v3749 = vmul.f32 %v3748, %v3747
    %v3750 = vmul.f32 0.5, %v3749
    %v3751 = vsub.f32 1.5, %v3750
    %v3752 = vmul.f32 %v3747, %v3751
    %vm3753 = vweird.f32 %v3739
    %vm3754 = vweird.f32 %v3747
    %vm3755 = vmor %vm3753, %vm3754
    %v3756 = vsel %vm3755, %v3747, %v3752
    %v3757 = vrsqrt.pop %v3740
    %v3758 = vmul.f32 %v3757, %v3740
    %v3759 = vmul.f32 %v3758, %v3757
    %v3760 = vmul.f32 0.5, %v3759
    %v3761 = vsub.f32 1.5, %v3760
    %v3762 = vmul.f32 %v3757, %v3761
    %vm3763 = vweird.f32 %v3740
    %vm3764 = vweird.f32 %v3757
    %vm3765 = vmor %vm3763, %vm3764
    %v3766 = vsel %vm3765, %v3757, %v3762
    %v3767 = vrsqrt.pop %v3741
    %v3768 = vmul.f32 %v3767, %v3741
    %v3769 = vmul.f32 %v3768, %v3767
    %v3770 = vmul.f32 0.5, %v3769
    %v3771 = vsub.f32 1.5, %v3770
    %v3772 = vmul.f32 %v3767, %v3771
    %vm3773 = vweird.f32 %v3741
    %vm3774 = vweird.f32 %v3767
    %vm3775 = vmor %vm3773, %vm3774
    %v3776 = vsel %vm3775, %v3767, %v3772
    %v3777 = vrsqrt.pop %v3742
    %v3778 = vmul.f32 %v3777, %v3742
    %v3779 = vmul.f32 %v3778, %v3777
    %v3780 = vmul.f32 0.5, %v3779
    %v3781 = vsub.f32 1.5, %v3780
    %v3782 = vmul.f32 %v3777, %v3781
    %vm3783 = vweird.f32 %v3742
    %vm3784 = vweird.f32 %v3777
    %vm3785 = vmor %vm3783, %vm3784
    %v3786 = vsel %vm3785, %v3777, %v3782
    %v3787 = vrsqrt.pop %v3743
    %v3788 = vmul.f32 %v3787, %v3743
    %v3789 = vmul.f32 %v3788, %v3787
    %v3790 = vmul.f32 0.5, %v3789
    %v3791 = vsub.f32 1.5, %v3790
    %v3792 = vmul.f32 %v3787, %v3791
    %vm3793 = vweird.f32 %v3743
    %vm3794 = vweird.f32 %v3787
    %vm3795 = vmor %vm3793, %vm3794
    %v3796 = vsel %vm3795, %v3787, %v3792
    %v3797 = vrsqrt.pop %v3744
    %v3798 = vmul.f32 %v3797, %v3744
    %v3799 = vmul.f32 %v3798, %v3797
    %v3800 = vmul.f32 0.5, %v3799
    %v3801 = vsub.f32 1.5, %v3800
    %v3802 = vmul.f32 %v3797, %v3801
    %vm3803 = vweird.f32 %v3744
    %vm3804 = vweird.f32 %v3797
    %vm3805 = vmor %vm3803, %vm3804
    %v3806 = vsel %vm3805, %v3797, %v3802
    %v3807 = vrsqrt.pop %v3745
    %v3808 = vmul.f32 %v3807, %v3745
    %v3809 = vmul.f32 %v3808, %v3807
    %v3810 = vmul.f32 0.5, %v3809
    %v3811 = vsub.f32 1.5, %v3810
    %v3812 = vmul.f32 %v3807, %v3811
    %vm3813 = vweird.f32 %v3745
    %vm3814 = vweird.f32 %v3807
    %vm3815 = vmor %vm3813, %vm3814
    %v3816 = vsel %vm3815, %v3807, %v3812
    %v3817 = vrsqrt.pop %v3746
    %v3818 = vmul.f32 %v3817, %v3746
    %v3819 = vmul.f32 %v3818, %v3817
    %v3820 = vmul.f32 0.5, %v3819
    %v3821 = vsub.f32 1.5, %v3820
    %v3822 = vmul.f32 %v3817, %v3821
    %vm3823 = vweird.f32 %v3746
    %vm3824 = vweird.f32 %v3817
    %vm3825 = vmor %vm3823, %vm3824
    %v3826 = vsel %vm3825, %v3817, %v3822
    %v3827 = vmul.f32 %v3691, %v3756
    %v3828 = vmul.f32 %v3692, %v3766
    %v3829 = vmul.f32 %v3693, %v3776
    %v3830 = vmul.f32 %v3694, %v3786
    %v3831 = vmul.f32 %v3695, %v3796
    %v3832 = vmul.f32 %v3696, %v3806
    %v3833 = vmul.f32 %v3697, %v3816
    %v3834 = vmul.f32 %v3698, %v3826
    %v3835 = vperm.slane %v83, 5
    %v3836 = vmul.f32 %v3827, %v3835
    %v3837 = vmul.f32 %v3828, %v3835
    %v3838 = vmul.f32 %v3829, %v3835
    %v3839 = vmul.f32 %v3830, %v3835
    %v3840 = vmul.f32 %v3831, %v3835
    %v3841 = vmul.f32 %v3832, %v3835
    %v3842 = vmul.f32 %v3833, %v3835
    %v3843 = vmul.f32 %v3834, %v3835
    %v3844 = vperm.slane %v83, 6
    %v3845 = vadd.f32 %v3836, %v3844
    %v3846 = vadd.f32 %v3837, %v3844
    %v3847 = vadd.f32 %v3838, %v3844
    %v3848 = vadd.f32 %v3839, %v3844
    %v3849 = vadd.f32 %v3840, %v3844
    %v3850 = vadd.f32 %v3841, %v3844
    %v3851 = vadd.f32 %v3842, %v3844
    %v3852 = vadd.f32 %v3843, %v3844
    %v3853 = vld [vmem:[%s13] sm:$0xff]
    %v3854 = vld [vmem:[%s13 + $0x8] sm:$0xff]
    %v3855 = vld [vmem:[%s13 + $0x10] sm:$0xff]
    %v3856 = vld [vmem:[%s13 + $0x18] sm:$0xff]
    %v3857 = vld [vmem:[%s13 + $0x20] sm:$0xff]
    %v3858 = vld [vmem:[%s13 + $0x28] sm:$0xff]
    %v3859 = vld [vmem:[%s13 + $0x30] sm:$0xff]
    %v3860 = vld [vmem:[%s13 + $0x38] sm:$0xff]
    %v3861 = vld [vmem:[%s13 + $0x40] sm:$0xff]
    %v3862 = vld [vmem:[%s13 + $0x48] sm:$0xff]
    %v3863 = vld [vmem:[%s13 + $0x50] sm:$0xff]
    %v3864 = vld [vmem:[%s13 + $0x58] sm:$0xff]
    %v3865 = vld [vmem:[%s13 + $0x60] sm:$0xff]
    %v3866 = vld [vmem:[%s13 + $0x68] sm:$0xff]
    %v3867 = vld [vmem:[%s13 + $0x70] sm:$0xff]
    %v3868 = vld [vmem:[%s13 + $0x78] sm:$0xff]
    %v3869 = vld [vmem:[%s14] sm:$0xff]
    %v3870 = vld [vmem:[%s14 + $0x8] sm:$0xff]
    %v3871 = vld [vmem:[%s14 + $0x10] sm:$0xff]
    %v3872 = vld [vmem:[%s14 + $0x18] sm:$0xff]
    %v3873 = vld [vmem:[%s15] sm:$0xff]
    %v3874 = vld [vmem:[%s15 + $0x8] sm:$0xff]
    %v3875 = vld [vmem:[%s15 + $0x10] sm:$0xff]
    %v3876 = vld [vmem:[%s15 + $0x18] sm:$0xff]
    %v3877 = vld [vmem:[%s15 + $0x20] sm:$0xff]
    %v3878 = vld [vmem:[%s15 + $0x28] sm:$0xff]
    %v3879 = vld [vmem:[%s15 + $0x30] sm:$0xff]
    %v3880 = vld [vmem:[%s15 + $0x38] sm:$0xff]
    %v3881 = vld [vmem:[%s16] sm:$0xff]
    %v3882 = vld [vmem:[%s16 + $0x8] sm:$0xff]
    %v3883 = vld [vmem:[%s16 + $0x10] sm:$0xff]
    %v3884 = vld [vmem:[%s16 + $0x18] sm:$0xff]
    %v3885 = vld [vmem:[%s18] sm:$0xff]
    %v3886 = vld [vmem:[%s18 + $0x8] sm:$0xff]
    %v3887 = vld [vmem:[%s18 + $0x10] sm:$0xff]
    %v3888 = vld [vmem:[%s18 + $0x18] sm:$0xff]
    %v3889 = vld [vmem:[%s18 + $0x20] sm:$0xff]
    %v3890 = vld [vmem:[%s18 + $0x28] sm:$0xff]
    %v3891 = vld [vmem:[%s18 + $0x30] sm:$0xff]
    %v3892 = vld [vmem:[%s18 + $0x38] sm:$0xff]
    %v3893 = vld [vmem:[%s18 + $0x40] sm:$0xff]
    %v3894 = vld [vmem:[%s18 + $0x48] sm:$0xff]
    %v3895 = vld [vmem:[%s18 + $0x50] sm:$0xff]
    %v3896 = vld [vmem:[%s18 + $0x58] sm:$0xff]
    %v3897 = vld [vmem:[%s18 + $0x60] sm:$0xff]
    %v3898 = vld [vmem:[%s18 + $0x68] sm:$0xff]
    %v3899 = vld [vmem:[%s18 + $0x70] sm:$0xff]
    %v3900 = vld [vmem:[%s18 + $0x78] sm:$0xff]
    %v3901 = vld [vmem:[%s19] sm:$0xff]
    %v3902 = vld [vmem:[%s19 + $0x8] sm:$0xff]
    %v3903 = vld [vmem:[%s19 + $0x10] sm:$0xff]
    %v3904 = vld [vmem:[%s19 + $0x18] sm:$0xff]
    %v3905 = vld [vmem:[%s17] sm:$0xff]
    %v3906 = vld [vmem:[%s17 + $0x8] sm:$0xff]
    %v3907 = vld [vmem:[%s17 + $0x10] sm:$0xff]
    %v3908 = vld [vmem:[%s17 + $0x18] sm:$0xff]
    %s3909 = scalar_lea.vmem %s17, 32
    %v3910 = vld [vmem:[%s3909] sm:$0xff]
    %v3911 = vld [vmem:[%s3909 + $0x8] sm:$0xff]
    %v3912 = vld [vmem:[%s3909 + $0x10] sm:$0xff]
    %v3913 = vld [vmem:[%s3909 + $0x18] sm:$0xff]
    %v3914 = vperm.slane %v86, 1
    %v3916 = vsel %vm110, %v3845, 0
    %v3919 = vsel %vm110, %v3846, 0
    %v3922 = vsel %vm110, %v3847, 0
    %v3925 = vsel %vm110, %v3848, 0
    %v3928 = vsel %vm110, %v3849, 0
    %v3931 = vsel %vm110, %v3850, 0
    %v3934 = vsel %vm110, %v3851, 0
    %v3937 = vsel %vm110, %v3852, 0
    %v3940 = vsel %vm110, %v3853, 0
    %v3943 = vsel %vm110, %v3854, 0
    %v3946 = vsel %vm110, %v3855, 0
    %v3949 = vsel %vm110, %v3856, 0
    %v3952 = vsel %vm110, %v3857, 0
    %v3955 = vsel %vm110, %v3858, 0
    %v3958 = vsel %vm110, %v3859, 0
    %v3961 = vsel %vm110, %v3860, 0
    %v3964 = vsel %vm110, %v3861, 0
    %v3967 = vsel %vm110, %v3862, 0
    %v3970 = vsel %vm110, %v3863, 0
    %v3973 = vsel %vm110, %v3864, 0
    %v3976 = vsel %vm110, %v3865, 0
    %v3979 = vsel %vm110, %v3866, 0
    %v3982 = vsel %vm110, %v3867, 0
    %v3985 = vsel %vm110, %v3868, 0
    %3987 = vmatpush.xpose.msra.mxu0 %v3985
    %3988 = vmatpush.xpose.msra.mxu0 %v3982
    %3989 = vmatpush.xpose.msra.mxu0 %v3979
    %3990 = vmatpush.xpose.msra.mxu0 %v3976
    %3991 = vmatpush.xpose.msra.mxu0 %v3973
    %3992 = vmatpush.xpose.msra.mxu0 %v3970
    %3993 = vmatpush.xpose.msra.mxu0 %v3967
    %3994 = vmatpush.xpose.msra.mxu0 %v3964
    %3995 = vmatpush.xpose.msra.mxu0 %v3961
    %3996 = vmatpush.xpose.msra.mxu0 %v3958
    %3997 = vmatpush.xpose.msra.mxu0 %v3955
    %3998 = vmatpush.xpose.msra.mxu0 %v3952
    %3999 = vmatpush.xpose.msra.mxu0 %v3949
    %4000 = vmatpush.xpose.msra.mxu0 %v3946
    %4001 = vmatpush.xpose.msra.mxu0 %v3943
    %4002 = vmatpush.xpose.msra.mxu0 %v3940
    %4003 = vmatmul.f32.gmra.mxu0 %v3916
    %v4004 = vpop.f32.mrf.mxu0
    %v4005 = vadd.f32 %v3914, %v4004
    %4006 = vmatmul.f32.gmra.mxu0 %v3919
    %v4007 = vpop.f32.mrf.mxu0
    %v4008 = vadd.f32 %v3914, %v4007
    %4009 = vmatmul.f32.gmra.mxu0 %v3922
    %v4010 = vpop.f32.mrf.mxu0
    %v4011 = vadd.f32 %v3914, %v4010
    %4012 = vmatmul.f32.gmra.mxu0 %v3925
    %v4013 = vpop.f32.mrf.mxu0
    %v4014 = vadd.f32 %v3914, %v4013
    %4015 = vmatmul.f32.gmra.mxu0 %v3928
    %v4016 = vpop.f32.mrf.mxu0
    %v4017 = vadd.f32 %v3914, %v4016
    %4018 = vmatmul.f32.gmra.mxu0 %v3931
    %v4019 = vpop.f32.mrf.mxu0
    %v4020 = vadd.f32 %v3914, %v4019
    %4021 = vmatmul.f32.gmra.mxu0 %v3934
    %v4022 = vpop.f32.mrf.mxu0
    %v4023 = vadd.f32 %v3914, %v4022
    %4024 = vmatmul.f32.gmra.mxu0 %v3937
    %v4025 = vpop.f32.mrf.mxu0
    %v4026 = vadd.f32 %v3914, %v4025
    %4027 = vdwg.mxu0
    %v4028 = vxor.u32 %v4005, 2147483648
    %v4029 = vxor.u32 %v4008, 2147483648
    %v4030 = vxor.u32 %v4011, 2147483648
    %v4031 = vxor.u32 %v4014, 2147483648
    %v4032 = vxor.u32 %v4017, 2147483648
    %v4033 = vxor.u32 %v4020, 2147483648
    %v4034 = vxor.u32 %v4023, 2147483648
    %v4035 = vxor.u32 %v4026, 2147483648
    %v4036 = vmul.f32 %v4028, 1.442695
    %v4037 = vpow.pop %v4036
    %v4038 = vmul.f32 %v4029, 1.442695
    %v4039 = vpow.pop %v4038
    %v4040 = vmul.f32 %v4030, 1.442695
    %v4041 = vpow.pop %v4040
    %v4042 = vmul.f32 %v4031, 1.442695
    %v4043 = vpow.pop %v4042
    %v4044 = vmul.f32 %v4032, 1.442695
    %v4045 = vpow.pop %v4044
    %v4046 = vmul.f32 %v4033, 1.442695
    %v4047 = vpow.pop %v4046
    %v4048 = vmul.f32 %v4034, 1.442695
    %v4049 = vpow.pop %v4048
    %v4050 = vmul.f32 %v4035, 1.442695
    %v4051 = vpow.pop %v4050
    %v4052 = vadd.f32 %v4037, 1.0
    %v4053 = vadd.f32 %v4039, 1.0
    %v4054 = vadd.f32 %v4041, 1.0
    %v4055 = vadd.f32 %v4043, 1.0
    %v4056 = vadd.f32 %v4045, 1.0
    %v4057 = vadd.f32 %v4047, 1.0
    %v4058 = vadd.f32 %v4049, 1.0
    %v4059 = vadd.f32 %v4051, 1.0
    %v4060 = vrcp.pop %v4052
    %v4061 = vmul.f32 %v4052, %v4060
    %v4062 = vsub.f32 1.0, %v4061
    %v4063 = vmul.f32 %v4060, %v4062
    %v4064 = vadd.f32 %v4060, %v4063
    %vm4065 = vweird.f32 %v4052
    %vm4066 = vweird.f32 %v4060
    %vm4067 = vmor %vm4065, %vm4066
    %v4068 = vsel %vm4067, %v4060, %v4064
    %v4069 = vand.u32 2147483647, %v4052
    %vm4070 = vcmp.eq.f32.partialorder %v4069, 8.507059e+37
    %v4071 = vand.u32 %v4052, 2147483648
    %v4072 = vor.u32 1.1754944e-38, %v4071
    %v4073 = vsel %vm4070, %v4072, %v4068
    %v4074 = vmul.f32 1.0, %v4073
    %v4075 = vrcp.pop %v4053
    %v4076 = vmul.f32 %v4053, %v4075
    %v4077 = vsub.f32 1.0, %v4076
    %v4078 = vmul.f32 %v4075, %v4077
    %v4079 = vadd.f32 %v4075, %v4078
    %vm4080 = vweird.f32 %v4053
    %vm4081 = vweird.f32 %v4075
    %vm4082 = vmor %vm4080, %vm4081
    %v4083 = vsel %vm4082, %v4075, %v4079
    %v4084 = vand.u32 2147483647, %v4053
    %vm4085 = vcmp.eq.f32.partialorder %v4084, 8.507059e+37
    %v4086 = vand.u32 %v4053, 2147483648
    %v4087 = vor.u32 1.1754944e-38, %v4086
    %v4088 = vsel %vm4085, %v4087, %v4083
    %v4089 = vmul.f32 1.0, %v4088
    %v4090 = vrcp.pop %v4054
    %v4091 = vmul.f32 %v4054, %v4090
    %v4092 = vsub.f32 1.0, %v4091
    %v4093 = vmul.f32 %v4090, %v4092
    %v4094 = vadd.f32 %v4090, %v4093
    %vm4095 = vweird.f32 %v4054
    %vm4096 = vweird.f32 %v4090
    %vm4097 = vmor %vm4095, %vm4096
    %v4098 = vsel %vm4097, %v4090, %v4094
    %v4099 = vand.u32 2147483647, %v4054
    %vm4100 = vcmp.eq.f32.partialorder %v4099, 8.507059e+37
    %v4101 = vand.u32 %v4054, 2147483648
    %v4102 = vor.u32 1.1754944e-38, %v4101
    %v4103 = vsel %vm4100, %v4102, %v4098
    %v4104 = vmul.f32 1.0, %v4103
    %v4105 = vrcp.pop %v4055
    %v4106 = vmul.f32 %v4055, %v4105
    %v4107 = vsub.f32 1.0, %v4106
    %v4108 = vmul.f32 %v4105, %v4107
    %v4109 = vadd.f32 %v4105, %v4108
    %vm4110 = vweird.f32 %v4055
    %vm4111 = vweird.f32 %v4105
    %vm4112 = vmor %vm4110, %vm4111
    %v4113 = vsel %vm4112, %v4105, %v4109
    %v4114 = vand.u32 2147483647, %v4055
    %vm4115 = vcmp.eq.f32.partialorder %v4114, 8.507059e+37
    %v4116 = vand.u32 %v4055, 2147483648
    %v4117 = vor.u32 1.1754944e-38, %v4116
    %v4118 = vsel %vm4115, %v4117, %v4113
    %v4119 = vmul.f32 1.0, %v4118
    %v4120 = vrcp.pop %v4056
    %v4121 = vmul.f32 %v4056, %v4120
    %v4122 = vsub.f32 1.0, %v4121
    %v4123 = vmul.f32 %v4120, %v4122
    %v4124 = vadd.f32 %v4120, %v4123
    %vm4125 = vweird.f32 %v4056
    %vm4126 = vweird.f32 %v4120
    %vm4127 = vmor %vm4125, %vm4126
    %v4128 = vsel %vm4127, %v4120, %v4124
    %v4129 = vand.u32 2147483647, %v4056
    %vm4130 = vcmp.eq.f32.partialorder %v4129, 8.507059e+37
    %v4131 = vand.u32 %v4056, 2147483648
    %v4132 = vor.u32 1.1754944e-38, %v4131
    %v4133 = vsel %vm4130, %v4132, %v4128
    %v4134 = vmul.f32 1.0, %v4133
    %v4135 = vrcp.pop %v4057
    %v4136 = vmul.f32 %v4057, %v4135
    %v4137 = vsub.f32 1.0, %v4136
    %v4138 = vmul.f32 %v4135, %v4137
    %v4139 = vadd.f32 %v4135, %v4138
    %vm4140 = vweird.f32 %v4057
    %vm4141 = vweird.f32 %v4135
    %vm4142 = vmor %vm4140, %vm4141
    %v4143 = vsel %vm4142, %v4135, %v4139
    %v4144 = vand.u32 2147483647, %v4057
    %vm4145 = vcmp.eq.f32.partialorder %v4144, 8.507059e+37
    %v4146 = vand.u32 %v4057, 2147483648
    %v4147 = vor.u32 1.1754944e-38, %v4146
    %v4148 = vsel %vm4145, %v4147, %v4143
    %v4149 = vmul.f32 1.0, %v4148
    %v4150 = vrcp.pop %v4058
    %v4151 = vmul.f32 %v4058, %v4150
    %v4152 = vsub.f32 1.0, %v4151
    %v4153 = vmul.f32 %v4150, %v4152
    %v4154 = vadd.f32 %v4150, %v4153
    %vm4155 = vweird.f32 %v4058
    %vm4156 = vweird.f32 %v4150
    %vm4157 = vmor %vm4155, %vm4156
    %v4158 = vsel %vm4157, %v4150, %v4154
    %v4159 = vand.u32 2147483647, %v4058
    %vm4160 = vcmp.eq.f32.partialorder %v4159, 8.507059e+37
    %v4161 = vand.u32 %v4058, 2147483648
    %v4162 = vor.u32 1.1754944e-38, %v4161
    %v4163 = vsel %vm4160, %v4162, %v4158
    %v4164 = vmul.f32 1.0, %v4163
    %v4165 = vrcp.pop %v4059
    %v4166 = vmul.f32 %v4059, %v4165
    %v4167 = vsub.f32 1.0, %v4166
    %v4168 = vmul.f32 %v4165, %v4167
    %v4169 = vadd.f32 %v4165, %v4168
    %vm4170 = vweird.f32 %v4059
    %vm4171 = vweird.f32 %v4165
    %vm4172 = vmor %vm4170, %vm4171
    %v4173 = vsel %vm4172, %v4165, %v4169
    %v4174 = vand.u32 2147483647, %v4059
    %vm4175 = vcmp.eq.f32.partialorder %v4174, 8.507059e+37
    %v4176 = vand.u32 %v4059, 2147483648
    %v4177 = vor.u32 1.1754944e-38, %v4176
    %v4178 = vsel %vm4175, %v4177, %v4173
    %v4179 = vmul.f32 1.0, %v4178
    %v4180 = vmul.f32 %v4005, %v4074
    %v4181 = vmul.f32 %v4008, %v4089
    %v4182 = vmul.f32 %v4011, %v4104
    %v4183 = vmul.f32 %v4014, %v4119
    %v4184 = vmul.f32 %v4017, %v4134
    %v4185 = vmul.f32 %v4020, %v4149
    %v4186 = vmul.f32 %v4023, %v4164
    %v4187 = vmul.f32 %v4026, %v4179
    %4196 = vrot.lane.b32.xlu0 %v4005, 64
    %v4197 = vpop.permute.xlu0 %4196
    %4198 = vrot.lane.b32.xlu0 %v4008, 64
    %v4199 = vpop.permute.xlu0 %4198
    %4200 = vrot.lane.b32.xlu0 %v4011, 64
    %v4201 = vpop.permute.xlu0 %4200
    %4202 = vrot.lane.b32.xlu0 %v4014, 64
    %v4203 = vpop.permute.xlu0 %4202
    %4204 = vrot.lane.b32.xlu0 %v4017, 64
    %v4205 = vpop.permute.xlu0 %4204
    %4206 = vrot.lane.b32.xlu0 %v4020, 64
    %v4207 = vpop.permute.xlu0 %4206
    %4208 = vrot.lane.b32.xlu0 %v4023, 64
    %v4209 = vpop.permute.xlu0 %4208
    %4210 = vrot.lane.b32.xlu0 %v4026, 64
    %v4211 = vpop.permute.xlu0 %4210
    %v4220 = vmul.f32 %v4180, %v4197
    %v4221 = vmul.f32 %v4181, %v4199
    %v4222 = vmul.f32 %v4182, %v4201
    %v4223 = vmul.f32 %v4183, %v4203
    %v4224 = vmul.f32 %v4184, %v4205
    %v4225 = vmul.f32 %v4185, %v4207
    %v4226 = vmul.f32 %v4186, %v4209
    %v4227 = vmul.f32 %v4187, %v4211
    %v4228 = vperm.slane %v83, 7
    %v4230 = vsel %vm919, %v4220, 0
    %v4233 = vsel %vm919, %v4221, 0
    %v4236 = vsel %vm919, %v4222, 0
    %v4239 = vsel %vm919, %v4223, 0
    %v4242 = vsel %vm919, %v4224, 0
    %v4245 = vsel %vm919, %v4225, 0
    %v4248 = vsel %vm919, %v4226, 0
    %v4251 = vsel %vm919, %v4227, 0
    %v4254 = vsel %vm919, %v3869, 0
    %v4257 = vsel %vm919, %v3870, 0
    %v4260 = vsel %vm919, %v3871, 0
    %v4263 = vsel %vm919, %v3872, 0
    %4265 = vmatpush.xpose.msra.mxu0 0.0
    %4266 = vmatpush.xpose.msra.mxu0 0.0
    %4267 = vmatpush.xpose.msra.mxu0 0.0
    %4268 = vmatpush.xpose.msra.mxu0 0.0
    %4269 = vmatpush.xpose.msra.mxu0 0.0
    %4270 = vmatpush.xpose.msra.mxu0 0.0
    %4271 = vmatpush.xpose.msra.mxu0 0.0
    %4272 = vmatpush.xpose.msra.mxu0 0.0
    %4273 = vmatpush.xpose.msra.mxu0 0.0
    %4274 = vmatpush.xpose.msra.mxu0 0.0
    %4275 = vmatpush.xpose.msra.mxu0 0.0
    %4276 = vmatpush.xpose.msra.mxu0 0.0
    %4277 = vmatpush.xpose.msra.mxu0 %v4263
    %4278 = vmatpush.xpose.msra.mxu0 %v4260
    %4279 = vmatpush.xpose.msra.mxu0 %v4257
    %4280 = vmatpush.xpose.msra.mxu0 %v4254
    %4281 = vmatmul.f32.gmra.mxu0 %v4230
    %v4282 = vpop.f32.mrf.mxu0
    %v4283 = vadd.f32 %v4228, %v4282
    %4284 = vmatmul.f32.gmra.mxu0 %v4233
    %v4285 = vpop.f32.mrf.mxu0
    %v4286 = vadd.f32 %v4228, %v4285
    %4287 = vmatmul.f32.gmra.mxu0 %v4236
    %v4288 = vpop.f32.mrf.mxu0
    %v4289 = vadd.f32 %v4228, %v4288
    %4290 = vmatmul.f32.gmra.mxu0 %v4239
    %v4291 = vpop.f32.mrf.mxu0
    %v4292 = vadd.f32 %v4228, %v4291
    %4293 = vmatmul.f32.gmra.mxu0 %v4242
    %v4294 = vpop.f32.mrf.mxu0
    %v4295 = vadd.f32 %v4228, %v4294
    %4296 = vmatmul.f32.gmra.mxu0 %v4245
    %v4297 = vpop.f32.mrf.mxu0
    %v4298 = vadd.f32 %v4228, %v4297
    %4299 = vmatmul.f32.gmra.mxu0 %v4248
    %v4300 = vpop.f32.mrf.mxu0
    %v4301 = vadd.f32 %v4228, %v4300
    %4302 = vmatmul.f32.gmra.mxu0 %v4251
    %v4303 = vpop.f32.mrf.mxu0
    %v4304 = vadd.f32 %v4228, %v4303
    %4305 = vdwg.mxu0
    %v4307 = vsel %vm110, %v4295, 0
    %v4310 = vsel %vm110, %v4298, 0
    %4312 = vmatpush.msra.mxu0 0.0
    %4313 = vmatpush.msra.mxu0 0.0
    %4314 = vmatpush.msra.mxu0 0.0
    %4315 = vmatpush.msra.mxu0 0.0
    %4316 = vmatpush.msra.mxu0 0.0
    %4317 = vmatpush.msra.mxu0 0.0
    %4318 = vmatpush.msra.mxu0 0.0
    %4319 = vmatpush.msra.mxu0 0.0
    %4320 = vmatpush.msra.mxu0 0.0
    %4321 = vmatpush.msra.mxu0 0.0
    %4322 = vmatpush.msra.mxu0 0.0
    %4323 = vmatpush.msra.mxu0 0.0
    %4324 = vmatpush.msra.mxu0 %v3913
    %4325 = vmatpush.msra.mxu0 %v3912
    %4326 = vmatpush.msra.mxu0 %v3911
    %4327 = vmatpush.msra.mxu0 %v3910
    %4328 = vmatmul.f32.gmra.mxu0 %v4307
    %v4329 = vpop.f32.mrf.mxu0
    %v4330 = vadd.f32 0.0, %v4329
    %4331 = vmatmul.f32.gmra.mxu0 %v4310
    %v4332 = vpop.f32.mrf.mxu0
    %v4333 = vadd.f32 0.0, %v4332
    %4334 = vdwg.mxu0
    %v4336 = vsel %vm110, %v4283, 0
    %v4339 = vsel %vm110, %v4286, 0
    %4341 = vmatpush.msra.mxu0 0.0
    %4342 = vmatpush.msra.mxu0 0.0
    %4343 = vmatpush.msra.mxu0 0.0
    %4344 = vmatpush.msra.mxu0 0.0
    %4345 = vmatpush.msra.mxu0 0.0
    %4346 = vmatpush.msra.mxu0 0.0
    %4347 = vmatpush.msra.mxu0 0.0
    %4348 = vmatpush.msra.mxu0 0.0
    %4349 = vmatpush.msra.mxu0 0.0
    %4350 = vmatpush.msra.mxu0 0.0
    %4351 = vmatpush.msra.mxu0 0.0
    %4352 = vmatpush.msra.mxu0 0.0
    %4353 = vmatpush.msra.mxu0 %v3908
    %4354 = vmatpush.msra.mxu0 %v3907
    %4355 = vmatpush.msra.mxu0 %v3906
    %4356 = vmatpush.msra.mxu0 %v3905
    %4357 = vmatmul.f32.gmra.mxu0 %v4336
    %v4358 = vpop.f32.mrf.mxu0
    %v4359 = vadd.f32 %v4330, %v4358
    %4360 = vmatmul.f32.gmra.mxu0 %v4339
    %v4361 = vpop.f32.mrf.mxu0
    %v4362 = vadd.f32 %v4333, %v4361
    %4363 = vdwg.mxu0
    %v4364 = vperm.slane %v85, 1
    %v4366 = vsel %vm110, %v4359, 0
    %v4369 = vsel %vm110, %v4362, 0
    %v4372 = vsel %vm110, %v3873, 0
    %v4375 = vsel %vm110, %v3874, 0
    %v4378 = vsel %vm110, %v3875, 0
    %v4381 = vsel %vm110, %v3876, 0
    %v4384 = vsel %vm110, %v3877, 0
    %v4387 = vsel %vm110, %v3878, 0
    %v4390 = vsel %vm110, %v3879, 0
    %v4393 = vsel %vm110, %v3880, 0
    %4395 = vmatpush.xpose.msra.mxu0 0.0
    %4396 = vmatpush.xpose.msra.mxu0 0.0
    %4397 = vmatpush.xpose.msra.mxu0 0.0
    %4398 = vmatpush.xpose.msra.mxu0 0.0
    %4399 = vmatpush.xpose.msra.mxu0 0.0
    %4400 = vmatpush.xpose.msra.mxu0 0.0
    %4401 = vmatpush.xpose.msra.mxu0 0.0
    %4402 = vmatpush.xpose.msra.mxu0 0.0
    %4403 = vmatpush.xpose.msra.mxu0 %v4393
    %4404 = vmatpush.xpose.msra.mxu0 %v4390
    %4405 = vmatpush.xpose.msra.mxu0 %v4387
    %4406 = vmatpush.xpose.msra.mxu0 %v4384
    %4407 = vmatpush.xpose.msra.mxu0 %v4381
    %4408 = vmatpush.xpose.msra.mxu0 %v4378
    %4409 = vmatpush.xpose.msra.mxu0 %v4375
    %4410 = vmatpush.xpose.msra.mxu0 %v4372
    %4411 = vmatmul.f32.gmra.mxu0 %v4366
    %v4412 = vpop.f32.mrf.mxu0
    %v4413 = vadd.f32 %v4364, %v4412
    %4414 = vmatmul.f32.gmra.mxu0 %v4369
    %v4415 = vpop.f32.mrf.mxu0
    %v4416 = vadd.f32 %v4364, %v4415
    %4417 = vdwg.mxu0
    %v4418 = vxor.u32 %v4413, 2147483648
    %v4419 = vxor.u32 %v4416, 2147483648
    %v4420 = vmul.f32 %v4418, 1.442695
    %v4421 = vpow.pop %v4420
    %v4422 = vmul.f32 %v4419, 1.442695
    %v4423 = vpow.pop %v4422
    %v4424 = vadd.f32 %v4421, 1.0
    %v4425 = vadd.f32 %v4423, 1.0
    %v4426 = vrcp.pop %v4424
    %v4427 = vmul.f32 %v4424, %v4426
    %v4428 = vsub.f32 1.0, %v4427
    %v4429 = vmul.f32 %v4426, %v4428
    %v4430 = vadd.f32 %v4426, %v4429
    %vm4431 = vweird.f32 %v4424
    %vm4432 = vweird.f32 %v4426
    %vm4433 = vmor %vm4431, %vm4432
    %v4434 = vsel %vm4433, %v4426, %v4430
    %v4435 = vand.u32 2147483647, %v4424
    %vm4436 = vcmp.eq.f32.partialorder %v4435, 8.507059e+37
    %v4437 = vand.u32 %v4424, 2147483648
    %v4438 = vor.u32 1.1754944e-38, %v4437
    %v4439 = vsel %vm4436, %v4438, %v4434
    %v4440 = vmul.f32 1.0, %v4439
    %v4441 = vrcp.pop %v4425
    %v4442 = vmul.f32 %v4425, %v4441
    %v4443 = vsub.f32 1.0, %v4442
    %v4444 = vmul.f32 %v4441, %v4443
    %v4445 = vadd.f32 %v4441, %v4444
    %vm4446 = vweird.f32 %v4425
    %vm4447 = vweird.f32 %v4441
    %vm4448 = vmor %vm4446, %vm4447
    %v4449 = vsel %vm4448, %v4441, %v4445
    %v4450 = vand.u32 2147483647, %v4425
    %vm4451 = vcmp.eq.f32.partialorder %v4450, 8.507059e+37
    %v4452 = vand.u32 %v4425, 2147483648
    %v4453 = vor.u32 1.1754944e-38, %v4452
    %v4454 = vsel %vm4451, %v4453, %v4449
    %v4455 = vmul.f32 1.0, %v4454
    %v4456 = vmul.f32 %v4413, %v4440
    %v4457 = vmul.f32 %v4416, %v4455
    %4460 = vrot.lane.b32.xlu0 %v4413, 96
    %v4461 = vpop.permute.xlu0 %4460
    %4462 = vrot.lane.b32.xlu0 %v4416, 96
    %v4463 = vpop.permute.xlu0 %4462
    %v4466 = vmul.f32 %v4456, %v4461
    %v4467 = vmul.f32 %v4457, %v4463
    %v4468 = vperm.slane %v84, 0
    %v4470 = vsel %vm110, %v4466, 0
    %v4473 = vsel %vm110, %v4467, 0
    %v4476 = vsel %vm110, %v3881, 0
    %v4479 = vsel %vm110, %v3882, 0
    %v4482 = vsel %vm110, %v3883, 0
    %v4485 = vsel %vm110, %v3884, 0
    %4487 = vmatpush.xpose.msra.mxu0 0.0
    %4488 = vmatpush.xpose.msra.mxu0 0.0
    %4489 = vmatpush.xpose.msra.mxu0 0.0
    %4490 = vmatpush.xpose.msra.mxu0 0.0
    %4491 = vmatpush.xpose.msra.mxu0 0.0
    %4492 = vmatpush.xpose.msra.mxu0 0.0
    %4493 = vmatpush.xpose.msra.mxu0 0.0
    %4494 = vmatpush.xpose.msra.mxu0 0.0
    %4495 = vmatpush.xpose.msra.mxu0 0.0
    %4496 = vmatpush.xpose.msra.mxu0 0.0
    %4497 = vmatpush.xpose.msra.mxu0 0.0
    %4498 = vmatpush.xpose.msra.mxu0 0.0
    %4499 = vmatpush.xpose.msra.mxu0 %v4485
    %4500 = vmatpush.xpose.msra.mxu0 %v4482
    %4501 = vmatpush.xpose.msra.mxu0 %v4479
    %4502 = vmatpush.xpose.msra.mxu0 %v4476
    %4503 = vmatmul.f32.gmra.mxu0 %v4470
    %v4504 = vpop.f32.mrf.mxu0
    %v4505 = vadd.f32 %v4468, %v4504
    %4506 = vmatmul.f32.gmra.mxu0 %v4473
    %v4507 = vpop.f32.mrf.mxu0
    %v4508 = vadd.f32 %v4468, %v4507
    %4509 = vdwg.mxu0
    %v4510 = vmul.f32 %v4505, %v4505
    %v4511 = vmul.f32 %v4508, %v4508
    %v4512 = vsel %vm1061, %v4510, 0.0
    %4513 = vadd.xlane.f32.xlu0 %v4512
    %v4514 = vpop.xlane.xlu0 %4513
    %v4515 = vsel %vm1061, %v4511, 0.0
    %4516 = vadd.xlane.f32.xlu0 %v4515
    %v4517 = vpop.xlane.xlu0 %4516
    %v4518 = vrsqrt.pop %v4514
    %v4519 = vmul.f32 %v4518, %v4514
    %v4520 = vmul.f32 %v4519, %v4518
    %v4521 = vmul.f32 0.5, %v4520
    %v4522 = vsub.f32 1.5, %v4521
    %v4523 = vmul.f32 %v4518, %v4522
    %v4524 = vmul.f32 %v4514, %v4523
    %vm4525 = vcmp.eq.f32.partialorder %v4514, inf
    %v4526 = vsel %vm4525, %v4514, %v4524
    %vm4527 = vcmp.eq.f32.partialorder %v4514, 0.0
    %v4528 = vand.u32 %v4514, 2147483648
    %v4529 = vsel %vm4527, %v4528, %v4526
    %v4530 = vrsqrt.pop %v4517
    %v4531 = vmul.f32 %v4530, %v4517
    %v4532 = vmul.f32 %v4531, %v4530
    %v4533 = vmul.f32 0.5, %v4532
    %v4534 = vsub.f32 1.5, %v4533
    %v4535 = vmul.f32 %v4530, %v4534
    %v4536 = vmul.f32 %v4517, %v4535
    %vm4537 = vcmp.eq.f32.partialorder %v4517, inf
    %v4538 = vsel %vm4537, %v4517, %v4536
    %vm4539 = vcmp.eq.f32.partialorder %v4517, 0.0
    %v4540 = vand.u32 %v4517, 2147483648
    %v4541 = vsel %vm4539, %v4540, %v4538
    %4544 = vrot.lane.b32.xlu0 %v4510, 112
    %v4545 = vpop.permute.xlu0 %4544
    %4546 = vrot.lane.b32.xlu0 %v4511, 112
    %v4547 = vpop.permute.xlu0 %4546
    %v4550 = vsel %vm1061, %v4545, 0.0
    %4551 = vadd.xlane.f32.xlu0 %v4550
    %v4552 = vpop.xlane.xlu0 %4551
    %v4553 = vsel %vm1061, %v4547, 0.0
    %4554 = vadd.xlane.f32.xlu0 %v4553
    %v4555 = vpop.xlane.xlu0 %4554
    %v4556 = vrsqrt.pop %v4552
    %v4557 = vmul.f32 %v4556, %v4552
    %v4558 = vmul.f32 %v4557, %v4556
    %v4559 = vmul.f32 0.5, %v4558
    %v4560 = vsub.f32 1.5, %v4559
    %v4561 = vmul.f32 %v4556, %v4560
    %v4562 = vmul.f32 %v4552, %v4561
    %vm4563 = vcmp.eq.f32.partialorder %v4552, inf
    %v4564 = vsel %vm4563, %v4552, %v4562
    %vm4565 = vcmp.eq.f32.partialorder %v4552, 0.0
    %v4566 = vand.u32 %v4552, 2147483648
    %v4567 = vsel %vm4565, %v4566, %v4564
    %v4568 = vrsqrt.pop %v4555
    %v4569 = vmul.f32 %v4568, %v4555
    %v4570 = vmul.f32 %v4569, %v4568
    %v4571 = vmul.f32 0.5, %v4570
    %v4572 = vsub.f32 1.5, %v4571
    %v4573 = vmul.f32 %v4568, %v4572
    %v4574 = vmul.f32 %v4555, %v4573
    %vm4575 = vcmp.eq.f32.partialorder %v4555, inf
    %v4576 = vsel %vm4575, %v4555, %v4574
    %vm4577 = vcmp.eq.f32.partialorder %v4555, 0.0
    %v4578 = vand.u32 %v4555, 2147483648
    %v4579 = vsel %vm4577, %v4578, %v4576
    %4582 = vrot.lane.b32.xlu0 %v4505, 112
    %v4583 = vpop.permute.xlu0 %4582
    %4584 = vrot.lane.b32.xlu0 %v4508, 112
    %v4585 = vpop.permute.xlu0 %4584
    %v4588 = vmul.f32 %v4505, %v4583
    %v4589 = vmul.f32 %v4508, %v4585
    %v4590 = vsel %vm1061, %v4588, 0.0
    %4591 = vadd.xlane.f32.xlu0 %v4590
    %v4592 = vpop.xlane.xlu0 %4591
    %v4593 = vsel %vm1061, %v4589, 0.0
    %4594 = vadd.xlane.f32.xlu0 %v4593
    %v4595 = vpop.xlane.xlu0 %4594
    %v4596 = vmul.f32 %v4529, %v4567
    %v4597 = vmul.f32 %v4541, %v4579
    %v4598 = vmax.f32 %v4596, 1e-08
    %v4599 = vmax.f32 %v4597, 1e-08
    %v4600 = vrcp.pop %v4598
    %v4601 = vmul.f32 %v4598, %v4600
    %v4602 = vsub.f32 1.0, %v4601
    %v4603 = vmul.f32 %v4600, %v4602
    %v4604 = vadd.f32 %v4600, %v4603
    %vm4605 = vweird.f32 %v4598
    %vm4606 = vweird.f32 %v4600
    %vm4607 = vmor %vm4605, %vm4606
    %v4608 = vsel %vm4607, %v4600, %v4604
    %v4609 = vand.u32 2147483647, %v4598
    %vm4610 = vcmp.eq.f32.partialorder %v4609, 8.507059e+37
    %v4611 = vand.u32 %v4598, 2147483648
    %v4612 = vor.u32 1.1754944e-38, %v4611
    %v4613 = vsel %vm4610, %v4612, %v4608
    %v4614 = vmul.f32 0.125, %v4613
    %v4615 = vrcp.pop %v4599
    %v4616 = vmul.f32 %v4599, %v4615
    %v4617 = vsub.f32 1.0, %v4616
    %v4618 = vmul.f32 %v4615, %v4617
    %v4619 = vadd.f32 %v4615, %v4618
    %vm4620 = vweird.f32 %v4599
    %vm4621 = vweird.f32 %v4615
    %vm4622 = vmor %vm4620, %vm4621
    %v4623 = vsel %vm4622, %v4615, %v4619
    %v4624 = vand.u32 2147483647, %v4599
    %vm4625 = vcmp.eq.f32.partialorder %v4624, 8.507059e+37
    %v4626 = vand.u32 %v4599, 2147483648
    %v4627 = vor.u32 1.1754944e-38, %v4626
    %v4628 = vsel %vm4625, %v4627, %v4623
    %v4629 = vmul.f32 0.125, %v4628
    %vm4630 = vcmp.gt.f32.partialorder %v4596, 1e-08
    %vm4631 = vcmp.gt.f32.partialorder %v4597, 1e-08
    %v4632 = vmul.f32 %v4592, -0.125
    %v4633 = vmul.f32 %v4595, -0.125
    %v4634 = vmul.f32 %v4598, %v4598
    %v4635 = vmul.f32 %v4599, %v4599
    %v4636 = vrcp.pop %v4634
    %v4637 = vmul.f32 %v4634, %v4636
    %v4638 = vsub.f32 1.0, %v4637
    %v4639 = vmul.f32 %v4636, %v4638
    %v4640 = vadd.f32 %v4636, %v4639
    %vm4641 = vweird.f32 %v4634
    %vm4642 = vweird.f32 %v4636
    %vm4643 = vmor %vm4641, %vm4642
    %v4644 = vsel %vm4643, %v4636, %v4640
    %v4645 = vand.u32 2147483647, %v4634
    %vm4646 = vcmp.eq.f32.partialorder %v4645, 8.507059e+37
    %v4647 = vand.u32 %v4634, 2147483648
    %v4648 = vor.u32 1.1754944e-38, %v4647
    %v4649 = vsel %vm4646, %v4648, %v4644
    %v4650 = vmul.f32 %v4632, %v4649
    %v4651 = vrcp.pop %v4635
    %v4652 = vmul.f32 %v4635, %v4651
    %v4653 = vsub.f32 1.0, %v4652
    %v4654 = vmul.f32 %v4651, %v4653
    %v4655 = vadd.f32 %v4651, %v4654
    %vm4656 = vweird.f32 %v4635
    %vm4657 = vweird.f32 %v4651
    %vm4658 = vmor %vm4656, %vm4657
    %v4659 = vsel %vm4658, %v4651, %v4655
    %v4660 = vand.u32 2147483647, %v4635
    %vm4661 = vcmp.eq.f32.partialorder %v4660, 8.507059e+37
    %v4662 = vand.u32 %v4635, 2147483648
    %v4663 = vor.u32 1.1754944e-38, %v4662
    %v4664 = vsel %vm4661, %v4663, %v4659
    %v4665 = vmul.f32 %v4633, %v4664
    %v4666 = vsel %vm4630, %v4650, 0.0
    %v4667 = vsel %vm4631, %v4665, 0.0
    %v4668 = vmul.f32 %v4614, %v4505
    %v4669 = vmul.f32 %v4629, %v4508
    %v4670 = vmul.f32 %v4666, %v4567
    %v4671 = vmul.f32 %v4667, %v4579
    %v4672 = vrcp.pop %v4529
    %v4673 = vmul.f32 %v4529, %v4672
    %v4674 = vsub.f32 1.0, %v4673
    %v4675 = vmul.f32 %v4672, %v4674
    %v4676 = vadd.f32 %v4672, %v4675
    %vm4677 = vweird.f32 %v4529
    %vm4678 = vweird.f32 %v4672
    %vm4679 = vmor %vm4677, %vm4678
    %v4680 = vsel %vm4679, %v4672, %v4676
    %v4681 = vand.u32 2147483647, %v4529
    %vm4682 = vcmp.eq.f32.partialorder %v4681, 8.507059e+37
    %v4683 = vand.u32 %v4529, 2147483648
    %v4684 = vor.u32 1.1754944e-38, %v4683
    %v4685 = vsel %vm4682, %v4684, %v4680
    %v4686 = vmul.f32 %v4670, %v4685
    %v4687 = vrcp.pop %v4541
    %v4688 = vmul.f32 %v4541, %v4687
    %v4689 = vsub.f32 1.0, %v4688
    %v4690 = vmul.f32 %v4687, %v4689
    %v4691 = vadd.f32 %v4687, %v4690
    %vm4692 = vweird.f32 %v4541
    %vm4693 = vweird.f32 %v4687
    %vm4694 = vmor %vm4692, %vm4693
    %v4695 = vsel %vm4694, %v4687, %v4691
    %v4696 = vand.u32 2147483647, %v4541
    %vm4697 = vcmp.eq.f32.partialorder %v4696, 8.507059e+37
    %v4698 = vand.u32 %v4541, 2147483648
    %v4699 = vor.u32 1.1754944e-38, %v4698
    %v4700 = vsel %vm4697, %v4699, %v4695
    %v4701 = vmul.f32 %v4671, %v4700
    %v4702 = vmul.f32 %v4686, %v4505
    %v4703 = vmul.f32 %v4701, %v4508
    %4706 = vrot.lane.b32.xlu0 %v4702, 16
    %v4707 = vpop.permute.xlu0 %4706
    %4708 = vrot.lane.b32.xlu0 %v4703, 16
    %v4709 = vpop.permute.xlu0 %4708
    %v4712 = vadd.f32 %v4668, %v4707
    %v4713 = vadd.f32 %v4669, %v4709
    %v4714 = vmul.f32 %v4666, %v4529
    %v4715 = vmul.f32 %v4667, %v4541
    %v4716 = vrcp.pop %v4567
    %v4717 = vmul.f32 %v4567, %v4716
    %v4718 = vsub.f32 1.0, %v4717
    %v4719 = vmul.f32 %v4716, %v4718
    %v4720 = vadd.f32 %v4716, %v4719
    %vm4721 = vweird.f32 %v4567
    %vm4722 = vweird.f32 %v4716
    %vm4723 = vmor %vm4721, %vm4722
    %v4724 = vsel %vm4723, %v4716, %v4720
    %v4725 = vand.u32 2147483647, %v4567
    %vm4726 = vcmp.eq.f32.partialorder %v4725, 8.507059e+37
    %v4727 = vand.u32 %v4567, 2147483648
    %v4728 = vor.u32 1.1754944e-38, %v4727
    %v4729 = vsel %vm4726, %v4728, %v4724
    %v4730 = vmul.f32 %v4714, %v4729
    %v4731 = vrcp.pop %v4579
    %v4732 = vmul.f32 %v4579, %v4731
    %v4733 = vsub.f32 1.0, %v4732
    %v4734 = vmul.f32 %v4731, %v4733
    %v4735 = vadd.f32 %v4731, %v4734
    %vm4736 = vweird.f32 %v4579
    %vm4737 = vweird.f32 %v4731
    %vm4738 = vmor %vm4736, %vm4737
    %v4739 = vsel %vm4738, %v4731, %v4735
    %v4740 = vand.u32 2147483647, %v4579
    %vm4741 = vcmp.eq.f32.partialorder %v4740, 8.507059e+37
    %v4742 = vand.u32 %v4579, 2147483648
    %v4743 = vor.u32 1.1754944e-38, %v4742
    %v4744 = vsel %vm4741, %v4743, %v4739
    %v4745 = vmul.f32 %v4715, %v4744
    %v4746 = vmul.f32 %v4730, %v4505
    %v4747 = vmul.f32 %v4745, %v4508
    %4750 = vrot.lane.b32.xlu0 %v4746, 112
    %v4751 = vpop.permute.xlu0 %4750
    %4752 = vrot.lane.b32.xlu0 %v4747, 112
    %v4753 = vpop.permute.xlu0 %4752
    %v4756 = vadd.f32 %v4668, %v4751
    %v4757 = vadd.f32 %v4669, %v4753
    %4760 = vrot.lane.b32.xlu0 %v4712, 112
    %v4761 = vpop.permute.xlu0 %4760
    %4762 = vrot.lane.b32.xlu0 %v4713, 112
    %v4763 = vpop.permute.xlu0 %4762
    %4768 = vrot.lane.b32.xlu0 %v4756, 16
    %v4769 = vpop.permute.xlu0 %4768
    %4770 = vrot.lane.b32.xlu0 %v4757, 16
    %v4771 = vpop.permute.xlu0 %4770
    %v4774 = vsel %vm1061, %v4761, %v4769
    %v4775 = vsel %vm1061, %v4763, %v4771
    %v4777 = vsel %vm110, %v4774, 0
    %v4780 = vsel %vm110, %v4775, 0
    %4782 = vmatpush.msra.mxu0 0.0
    %4783 = vmatpush.msra.mxu0 0.0
    %4784 = vmatpush.msra.mxu0 0.0
    %4785 = vmatpush.msra.mxu0 0.0
    %4786 = vmatpush.msra.mxu0 0.0
    %4787 = vmatpush.msra.mxu0 0.0
    %4788 = vmatpush.msra.mxu0 0.0
    %4789 = vmatpush.msra.mxu0 0.0
    %4790 = vmatpush.msra.mxu0 0.0
    %4791 = vmatpush.msra.mxu0 0.0
    %4792 = vmatpush.msra.mxu0 0.0
    %4793 = vmatpush.msra.mxu0 0.0
    %4794 = vmatpush.msra.mxu0 %v3884
    %4795 = vmatpush.msra.mxu0 %v3883
    %4796 = vmatpush.msra.mxu0 %v3882
    %4797 = vmatpush.msra.mxu0 %v3881
    %4798 = vmatmul.f32.gmra.mxu0 %v4777
    %v4799 = vpop.f32.mrf.mxu0
    %v4800 = vadd.f32 0.0, %v4799
    %4801 = vmatmul.f32.gmra.mxu0 %v4780
    %v4802 = vpop.f32.mrf.mxu0
    %v4803 = vadd.f32 0.0, %v4802
    %4804 = vdwg.mxu0
    %v4805 = vmul.f32 %v4800, %v4456
    %v4806 = vmul.f32 %v4803, %v4457
    %v4807 = vmul.f32 %v4800, %v4461
    %v4808 = vmul.f32 %v4803, %v4463
    %v4809 = vmul.f32 %v4807, %v4440
    %v4810 = vmul.f32 %v4808, %v4455
    %v4811 = vsub.f32 1.0, %v4440
    %v4812 = vsub.f32 1.0, %v4455
    %v4813 = vmul.f32 %v4413, %v4811
    %v4814 = vmul.f32 %v4416, %v4812
    %v4815 = vadd.f32 %v4813, 1.0
    %v4816 = vadd.f32 %v4814, 1.0
    %v4817 = vmul.f32 %v4809, %v4815
    %v4818 = vmul.f32 %v4810, %v4816
    %4821 = vrot.lane.b32.xlu0 %v4805, 32
    %v4822 = vpop.permute.xlu0 %4821
    %4823 = vrot.lane.b32.xlu0 %v4806, 32
    %v4824 = vpop.permute.xlu0 %4823
    %v4827 = vsel %vm110, %v4817, %v4822
    %v4828 = vsel %vm110, %v4818, %v4824
    %v4830 = vsel %vm919, %v4827, 0
    %v4833 = vsel %vm919, %v4828, 0
    %4835 = vmatpush.msra.mxu0 0.0
    %4836 = vmatpush.msra.mxu0 0.0
    %4837 = vmatpush.msra.mxu0 0.0
    %4838 = vmatpush.msra.mxu0 0.0
    %4839 = vmatpush.msra.mxu0 0.0
    %4840 = vmatpush.msra.mxu0 0.0
    %4841 = vmatpush.msra.mxu0 0.0
    %4842 = vmatpush.msra.mxu0 0.0
    %4843 = vmatpush.msra.mxu0 %v3880
    %4844 = vmatpush.msra.mxu0 %v3879
    %4845 = vmatpush.msra.mxu0 %v3878
    %4846 = vmatpush.msra.mxu0 %v3877
    %4847 = vmatpush.msra.mxu0 %v3876
    %4848 = vmatpush.msra.mxu0 %v3875
    %4849 = vmatpush.msra.mxu0 %v3874
    %4850 = vmatpush.msra.mxu0 %v3873
    %4851 = vmatmul.f32.gmra.mxu0 %v4830
    %v4852 = vpop.f32.mrf.mxu0
    %v4853 = vadd.f32 0.0, %v4852
    %4854 = vmatmul.f32.gmra.mxu0 %v4833
    %v4855 = vpop.f32.mrf.mxu0
    %v4856 = vadd.f32 0.0, %v4855
    %4857 = vdwg.mxu0
    %v4859 = vsel %vm110, %v4853, 0
    %v4862 = vsel %vm110, %v4856, 0
    %v4865 = vsel %vm110, %v3905, 0
    %v4868 = vsel %vm110, %v3906, 0
    %v4871 = vsel %vm110, %v3907, 0
    %v4874 = vsel %vm110, %v3908, 0
    %4876 = vmatpush.xpose.msra.mxu0 0.0
    %4877 = vmatpush.xpose.msra.mxu0 0.0
    %4878 = vmatpush.xpose.msra.mxu0 0.0
    %4879 = vmatpush.xpose.msra.mxu0 0.0
    %4880 = vmatpush.xpose.msra.mxu0 0.0
    %4881 = vmatpush.xpose.msra.mxu0 0.0
    %4882 = vmatpush.xpose.msra.mxu0 0.0
    %4883 = vmatpush.xpose.msra.mxu0 0.0
    %4884 = vmatpush.xpose.msra.mxu0 0.0
    %4885 = vmatpush.xpose.msra.mxu0 0.0
    %4886 = vmatpush.xpose.msra.mxu0 0.0
    %4887 = vmatpush.xpose.msra.mxu0 0.0
    %4888 = vmatpush.xpose.msra.mxu0 %v4874
    %4889 = vmatpush.xpose.msra.mxu0 %v4871
    %4890 = vmatpush.xpose.msra.mxu0 %v4868
    %4891 = vmatpush.xpose.msra.mxu0 %v4865
    %4892 = vmatmul.f32.gmra.mxu0 %v4859
    %v4893 = vpop.f32.mrf.mxu0
    %v4894 = vadd.f32 0.0, %v4893
    %4895 = vmatmul.f32.gmra.mxu0 %v4862
    %v4896 = vpop.f32.mrf.mxu0
    %v4897 = vadd.f32 0.0, %v4896
    %4898 = vdwg.mxu0
    %v4900 = vsel %vm110, %v3910, 0
    %v4903 = vsel %vm110, %v3911, 0
    %v4906 = vsel %vm110, %v3912, 0
    %v4909 = vsel %vm110, %v3913, 0
    %4911 = vmatpush.xpose.msra.mxu0 0.0
    %4912 = vmatpush.xpose.msra.mxu0 0.0
    %4913 = vmatpush.xpose.msra.mxu0 0.0
    %4914 = vmatpush.xpose.msra.mxu0 0.0
    %4915 = vmatpush.xpose.msra.mxu0 0.0
    %4916 = vmatpush.xpose.msra.mxu0 0.0
    %4917 = vmatpush.xpose.msra.mxu0 0.0
    %4918 = vmatpush.xpose.msra.mxu0 0.0
    %4919 = vmatpush.xpose.msra.mxu0 0.0
    %4920 = vmatpush.xpose.msra.mxu0 0.0
    %4921 = vmatpush.xpose.msra.mxu0 0.0
    %4922 = vmatpush.xpose.msra.mxu0 0.0
    %4923 = vmatpush.xpose.msra.mxu0 %v4909
    %4924 = vmatpush.xpose.msra.mxu0 %v4906
    %4925 = vmatpush.xpose.msra.mxu0 %v4903
    %4926 = vmatpush.xpose.msra.mxu0 %v4900
    %4927 = vmatmul.f32.gmra.mxu0 %v4859
    %v4928 = vpop.f32.mrf.mxu0
    %v4929 = vadd.f32 0.0, %v4928
    %4930 = vmatmul.f32.gmra.mxu0 %v4862
    %v4931 = vpop.f32.mrf.mxu0
    %v4932 = vadd.f32 0.0, %v4931
    %4933 = vdwg.mxu0
    %4934 = vxpose.xlu0.b32.start [1/16] %v4894, 128
    %4935 = vxpose.xlu0.b32.cont [2/16] %v4897, 128
    %4936 = vxpose.xlu0.b32.cont [3/16] %v4929, 128
    %4937 = vxpose.xlu0.b32.cont [4/16] %v4932, 128
    %4938 = vxpose.xlu0.b32.cont [5/16] 0.0, 128
    %4939 = vxpose.xlu0.b32.cont [6/16] 0.0, 128
    %4940 = vxpose.xlu0.b32.cont [7/16] 0.0, 128
    %4941 = vxpose.xlu0.b32.cont [8/16] 0.0, 128
    %4942 = vxpose.xlu0.b32.cont [9/16] 0.0, 128
    %4943 = vxpose.xlu0.b32.cont [10/16] 0.0, 128
    %4944 = vxpose.xlu0.b32.cont [11/16] 0.0, 128
    %4945 = vxpose.xlu0.b32.cont [12/16] 0.0, 128
    %4946 = vxpose.xlu0.b32.cont [13/16] 0.0, 128
    %4947 = vxpose.xlu0.b32.cont [14/16] 0.0, 128
    %4948 = vxpose.xlu0.b32.cont [15/16] 0.0, 128
    %4949 = vxpose.xlu0.b32.end [16/16] 0.0, 128
    %v4950 = vpop.trf.xlu0
    %v4951 = vpop.trf.xlu0
    %v4952 = vpop.trf.xlu0
    %v4953 = vpop.trf.xlu0
    %v4954 = vpop.trf.xlu0
    %v4955 = vpop.trf.xlu0
    %v4956 = vpop.trf.xlu0
    %v4957 = vpop.trf.xlu0
    %v4958 = vpop.trf.xlu0
    %v4959 = vpop.trf.xlu0
    %v4960 = vpop.trf.xlu0
    %v4961 = vpop.trf.xlu0
    %v4962 = vpop.trf.xlu0
    %v4963 = vpop.trf.xlu0
    %v4964 = vpop.trf.xlu0
    %v4965 = vpop.trf.xlu0
    %v4967 = vsel %vm110, %v4950, 0
    %v4970 = vsel %vm110, %v4951, 0
    %v4973 = vsel %vm110, %v4952, 0
    %v4976 = vsel %vm110, %v4953, 0
    %4978 = vmatpush.msra.mxu0 0.0
    %4979 = vmatpush.msra.mxu0 0.0
    %4980 = vmatpush.msra.mxu0 0.0
    %4981 = vmatpush.msra.mxu0 0.0
    %4982 = vmatpush.msra.mxu0 0.0
    %4983 = vmatpush.msra.mxu0 0.0
    %4984 = vmatpush.msra.mxu0 0.0
    %4985 = vmatpush.msra.mxu0 0.0
    %4986 = vmatpush.msra.mxu0 0.0
    %4987 = vmatpush.msra.mxu0 0.0
    %4988 = vmatpush.msra.mxu0 0.0
    %4989 = vmatpush.msra.mxu0 0.0
    %4990 = vmatpush.msra.mxu0 %v4225
    %4991 = vmatpush.msra.mxu0 %v4224
    %4992 = vmatpush.msra.mxu0 %v4221
    %4993 = vmatpush.msra.mxu0 %v4220
    %4994 = vmatmul.f32.gmra.mxu0 %v4967
    %v4995 = vpop.f32.mrf.mxu0
    %v4996 = vadd.f32 0.0, %v4995
    %4997 = vmatmul.f32.gmra.mxu0 %v4970
    %v4998 = vpop.f32.mrf.mxu0
    %v4999 = vadd.f32 0.0, %v4998
    %5000 = vmatmul.f32.gmra.mxu0 %v4973
    %v5001 = vpop.f32.mrf.mxu0
    %v5002 = vadd.f32 0.0, %v5001
    %5003 = vmatmul.f32.gmra.mxu0 %v4976
    %v5004 = vpop.f32.mrf.mxu0
    %v5005 = vadd.f32 0.0, %v5004
    %5006 = vdwg.mxu0
    %v5007 = vsel %vm110, %v4894, 0.0
    %v5008 = vsel %vm110, %v4897, 0.0
    %v5009 = vadd.f32 %v5007, %v5008
    %v5010 = vsel %vm110, %v4929, 0.0
    %v5011 = vadd.f32 %v5009, %v5010
    %v5012 = vsel %vm110, %v4932, 0.0
    %v5013 = vadd.f32 %v5011, %v5012
    %v5014 = vrot.slane %v5013, 4
    %v5015 = vadd.f32 %v5013, %v5014
    %v5016 = vrot.slane %v5015, 2
    %v5017 = vadd.f32 %v5015, %v5016
    %v5018 = vrot.slane %v5017, 1
    %v5019 = vadd.f32 %v5017, %v5018
    %v5021 = vsel %vm110, %v4894, 0
    %v5024 = vsel %vm110, %v4897, 0
    %v5027 = vsel %vm110, %v4929, 0
    %v5030 = vsel %vm110, %v4932, 0
    %5032 = vmatpush.msra.mxu0 0.0
    %5033 = vmatpush.msra.mxu0 0.0
    %5034 = vmatpush.msra.mxu0 0.0
    %5035 = vmatpush.msra.mxu0 0.0
    %5036 = vmatpush.msra.mxu0 0.0
    %5037 = vmatpush.msra.mxu0 0.0
    %5038 = vmatpush.msra.mxu0 0.0
    %5039 = vmatpush.msra.mxu0 0.0
    %5040 = vmatpush.msra.mxu0 0.0
    %5041 = vmatpush.msra.mxu0 0.0
    %5042 = vmatpush.msra.mxu0 0.0
    %5043 = vmatpush.msra.mxu0 0.0
    %5044 = vmatpush.msra.mxu0 %v3872
    %5045 = vmatpush.msra.mxu0 %v3871
    %5046 = vmatpush.msra.mxu0 %v3870
    %5047 = vmatpush.msra.mxu0 %v3869
    %5048 = vmatmul.f32.gmra.mxu0 %v5021
    %v5049 = vpop.f32.mrf.mxu0
    %v5050 = vadd.f32 0.0, %v5049
    %5051 = vmatmul.f32.gmra.mxu0 %v5024
    %v5052 = vpop.f32.mrf.mxu0
    %v5053 = vadd.f32 0.0, %v5052
    %5054 = vmatmul.f32.gmra.mxu0 %v5027
    %v5055 = vpop.f32.mrf.mxu0
    %v5056 = vadd.f32 0.0, %v5055
    %5057 = vmatmul.f32.gmra.mxu0 %v5030
    %v5058 = vpop.f32.mrf.mxu0
    %v5059 = vadd.f32 0.0, %v5058
    %5060 = vdwg.mxu0
    %v5061 = vmul.f32 %v5050, %v4180
    %v5062 = vmul.f32 %v5053, %v4181
    %v5063 = vmul.f32 %v5056, %v4184
    %v5064 = vmul.f32 %v5059, %v4185
    %v5065 = vmul.f32 %v5050, %v4197
    %v5066 = vmul.f32 %v5053, %v4199
    %v5067 = vmul.f32 %v5056, %v4205
    %v5068 = vmul.f32 %v5059, %v4207
    %v5069 = vmul.f32 %v5065, %v4074
    %v5070 = vmul.f32 %v5066, %v4089
    %v5071 = vmul.f32 %v5067, %v4134
    %v5072 = vmul.f32 %v5068, %v4149
    %v5073 = vsub.f32 1.0, %v4074
    %v5074 = vsub.f32 1.0, %v4089
    %v5075 = vsub.f32 1.0, %v4134
    %v5076 = vsub.f32 1.0, %v4149
    %v5077 = vmul.f32 %v4005, %v5073
    %v5078 = vmul.f32 %v4008, %v5074
    %v5079 = vmul.f32 %v4017, %v5075
    %v5080 = vmul.f32 %v4020, %v5076
    %v5081 = vadd.f32 %v5077, 1.0
    %v5082 = vadd.f32 %v5078, 1.0
    %v5083 = vadd.f32 %v5079, 1.0
    %v5084 = vadd.f32 %v5080, 1.0
    %v5085 = vmul.f32 %v5069, %v5081
    %v5086 = vmul.f32 %v5070, %v5082
    %v5087 = vmul.f32 %v5071, %v5083
    %v5088 = vmul.f32 %v5072, %v5084
    %5093 = vrot.lane.b32.xlu0 %v5061, 64
    %v5094 = vpop.permute.xlu0 %5093
    %5095 = vrot.lane.b32.xlu0 %v5062, 64
    %v5096 = vpop.permute.xlu0 %5095
    %5097 = vrot.lane.b32.xlu0 %v5063, 64
    %v5098 = vpop.permute.xlu0 %5097
    %5099 = vrot.lane.b32.xlu0 %v5064, 64
    %v5100 = vpop.permute.xlu0 %5099
    %v5105 = vsel %vm919, %v5085, %v5094
    %v5106 = vsel %vm919, %v5086, %v5096
    %v5107 = vsel %vm919, %v5087, %v5098
    %v5108 = vsel %vm919, %v5088, %v5100
    %5109 = vxpose.xlu0.b32.start [1/16] %v5105, 128
    %5110 = vxpose.xlu0.b32.cont [2/16] %v5106, 128
    %5111 = vxpose.xlu0.b32.cont [3/16] %v5107, 128
    %5112 = vxpose.xlu0.b32.cont [4/16] %v5108, 128
    %5113 = vxpose.xlu0.b32.cont [5/16] 0.0, 128
    %5114 = vxpose.xlu0.b32.cont [6/16] 0.0, 128
    %5115 = vxpose.xlu0.b32.cont [7/16] 0.0, 128
    %5116 = vxpose.xlu0.b32.cont [8/16] 0.0, 128
    %5117 = vxpose.xlu0.b32.cont [9/16] 0.0, 128
    %5118 = vxpose.xlu0.b32.cont [10/16] 0.0, 128
    %5119 = vxpose.xlu0.b32.cont [11/16] 0.0, 128
    %5120 = vxpose.xlu0.b32.cont [12/16] 0.0, 128
    %5121 = vxpose.xlu0.b32.cont [13/16] 0.0, 128
    %5122 = vxpose.xlu0.b32.cont [14/16] 0.0, 128
    %5123 = vxpose.xlu0.b32.cont [15/16] 0.0, 128
    %5124 = vxpose.xlu0.b32.end [16/16] 0.0, 128
    %v5125 = vpop.trf.xlu0
    %v5126 = vpop.trf.xlu0
    %v5127 = vpop.trf.xlu0
    %v5128 = vpop.trf.xlu0
    %v5129 = vpop.trf.xlu0
    %v5130 = vpop.trf.xlu0
    %v5131 = vpop.trf.xlu0
    %v5132 = vpop.trf.xlu0
    %v5133 = vpop.trf.xlu0
    %v5134 = vpop.trf.xlu0
    %v5135 = vpop.trf.xlu0
    %v5136 = vpop.trf.xlu0
    %v5137 = vpop.trf.xlu0
    %v5138 = vpop.trf.xlu0
    %v5139 = vpop.trf.xlu0
    %v5140 = vpop.trf.xlu0
    %v5142 = vsel %vm110, %v5125, 0
    %v5145 = vsel %vm110, %v5126, 0
    %v5148 = vsel %vm110, %v5127, 0
    %v5151 = vsel %vm110, %v5128, 0
    %v5154 = vsel %vm110, %v5129, 0
    %v5157 = vsel %vm110, %v5130, 0
    %v5160 = vsel %vm110, %v5131, 0
    %v5163 = vsel %vm110, %v5132, 0
    %v5166 = vsel %vm110, %v5133, 0
    %v5169 = vsel %vm110, %v5134, 0
    %v5172 = vsel %vm110, %v5135, 0
    %v5175 = vsel %vm110, %v5136, 0
    %v5178 = vsel %vm110, %v5137, 0
    %v5181 = vsel %vm110, %v5138, 0
    %v5184 = vsel %vm110, %v5139, 0
    %v5187 = vsel %vm110, %v5140, 0
    %5189 = vmatpush.msra.mxu0 0.0
    %5190 = vmatpush.msra.mxu0 0.0
    %5191 = vmatpush.msra.mxu0 0.0
    %5192 = vmatpush.msra.mxu0 0.0
    %5193 = vmatpush.msra.mxu0 0.0
    %5194 = vmatpush.msra.mxu0 0.0
    %5195 = vmatpush.msra.mxu0 0.0
    %5196 = vmatpush.msra.mxu0 0.0
    %5197 = vmatpush.msra.mxu0 0.0
    %5198 = vmatpush.msra.mxu0 0.0
    %5199 = vmatpush.msra.mxu0 0.0
    %5200 = vmatpush.msra.mxu0 0.0
    %5201 = vmatpush.msra.mxu0 %v3850
    %5202 = vmatpush.msra.mxu0 %v3849
    %5203 = vmatpush.msra.mxu0 %v3846
    %5204 = vmatpush.msra.mxu0 %v3845
    %5205 = vmatmul.f32.gmra.mxu0 %v5142
    %v5206 = vpop.f32.mrf.mxu0
    %v5207 = vadd.f32 0.0, %v5206
    %5208 = vmatmul.f32.gmra.mxu0 %v5145
    %v5209 = vpop.f32.mrf.mxu0
    %v5210 = vadd.f32 0.0, %v5209
    %5211 = vmatmul.f32.gmra.mxu0 %v5148
    %v5212 = vpop.f32.mrf.mxu0
    %v5213 = vadd.f32 0.0, %v5212
    %5214 = vmatmul.f32.gmra.mxu0 %v5151
    %v5215 = vpop.f32.mrf.mxu0
    %v5216 = vadd.f32 0.0, %v5215
    %5217 = vmatmul.f32.gmra.mxu0 %v5154
    %v5218 = vpop.f32.mrf.mxu0
    %v5219 = vadd.f32 0.0, %v5218
    %5220 = vmatmul.f32.gmra.mxu0 %v5157
    %v5221 = vpop.f32.mrf.mxu0
    %v5222 = vadd.f32 0.0, %v5221
    %5223 = vmatmul.f32.gmra.mxu0 %v5160
    %v5224 = vpop.f32.mrf.mxu0
    %v5225 = vadd.f32 0.0, %v5224
    %5226 = vmatmul.f32.gmra.mxu0 %v5163
    %v5227 = vpop.f32.mrf.mxu0
    %v5228 = vadd.f32 0.0, %v5227
    %5229 = vmatmul.f32.gmra.mxu0 %v5166
    %v5230 = vpop.f32.mrf.mxu0
    %v5231 = vadd.f32 0.0, %v5230
    %5232 = vmatmul.f32.gmra.mxu0 %v5169
    %v5233 = vpop.f32.mrf.mxu0
    %v5234 = vadd.f32 0.0, %v5233
    %5235 = vmatmul.f32.gmra.mxu0 %v5172
    %v5236 = vpop.f32.mrf.mxu0
    %v5237 = vadd.f32 0.0, %v5236
    %5238 = vmatmul.f32.gmra.mxu0 %v5175
    %v5239 = vpop.f32.mrf.mxu0
    %v5240 = vadd.f32 0.0, %v5239
    %5241 = vmatmul.f32.gmra.mxu0 %v5178
    %v5242 = vpop.f32.mrf.mxu0
    %v5243 = vadd.f32 0.0, %v5242
    %5244 = vmatmul.f32.gmra.mxu0 %v5181
    %v5245 = vpop.f32.mrf.mxu0
    %v5246 = vadd.f32 0.0, %v5245
    %5247 = vmatmul.f32.gmra.mxu0 %v5184
    %v5248 = vpop.f32.mrf.mxu0
    %v5249 = vadd.f32 0.0, %v5248
    %5250 = vmatmul.f32.gmra.mxu0 %v5187
    %v5251 = vpop.f32.mrf.mxu0
    %v5252 = vadd.f32 0.0, %v5251
    %5253 = vdwg.mxu0
    %v5254 = vadd.f32 %v5105, %v5106
    %v5255 = vadd.f32 %v5254, %v5107
    %v5256 = vadd.f32 %v5255, %v5108
    %v5257 = vrot.slane %v5256, 4
    %v5258 = vadd.f32 %v5256, %v5257
    %v5259 = vrot.slane %v5258, 2
    %v5260 = vadd.f32 %v5258, %v5259
    %v5261 = vrot.slane %v5260, 1
    %v5262 = vadd.f32 %v5260, %v5261
    %v5263 = vstv %s93
    %v5264 = vmul.f32 %v5207, %v5263
    %v5265 = vmul.f32 %v5210, %v5263
    %v5266 = vmul.f32 %v5213, %v5263
    %v5267 = vmul.f32 %v5216, %v5263
    %v5268 = vmul.f32 %v5219, %v5263
    %v5269 = vmul.f32 %v5222, %v5263
    %v5270 = vmul.f32 %v5225, %v5263
    %v5271 = vmul.f32 %v5228, %v5263
    %v5272 = vmul.f32 %v5231, %v5263
    %v5273 = vmul.f32 %v5234, %v5263
    %v5274 = vmul.f32 %v5237, %v5263
    %v5275 = vmul.f32 %v5240, %v5263
    %v5276 = vmul.f32 %v5243, %v5263
    %v5277 = vmul.f32 %v5246, %v5263
    %v5278 = vmul.f32 %v5249, %v5263
    %v5279 = vmul.f32 %v5252, %v5263
    %v5280 = vsub.f32 %v3885, %v5264
    %v5281 = vsub.f32 %v3886, %v5265
    %v5282 = vsub.f32 %v3887, %v5266
    %v5283 = vsub.f32 %v3888, %v5267
    %v5284 = vsub.f32 %v3889, %v5268
    %v5285 = vsub.f32 %v3890, %v5269
    %v5286 = vsub.f32 %v3891, %v5270
    %v5287 = vsub.f32 %v3892, %v5271
    %v5288 = vsub.f32 %v3893, %v5272
    %v5289 = vsub.f32 %v3894, %v5273
    %v5290 = vsub.f32 %v3895, %v5274
    %v5291 = vsub.f32 %v3896, %v5275
    %v5292 = vsub.f32 %v3897, %v5276
    %v5293 = vsub.f32 %v3898, %v5277
    %v5294 = vsub.f32 %v3899, %v5278
    %v5295 = vsub.f32 %v3900, %v5279
    %v5296 = vmul.f32 %v5262, %v5263
    %v5297 = vsub.f32 %v86, %v5296
    %v5298 = vmul.f32 %v4996, %v5263
    %v5299 = vmul.f32 %v4999, %v5263
    %v5300 = vmul.f32 %v5002, %v5263
    %v5301 = vmul.f32 %v5005, %v5263
    %v5302 = vsub.f32 %v3901, %v5298
    %v5303 = vsub.f32 %v3902, %v5299
    %v5304 = vsub.f32 %v3903, %v5300
    %v5305 = vsub.f32 %v3904, %v5301
    %v5306 = vmul.f32 %v5019, %v5263
    %v5307 = vsub.f32 %v84, %v5306
    %v5308 = vperm.slane %v5297, 2
    %v5310 = vsel %vm110, %v5280, 0
    %v5313 = vsel %vm110, %v5281, 0
    %v5316 = vsel %vm110, %v5282, 0
    %v5319 = vsel %vm110, %v5283, 0
    %v5322 = vsel %vm110, %v5284, 0
    %v5325 = vsel %vm110, %v5285, 0
    %v5328 = vsel %vm110, %v5286, 0
    %v5331 = vsel %vm110, %v5287, 0
    %v5334 = vsel %vm110, %v5288, 0
    %v5337 = vsel %vm110, %v5289, 0
    %v5340 = vsel %vm110, %v5290, 0
    %v5343 = vsel %vm110, %v5291, 0
    %v5346 = vsel %vm110, %v5292, 0
    %v5349 = vsel %vm110, %v5293, 0
    %v5352 = vsel %vm110, %v5294, 0
    %v5355 = vsel %vm110, %v5295, 0
    %5357 = vmatpush.xpose.msra.mxu0 %v5355
    %5358 = vmatpush.xpose.msra.mxu0 %v5352
    %5359 = vmatpush.xpose.msra.mxu0 %v5349
    %5360 = vmatpush.xpose.msra.mxu0 %v5346
    %5361 = vmatpush.xpose.msra.mxu0 %v5343
    %5362 = vmatpush.xpose.msra.mxu0 %v5340
    %5363 = vmatpush.xpose.msra.mxu0 %v5337
    %5364 = vmatpush.xpose.msra.mxu0 %v5334
    %5365 = vmatpush.xpose.msra.mxu0 %v5331
    %5366 = vmatpush.xpose.msra.mxu0 %v5328
    %5367 = vmatpush.xpose.msra.mxu0 %v5325
    %5368 = vmatpush.xpose.msra.mxu0 %v5322
    %5369 = vmatpush.xpose.msra.mxu0 %v5319
    %5370 = vmatpush.xpose.msra.mxu0 %v5316
    %5371 = vmatpush.xpose.msra.mxu0 %v5313
    %5372 = vmatpush.xpose.msra.mxu0 %v5310
    %5373 = vmatmul.f32.gmra.mxu0 %v3916
    %v5374 = vpop.f32.mrf.mxu0
    %v5375 = vadd.f32 %v5308, %v5374
    %5376 = vmatmul.f32.gmra.mxu0 %v3919
    %v5377 = vpop.f32.mrf.mxu0
    %v5378 = vadd.f32 %v5308, %v5377
    %5379 = vmatmul.f32.gmra.mxu0 %v3928
    %v5380 = vpop.f32.mrf.mxu0
    %v5381 = vadd.f32 %v5308, %v5380
    %5382 = vmatmul.f32.gmra.mxu0 %v3931
    %v5383 = vpop.f32.mrf.mxu0
    %v5384 = vadd.f32 %v5308, %v5383
    %5385 = vdwg.mxu0
    %v5386 = vxor.u32 %v5375, 2147483648
    %v5387 = vxor.u32 %v5378, 2147483648
    %v5388 = vxor.u32 %v5381, 2147483648
    %v5389 = vxor.u32 %v5384, 2147483648
    %v5390 = vmul.f32 %v5386, 1.442695
    %v5391 = vpow.pop %v5390
    %v5392 = vmul.f32 %v5387, 1.442695
    %v5393 = vpow.pop %v5392
    %v5394 = vmul.f32 %v5388, 1.442695
    %v5395 = vpow.pop %v5394
    %v5396 = vmul.f32 %v5389, 1.442695
    %v5397 = vpow.pop %v5396
    %v5398 = vadd.f32 %v5391, 1.0
    %v5399 = vadd.f32 %v5393, 1.0
    %v5400 = vadd.f32 %v5395, 1.0
    %v5401 = vadd.f32 %v5397, 1.0
    %v5402 = vrcp.pop %v5398
    %v5403 = vmul.f32 %v5398, %v5402
    %v5404 = vsub.f32 1.0, %v5403
    %v5405 = vmul.f32 %v5402, %v5404
    %v5406 = vadd.f32 %v5402, %v5405
    %vm5407 = vweird.f32 %v5398
    %vm5408 = vweird.f32 %v5402
    %vm5409 = vmor %vm5407, %vm5408
    %v5410 = vsel %vm5409, %v5402, %v5406
    %v5411 = vand.u32 2147483647, %v5398
    %vm5412 = vcmp.eq.f32.partialorder %v5411, 8.507059e+37
    %v5413 = vand.u32 %v5398, 2147483648
    %v5414 = vor.u32 1.1754944e-38, %v5413
    %v5415 = vsel %vm5412, %v5414, %v5410
    %v5416 = vmul.f32 1.0, %v5415
    %v5417 = vrcp.pop %v5399
    %v5418 = vmul.f32 %v5399, %v5417
    %v5419 = vsub.f32 1.0, %v5418
    %v5420 = vmul.f32 %v5417, %v5419
    %v5421 = vadd.f32 %v5417, %v5420
    %vm5422 = vweird.f32 %v5399
    %vm5423 = vweird.f32 %v5417
    %vm5424 = vmor %vm5422, %vm5423
    %v5425 = vsel %vm5424, %v5417, %v5421
    %v5426 = vand.u32 2147483647, %v5399
    %vm5427 = vcmp.eq.f32.partialorder %v5426, 8.507059e+37
    %v5428 = vand.u32 %v5399, 2147483648
    %v5429 = vor.u32 1.1754944e-38, %v5428
    %v5430 = vsel %vm5427, %v5429, %v5425
    %v5431 = vmul.f32 1.0, %v5430
    %v5432 = vrcp.pop %v5400
    %v5433 = vmul.f32 %v5400, %v5432
    %v5434 = vsub.f32 1.0, %v5433
    %v5435 = vmul.f32 %v5432, %v5434
    %v5436 = vadd.f32 %v5432, %v5435
    %vm5437 = vweird.f32 %v5400
    %vm5438 = vweird.f32 %v5432
    %vm5439 = vmor %vm5437, %vm5438
    %v5440 = vsel %vm5439, %v5432, %v5436
    %v5441 = vand.u32 2147483647, %v5400
    %vm5442 = vcmp.eq.f32.partialorder %v5441, 8.507059e+37
    %v5443 = vand.u32 %v5400, 2147483648
    %v5444 = vor.u32 1.1754944e-38, %v5443
    %v5445 = vsel %vm5442, %v5444, %v5440
    %v5446 = vmul.f32 1.0, %v5445
    %v5447 = vrcp.pop %v5401
    %v5448 = vmul.f32 %v5401, %v5447
    %v5449 = vsub.f32 1.0, %v5448
    %v5450 = vmul.f32 %v5447, %v5449
    %v5451 = vadd.f32 %v5447, %v5450
    %vm5452 = vweird.f32 %v5401
    %vm5453 = vweird.f32 %v5447
    %vm5454 = vmor %vm5452, %vm5453
    %v5455 = vsel %vm5454, %v5447, %v5451
    %v5456 = vand.u32 2147483647, %v5401
    %vm5457 = vcmp.eq.f32.partialorder %v5456, 8.507059e+37
    %v5458 = vand.u32 %v5401, 2147483648
    %v5459 = vor.u32 1.1754944e-38, %v5458
    %v5460 = vsel %vm5457, %v5459, %v5455
    %v5461 = vmul.f32 1.0, %v5460
    %v5462 = vmul.f32 %v5375, %v5416
    %v5463 = vmul.f32 %v5378, %v5431
    %v5464 = vmul.f32 %v5381, %v5446
    %v5465 = vmul.f32 %v5384, %v5461
    %5470 = vrot.lane.b32.xlu0 %v5375, 64
    %v5471 = vpop.permute.xlu0 %5470
    %5472 = vrot.lane.b32.xlu0 %v5378, 64
    %v5473 = vpop.permute.xlu0 %5472
    %5474 = vrot.lane.b32.xlu0 %v5381, 64
    %v5475 = vpop.permute.xlu0 %5474
    %5476 = vrot.lane.b32.xlu0 %v5384, 64
    %v5477 = vpop.permute.xlu0 %5476
    %v5482 = vmul.f32 %v5462, %v5471
    %v5483 = vmul.f32 %v5463, %v5473
    %v5484 = vmul.f32 %v5464, %v5475
    %v5485 = vmul.f32 %v5465, %v5477
    %v5486 = vperm.slane %v5307, 1
    %v5488 = vsel %vm919, %v5482, 0
    %v5491 = vsel %vm919, %v5483, 0
    %v5494 = vsel %vm919, %v5484, 0
    %v5497 = vsel %vm919, %v5485, 0
    %v5500 = vsel %vm919, %v5302, 0
    %v5503 = vsel %vm919, %v5303, 0
    %v5506 = vsel %vm919, %v5304, 0
    %v5509 = vsel %vm919, %v5305, 0
    %5511 = vmatpush.xpose.msra.mxu0 0.0
    %5512 = vmatpush.xpose.msra.mxu0 0.0
    %5513 = vmatpush.xpose.msra.mxu0 0.0
    %5514 = vmatpush.xpose.msra.mxu0 0.0
    %5515 = vmatpush.xpose.msra.mxu0 0.0
    %5516 = vmatpush.xpose.msra.mxu0 0.0
    %5517 = vmatpush.xpose.msra.mxu0 0.0
    %5518 = vmatpush.xpose.msra.mxu0 0.0
    %5519 = vmatpush.xpose.msra.mxu0 0.0
    %5520 = vmatpush.xpose.msra.mxu0 0.0
    %5521 = vmatpush.xpose.msra.mxu0 0.0
    %5522 = vmatpush.xpose.msra.mxu0 0.0
    %5523 = vmatpush.xpose.msra.mxu0 %v5509
    %5524 = vmatpush.xpose.msra.mxu0 %v5506
    %5525 = vmatpush.xpose.msra.mxu0 %v5503
    %5526 = vmatpush.xpose.msra.mxu0 %v5500
    %5527 = vmatmul.f32.gmra.mxu0 %v5488
    %v5528 = vpop.f32.mrf.mxu0
    %v5529 = vadd.f32 %v5486, %v5528
    %5530 = vmatmul.f32.gmra.mxu0 %v5491
    %v5531 = vpop.f32.mrf.mxu0
    %v5532 = vadd.f32 %v5486, %v5531
    %5533 = vmatmul.f32.gmra.mxu0 %v5494
    %v5534 = vpop.f32.mrf.mxu0
    %v5535 = vadd.f32 %v5486, %v5534
    %5536 = vmatmul.f32.gmra.mxu0 %v5497
    %v5537 = vpop.f32.mrf.mxu0
    %v5538 = vadd.f32 %v5486, %v5537
    %5539 = vdwg.mxu0
    %v5541 = vsel %vm110, %v4301, 0
    %v5544 = vsel %vm110, %v4304, 0
    %5546 = vmatpush.msra.mxu0 0.0
    %5547 = vmatpush.msra.mxu0 0.0
    %5548 = vmatpush.msra.mxu0 0.0
    %5549 = vmatpush.msra.mxu0 0.0
    %5550 = vmatpush.msra.mxu0 0.0
    %5551 = vmatpush.msra.mxu0 0.0
    %5552 = vmatpush.msra.mxu0 0.0
    %5553 = vmatpush.msra.mxu0 0.0
    %5554 = vmatpush.msra.mxu0 0.0
    %5555 = vmatpush.msra.mxu0 0.0
    %5556 = vmatpush.msra.mxu0 0.0
    %5557 = vmatpush.msra.mxu0 0.0
    %5558 = vmatpush.msra.mxu0 %v3913
    %5559 = vmatpush.msra.mxu0 %v3912
    %5560 = vmatpush.msra.mxu0 %v3911
    %5561 = vmatpush.msra.mxu0 %v3910
    %5562 = vmatmul.f32.gmra.mxu0 %v5541
    %v5563 = vpop.f32.mrf.mxu0
    %v5564 = vadd.f32 0.0, %v5563
    %5565 = vmatmul.f32.gmra.mxu0 %v5544
    %v5566 = vpop.f32.mrf.mxu0
    %v5567 = vadd.f32 0.0, %v5566
    %5568 = vdwg.mxu0
    %v5570 = vsel %vm110, %v4289, 0
    %v5573 = vsel %vm110, %v4292, 0
    %5575 = vmatpush.msra.mxu0 0.0
    %5576 = vmatpush.msra.mxu0 0.0
    %5577 = vmatpush.msra.mxu0 0.0
    %5578 = vmatpush.msra.mxu0 0.0
    %5579 = vmatpush.msra.mxu0 0.0
    %5580 = vmatpush.msra.mxu0 0.0
    %5581 = vmatpush.msra.mxu0 0.0
    %5582 = vmatpush.msra.mxu0 0.0
    %5583 = vmatpush.msra.mxu0 0.0
    %5584 = vmatpush.msra.mxu0 0.0
    %5585 = vmatpush.msra.mxu0 0.0
    %5586 = vmatpush.msra.mxu0 0.0
    %5587 = vmatpush.msra.mxu0 %v3908
    %5588 = vmatpush.msra.mxu0 %v3907
    %5589 = vmatpush.msra.mxu0 %v3906
    %5590 = vmatpush.msra.mxu0 %v3905
    %5591 = vmatmul.f32.gmra.mxu0 %v5570
    %v5592 = vpop.f32.mrf.mxu0
    %v5593 = vadd.f32 %v5564, %v5592
    %5594 = vmatmul.f32.gmra.mxu0 %v5573
    %v5595 = vpop.f32.mrf.mxu0
    %v5596 = vadd.f32 %v5567, %v5595
    %5597 = vdwg.mxu0
    %v5599 = vsel %vm110, %v5593, 0
    %v5602 = vsel %vm110, %v5596, 0
    %5604 = vmatpush.xpose.msra.mxu0 0.0
    %5605 = vmatpush.xpose.msra.mxu0 0.0
    %5606 = vmatpush.xpose.msra.mxu0 0.0
    %5607 = vmatpush.xpose.msra.mxu0 0.0
    %5608 = vmatpush.xpose.msra.mxu0 0.0
    %5609 = vmatpush.xpose.msra.mxu0 0.0
    %5610 = vmatpush.xpose.msra.mxu0 0.0
    %5611 = vmatpush.xpose.msra.mxu0 0.0
    %5612 = vmatpush.xpose.msra.mxu0 %v4393
    %5613 = vmatpush.xpose.msra.mxu0 %v4390
    %5614 = vmatpush.xpose.msra.mxu0 %v4387
    %5615 = vmatpush.xpose.msra.mxu0 %v4384
    %5616 = vmatpush.xpose.msra.mxu0 %v4381
    %5617 = vmatpush.xpose.msra.mxu0 %v4378
    %5618 = vmatpush.xpose.msra.mxu0 %v4375
    %5619 = vmatpush.xpose.msra.mxu0 %v4372
    %5620 = vmatmul.f32.gmra.mxu0 %v5599
    %v5621 = vpop.f32.mrf.mxu0
    %v5622 = vadd.f32 %v4364, %v5621
    %5623 = vmatmul.f32.gmra.mxu0 %v5602
    %v5624 = vpop.f32.mrf.mxu0
    %v5625 = vadd.f32 %v4364, %v5624
    %5626 = vdwg.mxu0
    %v5627 = vxor.u32 %v5622, 2147483648
    %v5628 = vxor.u32 %v5625, 2147483648
    %v5629 = vmul.f32 %v5627, 1.442695
    %v5630 = vpow.pop %v5629
    %v5631 = vmul.f32 %v5628, 1.442695
    %v5632 = vpow.pop %v5631
    %v5633 = vadd.f32 %v5630, 1.0
    %v5634 = vadd.f32 %v5632, 1.0
    %v5635 = vrcp.pop %v5633
    %v5636 = vmul.f32 %v5633, %v5635
    %v5637 = vsub.f32 1.0, %v5636
    %v5638 = vmul.f32 %v5635, %v5637
    %v5639 = vadd.f32 %v5635, %v5638
    %vm5640 = vweird.f32 %v5633
    %vm5641 = vweird.f32 %v5635
    %vm5642 = vmor %vm5640, %vm5641
    %v5643 = vsel %vm5642, %v5635, %v5639
    %v5644 = vand.u32 2147483647, %v5633
    %vm5645 = vcmp.eq.f32.partialorder %v5644, 8.507059e+37
    %v5646 = vand.u32 %v5633, 2147483648
    %v5647 = vor.u32 1.1754944e-38, %v5646
    %v5648 = vsel %vm5645, %v5647, %v5643
    %v5649 = vmul.f32 1.0, %v5648
    %v5650 = vrcp.pop %v5634
    %v5651 = vmul.f32 %v5634, %v5650
    %v5652 = vsub.f32 1.0, %v5651
    %v5653 = vmul.f32 %v5650, %v5652
    %v5654 = vadd.f32 %v5650, %v5653
    %vm5655 = vweird.f32 %v5634
    %vm5656 = vweird.f32 %v5650
    %vm5657 = vmor %vm5655, %vm5656
    %v5658 = vsel %vm5657, %v5650, %v5654
    %v5659 = vand.u32 2147483647, %v5634
    %vm5660 = vcmp.eq.f32.partialorder %v5659, 8.507059e+37
    %v5661 = vand.u32 %v5634, 2147483648
    %v5662 = vor.u32 1.1754944e-38, %v5661
    %v5663 = vsel %vm5660, %v5662, %v5658
    %v5664 = vmul.f32 1.0, %v5663
    %v5665 = vmul.f32 %v5622, %v5649
    %v5666 = vmul.f32 %v5625, %v5664
    %5669 = vrot.lane.b32.xlu0 %v5622, 96
    %v5670 = vpop.permute.xlu0 %5669
    %5671 = vrot.lane.b32.xlu0 %v5625, 96
    %v5672 = vpop.permute.xlu0 %5671
    %v5675 = vmul.f32 %v5665, %v5670
    %v5676 = vmul.f32 %v5666, %v5672
    %v5678 = vsel %vm110, %v5675, 0
    %v5681 = vsel %vm110, %v5676, 0
    %5683 = vmatpush.xpose.msra.mxu0 0.0
    %5684 = vmatpush.xpose.msra.mxu0 0.0
    %5685 = vmatpush.xpose.msra.mxu0 0.0
    %5686 = vmatpush.xpose.msra.mxu0 0.0
    %5687 = vmatpush.xpose.msra.mxu0 0.0
    %5688 = vmatpush.xpose.msra.mxu0 0.0
    %5689 = vmatpush.xpose.msra.mxu0 0.0
    %5690 = vmatpush.xpose.msra.mxu0 0.0
    %5691 = vmatpush.xpose.msra.mxu0 0.0
    %5692 = vmatpush.xpose.msra.mxu0 0.0
    %5693 = vmatpush.xpose.msra.mxu0 0.0
    %5694 = vmatpush.xpose.msra.mxu0 0.0
    %5695 = vmatpush.xpose.msra.mxu0 %v4485
    %5696 = vmatpush.xpose.msra.mxu0 %v4482
    %5697 = vmatpush.xpose.msra.mxu0 %v4479
    %5698 = vmatpush.xpose.msra.mxu0 %v4476
    %5699 = vmatmul.f32.gmra.mxu0 %v5678
    %v5700 = vpop.f32.mrf.mxu0
    %v5701 = vadd.f32 %v4468, %v5700
    %5702 = vmatmul.f32.gmra.mxu0 %v5681
    %v5703 = vpop.f32.mrf.mxu0
    %v5704 = vadd.f32 %v4468, %v5703
    %5705 = vdwg.mxu0
    %v5706 = vmul.f32 %v5701, %v5701
    %v5707 = vmul.f32 %v5704, %v5704
    %v5708 = vsel %vm1061, %v5706, 0.0
    %5709 = vadd.xlane.f32.xlu0 %v5708
    %v5710 = vpop.xlane.xlu0 %5709
    %v5711 = vsel %vm1061, %v5707, 0.0
    %5712 = vadd.xlane.f32.xlu0 %v5711
    %v5713 = vpop.xlane.xlu0 %5712
    %v5714 = vrsqrt.pop %v5710
    %v5715 = vmul.f32 %v5714, %v5710
    %v5716 = vmul.f32 %v5715, %v5714
    %v5717 = vmul.f32 0.5, %v5716
    %v5718 = vsub.f32 1.5, %v5717
    %v5719 = vmul.f32 %v5714, %v5718
    %v5720 = vmul.f32 %v5710, %v5719
    %vm5721 = vcmp.eq.f32.partialorder %v5710, inf
    %v5722 = vsel %vm5721, %v5710, %v5720
    %vm5723 = vcmp.eq.f32.partialorder %v5710, 0.0
    %v5724 = vand.u32 %v5710, 2147483648
    %v5725 = vsel %vm5723, %v5724, %v5722
    %v5726 = vrsqrt.pop %v5713
    %v5727 = vmul.f32 %v5726, %v5713
    %v5728 = vmul.f32 %v5727, %v5726
    %v5729 = vmul.f32 0.5, %v5728
    %v5730 = vsub.f32 1.5, %v5729
    %v5731 = vmul.f32 %v5726, %v5730
    %v5732 = vmul.f32 %v5713, %v5731
    %vm5733 = vcmp.eq.f32.partialorder %v5713, inf
    %v5734 = vsel %vm5733, %v5713, %v5732
    %vm5735 = vcmp.eq.f32.partialorder %v5713, 0.0
    %v5736 = vand.u32 %v5713, 2147483648
    %v5737 = vsel %vm5735, %v5736, %v5734
    %5740 = vrot.lane.b32.xlu0 %v5706, 112
    %v5741 = vpop.permute.xlu0 %5740
    %5742 = vrot.lane.b32.xlu0 %v5707, 112
    %v5743 = vpop.permute.xlu0 %5742
    %v5746 = vsel %vm1061, %v5741, 0.0
    %5747 = vadd.xlane.f32.xlu0 %v5746
    %v5748 = vpop.xlane.xlu0 %5747
    %v5749 = vsel %vm1061, %v5743, 0.0
    %5750 = vadd.xlane.f32.xlu0 %v5749
    %v5751 = vpop.xlane.xlu0 %5750
    %v5752 = vrsqrt.pop %v5748
    %v5753 = vmul.f32 %v5752, %v5748
    %v5754 = vmul.f32 %v5753, %v5752
    %v5755 = vmul.f32 0.5, %v5754
    %v5756 = vsub.f32 1.5, %v5755
    %v5757 = vmul.f32 %v5752, %v5756
    %v5758 = vmul.f32 %v5748, %v5757
    %vm5759 = vcmp.eq.f32.partialorder %v5748, inf
    %v5760 = vsel %vm5759, %v5748, %v5758
    %vm5761 = vcmp.eq.f32.partialorder %v5748, 0.0
    %v5762 = vand.u32 %v5748, 2147483648
    %v5763 = vsel %vm5761, %v5762, %v5760
    %v5764 = vrsqrt.pop %v5751
    %v5765 = vmul.f32 %v5764, %v5751
    %v5766 = vmul.f32 %v5765, %v5764
    %v5767 = vmul.f32 0.5, %v5766
    %v5768 = vsub.f32 1.5, %v5767
    %v5769 = vmul.f32 %v5764, %v5768
    %v5770 = vmul.f32 %v5751, %v5769
    %vm5771 = vcmp.eq.f32.partialorder %v5751, inf
    %v5772 = vsel %vm5771, %v5751, %v5770
    %vm5773 = vcmp.eq.f32.partialorder %v5751, 0.0
    %v5774 = vand.u32 %v5751, 2147483648
    %v5775 = vsel %vm5773, %v5774, %v5772
    %5778 = vrot.lane.b32.xlu0 %v5701, 112
    %v5779 = vpop.permute.xlu0 %5778
    %5780 = vrot.lane.b32.xlu0 %v5704, 112
    %v5781 = vpop.permute.xlu0 %5780
    %v5784 = vmul.f32 %v5701, %v5779
    %v5785 = vmul.f32 %v5704, %v5781
    %v5786 = vsel %vm1061, %v5784, 0.0
    %5787 = vadd.xlane.f32.xlu0 %v5786
    %v5788 = vpop.xlane.xlu0 %5787
    %v5789 = vsel %vm1061, %v5785, 0.0
    %5790 = vadd.xlane.f32.xlu0 %v5789
    %v5791 = vpop.xlane.xlu0 %5790
    %v5792 = vmul.f32 %v5725, %v5763
    %v5793 = vmul.f32 %v5737, %v5775
    %v5794 = vmax.f32 %v5792, 1e-08
    %v5795 = vmax.f32 %v5793, 1e-08
    %v5796 = vrcp.pop %v5794
    %v5797 = vmul.f32 %v5794, %v5796
    %v5798 = vsub.f32 1.0, %v5797
    %v5799 = vmul.f32 %v5796, %v5798
    %v5800 = vadd.f32 %v5796, %v5799
    %vm5801 = vweird.f32 %v5794
    %vm5802 = vweird.f32 %v5796
    %vm5803 = vmor %vm5801, %vm5802
    %v5804 = vsel %vm5803, %v5796, %v5800
    %v5805 = vand.u32 2147483647, %v5794
    %vm5806 = vcmp.eq.f32.partialorder %v5805, 8.507059e+37
    %v5807 = vand.u32 %v5794, 2147483648
    %v5808 = vor.u32 1.1754944e-38, %v5807
    %v5809 = vsel %vm5806, %v5808, %v5804
    %v5810 = vmul.f32 0.125, %v5809
    %v5811 = vrcp.pop %v5795
    %v5812 = vmul.f32 %v5795, %v5811
    %v5813 = vsub.f32 1.0, %v5812
    %v5814 = vmul.f32 %v5811, %v5813
    %v5815 = vadd.f32 %v5811, %v5814
    %vm5816 = vweird.f32 %v5795
    %vm5817 = vweird.f32 %v5811
    %vm5818 = vmor %vm5816, %vm5817
    %v5819 = vsel %vm5818, %v5811, %v5815
    %v5820 = vand.u32 2147483647, %v5795
    %vm5821 = vcmp.eq.f32.partialorder %v5820, 8.507059e+37
    %v5822 = vand.u32 %v5795, 2147483648
    %v5823 = vor.u32 1.1754944e-38, %v5822
    %v5824 = vsel %vm5821, %v5823, %v5819
    %v5825 = vmul.f32 0.125, %v5824
    %vm5826 = vcmp.gt.f32.partialorder %v5792, 1e-08
    %vm5827 = vcmp.gt.f32.partialorder %v5793, 1e-08
    %v5828 = vmul.f32 %v5788, -0.125
    %v5829 = vmul.f32 %v5791, -0.125
    %v5830 = vmul.f32 %v5794, %v5794
    %v5831 = vmul.f32 %v5795, %v5795
    %v5832 = vrcp.pop %v5830
    %v5833 = vmul.f32 %v5830, %v5832
    %v5834 = vsub.f32 1.0, %v5833
    %v5835 = vmul.f32 %v5832, %v5834
    %v5836 = vadd.f32 %v5832, %v5835
    %vm5837 = vweird.f32 %v5830
    %vm5838 = vweird.f32 %v5832
    %vm5839 = vmor %vm5837, %vm5838
    %v5840 = vsel %vm5839, %v5832, %v5836
    %v5841 = vand.u32 2147483647, %v5830
    %vm5842 = vcmp.eq.f32.partialorder %v5841, 8.507059e+37
    %v5843 = vand.u32 %v5830, 2147483648
    %v5844 = vor.u32 1.1754944e-38, %v5843
    %v5845 = vsel %vm5842, %v5844, %v5840
    %v5846 = vmul.f32 %v5828, %v5845
    %v5847 = vrcp.pop %v5831
    %v5848 = vmul.f32 %v5831, %v5847
    %v5849 = vsub.f32 1.0, %v5848
    %v5850 = vmul.f32 %v5847, %v5849
    %v5851 = vadd.f32 %v5847, %v5850
    %vm5852 = vweird.f32 %v5831
    %vm5853 = vweird.f32 %v5847
    %vm5854 = vmor %vm5852, %vm5853
    %v5855 = vsel %vm5854, %v5847, %v5851
    %v5856 = vand.u32 2147483647, %v5831
    %vm5857 = vcmp.eq.f32.partialorder %v5856, 8.507059e+37
    %v5858 = vand.u32 %v5831, 2147483648
    %v5859 = vor.u32 1.1754944e-38, %v5858
    %v5860 = vsel %vm5857, %v5859, %v5855
    %v5861 = vmul.f32 %v5829, %v5860
    %v5862 = vsel %vm5826, %v5846, 0.0
    %v5863 = vsel %vm5827, %v5861, 0.0
    %v5864 = vmul.f32 %v5810, %v5701
    %v5865 = vmul.f32 %v5825, %v5704
    %v5866 = vmul.f32 %v5862, %v5763
    %v5867 = vmul.f32 %v5863, %v5775
    %v5868 = vrcp.pop %v5725
    %v5869 = vmul.f32 %v5725, %v5868
    %v5870 = vsub.f32 1.0, %v5869
    %v5871 = vmul.f32 %v5868, %v5870
    %v5872 = vadd.f32 %v5868, %v5871
    %vm5873 = vweird.f32 %v5725
    %vm5874 = vweird.f32 %v5868
    %vm5875 = vmor %vm5873, %vm5874
    %v5876 = vsel %vm5875, %v5868, %v5872
    %v5877 = vand.u32 2147483647, %v5725
    %vm5878 = vcmp.eq.f32.partialorder %v5877, 8.507059e+37
    %v5879 = vand.u32 %v5725, 2147483648
    %v5880 = vor.u32 1.1754944e-38, %v5879
    %v5881 = vsel %vm5878, %v5880, %v5876
    %v5882 = vmul.f32 %v5866, %v5881
    %v5883 = vrcp.pop %v5737
    %v5884 = vmul.f32 %v5737, %v5883
    %v5885 = vsub.f32 1.0, %v5884
    %v5886 = vmul.f32 %v5883, %v5885
    %v5887 = vadd.f32 %v5883, %v5886
    %vm5888 = vweird.f32 %v5737
    %vm5889 = vweird.f32 %v5883
    %vm5890 = vmor %vm5888, %vm5889
    %v5891 = vsel %vm5890, %v5883, %v5887
    %v5892 = vand.u32 2147483647, %v5737
    %vm5893 = vcmp.eq.f32.partialorder %v5892, 8.507059e+37
    %v5894 = vand.u32 %v5737, 2147483648
    %v5895 = vor.u32 1.1754944e-38, %v5894
    %v5896 = vsel %vm5893, %v5895, %v5891
    %v5897 = vmul.f32 %v5867, %v5896
    %v5898 = vmul.f32 %v5882, %v5701
    %v5899 = vmul.f32 %v5897, %v5704
    %5902 = vrot.lane.b32.xlu0 %v5898, 16
    %v5903 = vpop.permute.xlu0 %5902
    %5904 = vrot.lane.b32.xlu0 %v5899, 16
    %v5905 = vpop.permute.xlu0 %5904
    %v5908 = vadd.f32 %v5864, %v5903
    %v5909 = vadd.f32 %v5865, %v5905
    %v5910 = vmul.f32 %v5862, %v5725
    %v5911 = vmul.f32 %v5863, %v5737
    %v5912 = vrcp.pop %v5763
    %v5913 = vmul.f32 %v5763, %v5912
    %v5914 = vsub.f32 1.0, %v5913
    %v5915 = vmul.f32 %v5912, %v5914
    %v5916 = vadd.f32 %v5912, %v5915
    %vm5917 = vweird.f32 %v5763
    %vm5918 = vweird.f32 %v5912
    %vm5919 = vmor %vm5917, %vm5918
    %v5920 = vsel %vm5919, %v5912, %v5916
    %v5921 = vand.u32 2147483647, %v5763
    %vm5922 = vcmp.eq.f32.partialorder %v5921, 8.507059e+37
    %v5923 = vand.u32 %v5763, 2147483648
    %v5924 = vor.u32 1.1754944e-38, %v5923
    %v5925 = vsel %vm5922, %v5924, %v5920
    %v5926 = vmul.f32 %v5910, %v5925
    %v5927 = vrcp.pop %v5775
    %v5928 = vmul.f32 %v5775, %v5927
    %v5929 = vsub.f32 1.0, %v5928
    %v5930 = vmul.f32 %v5927, %v5929
    %v5931 = vadd.f32 %v5927, %v5930
    %vm5932 = vweird.f32 %v5775
    %vm5933 = vweird.f32 %v5927
    %vm5934 = vmor %vm5932, %vm5933
    %v5935 = vsel %vm5934, %v5927, %v5931
    %v5936 = vand.u32 2147483647, %v5775
    %vm5937 = vcmp.eq.f32.partialorder %v5936, 8.507059e+37
    %v5938 = vand.u32 %v5775, 2147483648
    %v5939 = vor.u32 1.1754944e-38, %v5938
    %v5940 = vsel %vm5937, %v5939, %v5935
    %v5941 = vmul.f32 %v5911, %v5940
    %v5942 = vmul.f32 %v5926, %v5701
    %v5943 = vmul.f32 %v5941, %v5704
    %5946 = vrot.lane.b32.xlu0 %v5942, 112
    %v5947 = vpop.permute.xlu0 %5946
    %5948 = vrot.lane.b32.xlu0 %v5943, 112
    %v5949 = vpop.permute.xlu0 %5948
    %v5952 = vadd.f32 %v5864, %v5947
    %v5953 = vadd.f32 %v5865, %v5949
    %5956 = vrot.lane.b32.xlu0 %v5908, 112
    %v5957 = vpop.permute.xlu0 %5956
    %5958 = vrot.lane.b32.xlu0 %v5909, 112
    %v5959 = vpop.permute.xlu0 %5958
    %5964 = vrot.lane.b32.xlu0 %v5952, 16
    %v5965 = vpop.permute.xlu0 %5964
    %5966 = vrot.lane.b32.xlu0 %v5953, 16
    %v5967 = vpop.permute.xlu0 %5966
    %v5970 = vsel %vm1061, %v5957, %v5965
    %v5971 = vsel %vm1061, %v5959, %v5967
    %v5973 = vsel %vm110, %v5970, 0
    %v5976 = vsel %vm110, %v5971, 0
    %5978 = vmatpush.msra.mxu0 0.0
    %5979 = vmatpush.msra.mxu0 0.0
    %5980 = vmatpush.msra.mxu0 0.0
    %5981 = vmatpush.msra.mxu0 0.0
    %5982 = vmatpush.msra.mxu0 0.0
    %5983 = vmatpush.msra.mxu0 0.0
    %5984 = vmatpush.msra.mxu0 0.0
    %5985 = vmatpush.msra.mxu0 0.0
    %5986 = vmatpush.msra.mxu0 0.0
    %5987 = vmatpush.msra.mxu0 0.0
    %5988 = vmatpush.msra.mxu0 0.0
    %5989 = vmatpush.msra.mxu0 0.0
    %5990 = vmatpush.msra.mxu0 %v3884
    %5991 = vmatpush.msra.mxu0 %v3883
    %5992 = vmatpush.msra.mxu0 %v3882
    %5993 = vmatpush.msra.mxu0 %v3881
    %5994 = vmatmul.f32.gmra.mxu0 %v5973
    %v5995 = vpop.f32.mrf.mxu0
    %v5996 = vadd.f32 0.0, %v5995
    %5997 = vmatmul.f32.gmra.mxu0 %v5976
    %v5998 = vpop.f32.mrf.mxu0
    %v5999 = vadd.f32 0.0, %v5998
    %6000 = vdwg.mxu0
    %v6001 = vmul.f32 %v5996, %v5665
    %v6002 = vmul.f32 %v5999, %v5666
    %v6003 = vmul.f32 %v5996, %v5670
    %v6004 = vmul.f32 %v5999, %v5672
    %v6005 = vmul.f32 %v6003, %v5649
    %v6006 = vmul.f32 %v6004, %v5664
    %v6007 = vsub.f32 1.0, %v5649
    %v6008 = vsub.f32 1.0, %v5664
    %v6009 = vmul.f32 %v5622, %v6007
    %v6010 = vmul.f32 %v5625, %v6008
    %v6011 = vadd.f32 %v6009, 1.0
    %v6012 = vadd.f32 %v6010, 1.0
    %v6013 = vmul.f32 %v6005, %v6011
    %v6014 = vmul.f32 %v6006, %v6012
    %6017 = vrot.lane.b32.xlu0 %v6001, 32
    %v6018 = vpop.permute.xlu0 %6017
    %6019 = vrot.lane.b32.xlu0 %v6002, 32
    %v6020 = vpop.permute.xlu0 %6019
    %v6023 = vsel %vm110, %v6013, %v6018
    %v6024 = vsel %vm110, %v6014, %v6020
    %v6026 = vsel %vm919, %v6023, 0
    %v6029 = vsel %vm919, %v6024, 0
    %6031 = vmatpush.msra.mxu0 0.0
    %6032 = vmatpush.msra.mxu0 0.0
    %6033 = vmatpush.msra.mxu0 0.0
    %6034 = vmatpush.msra.mxu0 0.0
    %6035 = vmatpush.msra.mxu0 0.0
    %6036 = vmatpush.msra.mxu0 0.0
    %6037 = vmatpush.msra.mxu0 0.0
    %6038 = vmatpush.msra.mxu0 0.0
    %6039 = vmatpush.msra.mxu0 %v3880
    %6040 = vmatpush.msra.mxu0 %v3879
    %6041 = vmatpush.msra.mxu0 %v3878
    %6042 = vmatpush.msra.mxu0 %v3877
    %6043 = vmatpush.msra.mxu0 %v3876
    %6044 = vmatpush.msra.mxu0 %v3875
    %6045 = vmatpush.msra.mxu0 %v3874
    %6046 = vmatpush.msra.mxu0 %v3873
    %6047 = vmatmul.f32.gmra.mxu0 %v6026
    %v6048 = vpop.f32.mrf.mxu0
    %v6049 = vadd.f32 0.0, %v6048
    %6050 = vmatmul.f32.gmra.mxu0 %v6029
    %v6051 = vpop.f32.mrf.mxu0
    %v6052 = vadd.f32 0.0, %v6051
    %6053 = vdwg.mxu0
    %v6055 = vsel %vm110, %v6049, 0
    %v6058 = vsel %vm110, %v6052, 0
    %6060 = vmatpush.xpose.msra.mxu0 0.0
    %6061 = vmatpush.xpose.msra.mxu0 0.0
    %6062 = vmatpush.xpose.msra.mxu0 0.0
    %6063 = vmatpush.xpose.msra.mxu0 0.0
    %6064 = vmatpush.xpose.msra.mxu0 0.0
    %6065 = vmatpush.xpose.msra.mxu0 0.0
    %6066 = vmatpush.xpose.msra.mxu0 0.0
    %6067 = vmatpush.xpose.msra.mxu0 0.0
    %6068 = vmatpush.xpose.msra.mxu0 0.0
    %6069 = vmatpush.xpose.msra.mxu0 0.0
    %6070 = vmatpush.xpose.msra.mxu0 0.0
    %6071 = vmatpush.xpose.msra.mxu0 0.0
    %6072 = vmatpush.xpose.msra.mxu0 %v4874
    %6073 = vmatpush.xpose.msra.mxu0 %v4871
    %6074 = vmatpush.xpose.msra.mxu0 %v4868
    %6075 = vmatpush.xpose.msra.mxu0 %v4865
    %6076 = vmatmul.f32.gmra.mxu0 %v6055
    %v6077 = vpop.f32.mrf.mxu0
    %v6078 = vadd.f32 0.0, %v6077
    %6079 = vmatmul.f32.gmra.mxu0 %v6058
    %v6080 = vpop.f32.mrf.mxu0
    %v6081 = vadd.f32 0.0, %v6080
    %6082 = vdwg.mxu0
    %6083 = vmatpush.xpose.msra.mxu0 0.0
    %6084 = vmatpush.xpose.msra.mxu0 0.0
    %6085 = vmatpush.xpose.msra.mxu0 0.0
    %6086 = vmatpush.xpose.msra.mxu0 0.0
    %6087 = vmatpush.xpose.msra.mxu0 0.0
    %6088 = vmatpush.xpose.msra.mxu0 0.0
    %6089 = vmatpush.xpose.msra.mxu0 0.0
    %6090 = vmatpush.xpose.msra.mxu0 0.0
    %6091 = vmatpush.xpose.msra.mxu0 0.0
    %6092 = vmatpush.xpose.msra.mxu0 0.0
    %6093 = vmatpush.xpose.msra.mxu0 0.0
    %6094 = vmatpush.xpose.msra.mxu0 0.0
    %6095 = vmatpush.xpose.msra.mxu0 %v4909
    %6096 = vmatpush.xpose.msra.mxu0 %v4906
    %6097 = vmatpush.xpose.msra.mxu0 %v4903
    %6098 = vmatpush.xpose.msra.mxu0 %v4900
    %6099 = vmatmul.f32.gmra.mxu0 %v6055
    %v6100 = vpop.f32.mrf.mxu0
    %v6101 = vadd.f32 0.0, %v6100
    %6102 = vmatmul.f32.gmra.mxu0 %v6058
    %v6103 = vpop.f32.mrf.mxu0
    %v6104 = vadd.f32 0.0, %v6103
    %6105 = vdwg.mxu0
    %6106 = vxpose.xlu0.b32.start [1/16] %v6078, 128
    %6107 = vxpose.xlu0.b32.cont [2/16] %v6081, 128
    %6108 = vxpose.xlu0.b32.cont [3/16] %v6101, 128
    %6109 = vxpose.xlu0.b32.cont [4/16] %v6104, 128
    %6110 = vxpose.xlu0.b32.cont [5/16] 0.0, 128
    %6111 = vxpose.xlu0.b32.cont [6/16] 0.0, 128
    %6112 = vxpose.xlu0.b32.cont [7/16] 0.0, 128
    %6113 = vxpose.xlu0.b32.cont [8/16] 0.0, 128
    %6114 = vxpose.xlu0.b32.cont [9/16] 0.0, 128
    %6115 = vxpose.xlu0.b32.cont [10/16] 0.0, 128
    %6116 = vxpose.xlu0.b32.cont [11/16] 0.0, 128
    %6117 = vxpose.xlu0.b32.cont [12/16] 0.0, 128
    %6118 = vxpose.xlu0.b32.cont [13/16] 0.0, 128
    %6119 = vxpose.xlu0.b32.cont [14/16] 0.0, 128
    %6120 = vxpose.xlu0.b32.cont [15/16] 0.0, 128
    %6121 = vxpose.xlu0.b32.end [16/16] 0.0, 128
    %v6122 = vpop.trf.xlu0
    %v6123 = vpop.trf.xlu0
    %v6124 = vpop.trf.xlu0
    %v6125 = vpop.trf.xlu0
    %v6126 = vpop.trf.xlu0
    %v6127 = vpop.trf.xlu0
    %v6128 = vpop.trf.xlu0
    %v6129 = vpop.trf.xlu0
    %v6130 = vpop.trf.xlu0
    %v6131 = vpop.trf.xlu0
    %v6132 = vpop.trf.xlu0
    %v6133 = vpop.trf.xlu0
    %v6134 = vpop.trf.xlu0
    %v6135 = vpop.trf.xlu0
    %v6136 = vpop.trf.xlu0
    %v6137 = vpop.trf.xlu0
    %v6139 = vsel %vm110, %v6122, 0
    %v6142 = vsel %vm110, %v6123, 0
    %v6145 = vsel %vm110, %v6124, 0
    %v6148 = vsel %vm110, %v6125, 0
    %6150 = vmatpush.msra.mxu0 0.0
    %6151 = vmatpush.msra.mxu0 0.0
    %6152 = vmatpush.msra.mxu0 0.0
    %6153 = vmatpush.msra.mxu0 0.0
    %6154 = vmatpush.msra.mxu0 0.0
    %6155 = vmatpush.msra.mxu0 0.0
    %6156 = vmatpush.msra.mxu0 0.0
    %6157 = vmatpush.msra.mxu0 0.0
    %6158 = vmatpush.msra.mxu0 0.0
    %6159 = vmatpush.msra.mxu0 0.0
    %6160 = vmatpush.msra.mxu0 0.0
    %6161 = vmatpush.msra.mxu0 0.0
    %6162 = vmatpush.msra.mxu0 %v4227
    %6163 = vmatpush.msra.mxu0 %v4226
    %6164 = vmatpush.msra.mxu0 %v4223
    %6165 = vmatpush.msra.mxu0 %v4222
    %6166 = vmatmul.f32.gmra.mxu0 %v6139
    %v6167 = vpop.f32.mrf.mxu0
    %v6168 = vadd.f32 0.0, %v6167
    %6169 = vmatmul.f32.gmra.mxu0 %v6142
    %v6170 = vpop.f32.mrf.mxu0
    %v6171 = vadd.f32 0.0, %v6170
    %6172 = vmatmul.f32.gmra.mxu0 %v6145
    %v6173 = vpop.f32.mrf.mxu0
    %v6174 = vadd.f32 0.0, %v6173
    %6175 = vmatmul.f32.gmra.mxu0 %v6148
    %v6176 = vpop.f32.mrf.mxu0
    %v6177 = vadd.f32 0.0, %v6176
    %6178 = vdwg.mxu0
    %v6179 = vsel %vm110, %v6078, 0.0
    %v6180 = vsel %vm110, %v6081, 0.0
    %v6181 = vadd.f32 %v6179, %v6180
    %v6182 = vsel %vm110, %v6101, 0.0
    %v6183 = vadd.f32 %v6181, %v6182
    %v6184 = vsel %vm110, %v6104, 0.0
    %v6185 = vadd.f32 %v6183, %v6184
    %v6186 = vrot.slane %v6185, 4
    %v6187 = vadd.f32 %v6185, %v6186
    %v6188 = vrot.slane %v6187, 2
    %v6189 = vadd.f32 %v6187, %v6188
    %v6190 = vrot.slane %v6189, 1
    %v6191 = vadd.f32 %v6189, %v6190
    %v6193 = vsel %vm110, %v6078, 0
    %v6196 = vsel %vm110, %v6081, 0
    %v6199 = vsel %vm110, %v6101, 0
    %v6202 = vsel %vm110, %v6104, 0
    %6204 = vmatpush.msra.mxu0 0.0
    %6205 = vmatpush.msra.mxu0 0.0
    %6206 = vmatpush.msra.mxu0 0.0
    %6207 = vmatpush.msra.mxu0 0.0
    %6208 = vmatpush.msra.mxu0 0.0
    %6209 = vmatpush.msra.mxu0 0.0
    %6210 = vmatpush.msra.mxu0 0.0
    %6211 = vmatpush.msra.mxu0 0.0
    %6212 = vmatpush.msra.mxu0 0.0
    %6213 = vmatpush.msra.mxu0 0.0
    %6214 = vmatpush.msra.mxu0 0.0
    %6215 = vmatpush.msra.mxu0 0.0
    %6216 = vmatpush.msra.mxu0 %v3872
    %6217 = vmatpush.msra.mxu0 %v3871
    %6218 = vmatpush.msra.mxu0 %v3870
    %6219 = vmatpush.msra.mxu0 %v3869
    %6220 = vmatmul.f32.gmra.mxu0 %v6193
    %v6221 = vpop.f32.mrf.mxu0
    %v6222 = vadd.f32 0.0, %v6221
    %6223 = vmatmul.f32.gmra.mxu0 %v6196
    %v6224 = vpop.f32.mrf.mxu0
    %v6225 = vadd.f32 0.0, %v6224
    %6226 = vmatmul.f32.gmra.mxu0 %v6199
    %v6227 = vpop.f32.mrf.mxu0
    %v6228 = vadd.f32 0.0, %v6227
    %6229 = vmatmul.f32.gmra.mxu0 %v6202
    %v6230 = vpop.f32.mrf.mxu0
    %v6231 = vadd.f32 0.0, %v6230
    %6232 = vdwg.mxu0
    %v6233 = vmul.f32 %v6222, %v4182
    %v6234 = vmul.f32 %v6225, %v4183
    %v6235 = vmul.f32 %v6228, %v4186
    %v6236 = vmul.f32 %v6231, %v4187
    %v6237 = vmul.f32 %v6222, %v4201
    %v6238 = vmul.f32 %v6225, %v4203
    %v6239 = vmul.f32 %v6228, %v4209
    %v6240 = vmul.f32 %v6231, %v4211
    %v6241 = vmul.f32 %v6237, %v4104
    %v6242 = vmul.f32 %v6238, %v4119
    %v6243 = vmul.f32 %v6239, %v4164
    %v6244 = vmul.f32 %v6240, %v4179
    %v6245 = vsub.f32 1.0, %v4104
    %v6246 = vsub.f32 1.0, %v4119
    %v6247 = vsub.f32 1.0, %v4164
    %v6248 = vsub.f32 1.0, %v4179
    %v6249 = vmul.f32 %v4011, %v6245
    %v6250 = vmul.f32 %v4014, %v6246
    %v6251 = vmul.f32 %v4023, %v6247
    %v6252 = vmul.f32 %v4026, %v6248
    %v6253 = vadd.f32 %v6249, 1.0
    %v6254 = vadd.f32 %v6250, 1.0
    %v6255 = vadd.f32 %v6251, 1.0
    %v6256 = vadd.f32 %v6252, 1.0
    %v6257 = vmul.f32 %v6241, %v6253
    %v6258 = vmul.f32 %v6242, %v6254
    %v6259 = vmul.f32 %v6243, %v6255
    %v6260 = vmul.f32 %v6244, %v6256
    %6265 = vrot.lane.b32.xlu0 %v6233, 64
    %v6266 = vpop.permute.xlu0 %6265
    %6267 = vrot.lane.b32.xlu0 %v6234, 64
    %v6268 = vpop.permute.xlu0 %6267
    %6269 = vrot.lane.b32.xlu0 %v6235, 64
    %v6270 = vpop.permute.xlu0 %6269
    %6271 = vrot.lane.b32.xlu0 %v6236, 64
    %v6272 = vpop.permute.xlu0 %6271
    %v6277 = vsel %vm919, %v6257, %v6266
    %v6278 = vsel %vm919, %v6258, %v6268
    %v6279 = vsel %vm919, %v6259, %v6270
    %v6280 = vsel %vm919, %v6260, %v6272
    %6281 = vxpose.xlu0.b32.start [1/16] %v6277, 128
    %6282 = vxpose.xlu0.b32.cont [2/16] %v6278, 128
    %6283 = vxpose.xlu0.b32.cont [3/16] %v6279, 128
    %6284 = vxpose.xlu0.b32.cont [4/16] %v6280, 128
    %6285 = vxpose.xlu0.b32.cont [5/16] 0.0, 128
    %6286 = vxpose.xlu0.b32.cont [6/16] 0.0, 128
    %6287 = vxpose.xlu0.b32.cont [7/16] 0.0, 128
    %6288 = vxpose.xlu0.b32.cont [8/16] 0.0, 128
    %6289 = vxpose.xlu0.b32.cont [9/16] 0.0, 128
    %6290 = vxpose.xlu0.b32.cont [10/16] 0.0, 128
    %6291 = vxpose.xlu0.b32.cont [11/16] 0.0, 128
    %6292 = vxpose.xlu0.b32.cont [12/16] 0.0, 128
    %6293 = vxpose.xlu0.b32.cont [13/16] 0.0, 128
    %6294 = vxpose.xlu0.b32.cont [14/16] 0.0, 128
    %6295 = vxpose.xlu0.b32.cont [15/16] 0.0, 128
    %6296 = vxpose.xlu0.b32.end [16/16] 0.0, 128
    %v6297 = vpop.trf.xlu0
    %v6298 = vpop.trf.xlu0
    %v6299 = vpop.trf.xlu0
    %v6300 = vpop.trf.xlu0
    %v6301 = vpop.trf.xlu0
    %v6302 = vpop.trf.xlu0
    %v6303 = vpop.trf.xlu0
    %v6304 = vpop.trf.xlu0
    %v6305 = vpop.trf.xlu0
    %v6306 = vpop.trf.xlu0
    %v6307 = vpop.trf.xlu0
    %v6308 = vpop.trf.xlu0
    %v6309 = vpop.trf.xlu0
    %v6310 = vpop.trf.xlu0
    %v6311 = vpop.trf.xlu0
    %v6312 = vpop.trf.xlu0
    %v6314 = vsel %vm110, %v6297, 0
    %v6317 = vsel %vm110, %v6298, 0
    %v6320 = vsel %vm110, %v6299, 0
    %v6323 = vsel %vm110, %v6300, 0
    %v6326 = vsel %vm110, %v6301, 0
    %v6329 = vsel %vm110, %v6302, 0
    %v6332 = vsel %vm110, %v6303, 0
    %v6335 = vsel %vm110, %v6304, 0
    %v6338 = vsel %vm110, %v6305, 0
    %v6341 = vsel %vm110, %v6306, 0
    %v6344 = vsel %vm110, %v6307, 0
    %v6347 = vsel %vm110, %v6308, 0
    %v6350 = vsel %vm110, %v6309, 0
    %v6353 = vsel %vm110, %v6310, 0
    %v6356 = vsel %vm110, %v6311, 0
    %v6359 = vsel %vm110, %v6312, 0
    %6361 = vmatpush.msra.mxu0 0.0
    %6362 = vmatpush.msra.mxu0 0.0
    %6363 = vmatpush.msra.mxu0 0.0
    %6364 = vmatpush.msra.mxu0 0.0
    %6365 = vmatpush.msra.mxu0 0.0
    %6366 = vmatpush.msra.mxu0 0.0
    %6367 = vmatpush.msra.mxu0 0.0
    %6368 = vmatpush.msra.mxu0 0.0
    %6369 = vmatpush.msra.mxu0 0.0
    %6370 = vmatpush.msra.mxu0 0.0
    %6371 = vmatpush.msra.mxu0 0.0
    %6372 = vmatpush.msra.mxu0 0.0
    %6373 = vmatpush.msra.mxu0 %v3852
    %6374 = vmatpush.msra.mxu0 %v3851
    %6375 = vmatpush.msra.mxu0 %v3848
    %6376 = vmatpush.msra.mxu0 %v3847
    %6377 = vmatmul.f32.gmra.mxu0 %v6314
    %v6378 = vpop.f32.mrf.mxu0
    %v6379 = vadd.f32 0.0, %v6378
    %6380 = vmatmul.f32.gmra.mxu0 %v6317
    %v6381 = vpop.f32.mrf.mxu0
    %v6382 = vadd.f32 0.0, %v6381
    %6383 = vmatmul.f32.gmra.mxu0 %v6320
    %v6384 = vpop.f32.mrf.mxu0
    %v6385 = vadd.f32 0.0, %v6384
    %6386 = vmatmul.f32.gmra.mxu0 %v6323
    %v6387 = vpop.f32.mrf.mxu0
    %v6388 = vadd.f32 0.0, %v6387
    %6389 = vmatmul.f32.gmra.mxu0 %v6326
    %v6390 = vpop.f32.mrf.mxu0
    %v6391 = vadd.f32 0.0, %v6390
    %6392 = vmatmul.f32.gmra.mxu0 %v6329
    %v6393 = vpop.f32.mrf.mxu0
    %v6394 = vadd.f32 0.0, %v6393
    %6395 = vmatmul.f32.gmra.mxu0 %v6332
    %v6396 = vpop.f32.mrf.mxu0
    %v6397 = vadd.f32 0.0, %v6396
    %6398 = vmatmul.f32.gmra.mxu0 %v6335
    %v6399 = vpop.f32.mrf.mxu0
    %v6400 = vadd.f32 0.0, %v6399
    %6401 = vmatmul.f32.gmra.mxu0 %v6338
    %v6402 = vpop.f32.mrf.mxu0
    %v6403 = vadd.f32 0.0, %v6402
    %6404 = vmatmul.f32.gmra.mxu0 %v6341
    %v6405 = vpop.f32.mrf.mxu0
    %v6406 = vadd.f32 0.0, %v6405
    %6407 = vmatmul.f32.gmra.mxu0 %v6344
    %v6408 = vpop.f32.mrf.mxu0
    %v6409 = vadd.f32 0.0, %v6408
    %6410 = vmatmul.f32.gmra.mxu0 %v6347
    %v6411 = vpop.f32.mrf.mxu0
    %v6412 = vadd.f32 0.0, %v6411
    %6413 = vmatmul.f32.gmra.mxu0 %v6350
    %v6414 = vpop.f32.mrf.mxu0
    %v6415 = vadd.f32 0.0, %v6414
    %6416 = vmatmul.f32.gmra.mxu0 %v6353
    %v6417 = vpop.f32.mrf.mxu0
    %v6418 = vadd.f32 0.0, %v6417
    %6419 = vmatmul.f32.gmra.mxu0 %v6356
    %v6420 = vpop.f32.mrf.mxu0
    %v6421 = vadd.f32 0.0, %v6420
    %6422 = vmatmul.f32.gmra.mxu0 %v6359
    %v6423 = vpop.f32.mrf.mxu0
    %v6424 = vadd.f32 0.0, %v6423
    %6425 = vdwg.mxu0
    %v6426 = vadd.f32 %v6277, %v6278
    %v6427 = vadd.f32 %v6426, %v6279
    %v6428 = vadd.f32 %v6427, %v6280
    %v6429 = vrot.slane %v6428, 4
    %v6430 = vadd.f32 %v6428, %v6429
    %v6431 = vrot.slane %v6430, 2
    %v6432 = vadd.f32 %v6430, %v6431
    %v6433 = vrot.slane %v6432, 1
    %v6434 = vadd.f32 %v6432, %v6433
    %v6435 = vmul.f32 %v6379, %v5263
    %v6436 = vmul.f32 %v6382, %v5263
    %v6437 = vmul.f32 %v6385, %v5263
    %v6438 = vmul.f32 %v6388, %v5263
    %v6439 = vmul.f32 %v6391, %v5263
    %v6440 = vmul.f32 %v6394, %v5263
    %v6441 = vmul.f32 %v6397, %v5263
    %v6442 = vmul.f32 %v6400, %v5263
    %v6443 = vmul.f32 %v6403, %v5263
    %v6444 = vmul.f32 %v6406, %v5263
    %v6445 = vmul.f32 %v6409, %v5263
    %v6446 = vmul.f32 %v6412, %v5263
    %v6447 = vmul.f32 %v6415, %v5263
    %v6448 = vmul.f32 %v6418, %v5263
    %v6449 = vmul.f32 %v6421, %v5263
    %v6450 = vmul.f32 %v6424, %v5263
    %v6451 = vsub.f32 %v3885, %v6435
    %v6452 = vsub.f32 %v3886, %v6436
    %v6453 = vsub.f32 %v3887, %v6437
    %v6454 = vsub.f32 %v3888, %v6438
    %v6455 = vsub.f32 %v3889, %v6439
    %v6456 = vsub.f32 %v3890, %v6440
    %v6457 = vsub.f32 %v3891, %v6441
    %v6458 = vsub.f32 %v3892, %v6442
    %v6459 = vsub.f32 %v3893, %v6443
    %v6460 = vsub.f32 %v3894, %v6444
    %v6461 = vsub.f32 %v3895, %v6445
    %v6462 = vsub.f32 %v3896, %v6446
    %v6463 = vsub.f32 %v3897, %v6447
    %v6464 = vsub.f32 %v3898, %v6448
    %v6465 = vsub.f32 %v3899, %v6449
    %v6466 = vsub.f32 %v3900, %v6450
    %v6467 = vmul.f32 %v6434, %v5263
    %v6468 = vsub.f32 %v86, %v6467
    %v6469 = vmul.f32 %v6168, %v5263
    %v6470 = vmul.f32 %v6171, %v5263
    %v6471 = vmul.f32 %v6174, %v5263
    %v6472 = vmul.f32 %v6177, %v5263
    %v6473 = vsub.f32 %v3901, %v6469
    %v6474 = vsub.f32 %v3902, %v6470
    %v6475 = vsub.f32 %v3903, %v6471
    %v6476 = vsub.f32 %v3904, %v6472
    %v6477 = vmul.f32 %v6191, %v5263
    %v6478 = vsub.f32 %v84, %v6477
    %v6479 = vperm.slane %v6468, 2
    %v6481 = vsel %vm110, %v6451, 0
    %v6484 = vsel %vm110, %v6452, 0
    %v6487 = vsel %vm110, %v6453, 0
    %v6490 = vsel %vm110, %v6454, 0
    %v6493 = vsel %vm110, %v6455, 0
    %v6496 = vsel %vm110, %v6456, 0
    %v6499 = vsel %vm110, %v6457, 0
    %v6502 = vsel %vm110, %v6458, 0
    %v6505 = vsel %vm110, %v6459, 0
    %v6508 = vsel %vm110, %v6460, 0
    %v6511 = vsel %vm110, %v6461, 0
    %v6514 = vsel %vm110, %v6462, 0
    %v6517 = vsel %vm110, %v6463, 0
    %v6520 = vsel %vm110, %v6464, 0
    %v6523 = vsel %vm110, %v6465, 0
    %v6526 = vsel %vm110, %v6466, 0
    %6528 = vmatpush.xpose.msra.mxu0 %v6526
    %6529 = vmatpush.xpose.msra.mxu0 %v6523
    %6530 = vmatpush.xpose.msra.mxu0 %v6520
    %6531 = vmatpush.xpose.msra.mxu0 %v6517
    %6532 = vmatpush.xpose.msra.mxu0 %v6514
    %6533 = vmatpush.xpose.msra.mxu0 %v6511
    %6534 = vmatpush.xpose.msra.mxu0 %v6508
    %6535 = vmatpush.xpose.msra.mxu0 %v6505
    %6536 = vmatpush.xpose.msra.mxu0 %v6502
    %6537 = vmatpush.xpose.msra.mxu0 %v6499
    %6538 = vmatpush.xpose.msra.mxu0 %v6496
    %6539 = vmatpush.xpose.msra.mxu0 %v6493
    %6540 = vmatpush.xpose.msra.mxu0 %v6490
    %6541 = vmatpush.xpose.msra.mxu0 %v6487
    %6542 = vmatpush.xpose.msra.mxu0 %v6484
    %6543 = vmatpush.xpose.msra.mxu0 %v6481
    %6544 = vmatmul.f32.gmra.mxu0 %v3922
    %v6545 = vpop.f32.mrf.mxu0
    %v6546 = vadd.f32 %v6479, %v6545
    %6547 = vmatmul.f32.gmra.mxu0 %v3925
    %v6548 = vpop.f32.mrf.mxu0
    %v6549 = vadd.f32 %v6479, %v6548
    %6550 = vmatmul.f32.gmra.mxu0 %v3934
    %v6551 = vpop.f32.mrf.mxu0
    %v6552 = vadd.f32 %v6479, %v6551
    %6553 = vmatmul.f32.gmra.mxu0 %v3937
    %v6554 = vpop.f32.mrf.mxu0
    %v6555 = vadd.f32 %v6479, %v6554
    %6556 = vdwg.mxu0
    %v6557 = vxor.u32 %v6546, 2147483648
    %v6558 = vxor.u32 %v6549, 2147483648
    %v6559 = vxor.u32 %v6552, 2147483648
    %v6560 = vxor.u32 %v6555, 2147483648
    %v6561 = vmul.f32 %v6557, 1.442695
    %v6562 = vpow.pop %v6561
    %v6563 = vmul.f32 %v6558, 1.442695
    %v6564 = vpow.pop %v6563
    %v6565 = vmul.f32 %v6559, 1.442695
    %v6566 = vpow.pop %v6565
    %v6567 = vmul.f32 %v6560, 1.442695
    %v6568 = vpow.pop %v6567
    %v6569 = vadd.f32 %v6562, 1.0
    %v6570 = vadd.f32 %v6564, 1.0
    %v6571 = vadd.f32 %v6566, 1.0
    %v6572 = vadd.f32 %v6568, 1.0
    %v6573 = vrcp.pop %v6569
    %v6574 = vmul.f32 %v6569, %v6573
    %v6575 = vsub.f32 1.0, %v6574
    %v6576 = vmul.f32 %v6573, %v6575
    %v6577 = vadd.f32 %v6573, %v6576
    %vm6578 = vweird.f32 %v6569
    %vm6579 = vweird.f32 %v6573
    %vm6580 = vmor %vm6578, %vm6579
    %v6581 = vsel %vm6580, %v6573, %v6577
    %v6582 = vand.u32 2147483647, %v6569
    %vm6583 = vcmp.eq.f32.partialorder %v6582, 8.507059e+37
    %v6584 = vand.u32 %v6569, 2147483648
    %v6585 = vor.u32 1.1754944e-38, %v6584
    %v6586 = vsel %vm6583, %v6585, %v6581
    %v6587 = vmul.f32 1.0, %v6586
    %v6588 = vrcp.pop %v6570
    %v6589 = vmul.f32 %v6570, %v6588
    %v6590 = vsub.f32 1.0, %v6589
    %v6591 = vmul.f32 %v6588, %v6590
    %v6592 = vadd.f32 %v6588, %v6591
    %vm6593 = vweird.f32 %v6570
    %vm6594 = vweird.f32 %v6588
    %vm6595 = vmor %vm6593, %vm6594
    %v6596 = vsel %vm6595, %v6588, %v6592
    %v6597 = vand.u32 2147483647, %v6570
    %vm6598 = vcmp.eq.f32.partialorder %v6597, 8.507059e+37
    %v6599 = vand.u32 %v6570, 2147483648
    %v6600 = vor.u32 1.1754944e-38, %v6599
    %v6601 = vsel %vm6598, %v6600, %v6596
    %v6602 = vmul.f32 1.0, %v6601
    %v6603 = vrcp.pop %v6571
    %v6604 = vmul.f32 %v6571, %v6603
    %v6605 = vsub.f32 1.0, %v6604
    %v6606 = vmul.f32 %v6603, %v6605
    %v6607 = vadd.f32 %v6603, %v6606
    %vm6608 = vweird.f32 %v6571
    %vm6609 = vweird.f32 %v6603
    %vm6610 = vmor %vm6608, %vm6609
    %v6611 = vsel %vm6610, %v6603, %v6607
    %v6612 = vand.u32 2147483647, %v6571
    %vm6613 = vcmp.eq.f32.partialorder %v6612, 8.507059e+37
    %v6614 = vand.u32 %v6571, 2147483648
    %v6615 = vor.u32 1.1754944e-38, %v6614
    %v6616 = vsel %vm6613, %v6615, %v6611
    %v6617 = vmul.f32 1.0, %v6616
    %v6618 = vrcp.pop %v6572
    %v6619 = vmul.f32 %v6572, %v6618
    %v6620 = vsub.f32 1.0, %v6619
    %v6621 = vmul.f32 %v6618, %v6620
    %v6622 = vadd.f32 %v6618, %v6621
    %vm6623 = vweird.f32 %v6572
    %vm6624 = vweird.f32 %v6618
    %vm6625 = vmor %vm6623, %vm6624
    %v6626 = vsel %vm6625, %v6618, %v6622
    %v6627 = vand.u32 2147483647, %v6572
    %vm6628 = vcmp.eq.f32.partialorder %v6627, 8.507059e+37
    %v6629 = vand.u32 %v6572, 2147483648
    %v6630 = vor.u32 1.1754944e-38, %v6629
    %v6631 = vsel %vm6628, %v6630, %v6626
    %v6632 = vmul.f32 1.0, %v6631
    %v6633 = vmul.f32 %v6546, %v6587
    %v6634 = vmul.f32 %v6549, %v6602
    %v6635 = vmul.f32 %v6552, %v6617
    %v6636 = vmul.f32 %v6555, %v6632
    %6641 = vrot.lane.b32.xlu0 %v6546, 64
    %v6642 = vpop.permute.xlu0 %6641
    %6643 = vrot.lane.b32.xlu0 %v6549, 64
    %v6644 = vpop.permute.xlu0 %6643
    %6645 = vrot.lane.b32.xlu0 %v6552, 64
    %v6646 = vpop.permute.xlu0 %6645
    %6647 = vrot.lane.b32.xlu0 %v6555, 64
    %v6648 = vpop.permute.xlu0 %6647
    %v6653 = vmul.f32 %v6633, %v6642
    %v6654 = vmul.f32 %v6634, %v6644
    %v6655 = vmul.f32 %v6635, %v6646
    %v6656 = vmul.f32 %v6636, %v6648
    %v6657 = vperm.slane %v6478, 1
    %v6659 = vsel %vm919, %v6653, 0
    %v6662 = vsel %vm919, %v6654, 0
    %v6665 = vsel %vm919, %v6655, 0
    %v6668 = vsel %vm919, %v6656, 0
    %v6671 = vsel %vm919, %v6473, 0
    %v6674 = vsel %vm919, %v6474, 0
    %v6677 = vsel %vm919, %v6475, 0
    %v6680 = vsel %vm919, %v6476, 0
    %6682 = vmatpush.xpose.msra.mxu0 0.0
    %6683 = vmatpush.xpose.msra.mxu0 0.0
    %6684 = vmatpush.xpose.msra.mxu0 0.0
    %6685 = vmatpush.xpose.msra.mxu0 0.0
    %6686 = vmatpush.xpose.msra.mxu0 0.0
    %6687 = vmatpush.xpose.msra.mxu0 0.0
    %6688 = vmatpush.xpose.msra.mxu0 0.0
    %6689 = vmatpush.xpose.msra.mxu0 0.0
    %6690 = vmatpush.xpose.msra.mxu0 0.0
    %6691 = vmatpush.xpose.msra.mxu0 0.0
    %6692 = vmatpush.xpose.msra.mxu0 0.0
    %6693 = vmatpush.xpose.msra.mxu0 0.0
    %6694 = vmatpush.xpose.msra.mxu0 %v6680
    %6695 = vmatpush.xpose.msra.mxu0 %v6677
    %6696 = vmatpush.xpose.msra.mxu0 %v6674
    %6697 = vmatpush.xpose.msra.mxu0 %v6671
    %6698 = vmatmul.f32.gmra.mxu0 %v6659
    %v6699 = vpop.f32.mrf.mxu0
    %v6700 = vadd.f32 %v6657, %v6699
    %6701 = vmatmul.f32.gmra.mxu0 %v6662
    %v6702 = vpop.f32.mrf.mxu0
    %v6703 = vadd.f32 %v6657, %v6702
    %6704 = vmatmul.f32.gmra.mxu0 %v6665
    %v6705 = vpop.f32.mrf.mxu0
    %v6706 = vadd.f32 %v6657, %v6705
    %6707 = vmatmul.f32.gmra.mxu0 %v6668
    %v6708 = vpop.f32.mrf.mxu0
    %v6709 = vadd.f32 %v6657, %v6708
    %6710 = vdwg.mxu0
    %v6711 = vsel %vm110, %v5529, 0.0
    %6712 = vadd.xlane.f32.xlu0 %v6711
    %v6713 = vpop.xlane.xlu0 %6712
    %v6714 = vsel %vm110, %v5532, 0.0
    %6715 = vadd.xlane.f32.xlu0 %v6714
    %v6716 = vpop.xlane.xlu0 %6715
    %v6717 = vsel %vm110, %v6700, 0.0
    %6718 = vadd.xlane.f32.xlu0 %v6717
    %v6719 = vpop.xlane.xlu0 %6718
    %v6720 = vsel %vm110, %v6703, 0.0
    %6721 = vadd.xlane.f32.xlu0 %v6720
    %v6722 = vpop.xlane.xlu0 %6721
    %v6723 = vsel %vm110, %v5535, 0.0
    %6724 = vadd.xlane.f32.xlu0 %v6723
    %v6725 = vpop.xlane.xlu0 %6724
    %v6726 = vsel %vm110, %v5538, 0.0
    %6727 = vadd.xlane.f32.xlu0 %v6726
    %v6728 = vpop.xlane.xlu0 %6727
    %v6729 = vsel %vm110, %v6706, 0.0
    %6730 = vadd.xlane.f32.xlu0 %v6729
    %v6731 = vpop.xlane.xlu0 %6730
    %v6732 = vsel %vm110, %v6709, 0.0
    %6733 = vadd.xlane.f32.xlu0 %v6732
    %v6734 = vpop.xlane.xlu0 %6733
    %v6735 = vmul.f32 %v6713, %v237
    %v6736 = vmul.f32 %v6716, %v237
    %v6737 = vmul.f32 %v6719, %v237
    %v6738 = vmul.f32 %v6722, %v237
    %v6739 = vmul.f32 %v6725, %v237
    %v6740 = vmul.f32 %v6728, %v237
    %v6741 = vmul.f32 %v6731, %v237
    %v6742 = vmul.f32 %v6734, %v237
    %v6743 = vsub.f32 %v5529, %v6735
    %v6744 = vsub.f32 %v5532, %v6736
    %v6745 = vsub.f32 %v6700, %v6737
    %v6746 = vsub.f32 %v6703, %v6738
    %v6747 = vsub.f32 %v5535, %v6739
    %v6748 = vsub.f32 %v5538, %v6740
    %v6749 = vsub.f32 %v6706, %v6741
    %v6750 = vsub.f32 %v6709, %v6742
    %v6751 = vmul.f32 %v6743, %v6743
    %v6752 = vmul.f32 %v6744, %v6744
    %v6753 = vmul.f32 %v6745, %v6745
    %v6754 = vmul.f32 %v6746, %v6746
    %v6755 = vmul.f32 %v6747, %v6747
    %v6756 = vmul.f32 %v6748, %v6748
    %v6757 = vmul.f32 %v6749, %v6749
    %v6758 = vmul.f32 %v6750, %v6750
    %v6759 = vsel %vm110, %v6751, 0.0
    %6760 = vadd.xlane.f32.xlu0 %v6759
    %v6761 = vpop.xlane.xlu0 %6760
    %v6762 = vsel %vm110, %v6752, 0.0
    %6763 = vadd.xlane.f32.xlu0 %v6762
    %v6764 = vpop.xlane.xlu0 %6763
    %v6765 = vsel %vm110, %v6753, 0.0
    %6766 = vadd.xlane.f32.xlu0 %v6765
    %v6767 = vpop.xlane.xlu0 %6766
    %v6768 = vsel %vm110, %v6754, 0.0
    %6769 = vadd.xlane.f32.xlu0 %v6768
    %v6770 = vpop.xlane.xlu0 %6769
    %v6771 = vsel %vm110, %v6755, 0.0
    %6772 = vadd.xlane.f32.xlu0 %v6771
    %v6773 = vpop.xlane.xlu0 %6772
    %v6774 = vsel %vm110, %v6756, 0.0
    %6775 = vadd.xlane.f32.xlu0 %v6774
    %v6776 = vpop.xlane.xlu0 %6775
    %v6777 = vsel %vm110, %v6757, 0.0
    %6778 = vadd.xlane.f32.xlu0 %v6777
    %v6779 = vpop.xlane.xlu0 %6778
    %v6780 = vsel %vm110, %v6758, 0.0
    %6781 = vadd.xlane.f32.xlu0 %v6780
    %v6782 = vpop.xlane.xlu0 %6781
    %v6783 = vmul.f32 %v6761, %v237
    %v6784 = vmul.f32 %v6764, %v237
    %v6785 = vmul.f32 %v6767, %v237
    %v6786 = vmul.f32 %v6770, %v237
    %v6787 = vmul.f32 %v6773, %v237
    %v6788 = vmul.f32 %v6776, %v237
    %v6789 = vmul.f32 %v6779, %v237
    %v6790 = vmul.f32 %v6782, %v237
    %v6791 = vadd.f32 %v6783, 1e-05
    %v6792 = vadd.f32 %v6784, 1e-05
    %v6793 = vadd.f32 %v6785, 1e-05
    %v6794 = vadd.f32 %v6786, 1e-05
    %v6795 = vadd.f32 %v6787, 1e-05
    %v6796 = vadd.f32 %v6788, 1e-05
    %v6797 = vadd.f32 %v6789, 1e-05
    %v6798 = vadd.f32 %v6790, 1e-05
    %v6799 = vrsqrt.pop %v6791
    %v6800 = vmul.f32 %v6799, %v6791
    %v6801 = vmul.f32 %v6800, %v6799
    %v6802 = vmul.f32 0.5, %v6801
    %v6803 = vsub.f32 1.5, %v6802
    %v6804 = vmul.f32 %v6799, %v6803
    %vm6805 = vweird.f32 %v6791
    %vm6806 = vweird.f32 %v6799
    %vm6807 = vmor %vm6805, %vm6806
    %v6808 = vsel %vm6807, %v6799, %v6804
    %v6809 = vrsqrt.pop %v6792
    %v6810 = vmul.f32 %v6809, %v6792
    %v6811 = vmul.f32 %v6810, %v6809
    %v6812 = vmul.f32 0.5, %v6811
    %v6813 = vsub.f32 1.5, %v6812
    %v6814 = vmul.f32 %v6809, %v6813
    %vm6815 = vweird.f32 %v6792
    %vm6816 = vweird.f32 %v6809
    %vm6817 = vmor %vm6815, %vm6816
    %v6818 = vsel %vm6817, %v6809, %v6814
    %v6819 = vrsqrt.pop %v6793
    %v6820 = vmul.f32 %v6819, %v6793
    %v6821 = vmul.f32 %v6820, %v6819
    %v6822 = vmul.f32 0.5, %v6821
    %v6823 = vsub.f32 1.5, %v6822
    %v6824 = vmul.f32 %v6819, %v6823
    %vm6825 = vweird.f32 %v6793
    %vm6826 = vweird.f32 %v6819
    %vm6827 = vmor %vm6825, %vm6826
    %v6828 = vsel %vm6827, %v6819, %v6824
    %v6829 = vrsqrt.pop %v6794
    %v6830 = vmul.f32 %v6829, %v6794
    %v6831 = vmul.f32 %v6830, %v6829
    %v6832 = vmul.f32 0.5, %v6831
    %v6833 = vsub.f32 1.5, %v6832
    %v6834 = vmul.f32 %v6829, %v6833
    %vm6835 = vweird.f32 %v6794
    %vm6836 = vweird.f32 %v6829
    %vm6837 = vmor %vm6835, %vm6836
    %v6838 = vsel %vm6837, %v6829, %v6834
    %v6839 = vrsqrt.pop %v6795
    %v6840 = vmul.f32 %v6839, %v6795
    %v6841 = vmul.f32 %v6840, %v6839
    %v6842 = vmul.f32 0.5, %v6841
    %v6843 = vsub.f32 1.5, %v6842
    %v6844 = vmul.f32 %v6839, %v6843
    %vm6845 = vweird.f32 %v6795
    %vm6846 = vweird.f32 %v6839
    %vm6847 = vmor %vm6845, %vm6846
    %v6848 = vsel %vm6847, %v6839, %v6844
    %v6849 = vrsqrt.pop %v6796
    %v6850 = vmul.f32 %v6849, %v6796
    %v6851 = vmul.f32 %v6850, %v6849
    %v6852 = vmul.f32 0.5, %v6851
    %v6853 = vsub.f32 1.5, %v6852
    %v6854 = vmul.f32 %v6849, %v6853
    %vm6855 = vweird.f32 %v6796
    %vm6856 = vweird.f32 %v6849
    %vm6857 = vmor %vm6855, %vm6856
    %v6858 = vsel %vm6857, %v6849, %v6854
    %v6859 = vrsqrt.pop %v6797
    %v6860 = vmul.f32 %v6859, %v6797
    %v6861 = vmul.f32 %v6860, %v6859
    %v6862 = vmul.f32 0.5, %v6861
    %v6863 = vsub.f32 1.5, %v6862
    %v6864 = vmul.f32 %v6859, %v6863
    %vm6865 = vweird.f32 %v6797
    %vm6866 = vweird.f32 %v6859
    %vm6867 = vmor %vm6865, %vm6866
    %v6868 = vsel %vm6867, %v6859, %v6864
    %v6869 = vrsqrt.pop %v6798
    %v6870 = vmul.f32 %v6869, %v6798
    %v6871 = vmul.f32 %v6870, %v6869
    %v6872 = vmul.f32 0.5, %v6871
    %v6873 = vsub.f32 1.5, %v6872
    %v6874 = vmul.f32 %v6869, %v6873
    %vm6875 = vweird.f32 %v6798
    %vm6876 = vweird.f32 %v6869
    %vm6877 = vmor %vm6875, %vm6876
    %v6878 = vsel %vm6877, %v6869, %v6874
    %v6879 = vmul.f32 %v6743, %v6808
    %v6880 = vmul.f32 %v6744, %v6818
    %v6881 = vmul.f32 %v6745, %v6828
    %v6882 = vmul.f32 %v6746, %v6838
    %v6883 = vmul.f32 %v6747, %v6848
    %v6884 = vmul.f32 %v6748, %v6858
    %v6885 = vmul.f32 %v6749, %v6868
    %v6886 = vmul.f32 %v6750, %v6878
    %v6887 = vperm.slane %v84, 2
    %v6888 = vmul.f32 %v6879, %v6887
    %v6889 = vmul.f32 %v6880, %v6887
    %v6890 = vmul.f32 %v6881, %v6887
    %v6891 = vmul.f32 %v6882, %v6887
    %v6892 = vmul.f32 %v6883, %v6887
    %v6893 = vmul.f32 %v6884, %v6887
    %v6894 = vmul.f32 %v6885, %v6887
    %v6895 = vmul.f32 %v6886, %v6887
    %v6896 = vperm.slane %v84, 3
    %v6897 = vadd.f32 %v6888, %v6896
    %v6898 = vadd.f32 %v6889, %v6896
    %v6899 = vadd.f32 %v6890, %v6896
    %v6900 = vadd.f32 %v6891, %v6896
    %v6901 = vadd.f32 %v6892, %v6896
    %v6902 = vadd.f32 %v6893, %v6896
    %v6903 = vadd.f32 %v6894, %v6896
    %v6904 = vadd.f32 %v6895, %v6896
    %v6905 = vmul.f32 %v6897, 0.5
    %v6906 = vmul.f32 %v6898, 0.5
    %v6907 = vmul.f32 %v6899, 0.5
    %v6908 = vmul.f32 %v6900, 0.5
    %v6909 = vmul.f32 %v6901, 0.5
    %v6910 = vmul.f32 %v6902, 0.5
    %v6911 = vmul.f32 %v6903, 0.5
    %v6912 = vmul.f32 %v6904, 0.5
    %v6913 = vadd.f32 %v6905, %v3651
    %v6914 = vadd.f32 %v6906, %v3652
    %v6915 = vadd.f32 %v6907, %v3653
    %v6916 = vadd.f32 %v6908, %v3654
    %v6917 = vadd.f32 %v6909, %v3655
    %v6918 = vadd.f32 %v6910, %v3656
    %v6919 = vadd.f32 %v6911, %v3657
    %v6920 = vadd.f32 %v6912, %v3658
    %v6921 = vsel %vm110, %v6913, 0.0
    %6922 = vadd.xlane.f32.xlu0 %v6921
    %v6923 = vpop.xlane.xlu0 %6922
    %v6924 = vsel %vm110, %v6914, 0.0
    %6925 = vadd.xlane.f32.xlu0 %v6924
    %v6926 = vpop.xlane.xlu0 %6925
    %v6927 = vsel %vm110, %v6915, 0.0
    %6928 = vadd.xlane.f32.xlu0 %v6927
    %v6929 = vpop.xlane.xlu0 %6928
    %v6930 = vsel %vm110, %v6916, 0.0
    %6931 = vadd.xlane.f32.xlu0 %v6930
    %v6932 = vpop.xlane.xlu0 %6931
    %v6933 = vsel %vm110, %v6917, 0.0
    %6934 = vadd.xlane.f32.xlu0 %v6933
    %v6935 = vpop.xlane.xlu0 %6934
    %v6936 = vsel %vm110, %v6918, 0.0
    %6937 = vadd.xlane.f32.xlu0 %v6936
    %v6938 = vpop.xlane.xlu0 %6937
    %v6939 = vsel %vm110, %v6919, 0.0
    %6940 = vadd.xlane.f32.xlu0 %v6939
    %v6941 = vpop.xlane.xlu0 %6940
    %v6942 = vsel %vm110, %v6920, 0.0
    %6943 = vadd.xlane.f32.xlu0 %v6942
    %v6944 = vpop.xlane.xlu0 %6943
    %v6945 = vmul.f32 %v6923, %v237
    %v6946 = vmul.f32 %v6926, %v237
    %v6947 = vmul.f32 %v6929, %v237
    %v6948 = vmul.f32 %v6932, %v237
    %v6949 = vmul.f32 %v6935, %v237
    %v6950 = vmul.f32 %v6938, %v237
    %v6951 = vmul.f32 %v6941, %v237
    %v6952 = vmul.f32 %v6944, %v237
    %v6953 = vsub.f32 %v6913, %v6945
    %v6954 = vsub.f32 %v6914, %v6946
    %v6955 = vsub.f32 %v6915, %v6947
    %v6956 = vsub.f32 %v6916, %v6948
    %v6957 = vsub.f32 %v6917, %v6949
    %v6958 = vsub.f32 %v6918, %v6950
    %v6959 = vsub.f32 %v6919, %v6951
    %v6960 = vsub.f32 %v6920, %v6952
    %v6961 = vmul.f32 %v6953, %v6953
    %v6962 = vmul.f32 %v6954, %v6954
    %v6963 = vmul.f32 %v6955, %v6955
    %v6964 = vmul.f32 %v6956, %v6956
    %v6965 = vmul.f32 %v6957, %v6957
    %v6966 = vmul.f32 %v6958, %v6958
    %v6967 = vmul.f32 %v6959, %v6959
    %v6968 = vmul.f32 %v6960, %v6960
    %v6969 = vsel %vm110, %v6961, 0.0
    %6970 = vadd.xlane.f32.xlu0 %v6969
    %v6971 = vpop.xlane.xlu0 %6970
    %v6972 = vsel %vm110, %v6962, 0.0
    %6973 = vadd.xlane.f32.xlu0 %v6972
    %v6974 = vpop.xlane.xlu0 %6973
    %v6975 = vsel %vm110, %v6963, 0.0
    %6976 = vadd.xlane.f32.xlu0 %v6975
    %v6977 = vpop.xlane.xlu0 %6976
    %v6978 = vsel %vm110, %v6964, 0.0
    %6979 = vadd.xlane.f32.xlu0 %v6978
    %v6980 = vpop.xlane.xlu0 %6979
    %v6981 = vsel %vm110, %v6965, 0.0
    %6982 = vadd.xlane.f32.xlu0 %v6981
    %v6983 = vpop.xlane.xlu0 %6982
    %v6984 = vsel %vm110, %v6966, 0.0
    %6985 = vadd.xlane.f32.xlu0 %v6984
    %v6986 = vpop.xlane.xlu0 %6985
    %v6987 = vsel %vm110, %v6967, 0.0
    %6988 = vadd.xlane.f32.xlu0 %v6987
    %v6989 = vpop.xlane.xlu0 %6988
    %v6990 = vsel %vm110, %v6968, 0.0
    %6991 = vadd.xlane.f32.xlu0 %v6990
    %v6992 = vpop.xlane.xlu0 %6991
    %v6993 = vmul.f32 %v6971, %v237
    %v6994 = vmul.f32 %v6974, %v237
    %v6995 = vmul.f32 %v6977, %v237
    %v6996 = vmul.f32 %v6980, %v237
    %v6997 = vmul.f32 %v6983, %v237
    %v6998 = vmul.f32 %v6986, %v237
    %v6999 = vmul.f32 %v6989, %v237
    %v7000 = vmul.f32 %v6992, %v237
    %v7001 = vadd.f32 %v6993, 1e-05
    %v7002 = vadd.f32 %v6994, 1e-05
    %v7003 = vadd.f32 %v6995, 1e-05
    %v7004 = vadd.f32 %v6996, 1e-05
    %v7005 = vadd.f32 %v6997, 1e-05
    %v7006 = vadd.f32 %v6998, 1e-05
    %v7007 = vadd.f32 %v6999, 1e-05
    %v7008 = vadd.f32 %v7000, 1e-05
    %v7009 = vrsqrt.pop %v7001
    %v7010 = vmul.f32 %v7009, %v7001
    %v7011 = vmul.f32 %v7010, %v7009
    %v7012 = vmul.f32 0.5, %v7011
    %v7013 = vsub.f32 1.5, %v7012
    %v7014 = vmul.f32 %v7009, %v7013
    %vm7015 = vweird.f32 %v7001
    %vm7016 = vweird.f32 %v7009
    %vm7017 = vmor %vm7015, %vm7016
    %v7018 = vsel %vm7017, %v7009, %v7014
    %v7019 = vrsqrt.pop %v7002
    %v7020 = vmul.f32 %v7019, %v7002
    %v7021 = vmul.f32 %v7020, %v7019
    %v7022 = vmul.f32 0.5, %v7021
    %v7023 = vsub.f32 1.5, %v7022
    %v7024 = vmul.f32 %v7019, %v7023
    %vm7025 = vweird.f32 %v7002
    %vm7026 = vweird.f32 %v7019
    %vm7027 = vmor %vm7025, %vm7026
    %v7028 = vsel %vm7027, %v7019, %v7024
    %v7029 = vrsqrt.pop %v7003
    %v7030 = vmul.f32 %v7029, %v7003
    %v7031 = vmul.f32 %v7030, %v7029
    %v7032 = vmul.f32 0.5, %v7031
    %v7033 = vsub.f32 1.5, %v7032
    %v7034 = vmul.f32 %v7029, %v7033
    %vm7035 = vweird.f32 %v7003
    %vm7036 = vweird.f32 %v7029
    %vm7037 = vmor %vm7035, %vm7036
    %v7038 = vsel %vm7037, %v7029, %v7034
    %v7039 = vrsqrt.pop %v7004
    %v7040 = vmul.f32 %v7039, %v7004
    %v7041 = vmul.f32 %v7040, %v7039
    %v7042 = vmul.f32 0.5, %v7041
    %v7043 = vsub.f32 1.5, %v7042
    %v7044 = vmul.f32 %v7039, %v7043
    %vm7045 = vweird.f32 %v7004
    %vm7046 = vweird.f32 %v7039
    %vm7047 = vmor %vm7045, %vm7046
    %v7048 = vsel %vm7047, %v7039, %v7044
    %v7049 = vrsqrt.pop %v7005
    %v7050 = vmul.f32 %v7049, %v7005
    %v7051 = vmul.f32 %v7050, %v7049
    %v7052 = vmul.f32 0.5, %v7051
    %v7053 = vsub.f32 1.5, %v7052
    %v7054 = vmul.f32 %v7049, %v7053
    %vm7055 = vweird.f32 %v7005
    %vm7056 = vweird.f32 %v7049
    %vm7057 = vmor %vm7055, %vm7056
    %v7058 = vsel %vm7057, %v7049, %v7054
    %v7059 = vrsqrt.pop %v7006
    %v7060 = vmul.f32 %v7059, %v7006
    %v7061 = vmul.f32 %v7060, %v7059
    %v7062 = vmul.f32 0.5, %v7061
    %v7063 = vsub.f32 1.5, %v7062
    %v7064 = vmul.f32 %v7059, %v7063
    %vm7065 = vweird.f32 %v7006
    %vm7066 = vweird.f32 %v7059
    %vm7067 = vmor %vm7065, %vm7066
    %v7068 = vsel %vm7067, %v7059, %v7064
    %v7069 = vrsqrt.pop %v7007
    %v7070 = vmul.f32 %v7069, %v7007
    %v7071 = vmul.f32 %v7070, %v7069
    %v7072 = vmul.f32 0.5, %v7071
    %v7073 = vsub.f32 1.5, %v7072
    %v7074 = vmul.f32 %v7069, %v7073
    %vm7075 = vweird.f32 %v7007
    %vm7076 = vweird.f32 %v7069
    %vm7077 = vmor %vm7075, %vm7076
    %v7078 = vsel %vm7077, %v7069, %v7074
    %v7079 = vrsqrt.pop %v7008
    %v7080 = vmul.f32 %v7079, %v7008
    %v7081 = vmul.f32 %v7080, %v7079
    %v7082 = vmul.f32 0.5, %v7081
    %v7083 = vsub.f32 1.5, %v7082
    %v7084 = vmul.f32 %v7079, %v7083
    %vm7085 = vweird.f32 %v7008
    %vm7086 = vweird.f32 %v7079
    %vm7087 = vmor %vm7085, %vm7086
    %v7088 = vsel %vm7087, %v7079, %v7084
    %v7089 = vmul.f32 %v6953, %v7018
    %v7090 = vmul.f32 %v6954, %v7028
    %v7091 = vmul.f32 %v6955, %v7038
    %v7092 = vmul.f32 %v6956, %v7048
    %v7093 = vmul.f32 %v6957, %v7058
    %v7094 = vmul.f32 %v6958, %v7068
    %v7095 = vmul.f32 %v6959, %v7078
    %v7096 = vmul.f32 %v6960, %v7088
    %v7097 = vperm.slane %v84, 4
    %v7098 = vmul.f32 %v7089, %v7097
    %v7099 = vmul.f32 %v7090, %v7097
    %v7100 = vmul.f32 %v7091, %v7097
    %v7101 = vmul.f32 %v7092, %v7097
    %v7102 = vmul.f32 %v7093, %v7097
    %v7103 = vmul.f32 %v7094, %v7097
    %v7104 = vmul.f32 %v7095, %v7097
    %v7105 = vmul.f32 %v7096, %v7097
    %v7106 = vperm.slane %v84, 5
    %v7107 = vadd.f32 %v7098, %v7106
    %v7108 = vadd.f32 %v7099, %v7106
    %v7109 = vadd.f32 %v7100, %v7106
    %v7110 = vadd.f32 %v7101, %v7106
    %v7111 = vadd.f32 %v7102, %v7106
    %v7112 = vadd.f32 %v7103, %v7106
    %v7113 = vadd.f32 %v7104, %v7106
    %v7114 = vadd.f32 %v7105, %v7106
    %v7115 = vstv %s97
    %v7116 = vmul.f32 %v98, %v7115
    %v7117 = vmul.f32 %v99, %v7115
    %v7118 = vmul.f32 %v100, %v7115
    %v7119 = vmul.f32 %v101, %v7115
    %v7120 = vmul.f32 %v102, %v7115
    %v7121 = vmul.f32 %v103, %v7115
    %v7122 = vmul.f32 %v104, %v7115
    %v7123 = vmul.f32 %v105, %v7115
    %v7124 = vadd.f32 %v7107, %v7116
    %v7125 = vadd.f32 %v7108, %v7117
    %v7126 = vadd.f32 %v7109, %v7118
    %v7127 = vadd.f32 %v7110, %v7119
    %v7128 = vadd.f32 %v7111, %v7120
    %v7129 = vadd.f32 %v7112, %v7121
    %v7130 = vadd.f32 %v7113, %v7122
    %v7131 = vadd.f32 %v7114, %v7123
    %7132 = vst.msk [vmem:[#allocation5] sm:$0xff] %vm110, %v7124
    %7133 = vst.msk [vmem:[#allocation5 + $0x8] sm:$0xff] %vm110, %v7125
    %7134 = vst.msk [vmem:[#allocation5 + $0x10] sm:$0xff] %vm110, %v7126
    %7135 = vst.msk [vmem:[#allocation5 + $0x18] sm:$0xff] %vm110, %v7127
    %7136 = vst.msk [vmem:[#allocation5 + $0x20] sm:$0xff] %vm110, %v7128
    %7137 = vst.msk [vmem:[#allocation5 + $0x28] sm:$0xff] %vm110, %v7129
    %7138 = vst.msk [vmem:[#allocation5 + $0x30] sm:$0xff] %vm110, %v7130
    %7139 = vst.msk [vmem:[#allocation5 + $0x38] sm:$0xff] %vm110, %v7131
    // Predicated region
    $region86: #{conformer_layer_forward.1} parent=1 // pred_check
      _
    $region87: #{conformer_layer_forward.1} parent=1 // pred_check_branch
      %7141 = sbr.rel (0) target = $region89
    $region88: #{conformer_layer_forward.1} parent=1 // pred_region
      %7143 = vsyncadd [#allocation4], 0
      %s7144 = sshll.u32 [#allocation5], 4
      %s7145 = int_to_ptr.vmem [resolvable:$true] %s7144
      %s7146 = sshll.u32 %s20, 4
      %s7147 = int_to_ptr.hbm [resolvable:$true] %s7146
      %7152 = dma.vmem_to_hbm [thread:$0]  %s7145, 1024, %s7147, [#allocation4], 128, 128, 8
    $region89: #{conformer_layer_forward.1} parent=1 // pred_fallthru
      _
    // Predicated region
    $region90: #{conformer_layer_forward.1} parent=1 // pred_check
      _
    $region91: #{conformer_layer_forward.1} parent=1 // pred_check_branch
      %7154 = sbr.rel (0) target = $region93
    $region92: #{conformer_layer_forward.1} parent=1 // pred_region
      _
    $region93: #{conformer_layer_forward.1} parent=1 // pred_fallthru
      _
    // Predicated region
    $region94: #{conformer_layer_forward.1} parent=1 // pred_check
      _
    $region95: #{conformer_layer_forward.1} parent=1 // pred_check_branch
      %7156 = sbr.rel (0) target = $region97
    $region96: #{conformer_layer_forward.1} parent=1 // pred_region
      %7158 = dma.done [#allocation4], 1024
    $region97: #{conformer_layer_forward.1} parent=1 // pred_fallthru
      _
    // Predicated region
    $region98: #{conformer_layer_forward.1} parent=1 // pred_check
      _
    $region99: #{conformer_layer_forward.1} parent=1 // pred_check_branch
      %7160 = sbr.rel (0) target = $region101
    $region100: #{conformer_layer_forward.1} parent=1 // pred_region
      _
    $region101: #{conformer_layer_forward.1} parent=1 // pred_fallthru
      _
    %7161 = vsyncpa [#allocation3], 1
    %7162 = vsyncpa [#allocation4], 1

</llo_original>
